<compile_context>
chip_gen: v7x
topology: tpu7x:2x2x1
jax: 0.10.0
libtpu: 0.0.40
codegen_flags: <defaults>
</compile_context>

<pallas_src>
import jax
import jax.numpy as jnp
from jax.experimental import pallas as pl
from jax.experimental.pallas import tpu as pltpu

HIDDEN = 1280
IN_FEATS = 10
NUM_CLASSES = 7
NUM_BLOCKS = 5
HEAD_PAD = 128          # lane-dense classifier width (sliced back to 7)
BN_EPS = 1e-5


# ----------------------------------------------------------------------------
# Fully fused kernel: stem (block 0) -> 5 residual blocks -> classifier head.
# grid=(NUM_BLOCKS,).  Each step i:
#   (i == 0)  h = relu(x @ Ws + bs)                         # stem, fused
#   t = (h_bf16 @ dequant(Wg_i)) ; s = relu(A_hat @ t + bg)
#   y = relu(s_bf16 @ dequant(Wl_i) + bl) + h               # residual
#   h = BN(y)                                               # eval-mode scale/shift
#   logits = h_bf16 @ Wo + bo   (written every step; last step wins)
# ----------------------------------------------------------------------------
def _gcn_fused_kernel(x_ref, a_ref, stem_w_ref, stem_b_ref,
                      wg_ref, wl_ref, vec_ref,
                      head_w_ref, head_b_ref,
                      out_ref, h_acc):
    blk = pl.program_id(0)

    # Fused stem (replaces a separate pallas_call).
    @pl.when(blk == 0)
    def _():
        h0 = jnp.dot(x_ref[...], stem_w_ref[...],
                     preferred_element_type=jnp.float32) + stem_b_ref[...]
        h_acc[...] = jnp.maximum(h0, 0.0)

    h = h_acc[...]                                   # (N, H) f32 carry

    vecs = vec_ref[0]                                # (6, H) f32 slab
    bg, bl = vecs[0:1], vecs[1:2]
    bn_sc, bn_sh = vecs[2:3], vecs[3:4]
    wg_sc, wl_sc = vecs[4:5], vecs[5:6]

    # Weight-only int8: cast to bf16 for the MXU (VPU work, hides under DMA);
    # fold the per-output-channel scale into the matmul output.
    wg = wg_ref[0].astype(jnp.bfloat16)              # (H, H)
    wl = wl_ref[0].astype(jnp.bfloat16)              # (H, H)

    # GCNConv: linear (no bias) -> symmetric-normalized aggregation -> bias.
    t = jnp.dot(h.astype(jnp.bfloat16), wg,
                preferred_element_type=jnp.float32) * wg_sc
    s = jnp.dot(a_ref[...], t, preferred_element_type=jnp.float32) + bg
    s = jnp.maximum(s, 0.0)                          # ReLU

    # Block Linear -> ReLU -> residual add.
    y = jnp.dot(s.astype(jnp.bfloat16), wl,
                preferred_element_type=jnp.float32) * wl_sc + bl
    y = jnp.maximum(y, 0.0) + h

    # BatchNorm1d (eval-mode scale/shift); Dropout is identity in inference.
    h_new = y * bn_sc + bn_sh
    h_acc[...] = h_new

    # Fused, lane-dense classifier head; written unconditionally every step.
    logits = jnp.dot(h_new.astype(jnp.bfloat16), head_w_ref[...],
                     preferred_element_type=jnp.float32) + head_b_ref[...]
    out_ref[...] = logits.astype(out_ref.dtype)


@jax.jit
def gcn_forward(x, a_hat, params):
    n = x.shape[0]
    out = pl.pallas_call(
        _gcn_fused_kernel,
        out_shape=jax.ShapeDtypeStruct((n, HEAD_PAD), jnp.float32),
        grid_spec=pltpu.PrefetchScalarGridSpec(
            num_scalar_prefetch=0,
            grid=(NUM_BLOCKS,),
            in_specs=[
                pl.BlockSpec((n, IN_FEATS), lambda i: (0, 0)),        # x (once)
                pl.BlockSpec((n, n), lambda i: (0, 0)),               # A_hat (once)
                pl.BlockSpec((IN_FEATS, HIDDEN), lambda i: (0, 0)),   # stem W (once)
                pl.BlockSpec((1, HIDDEN), lambda i: (0, 0)),          # stem b (once)
                pl.BlockSpec((1, HIDDEN, HIDDEN), lambda i: (i, 0, 0)),  # Wg int8 stream
                pl.BlockSpec((1, HIDDEN, HIDDEN), lambda i: (i, 0, 0)),  # Wl int8 stream
                pl.BlockSpec((1, 6, HIDDEN), lambda i: (i, 0, 0)),    # packed per-block vecs
                pl.BlockSpec((HIDDEN, HEAD_PAD), lambda i: (0, 0)),   # head W (once, bf16)
                pl.BlockSpec((1, HEAD_PAD), lambda i: (0, 0)),        # head b (once)
            ],
            out_specs=pl.BlockSpec((n, HEAD_PAD), lambda i: (0, 0)),
            scratch_shapes=[pltpu.VMEM((n, HIDDEN), jnp.float32)],    # activation carry
        ),
        compiler_params=pltpu.CompilerParams(
            dimension_semantics=("arbitrary",),       # sequential recurrence over blocks
            vmem_limit_bytes=40 * 1024 * 1024),       # weights dbl-buffered + bf16 dequant temps
    )(x, a_hat, params["stem_w"], params["stem_b"],
      params["wg_q"], params["wl_q"], params["vec"],
      params["head_w"], params["head_b"])
    return out[:, :NUM_CLASSES]


# ----------------------------------------------------------------------------
# Graph preprocessing glue (host JAX, not per-forward hot path)
# ----------------------------------------------------------------------------
def gcn_norm_dense(edge_index, num_nodes):
    """Dense symmetric-normalized adjacency matching GCNConv's gcn_norm."""
    src, dst = edge_index[0], edge_index[1]
    w = (src != dst).astype(jnp.float32)           # drop explicit self loops
    a = jnp.zeros((num_nodes, num_nodes), jnp.float32)
    a = a.at[dst, src].add(w)                      # message: source -> target
    a = a + jnp.eye(num_nodes, dtype=jnp.float32)  # add self loops
    deg = a.sum(axis=1)
    dinv = jax.lax.rsqrt(deg)
    return a * dinv[:, None] * dinv[None, :]


# ----------------------------------------------------------------------------
# Deterministic parameter init (synthetic; shapes follow the torch module)
# ----------------------------------------------------------------------------
def _quantize_per_out_channel(w):
    """Weight-only int8 quantization with per-output-channel f32 scales."""
    amax = jnp.max(jnp.abs(w), axis=0)
    scale = jnp.maximum(amax, 1e-12) / 127.0
    wq = jnp.clip(jnp.round(w / scale), -127.0, 127.0).astype(jnp.int8)
    return wq, scale


def init_params(key):
    def dense(k, fin, fout):
        bound = 1.0 / jnp.sqrt(jnp.float32(fin))
        kw, kb = jax.random.split(k)
        w = jax.random.uniform(kw, (fin, fout), jnp.float32, -bound, bound)
        b = jax.random.uniform(kb, (fout,), jnp.float32, -bound, bound)
        return w, b

    keys = jax.random.split(key, 12)
    stem_w, stem_b = dense(keys[0], IN_FEATS, HIDDEN)

    # BatchNorm1d eval-mode with default stats: gamma=1, beta=0, mean=0, var=1
    bn_scale = jnp.ones((HIDDEN,), jnp.float32) / jnp.sqrt(1.0 + BN_EPS)
    bn_shift = jnp.zeros((HIDDEN,), jnp.float32)

    wg_q, wl_q, vec = [], [], []
    for i in range(NUM_BLOCKS):
        wg, bg = dense(keys[1 + 2 * i], HIDDEN, HIDDEN)   # GCNConv weight/bias
        wl, bl = dense(keys[2 + 2 * i], HIDDEN, HIDDEN)   # block Linear weight/bias
        wgq, wgs = _quantize_per_out_channel(wg)
        wlq, wls = _quantize_per_out_channel(wl)
        wg_q.append(wgq)
        wl_q.append(wlq)
        # Packed per-block vector slab: [bg, bl, bn_scale, bn_shift, wg_scale, wl_scale]
        vec.append(jnp.stack([bg, bl, bn_scale, bn_shift, wgs, wls]))   # (6, H)

    out_w, out_b = dense(keys[11], HIDDEN, NUM_CLASSES)
    head_w = jnp.zeros((HIDDEN, HEAD_PAD), jnp.float32).at[:, :NUM_CLASSES].set(out_w)
    head_b = jnp.zeros((1, HEAD_PAD), jnp.float32).at[0, :NUM_CLASSES].set(out_b)

    return dict(
        stem_w=stem_w,                               # (10, H) f32
        stem_b=stem_b.reshape(1, HIDDEN),            # (1, H) f32
        wg_q=jnp.stack(wg_q),                        # (5, H, H) int8
        wl_q=jnp.stack(wl_q),                        # (5, H, H) int8
        vec=jnp.stack(vec),                          # (5, 6, H) f32
        head_w=head_w.astype(jnp.bfloat16),          # (H, 128) bf16 lane-dense pad
        head_b=head_b,                               # (1, 128) f32
    )


# ----------------------------------------------------------------------------
# Pure-JAX reference (mirrors the int8 weight quantization and bf16 activation
# casts so the only Pallas-vs-reference differences are accumulation order).
# Note: int8/bf16 storage changes numerics vs an f32 torch checkpoint; the
# self-test validates the kernel against this quantization-aware reference.
# ----------------------------------------------------------------------------
def reference_forward(x, a_hat, params):
    hi = jax.lax.Precision.HIGHEST
    h = jnp.maximum(jnp.dot(x, params["stem_w"], precision=hi)
                    + params["stem_b"][0], 0.0)
    for i in range(NUM_BLOCKS):
        wg = params["wg_q"][i].astype(jnp.float32)
        wl = params["wl_q"][i].astype(jnp.float32)
        v = params["vec"][i]
        bg, bl, bn_sc, bn_sh, wg_sc, wl_sc = (v[0], v[1], v[2], v[3], v[4], v[5])
        hb = h.astype(jnp.bfloat16).astype(jnp.float32)
        t = jnp.dot(hb, wg, precision=hi) * wg_sc
        s = jnp.maximum(jnp.dot(a_hat, t, precision=hi) + bg, 0.0)
        sb = s.astype(jnp.bfloat16).astype(jnp.float32)
        y = jnp.maximum(jnp.dot(sb, wl, precision=hi) * wl_sc + bl, 0.0) + h
        h = y * bn_sc + bn_sh
    hb = h.astype(jnp.bfloat16).astype(jnp.float32)
    logits = jnp.dot(hb, params["head_w"].astype(jnp.float32), precision=hi) \
        + params["head_b"][0]
    return logits[:, :NUM_CLASSES]


if __name__ == "__main__":
    key = jax.random.PRNGKey(0)
    kx, ks, kd, kp = jax.random.split(key, 4)

    N, E = 16, 48                                   # small synthetic graph
    x = jax.random.normal(kx, (N, IN_FEATS), jnp.float32)
    src = jax.random.randint(ks, (E,), 0, N)
    dst = jax.random.randint(kd, (E,), 0, N)
    edge_index = jnp.stack([src, dst]).astype(jnp.int32)

    a_hat = gcn_norm_dense(edge_index, N)
    params = init_params(kp)

    out = jax.block_until_ready(gcn_forward(x, a_hat, params))
    assert out.shape == (N, NUM_CLASSES), out.shape

    ref = reference_forward(x, a_hat, params)
    if not jnp.allclose(out, ref, atol=2e-2, rtol=2e-2):
        max_err = jnp.max(jnp.abs(out - ref))
        raise AssertionError(
            f"Pallas output mismatches pure-JAX reference (max abs err {max_err})")

    print("KERNEL_OK")
</pallas_src>

<mosaic_0001>
module attributes {stable_mosaic.version = 11 : i64} {
  func.func @_gcn_fused_kernel(%arg0: i32, %arg1: memref<16x10xf32, #tpu.memory_space<vmem>>, %arg2: memref<16x16xf32, #tpu.memory_space<vmem>>, %arg3: memref<10x1280xf32, #tpu.memory_space<vmem>>, %arg4: memref<1x1280xf32, #tpu.memory_space<vmem>>, %arg5: memref<1x1280x1280xi8, #tpu.memory_space<vmem>>, %arg6: memref<1x1280x1280xi8, #tpu.memory_space<vmem>>, %arg7: memref<1x6x1280xf32, #tpu.memory_space<vmem>>, %arg8: memref<1280x128xbf16, #tpu.memory_space<vmem>>, %arg9: memref<1x128xf32, #tpu.memory_space<vmem>>, %arg10: memref<16x128xf32, #tpu.memory_space<vmem>>, %arg11: memref<16x1280xf32, #tpu.memory_space<vmem>>) attributes {dimension_semantics = [#tpu.dimension_semantics<arbitrary>], iteration_bounds = array<i64: 5>, scalar_prefetch = 0 : i64, scratch_operands = 1 : i64, tpu.core_type = #tpu.core_type<tc>, window_params = [{pipeline_mode = #tpu.pipeline_mode<synchronous>, transform_indices = @transform_0, window_bounds = array<i64: 16, 10>}, {pipeline_mode = #tpu.pipeline_mode<synchronous>, transform_indices = @transform_1, window_bounds = array<i64: 16, 16>}, {pipeline_mode = #tpu.pipeline_mode<synchronous>, transform_indices = @transform_2, window_bounds = array<i64: 10, 1280>}, {pipeline_mode = #tpu.pipeline_mode<synchronous>, transform_indices = @transform_3, window_bounds = array<i64: 1, 1280>}, {transform_indices = @transform_4, window_bounds = array<i64: 1, 1280, 1280>}, {transform_indices = @transform_5, window_bounds = array<i64: 1, 1280, 1280>}, {transform_indices = @transform_6, window_bounds = array<i64: 1, 6, 1280>}, {pipeline_mode = #tpu.pipeline_mode<synchronous>, transform_indices = @transform_7, window_bounds = array<i64: 1280, 128>}, {pipeline_mode = #tpu.pipeline_mode<synchronous>, transform_indices = @transform_8, window_bounds = array<i64: 1, 128>}, {pipeline_mode = #tpu.pipeline_mode<synchronous>, transform_indices = @transform_9, window_bounds = array<i64: 16, 128>}]} {
    %c0_i32 = arith.constant 0 : i32
    %0 = arith.cmpi eq, %arg0, %c0_i32 : i32
    %1 = arith.extui %0 : i1 to i32
    %c0_i32_0 = arith.constant 0 : i32
    %2 = arith.cmpi ne, %1, %c0_i32_0 : i32
    scf.if %2 {
      %c0_26 = arith.constant 0 : index
      %c0_27 = arith.constant 0 : index
      %49 = vector.load %arg1[%c0_26, %c0_27] : memref<16x10xf32, #tpu.memory_space<vmem>>, vector<16x10xf32>
      %c0_28 = arith.constant 0 : index
      %c0_29 = arith.constant 0 : index
      %50 = vector.load %arg3[%c0_28, %c0_29] : memref<10x1280xf32, #tpu.memory_space<vmem>>, vector<10x1280xf32>
      %cst_30 = arith.constant dense<0.000000e+00> : vector<16x1280xf32>
      %51 = tpu.matmul %49, %50, %cst_30 {dimension_numbers = #tpu.dot_dimension_numbers<[1], [0], [0], [1], [0, 0, 1, 1], [], []>} : vector<16x10xf32>, vector<10x1280xf32>, vector<16x1280xf32> -> vector<16x1280xf32>
      %c0_31 = arith.constant 0 : index
      %c0_32 = arith.constant 0 : index
      %52 = vector.load %arg4[%c0_31, %c0_32] : memref<1x1280xf32, #tpu.memory_space<vmem>>, vector<1x1280xf32>
      %53 = vector.broadcast %52 : vector<1x1280xf32> to vector<16x1280xf32>
      %54 = arith.addf %51, %53 : vector<16x1280xf32>
      %cst_33 = arith.constant 0.000000e+00 : f32
      %55 = vector.broadcast %cst_33 : f32 to vector<16x1280xf32>
      %56 = arith.maximumf %54, %55 : vector<16x1280xf32>
      %c0_34 = arith.constant 0 : index
      %c0_35 = arith.constant 0 : index
      %57 = vector.load %arg11[%c0_34, %c0_35] : memref<16x1280xf32, #tpu.memory_space<vmem>>, vector<16x1280xf32>
      tpu.vector_store %arg11[%c0_34, %c0_35], %56 {strides = array<i32>} : memref<16x1280xf32, #tpu.memory_space<vmem>>, vector<16x1280xf32>,
    } else {
    }
    %c0 = arith.constant 0 : index
    %c0_1 = arith.constant 0 : index
    %3 = vector.load %arg11[%c0, %c0_1] : memref<16x1280xf32, #tpu.memory_space<vmem>>, vector<16x1280xf32>
    %c0_2 = arith.constant 0 : index
    %c0_3 = arith.constant 0 : index
    %c0_4 = arith.constant 0 : index
    %4 = vector.load %arg7[%c0_2, %c0_3, %c0_4] : memref<1x6x1280xf32, #tpu.memory_space<vmem>>, vector<1x6x1280xf32>
    %5 = vector.shape_cast %4 : vector<1x6x1280xf32> to vector<6x1280xf32>
    %6 = vector.extract_strided_slice %5 {offsets = [0, 0], sizes = [1, 1280], strides = [1, 1]} : vector<6x1280xf32> to vector<1x1280xf32>
    %7 = vector.extract_strided_slice %5 {offsets = [1, 0], sizes = [1, 1280], strides = [1, 1]} : vector<6x1280xf32> to vector<1x1280xf32>
    %8 = vector.extract_strided_slice %5 {offsets = [2, 0], sizes = [1, 1280], strides = [1, 1]} : vector<6x1280xf32> to vector<1x1280xf32>
    %9 = vector.extract_strided_slice %5 {offsets = [3, 0], sizes = [1, 1280], strides = [1, 1]} : vector<6x1280xf32> to vector<1x1280xf32>
    %10 = vector.extract_strided_slice %5 {offsets = [4, 0], sizes = [1, 1280], strides = [1, 1]} : vector<6x1280xf32> to vector<1x1280xf32>
    %11 = vector.extract_strided_slice %5 {offsets = [5, 0], sizes = [1, 1280], strides = [1, 1]} : vector<6x1280xf32> to vector<1x1280xf32>
    %c0_5 = arith.constant 0 : index
    %c0_6 = arith.constant 0 : index
    %c0_7 = arith.constant 0 : index
    %12 = vector.load %arg5[%c0_5, %c0_6, %c0_7] : memref<1x1280x1280xi8, #tpu.memory_space<vmem>>, vector<1x1280x1280xi8>
    %13 = vector.shape_cast %12 : vector<1x1280x1280xi8> to vector<1280x1280xi8>
    %14 = arith.sitofp %13 : vector<1280x1280xi8> to vector<1280x1280xbf16>
    %c0_8 = arith.constant 0 : index
    %c0_9 = arith.constant 0 : index
    %c0_10 = arith.constant 0 : index
    %15 = vector.load %arg6[%c0_8, %c0_9, %c0_10] : memref<1x1280x1280xi8, #tpu.memory_space<vmem>>, vector<1x1280x1280xi8>
    %16 = vector.shape_cast %15 : vector<1x1280x1280xi8> to vector<1280x1280xi8>
    %17 = arith.sitofp %16 : vector<1280x1280xi8> to vector<1280x1280xbf16>
    %18 = arith.truncf %3 : vector<16x1280xf32> to vector<16x1280xbf16>
    %cst = arith.constant dense<0.000000e+00> : vector<16x1280xf32>
    %19 = tpu.matmul %18, %14, %cst {dimension_numbers = #tpu.dot_dimension_numbers<[1], [0], [0], [1], [0, 0, 1, 1], [], []>} : vector<16x1280xbf16>, vector<1280x1280xbf16>, vector<16x1280xf32> -> vector<16x1280xf32>
    %20 = vector.broadcast %10 : vector<1x1280xf32> to vector<16x1280xf32>
    %21 = arith.mulf %19, %20 : vector<16x1280xf32>
    %c0_11 = arith.constant 0 : index
    %c0_12 = arith.constant 0 : index
    %22 = vector.load %arg2[%c0_11, %c0_12] : memref<16x16xf32, #tpu.memory_space<vmem>>, vector<16x16xf32>
    %cst_13 = arith.constant dense<0.000000e+00> : vector<16x1280xf32>
    %23 = tpu.matmul %22, %21, %cst_13 {dimension_numbers = #tpu.dot_dimension_numbers<[1], [0], [0], [1], [0, 0, 1, 1], [], []>} : vector<16x16xf32>, vector<16x1280xf32>, vector<16x1280xf32> -> vector<16x1280xf32>
    %24 = vector.broadcast %6 : vector<1x1280xf32> to vector<16x1280xf32>
    %25 = arith.addf %23, %24 : vector<16x1280xf32>
    %cst_14 = arith.constant 0.000000e+00 : f32
    %26 = vector.broadcast %cst_14 : f32 to vector<16x1280xf32>
    %27 = arith.maximumf %25, %26 : vector<16x1280xf32>
    %28 = arith.truncf %27 : vector<16x1280xf32> to vector<16x1280xbf16>
    %cst_15 = arith.constant dense<0.000000e+00> : vector<16x1280xf32>
    %29 = tpu.matmul %28, %17, %cst_15 {dimension_numbers = #tpu.dot_dimension_numbers<[1], [0], [0], [1], [0, 0, 1, 1], [], []>} : vector<16x1280xbf16>, vector<1280x1280xbf16>, vector<16x1280xf32> -> vector<16x1280xf32>
    %30 = vector.broadcast %11 : vector<1x1280xf32> to vector<16x1280xf32>
    %31 = arith.mulf %29, %30 : vector<16x1280xf32>
    %32 = vector.broadcast %7 : vector<1x1280xf32> to vector<16x1280xf32>
    %33 = arith.addf %31, %32 : vector<16x1280xf32>
    %cst_16 = arith.constant 0.000000e+00 : f32
    %34 = vector.broadcast %cst_16 : f32 to vector<16x1280xf32>
    %35 = arith.maximumf %33, %34 : vector<16x1280xf32>
    %36 = arith.addf %35, %3 : vector<16x1280xf32>
    %37 = vector.broadcast %8 : vector<1x1280xf32> to vector<16x1280xf32>
    %38 = arith.mulf %36, %37 : vector<16x1280xf32>
    %39 = vector.broadcast %9 : vector<1x1280xf32> to vector<16x1280xf32>
    %40 = arith.addf %38, %39 : vector<16x1280xf32>
    %c0_17 = arith.constant 0 : index
    %c0_18 = arith.constant 0 : index
    %41 = vector.load %arg11[%c0_17, %c0_18] : memref<16x1280xf32, #tpu.memory_space<vmem>>, vector<16x1280xf32>
    tpu.vector_store %arg11[%c0_17, %c0_18], %40 {strides = array<i32>} : memref<16x1280xf32, #tpu.memory_space<vmem>>, vector<16x1280xf32>,
    %42 = arith.truncf %40 : vector<16x1280xf32> to vector<16x1280xbf16>
    %c0_19 = arith.constant 0 : index
    %c0_20 = arith.constant 0 : index
    %43 = vector.load %arg8[%c0_19, %c0_20] : memref<1280x128xbf16, #tpu.memory_space<vmem>>, vector<1280x128xbf16>
    %cst_21 = arith.constant dense<0.000000e+00> : vector<16x128xf32>
    %44 = tpu.matmul %42, %43, %cst_21 {dimension_numbers = #tpu.dot_dimension_numbers<[1], [0], [0], [1], [0, 0, 1, 1], [], []>} : vector<16x1280xbf16>, vector<1280x128xbf16>, vector<16x128xf32> -> vector<16x128xf32>
    %c0_22 = arith.constant 0 : index
    %c0_23 = arith.constant 0 : index
    %45 = vector.load %arg9[%c0_22, %c0_23] : memref<1x128xf32, #tpu.memory_space<vmem>>, vector<1x128xf32>
    %46 = vector.broadcast %45 : vector<1x128xf32> to vector<16x128xf32>
    %47 = arith.addf %44, %46 : vector<16x128xf32>
    %c0_24 = arith.constant 0 : index
    %c0_25 = arith.constant 0 : index
    %48 = vector.load %arg10[%c0_24, %c0_25] : memref<16x128xf32, #tpu.memory_space<vmem>>, vector<16x128xf32>
    tpu.vector_store %arg10[%c0_24, %c0_25], %47 {strides = array<i32>} : memref<16x128xf32, #tpu.memory_space<vmem>>, vector<16x128xf32>,
    return
  }
  func.func @transform_0(%arg0: i32) -> (i32, i32) {
    %c0_i32 = arith.constant 0 : i32
    %c0_i32_0 = arith.constant 0 : i32
    %c0_i32_1 = arith.constant 0 : i32
    return %c0_i32, %c0_i32_0 : i32, i32
  }
  func.func @transform_1(%arg0: i32) -> (i32, i32) {
    %c0_i32 = arith.constant 0 : i32
    %c0_i32_0 = arith.constant 0 : i32
    %c0_i32_1 = arith.constant 0 : i32
    return %c0_i32, %c0_i32_0 : i32, i32
  }
  func.func @transform_2(%arg0: i32) -> (i32, i32) {
    %c0_i32 = arith.constant 0 : i32
    %c0_i32_0 = arith.constant 0 : i32
    %c0_i32_1 = arith.constant 0 : i32
    return %c0_i32, %c0_i32_0 : i32, i32
  }
  func.func @transform_3(%arg0: i32) -> (i32, i32) {
    %c0_i32 = arith.constant 0 : i32
    %c0_i32_0 = arith.constant 0 : i32
    %c0_i32_1 = arith.constant 0 : i32
    return %c0_i32, %c0_i32_0 : i32, i32
  }
  func.func @transform_4(%arg0: i32) -> (i32, i32, i32) {
    %c0_i32 = arith.constant 0 : i32
    %c0_i32_0 = arith.constant 0 : i32
    %c0_i32_1 = arith.constant 0 : i32
    return %arg0, %c0_i32, %c0_i32_0 : i32, i32, i32
  }
  func.func @transform_5(%arg0: i32) -> (i32, i32, i32) {
    %c0_i32 = arith.constant 0 : i32
    %c0_i32_0 = arith.constant 0 : i32
    %c0_i32_1 = arith.constant 0 : i32
    return %arg0, %c0_i32, %c0_i32_0 : i32, i32, i32
  }
  func.func @transform_6(%arg0: i32) -> (i32, i32, i32) {
    %c0_i32 = arith.constant 0 : i32
    %c0_i32_0 = arith.constant 0 : i32
    %c0_i32_1 = arith.constant 0 : i32
    return %arg0, %c0_i32, %c0_i32_0 : i32, i32, i32
  }
  func.func @transform_7(%arg0: i32) -> (i32, i32) {
    %c0_i32 = arith.constant 0 : i32
    %c0_i32_0 = arith.constant 0 : i32
    %c0_i32_1 = arith.constant 0 : i32
    return %c0_i32, %c0_i32_0 : i32, i32
  }
  func.func @transform_8(%arg0: i32) -> (i32, i32) {
    %c0_i32 = arith.constant 0 : i32
    %c0_i32_0 = arith.constant 0 : i32
    %c0_i32_1 = arith.constant 0 : i32
    return %c0_i32, %c0_i32_0 : i32, i32
  }
  func.func @transform_9(%arg0: i32) -> (i32, i32) {
    %c0_i32 = arith.constant 0 : i32
    %c0_i32_0 = arith.constant 0 : i32
    %c0_i32_1 = arith.constant 0 : i32
    return %c0_i32, %c0_i32_0 : i32, i32
  }
}

</mosaic_0001>

<llo_original>
// kernel: gcn_forward.1
$region0: #{gcn_forward.1}
  #allocation0 [shape = 'u32[]', space=smem, size = 0x4, offset = 0x4, fixed_abs, tag = 'smem constant byte address 0x4 - core index']
  #allocation1 [shape = 'u32[144,128]{1,0:T(1,128)}', space=vmem, size = 0x12000, scoped, tag = 'internal scratch']
  #allocation2 [shape = 'f32[16,1280]{1,0:T(8,128)}', space=vmem, size = 0x14000, scoped, tag = 'scratch operand']
  %s0 = inlined_call_operand.hbm [shape: f32[16,10], index: 0, kind: input, shape index: {}]
  %s1 = inlined_call_operand.hbm [shape: f32[16,16], index: 1, kind: input, shape index: {}]
  %s2 = inlined_call_operand.hbm [shape: f32[10,1280], index: 2, kind: input, shape index: {}]
  %s3 = inlined_call_operand.hbm [shape: f32[1,1280], index: 3, kind: input, shape index: {}]
  %s4 = inlined_call_operand.hbm [shape: s8[5,1280,1280], index: 4, kind: input, shape index: {}]
  %s5 = inlined_call_operand.hbm [shape: s8[5,1280,1280], index: 5, kind: input, shape index: {}]
  %s6 = inlined_call_operand.hbm [shape: f32[5,6,1280], index: 6, kind: input, shape index: {}]
  %s7 = inlined_call_operand.hbm [shape: bf16[1280,128], index: 7, kind: input, shape index: {}]
  %s8 = inlined_call_operand.hbm [shape: f32[1,128], index: 8, kind: input, shape index: {}]
  %s9 = inlined_call_operand.vmem [shape: f32[16,128], index: 9, kind: output, shape index: {}]
  %s10 = sld [smem:[#allocation0]]
  $region109: #{gcn_forward.1} parent=0
    _
  %s12 = ssub.s32 1, %s10
  %s13 = scalar_select 0, %s12, %s10
  $region1: #{gcn_forward.1} parent=0
    #allocation3 [shape = 'u8[8192]{0}', space=vmem, size = 0x2000, scoped, tag = 'input window, operand 0, single buffered']
    #allocation4 [shape = 's32[2]{0}', space=sflag, size = 0x8, scoped, tag = 'scoped memory for gcn_forward.1']
    #allocation5 [shape = 'u8[8192]{0}', space=vmem, size = 0x2000, scoped, tag = 'input window, operand 1, single buffered']
    #allocation6 [shape = 's32[1]{0}', space=sflag, size = 0x4, scoped, tag = 'scoped memory for gcn_forward.1']
    #allocation7 [shape = 'u8[81920]{0}', space=vmem, size = 0x14000, scoped, tag = 'input window, operand 2, single buffered']
    #allocation8 [shape = 'u8[5120]{0}', space=vmem, size = 0x1400, scoped, tag = 'input window, operand 3, single buffered']
    #allocation9 [shape = 's32[1]{0}', space=sflag, size = 0x4, scoped, tag = 'scoped memory for gcn_forward.1']
    #allocation10 [shape = 'u8[3276800]{0}', space=vmem, size = 0x320000, scoped, tag = 'input window, operand 4']
    #allocation11 [shape = 'u8[3276800]{0}', space=vmem, size = 0x320000, scoped, tag = 'input window, operand 5']
    #allocation12 [shape = 'u8[81920]{0}', space=vmem, size = 0x14000, scoped, tag = 'input window, operand 6']
    #allocation13 [shape = 'u8[327680]{0}', space=vmem, size = 0x50000, scoped, tag = 'input window, operand 7, single buffered']
    #allocation14 [shape = 'u8[512]{0}', space=vmem, size = 0x400, scoped, tag = 'input window, operand 8, single buffered']
    %14 = vsyncpa [#allocation4], 0
    %15 = vsyncpa [#allocation6], 0
    %16 = vsyncpa [#allocation9], 0
    loop: start=0, step=1, limit=7
    $region2: #{gcn_forward.1} parent=1 // loop_pre_header
      _
    $region3: #{gcn_forward.1} parent=1 // loop_header
      %s18 = sphi 0, %s22
      %p19 = scmp.ge.s32.totalorder %s18, 7
      %s26 = sphi 0, %s26
      %s28 = sphi 0, %s26
      %s29 = sphi 0, %s28
      %s43 = sphi 0, %s29
      %s47 = sphi 0, %s47
      %s49 = sphi 0, %s47
      %s50 = sphi 0, %s49
      %s64 = sphi 0, %s50
      %s68 = sphi 0, %s68
      %s70 = sphi 0, %s68
      %s71 = sphi 0, %s70
      %s85 = sphi 0, %s71
      %s89 = sphi 0, %s89
      %s91 = sphi 0, %s89
      %s92 = sphi 0, %s91
      %s106 = sphi 0, %s92
      %s112 = sphi 0, %s114
      %s115 = sphi 0, %s112
      %s116 = sphi 0, %s115
      %s132 = sphi 0, %s116
      %s138 = sphi 0, %s140
      %s141 = sphi 0, %s138
      %s142 = sphi 0, %s141
      %s158 = sphi 0, %s142
      %s164 = sphi 0, %s166
      %s167 = sphi 0, %s164
      %s168 = sphi 0, %s167
      %s184 = sphi 0, %s168
      %s188 = sphi 0, %s188
      %s190 = sphi 0, %s188
      %s191 = sphi 0, %s190
      %s205 = sphi 0, %s191
      %s209 = sphi 0, %s209
      %s211 = sphi 0, %s209
      %s212 = sphi 0, %s211
      %s226 = sphi 0, %s212
      %s230 = sphi 0, %s230
      %s232 = sphi 0, %s230
      %s233 = sphi 0, %s232
      %s247 = sphi 0, %s233
    $region4: #{gcn_forward.1} parent=1 // loop_header_branch
      %21 = sbr.rel (%p19) target = $region8
    $region5: #{gcn_forward.1} parent=1 // loop_body
      %s23 = ssub.s32 %s18, 1
      %s24 = ssub.s32 %s18, 2
      %s25 = sadd.s32 %s18, 1
      %s27 = sadd.s32 %s26, 1
      %p30 = scmp.eq.s32.totalorder %s18, 4
      %p31 = scmp.ne.s32.totalorder %s26, %s28
      %p32 = scmp.eq.s32.totalorder %s18, 0
      %p33 = por %p31, %p32
      %p34 = scmp.ne.s32.totalorder %s26, %s28
      %p35 = scmp.eq.s32.totalorder %s23, 4
      %p36 = por %p34, %p35
      %p37 = scmp.ne.s32.totalorder %s28, %s29
      %p38 = scmp.eq.s32.totalorder %s23, 0
      %p39 = por %p37, %p38
      %p40 = scmp.ne.s32.totalorder %s28, %s29
      %p41 = scmp.eq.s32.totalorder %s24, 4
      %p42 = por %p40, %p41
      %p44 = scmp.ne.s32.totalorder %s29, %s43
      %p45 = scmp.eq.s32.totalorder %s24, 0
      %p46 = por %p44, %p45
      %s48 = sadd.s32 %s47, 1
      %p51 = scmp.eq.s32.totalorder %s18, 4
      %p52 = scmp.ne.s32.totalorder %s47, %s49
      %p53 = scmp.eq.s32.totalorder %s18, 0
      %p54 = por %p52, %p53
      %p55 = scmp.ne.s32.totalorder %s47, %s49
      %p56 = scmp.eq.s32.totalorder %s23, 4
      %p57 = por %p55, %p56
      %p58 = scmp.ne.s32.totalorder %s49, %s50
      %p59 = scmp.eq.s32.totalorder %s23, 0
      %p60 = por %p58, %p59
      %p61 = scmp.ne.s32.totalorder %s49, %s50
      %p62 = scmp.eq.s32.totalorder %s24, 4
      %p63 = por %p61, %p62
      %p65 = scmp.ne.s32.totalorder %s50, %s64
      %p66 = scmp.eq.s32.totalorder %s24, 0
      %p67 = por %p65, %p66
      %s69 = sadd.s32 %s68, 1
      %p72 = scmp.eq.s32.totalorder %s18, 4
      %p73 = scmp.ne.s32.totalorder %s68, %s70
      %p74 = scmp.eq.s32.totalorder %s18, 0
      %p75 = por %p73, %p74
      %p76 = scmp.ne.s32.totalorder %s68, %s70
      %p77 = scmp.eq.s32.totalorder %s23, 4
      %p78 = por %p76, %p77
      %p79 = scmp.ne.s32.totalorder %s70, %s71
      %p80 = scmp.eq.s32.totalorder %s23, 0
      %p81 = por %p79, %p80
      %p82 = scmp.ne.s32.totalorder %s70, %s71
      %p83 = scmp.eq.s32.totalorder %s24, 4
      %p84 = por %p82, %p83
      %p86 = scmp.ne.s32.totalorder %s71, %s85
      %p87 = scmp.eq.s32.totalorder %s24, 0
      %p88 = por %p86, %p87
      %s90 = sadd.s32 %s89, 1
      %p93 = scmp.eq.s32.totalorder %s18, 4
      %p94 = scmp.ne.s32.totalorder %s89, %s91
      %p95 = scmp.eq.s32.totalorder %s18, 0
      %p96 = por %p94, %p95
      %p97 = scmp.ne.s32.totalorder %s89, %s91
      %p98 = scmp.eq.s32.totalorder %s23, 4
      %p99 = por %p97, %p98
      %p100 = scmp.ne.s32.totalorder %s91, %s92
      %p101 = scmp.eq.s32.totalorder %s23, 0
      %p102 = por %p100, %p101
      %p103 = scmp.ne.s32.totalorder %s91, %s92
      %p104 = scmp.eq.s32.totalorder %s24, 4
      %p105 = por %p103, %p104
      %p107 = scmp.ne.s32.totalorder %s92, %s106
      %p108 = scmp.eq.s32.totalorder %s24, 0
      %p109 = por %p107, %p108
      %s110 = ssub.s32 %s18, %s25
      %p111 = scmp.eq.s32.totalorder %s110, 0
      %s113 = sadd.s32 %s112, 1
      %s114 = scalar_select %p111, %s112, %s113
      %p117 = pneg %p111
      %p118 = scmp.eq.s32.totalorder %s18, 4
      %p119 = por %p117, %p118
      %p120 = scmp.ne.s32.totalorder %s112, %s115
      %p121 = scmp.eq.s32.totalorder %s18, 0
      %p122 = por %p120, %p121
      %p123 = scmp.ne.s32.totalorder %s112, %s115
      %p124 = scmp.eq.s32.totalorder %s23, 4
      %p125 = por %p123, %p124
      %p126 = scmp.ne.s32.totalorder %s115, %s116
      %p127 = scmp.eq.s32.totalorder %s23, 0
      %p128 = por %p126, %p127
      %p129 = scmp.ne.s32.totalorder %s115, %s116
      %p130 = scmp.eq.s32.totalorder %s24, 4
      %p131 = por %p129, %p130
      %p133 = scmp.ne.s32.totalorder %s116, %s132
      %p134 = scmp.eq.s32.totalorder %s24, 0
      %p135 = por %p133, %p134
      %s136 = ssub.s32 %s18, %s25
      %p137 = scmp.eq.s32.totalorder %s136, 0
      %s139 = sadd.s32 %s138, 1
      %s140 = scalar_select %p137, %s138, %s139
      %p143 = pneg %p137
      %p144 = scmp.eq.s32.totalorder %s18, 4
      %p145 = por %p143, %p144
      %p146 = scmp.ne.s32.totalorder %s138, %s141
      %p147 = scmp.eq.s32.totalorder %s18, 0
      %p148 = por %p146, %p147
      %p149 = scmp.ne.s32.totalorder %s138, %s141
      %p150 = scmp.eq.s32.totalorder %s23, 4
      %p151 = por %p149, %p150
      %p152 = scmp.ne.s32.totalorder %s141, %s142
      %p153 = scmp.eq.s32.totalorder %s23, 0
      %p154 = por %p152, %p153
      %p155 = scmp.ne.s32.totalorder %s141, %s142
      %p156 = scmp.eq.s32.totalorder %s24, 4
      %p157 = por %p155, %p156
      %p159 = scmp.ne.s32.totalorder %s142, %s158
      %p160 = scmp.eq.s32.totalorder %s24, 0
      %p161 = por %p159, %p160
      %s162 = ssub.s32 %s18, %s25
      %p163 = scmp.eq.s32.totalorder %s162, 0
      %s165 = sadd.s32 %s164, 1
      %s166 = scalar_select %p163, %s164, %s165
      %p169 = pneg %p163
      %p170 = scmp.eq.s32.totalorder %s18, 4
      %p171 = por %p169, %p170
      %p172 = scmp.ne.s32.totalorder %s164, %s167
      %p173 = scmp.eq.s32.totalorder %s18, 0
      %p174 = por %p172, %p173
      %p175 = scmp.ne.s32.totalorder %s164, %s167
      %p176 = scmp.eq.s32.totalorder %s23, 4
      %p177 = por %p175, %p176
      %p178 = scmp.ne.s32.totalorder %s167, %s168
      %p179 = scmp.eq.s32.totalorder %s23, 0
      %p180 = por %p178, %p179
      %p181 = scmp.ne.s32.totalorder %s167, %s168
      %p182 = scmp.eq.s32.totalorder %s24, 4
      %p183 = por %p181, %p182
      %p185 = scmp.ne.s32.totalorder %s168, %s184
      %p186 = scmp.eq.s32.totalorder %s24, 0
      %p187 = por %p185, %p186
      %s189 = sadd.s32 %s188, 1
      %p192 = scmp.eq.s32.totalorder %s18, 4
      %p193 = scmp.ne.s32.totalorder %s188, %s190
      %p194 = scmp.eq.s32.totalorder %s18, 0
      %p195 = por %p193, %p194
      %p196 = scmp.ne.s32.totalorder %s188, %s190
      %p197 = scmp.eq.s32.totalorder %s23, 4
      %p198 = por %p196, %p197
      %p199 = scmp.ne.s32.totalorder %s190, %s191
      %p200 = scmp.eq.s32.totalorder %s23, 0
      %p201 = por %p199, %p200
      %p202 = scmp.ne.s32.totalorder %s190, %s191
      %p203 = scmp.eq.s32.totalorder %s24, 4
      %p204 = por %p202, %p203
      %p206 = scmp.ne.s32.totalorder %s191, %s205
      %p207 = scmp.eq.s32.totalorder %s24, 0
      %p208 = por %p206, %p207
      %s210 = sadd.s32 %s209, 1
      %p213 = scmp.eq.s32.totalorder %s18, 4
      %p214 = scmp.ne.s32.totalorder %s209, %s211
      %p215 = scmp.eq.s32.totalorder %s18, 0
      %p216 = por %p214, %p215
      %p217 = scmp.ne.s32.totalorder %s209, %s211
      %p218 = scmp.eq.s32.totalorder %s23, 4
      %p219 = por %p217, %p218
      %p220 = scmp.ne.s32.totalorder %s211, %s212
      %p221 = scmp.eq.s32.totalorder %s23, 0
      %p222 = por %p220, %p221
      %p223 = scmp.ne.s32.totalorder %s211, %s212
      %p224 = scmp.eq.s32.totalorder %s24, 4
      %p225 = por %p223, %p224
      %p227 = scmp.ne.s32.totalorder %s212, %s226
      %p228 = scmp.eq.s32.totalorder %s24, 0
      %p229 = por %p227, %p228
      %s231 = sadd.s32 %s230, 1
      %p234 = scmp.eq.s32.totalorder %s18, 4
      %p235 = scmp.ne.s32.totalorder %s230, %s232
      %p236 = scmp.eq.s32.totalorder %s18, 0
      %p237 = por %p235, %p236
      %p238 = scmp.ne.s32.totalorder %s230, %s232
      %p239 = scmp.eq.s32.totalorder %s23, 4
      %p240 = por %p238, %p239
      %p241 = scmp.ne.s32.totalorder %s232, %s233
      %p242 = scmp.eq.s32.totalorder %s23, 0
      %p243 = por %p241, %p242
      %p244 = scmp.ne.s32.totalorder %s232, %s233
      %p245 = scmp.eq.s32.totalorder %s24, 4
      %p246 = por %p244, %p245
      %p248 = scmp.ne.s32.totalorder %s233, %s247
      %p249 = scmp.eq.s32.totalorder %s24, 0
      %p250 = por %p248, %p249
      %p251 = scmp.le.s32.totalorder 1, %s18
      %p252 = scmp.lt.s32.totalorder %s18, 6
      %p253 = pnand %p251, %p252
      %p254 = pneg %p253
      // Predicated region
      $region9: #{gcn_forward.1} parent=5 // pred_check
        _
      $region10: #{gcn_forward.1} parent=5 // pred_check_branch
        %256 = sbr.rel (%p253) target = $region12
      $region11: #{gcn_forward.1} parent=5 // pred_region
        %s257 = ssub.s32 %s18, 1
        // Predicated region
        $region13: #{gcn_forward.1} parent=11 // pred_check
          %p258 = pneg %p39
        $region14: #{gcn_forward.1} parent=11 // pred_check_branch
          %260 = sbr.rel (%p258) target = $region16
        $region15: #{gcn_forward.1} parent=11 // pred_region
          %s262 = ssub.s32 256, 256
          %263 = vsyncadd [#allocation4], %s262
          %s264 = sshll.u32 [#allocation3], 4
          %s265 = int_to_ptr.vmem [resolvable:$true] %s264
          %270 = dma.hbm_to_vmem [thread:$0]  %s0, 256, %s265, [#allocation4], 128, 128, 8
        $region16: #{gcn_forward.1} parent=11 // pred_fallthru
          _
        // Predicated region
        $region17: #{gcn_forward.1} parent=11 // pred_check
          %p271 = pneg %p60
        $region18: #{gcn_forward.1} parent=11 // pred_check_branch
          %273 = sbr.rel (%p271) target = $region20
        $region19: #{gcn_forward.1} parent=11 // pred_region
          %s275 = ssub.s32 256, 256
          %276 = vsyncadd [#allocation6], %s275
          %s277 = sshll.u32 [#allocation5], 4
          %s278 = int_to_ptr.vmem [resolvable:$true] %s277
          %283 = dma.hbm_to_vmem [thread:$0]  %s1, 256, %s278, [#allocation6], 128, 128, 8
        $region20: #{gcn_forward.1} parent=11 // pred_fallthru
          _
        // Predicated region
        $region21: #{gcn_forward.1} parent=11 // pred_check
          %p284 = pneg %p81
        $region22: #{gcn_forward.1} parent=11 // pred_check_branch
          %286 = sbr.rel (%p284) target = $region24
        $region23: #{gcn_forward.1} parent=11 // pred_region
          %s288 = ssub.s32 2560, 2560
          %289 = vsyncadd [#allocation6], %s288
          %s290 = sshll.u32 [#allocation7], 4
          %s291 = int_to_ptr.vmem [resolvable:$true] %s290
          %296 = dma.hbm_to_vmem [thread:$0]  %s2, 2560, %s291, [#allocation6], 1280, 1280, 80
        $region24: #{gcn_forward.1} parent=11 // pred_fallthru
          _
        // Predicated region
        $region25: #{gcn_forward.1} parent=11 // pred_check
          %p297 = pneg %p102
        $region26: #{gcn_forward.1} parent=11 // pred_check_branch
          %299 = sbr.rel (%p297) target = $region28
        $region27: #{gcn_forward.1} parent=11 // pred_region
          %s301 = ssub.s32 160, 160
          %302 = vsyncadd [#allocation9], %s301
          %s304 = sshll.u32 [#allocation8], 4
          %s305 = int_to_ptr.vmem [resolvable:$true] %s304
          %307 = dma.hbm_to_vmem [thread:$0]  %s3, 160, %s305, [#allocation9]
        $region28: #{gcn_forward.1} parent=11 // pred_fallthru
          _
        // Predicated region
        $region29: #{gcn_forward.1} parent=11 // pred_check
          %p308 = pneg %p201
        $region30: #{gcn_forward.1} parent=11 // pred_check_branch
          %310 = sbr.rel (%p308) target = $region32
        $region31: #{gcn_forward.1} parent=11 // pred_region
          %s312 = ssub.s32 10240, 10240
          %313 = vsyncadd [#allocation6], %s312
          %s314 = sshll.u32 [#allocation13], 4
          %s315 = int_to_ptr.vmem [resolvable:$true] %s314
          %320 = dma.hbm_to_vmem [thread:$0]  %s7, 10240, %s315, [#allocation6], 64, 64, 4
        $region32: #{gcn_forward.1} parent=11 // pred_fallthru
          _
        // Predicated region
        $region33: #{gcn_forward.1} parent=11 // pred_check
          %p321 = pneg %p222
        $region34: #{gcn_forward.1} parent=11 // pred_check_branch
          %323 = sbr.rel (%p321) target = $region36
        $region35: #{gcn_forward.1} parent=11 // pred_region
          %s325 = ssub.s32 16, 16
          %326 = vsyncadd [#allocation9], %s325
          %s328 = sshll.u32 [#allocation14], 4
          %s329 = int_to_ptr.vmem [resolvable:$true] %s328
          %331 = dma.hbm_to_vmem [thread:$0]  %s8, 16, %s329, [#allocation9]
        $region36: #{gcn_forward.1} parent=11 // pred_fallthru
          _
      $region12: #{gcn_forward.1} parent=5 // pred_fallthru
        _
      %p332 = scmp.lt.s32.totalorder %s18, 5
      // Predicated region
      $region37: #{gcn_forward.1} parent=5 // pred_check
        %p333 = pneg %p332
      $region38: #{gcn_forward.1} parent=5 // pred_check_branch
        %335 = sbr.rel (%p333) target = $region40
      $region39: #{gcn_forward.1} parent=5 // pred_region
        // Predicated region
        $region41: #{gcn_forward.1} parent=39 // pred_check
          %p336 = pneg %p122
        $region42: #{gcn_forward.1} parent=39 // pred_check_branch
          %338 = sbr.rel (%p336) target = $region44
        $region43: #{gcn_forward.1} parent=39 // pred_region
          %s339 = sand.u32 %s18, 1
          %s340 = scalar_lea.sflag [#allocation4], %s339
          %s341 = sand.u32 %s112, 1
          %s342 = smul.addr %s341, 3200
          %s343 = scalar_lea.vmem [#allocation10], %s342
          %s345 = ssub.s32 51200, 51200
          %346 = vsyncadd %s340, %s345
          %s347 = smul.addr %s18, 400
          %s348 = smul.addr %s347, 128
          %s349 = scalar_lea.hbm %s4, %s348
          %s350 = sshll.u32 %s343, 4
          %s351 = int_to_ptr.vmem [resolvable:$true] %s350
          %356 = dma.hbm_to_vmem [thread:$0]  %s349, 51200, %s351, %s340, 1280, 1280, 80
        $region44: #{gcn_forward.1} parent=39 // pred_fallthru
          _
        // Predicated region
        $region45: #{gcn_forward.1} parent=39 // pred_check
          %p357 = pneg %p148
        $region46: #{gcn_forward.1} parent=39 // pred_check_branch
          %359 = sbr.rel (%p357) target = $region48
        $region47: #{gcn_forward.1} parent=39 // pred_region
          %s360 = sand.u32 %s18, 1
          %s361 = scalar_lea.sflag [#allocation4], %s360
          %s362 = sand.u32 %s138, 1
          %s363 = smul.addr %s362, 3200
          %s364 = scalar_lea.vmem [#allocation11], %s363
          %s366 = ssub.s32 51200, 51200
          %367 = vsyncadd %s361, %s366
          %s368 = smul.addr %s18, 400
          %s369 = smul.addr %s368, 128
          %s370 = scalar_lea.hbm %s5, %s369
          %s371 = sshll.u32 %s364, 4
          %s372 = int_to_ptr.vmem [resolvable:$true] %s371
          %377 = dma.hbm_to_vmem [thread:$0]  %s370, 51200, %s372, %s361, 1280, 1280, 80
        $region48: #{gcn_forward.1} parent=39 // pred_fallthru
          _
        // Predicated region
        $region49: #{gcn_forward.1} parent=39 // pred_check
          %p378 = pneg %p174
        $region50: #{gcn_forward.1} parent=39 // pred_check_branch
          %380 = sbr.rel (%p378) target = $region52
        $region51: #{gcn_forward.1} parent=39 // pred_region
          %s381 = sand.u32 %s18, 1
          %s382 = scalar_lea.sflag [#allocation4], %s381
          %s383 = sand.u32 %s164, 1
          %s384 = smul.addr %s383, 80
          %s385 = scalar_lea.vmem [#allocation12], %s384
          %s387 = ssub.s32 1280, 1280
          %388 = vsyncadd %s382, %s387
          %s389 = smul.addr %s18, 10
          %s390 = smul.addr %s389, 128
          %s391 = scalar_lea.hbm %s6, %s390
          %s393 = sshll.u32 %s385, 4
          %s394 = int_to_ptr.vmem [resolvable:$true] %s393
          %396 = dma.hbm_to_vmem [thread:$0]  %s391, 1280, %s394, %s382
        $region52: #{gcn_forward.1} parent=39 // pred_fallthru
          _
      $region40: #{gcn_forward.1} parent=5 // pred_fallthru
        _
      %p397 = scmp.le.s32.totalorder 1, %s18
      %p398 = scmp.lt.s32.totalorder %s18, 6
      %p399 = pnand %p397, %p398
      %p400 = pneg %p399
      // Predicated region
      $region53: #{gcn_forward.1} parent=5 // pred_check
        _
      $region54: #{gcn_forward.1} parent=5 // pred_check_branch
        %402 = sbr.rel (%p399) target = $region56
      $region55: #{gcn_forward.1} parent=5 // pred_region
        %s403 = ssub.s32 %s18, 1
        // Predicated region
        $region57: #{gcn_forward.1} parent=55 // pred_check
          %p404 = pneg %p39
        $region58: #{gcn_forward.1} parent=55 // pred_check_branch
          %406 = sbr.rel (%p404) target = $region60
        $region59: #{gcn_forward.1} parent=55 // pred_region
          %407 = dma.done [#allocation4], 256
        $region60: #{gcn_forward.1} parent=55 // pred_fallthru
          _
        // Predicated region
        $region61: #{gcn_forward.1} parent=55 // pred_check
          %p408 = pneg %p60
        $region62: #{gcn_forward.1} parent=55 // pred_check_branch
          %410 = sbr.rel (%p408) target = $region64
        $region63: #{gcn_forward.1} parent=55 // pred_region
          %411 = dma.done [#allocation6], 256
        $region64: #{gcn_forward.1} parent=55 // pred_fallthru
          _
        // Predicated region
        $region65: #{gcn_forward.1} parent=55 // pred_check
          %p412 = pneg %p81
        $region66: #{gcn_forward.1} parent=55 // pred_check_branch
          %414 = sbr.rel (%p412) target = $region68
        $region67: #{gcn_forward.1} parent=55 // pred_region
          %415 = dma.done [#allocation6], 2560
        $region68: #{gcn_forward.1} parent=55 // pred_fallthru
          _
        // Predicated region
        $region69: #{gcn_forward.1} parent=55 // pred_check
          %p416 = pneg %p102
        $region70: #{gcn_forward.1} parent=55 // pred_check_branch
          %418 = sbr.rel (%p416) target = $region72
        $region71: #{gcn_forward.1} parent=55 // pred_region
          %419 = dma.done [#allocation9], 160
        $region72: #{gcn_forward.1} parent=55 // pred_fallthru
          _
        %s420 = sand.u32 %s23, 1
        %s421 = scalar_lea.sflag [#allocation4], %s420
        %s422 = sand.u32 %s115, 1
        %s423 = smul.addr %s422, 3200
        %s424 = scalar_lea.vmem [#allocation10], %s423
        // Predicated region
        $region73: #{gcn_forward.1} parent=55 // pred_check
          %p425 = pneg %p128
        $region74: #{gcn_forward.1} parent=55 // pred_check_branch
          %427 = sbr.rel (%p425) target = $region76
        $region75: #{gcn_forward.1} parent=55 // pred_region
          %428 = dma.done %s421, 51200
        $region76: #{gcn_forward.1} parent=55 // pred_fallthru
          _
        %s429 = sand.u32 %s23, 1
        %s430 = scalar_lea.sflag [#allocation4], %s429
        %s431 = sand.u32 %s141, 1
        %s432 = smul.addr %s431, 3200
        %s433 = scalar_lea.vmem [#allocation11], %s432
        // Predicated region
        $region77: #{gcn_forward.1} parent=55 // pred_check
          %p434 = pneg %p154
        $region78: #{gcn_forward.1} parent=55 // pred_check_branch
          %436 = sbr.rel (%p434) target = $region80
        $region79: #{gcn_forward.1} parent=55 // pred_region
          %437 = dma.done %s430, 51200
        $region80: #{gcn_forward.1} parent=55 // pred_fallthru
          _
        %s438 = sand.u32 %s23, 1
        %s439 = scalar_lea.sflag [#allocation4], %s438
        %s440 = sand.u32 %s167, 1
        %s441 = smul.addr %s440, 80
        %s442 = scalar_lea.vmem [#allocation12], %s441
        // Predicated region
        $region81: #{gcn_forward.1} parent=55 // pred_check
          %p443 = pneg %p180
        $region82: #{gcn_forward.1} parent=55 // pred_check_branch
          %445 = sbr.rel (%p443) target = $region84
        $region83: #{gcn_forward.1} parent=55 // pred_region
          %446 = dma.done %s439, 1280
        $region84: #{gcn_forward.1} parent=55 // pred_fallthru
          _
        // Predicated region
        $region85: #{gcn_forward.1} parent=55 // pred_check
          %p447 = pneg %p201
        $region86: #{gcn_forward.1} parent=55 // pred_check_branch
          %449 = sbr.rel (%p447) target = $region88
        $region87: #{gcn_forward.1} parent=55 // pred_region
          %450 = dma.done [#allocation6], 10240
        $region88: #{gcn_forward.1} parent=55 // pred_fallthru
          _
        // Predicated region
        $region89: #{gcn_forward.1} parent=55 // pred_check
          %p451 = pneg %p222
        $region90: #{gcn_forward.1} parent=55 // pred_check_branch
          %453 = sbr.rel (%p451) target = $region92
        $region91: #{gcn_forward.1} parent=55 // pred_region
          %454 = dma.done [#allocation9], 16
        $region92: #{gcn_forward.1} parent=55 // pred_fallthru
          _
        %p455 = pneg %p39
        %p456 = pneg %p36
        %p457 = pneg %p60
        %p458 = pneg %p57
        %p459 = pneg %p81
        %p460 = pneg %p78
        %p461 = pneg %p102
        %p462 = pneg %p99
        %s463 = sand.u32 %s23, 1
        %s464 = scalar_lea.sflag [#allocation4], %s463
        %s465 = sand.u32 %s115, 1
        %s466 = smul.addr %s465, 3200
        %s467 = scalar_lea.vmem [#allocation10], %s466
        %p468 = pneg %p128
        %p469 = pneg %p125
        %s470 = sand.u32 %s23, 1
        %s471 = scalar_lea.sflag [#allocation4], %s470
        %s472 = sand.u32 %s141, 1
        %s473 = smul.addr %s472, 3200
        %s474 = scalar_lea.vmem [#allocation11], %s473
        %p475 = pneg %p154
        %p476 = pneg %p151
        %s477 = sand.u32 %s23, 1
        %s478 = scalar_lea.sflag [#allocation4], %s477
        %s479 = sand.u32 %s167, 1
        %s480 = smul.addr %s479, 80
        %s481 = scalar_lea.vmem [#allocation12], %s480
        %p482 = pneg %p180
        %p483 = pneg %p177
        %p484 = pneg %p201
        %p485 = pneg %p198
        %p486 = pneg %p222
        %p487 = pneg %p219
        %p488 = pneg %p243
        %p489 = pneg %p240
        %p491 = scmp.eq.s32.totalorder %s23, 0
        // Predicated region
        $region93: #{gcn_forward.1} parent=55 // pred_check
          %p492 = pneg %p491
        $region94: #{gcn_forward.1} parent=55 // pred_check_branch
          %494 = sbr.rel (%p492) target = $region96
        $region95: #{gcn_forward.1} parent=55 // pred_region
          %v495 = vld [vmem:[#allocation3] sm:$0xff]
          %v496 = vld [vmem:[#allocation3 + $0x8] sm:$0xff]
          %v497 = vld [vmem:[#allocation7] sm:$0xff]
          %v498 = vld [vmem:[#allocation7 + $0x8] sm:$0xff]
          %v499 = vld [vmem:[#allocation7 + $0x10] sm:$0xff]
          %v500 = vld [vmem:[#allocation7 + $0x18] sm:$0xff]
          %v501 = vld [vmem:[#allocation7 + $0x20] sm:$0xff]
          %v502 = vld [vmem:[#allocation7 + $0x28] sm:$0xff]
          %v503 = vld [vmem:[#allocation7 + $0x30] sm:$0xff]
          %v504 = vld [vmem:[#allocation7 + $0x38] sm:$0xff]
          %v505 = vld [vmem:[#allocation7 + $0x40] sm:$0xff]
          %v506 = vld [vmem:[#allocation7 + $0x48] sm:$0xff]
          %v507 = vld [vmem:[#allocation7 + $0x50] sm:$0x3]
          %v508 = vld [vmem:[#allocation7 + $0x58] sm:$0x3]
          %v509 = vld [vmem:[#allocation7 + $0x60] sm:$0x3]
          %v510 = vld [vmem:[#allocation7 + $0x68] sm:$0x3]
          %v511 = vld [vmem:[#allocation7 + $0x70] sm:$0x3]
          %v512 = vld [vmem:[#allocation7 + $0x78] sm:$0x3]
          %v513 = vld [vmem:[#allocation7 + $0x80] sm:$0x3]
          %v514 = vld [vmem:[#allocation7 + $0x88] sm:$0x3]
          %v515 = vld [vmem:[#allocation7 + $0x90] sm:$0x3]
          %v516 = vld [vmem:[#allocation7 + $0x98] sm:$0x3]
          %v517 = vld [vmem:[#allocation8] sm:$0xff]
          %v518 = vld [vmem:[#allocation8 + $0x8] sm:$0x3]
          %v521 = vlaneseq
          %v522 = vshrl.u32 %v521, 7
          %v523 = vsub.s32 0, %v522
          %v524 = vrot.slane %v517, %v523
          %v525 = vlaneseq
          %v526 = vshrl.u32 %v525, 7
          %v527 = vsub.s32 1, %v526
          %v528 = vrot.slane %v517, %v527
          %v529 = vlaneseq
          %v530 = vshrl.u32 %v529, 7
          %v531 = vsub.s32 2, %v530
          %v532 = vrot.slane %v517, %v531
          %v533 = vlaneseq
          %v534 = vshrl.u32 %v533, 7
          %v535 = vsub.s32 3, %v534
          %v536 = vrot.slane %v517, %v535
          %v537 = vlaneseq
          %v538 = vshrl.u32 %v537, 7
          %v539 = vsub.s32 4, %v538
          %v540 = vrot.slane %v517, %v539
          %v541 = vlaneseq
          %v542 = vshrl.u32 %v541, 7
          %v543 = vsub.s32 5, %v542
          %v544 = vrot.slane %v517, %v543
          %v545 = vlaneseq
          %v546 = vshrl.u32 %v545, 7
          %v547 = vsub.s32 6, %v546
          %v548 = vrot.slane %v517, %v547
          %v549 = vlaneseq
          %v550 = vshrl.u32 %v549, 7
          %v551 = vsub.s32 7, %v550
          %v552 = vrot.slane %v517, %v551
          %v553 = vlaneseq
          %v554 = vshrl.u32 %v553, 7
          %v555 = vsub.s32 0, %v554
          %v556 = vrot.slane %v518, %v555
          %v557 = vlaneseq
          %v558 = vshrl.u32 %v557, 7
          %v559 = vsub.s32 1, %v558
          %v560 = vrot.slane %v518, %v559
          %vm571 = vcmask 80896
          %v573 = vsel %vm571, %v495, 0
          %v576 = vsel %vm571, %v496, 0
          %vm578 = vcmask 1041408
          %v580 = vsel %vm578, %v507, 0
          %v583 = vsel %vm578, %v508, 0
          %v586 = vsel %vm578, %v509, 0
          %v589 = vsel %vm578, %v510, 0
          %v592 = vsel %vm578, %v511, 0
          %v595 = vsel %vm578, %v512, 0
          %v598 = vsel %vm578, %v513, 0
          %v601 = vsel %vm578, %v514, 0
          %v604 = vsel %vm578, %v515, 0
          %v607 = vsel %vm578, %v516, 0
          %609 = vmatprep.subr.mxu0 %v498
          %610 = vmatpush1.msra.mxu0 %v497
          %611 = vmatprep.subr.mxu0 %v583
          %612 = vmatpush1.msra.mxu0 %v580
          %613 = vmatprep.subr.mxu0 0.0
          %614 = vmatpush1.msra.mxu0 0.0
          %615 = vmatprep.subr.mxu0 0.0
          %616 = vmatpush1.msra.mxu0 0.0
          %617 = vmatprep.subr.mxu0 0.0
          %618 = vmatpush1.msra.mxu0 0.0
          %619 = vmatprep.subr.mxu0 0.0
          %620 = vmatpush1.msra.mxu0 0.0
          %621 = vmatprep.subr.mxu0 0.0
          %622 = vmatpush1.msra.mxu0 0.0
          %623 = vmatprep.subr.mxu0 0.0
          %624 = vmatpush1.msra.mxu0 0.0
          %625 = vmatprep.subr.mxu0 0.0
          %626 = vmatpush1.msra.mxu0 0.0
          %627 = vmatprep.subr.mxu0 0.0
          %628 = vmatpush1.msra.mxu0 0.0
          %629 = vmatprep.subr.mxu0 0.0
          %630 = vmatpush1.msra.mxu0 0.0
          %631 = vmatprep.subr.mxu0 0.0
          %632 = vmatpush1.msra.mxu0 0.0
          %633 = vmatprep.subr.mxu0 0.0
          %634 = vmatpush1.msra.mxu0 0.0
          %635 = vmatprep.subr.mxu0 0.0
          %636 = vmatpush1.msra.mxu0 0.0
          %637 = vmatprep.subr.mxu0 0.0
          %638 = vmatpush1.msra.mxu0 0.0
          %639 = vmatprep.subr.mxu0 0.0
          %640 = vmatpush1.msra.mxu0 0.0
          %641 = vmatprep.subr.mxu0 0.0
          %642 = vmatpush1.msra.mxu0 0.0
          %643 = vmatprep.subr.mxu0 0.0
          %644 = vmatpush1.msra.mxu0 0.0
          %645 = vmatprep.subr.mxu0 0.0
          %646 = vmatpush1.msra.mxu0 0.0
          %647 = vmatprep.subr.mxu0 0.0
          %648 = vmatpush1.msra.mxu0 0.0
          %649 = vmatprep.subr.mxu0 0.0
          %650 = vmatpush1.msra.mxu0 0.0
          %651 = vmatprep.subr.mxu0 0.0
          %652 = vmatpush1.msra.mxu0 0.0
          %653 = vmatprep.subr.mxu0 0.0
          %654 = vmatpush1.msra.mxu0 0.0
          %655 = vmatprep.subr.mxu0 0.0
          %656 = vmatpush1.msra.mxu0 0.0
          %657 = vmatprep.subr.mxu0 0.0
          %658 = vmatpush1.msra.mxu0 0.0
          %659 = vmatprep.subr.mxu0 0.0
          %660 = vmatpush1.msra.mxu0 0.0
          %661 = vmatprep.subr.mxu0 0.0
          %662 = vmatpush1.msra.mxu0 0.0
          %663 = vmatprep.subr.mxu0 0.0
          %664 = vmatpush1.msra.mxu0 0.0
          %665 = vmatprep.subr.mxu0 0.0
          %666 = vmatpush1.msra.mxu0 0.0
          %667 = vmatprep.subr.mxu0 0.0
          %668 = vmatpush1.msra.mxu0 0.0
          %669 = vmatprep.subr.mxu0 0.0
          %670 = vmatpush1.msra.mxu0 0.0
          %671 = vmatprep.subr.mxu0 0.0
          %672 = vmatpush1.msra.mxu0 0.0
          %673 = vmatprep.mubr.f32.mxu0 0.0
          %674 = vmatmul.mubr.f32.gmra.mrb[0].mxu0 %v573
          %v675 = vpop.f32.mrb[0].mxu0
          %v676 = vadd.f32 %v524, %v675
          %v677 = vpop.f32.mrb[0].mxu0
          %v678 = vadd.f32 %v528, %v677
          %679 = vmatprep.mubr.f32.mxu0 0.0
          %680 = vmatmul.mubr.f32.gmra.mrb[0].mxu0 %v576
          %v681 = vpop.f32.mrb[0].mxu0
          %v682 = vadd.f32 %v524, %v681
          %v683 = vpop.f32.mrb[0].mxu0
          %v684 = vadd.f32 %v528, %v683
          %685 = vdwg.mxu0
          %686 = vmatprep.subr.mxu0 %v500
          %687 = vmatpush1.msra.mxu0 %v499
          %688 = vmatprep.subr.mxu0 %v589
          %689 = vmatpush1.msra.mxu0 %v586
          %690 = vmatprep.subr.mxu0 0.0
          %691 = vmatpush1.msra.mxu0 0.0
          %692 = vmatprep.subr.mxu0 0.0
          %693 = vmatpush1.msra.mxu0 0.0
          %694 = vmatprep.subr.mxu0 0.0
          %695 = vmatpush1.msra.mxu0 0.0
          %696 = vmatprep.subr.mxu0 0.0
          %697 = vmatpush1.msra.mxu0 0.0
          %698 = vmatprep.subr.mxu0 0.0
          %699 = vmatpush1.msra.mxu0 0.0
          %700 = vmatprep.subr.mxu0 0.0
          %701 = vmatpush1.msra.mxu0 0.0
          %702 = vmatprep.subr.mxu0 0.0
          %703 = vmatpush1.msra.mxu0 0.0
          %704 = vmatprep.subr.mxu0 0.0
          %705 = vmatpush1.msra.mxu0 0.0
          %706 = vmatprep.subr.mxu0 0.0
          %707 = vmatpush1.msra.mxu0 0.0
          %708 = vmatprep.subr.mxu0 0.0
          %709 = vmatpush1.msra.mxu0 0.0
          %710 = vmatprep.subr.mxu0 0.0
          %711 = vmatpush1.msra.mxu0 0.0
          %712 = vmatprep.subr.mxu0 0.0
          %713 = vmatpush1.msra.mxu0 0.0
          %714 = vmatprep.subr.mxu0 0.0
          %715 = vmatpush1.msra.mxu0 0.0
          %716 = vmatprep.subr.mxu0 0.0
          %717 = vmatpush1.msra.mxu0 0.0
          %718 = vmatprep.subr.mxu0 0.0
          %719 = vmatpush1.msra.mxu0 0.0
          %720 = vmatprep.subr.mxu0 0.0
          %721 = vmatpush1.msra.mxu0 0.0
          %722 = vmatprep.subr.mxu0 0.0
          %723 = vmatpush1.msra.mxu0 0.0
          %724 = vmatprep.subr.mxu0 0.0
          %725 = vmatpush1.msra.mxu0 0.0
          %726 = vmatprep.subr.mxu0 0.0
          %727 = vmatpush1.msra.mxu0 0.0
          %728 = vmatprep.subr.mxu0 0.0
          %729 = vmatpush1.msra.mxu0 0.0
          %730 = vmatprep.subr.mxu0 0.0
          %731 = vmatpush1.msra.mxu0 0.0
          %732 = vmatprep.subr.mxu0 0.0
          %733 = vmatpush1.msra.mxu0 0.0
          %734 = vmatprep.subr.mxu0 0.0
          %735 = vmatpush1.msra.mxu0 0.0
          %736 = vmatprep.subr.mxu0 0.0
          %737 = vmatpush1.msra.mxu0 0.0
          %738 = vmatprep.subr.mxu0 0.0
          %739 = vmatpush1.msra.mxu0 0.0
          %740 = vmatprep.subr.mxu0 0.0
          %741 = vmatpush1.msra.mxu0 0.0
          %742 = vmatprep.subr.mxu0 0.0
          %743 = vmatpush1.msra.mxu0 0.0
          %744 = vmatprep.subr.mxu0 0.0
          %745 = vmatpush1.msra.mxu0 0.0
          %746 = vmatprep.subr.mxu0 0.0
          %747 = vmatpush1.msra.mxu0 0.0
          %748 = vmatprep.subr.mxu0 0.0
          %749 = vmatpush1.msra.mxu0 0.0
          %750 = vmatprep.mubr.f32.mxu0 0.0
          %751 = vmatmul.mubr.f32.gmra.mrb[0].mxu0 %v573
          %v752 = vpop.f32.mrb[0].mxu0
          %v753 = vadd.f32 %v532, %v752
          %v754 = vpop.f32.mrb[0].mxu0
          %v755 = vadd.f32 %v536, %v754
          %756 = vmatprep.mubr.f32.mxu0 0.0
          %757 = vmatmul.mubr.f32.gmra.mrb[0].mxu0 %v576
          %v758 = vpop.f32.mrb[0].mxu0
          %v759 = vadd.f32 %v532, %v758
          %v760 = vpop.f32.mrb[0].mxu0
          %v761 = vadd.f32 %v536, %v760
          %762 = vdwg.mxu0
          %763 = vmatprep.subr.mxu0 %v502
          %764 = vmatpush1.msra.mxu0 %v501
          %765 = vmatprep.subr.mxu0 %v595
          %766 = vmatpush1.msra.mxu0 %v592
          %767 = vmatprep.subr.mxu0 0.0
          %768 = vmatpush1.msra.mxu0 0.0
          %769 = vmatprep.subr.mxu0 0.0
          %770 = vmatpush1.msra.mxu0 0.0
          %771 = vmatprep.subr.mxu0 0.0
          %772 = vmatpush1.msra.mxu0 0.0
          %773 = vmatprep.subr.mxu0 0.0
          %774 = vmatpush1.msra.mxu0 0.0
          %775 = vmatprep.subr.mxu0 0.0
          %776 = vmatpush1.msra.mxu0 0.0
          %777 = vmatprep.subr.mxu0 0.0
          %778 = vmatpush1.msra.mxu0 0.0
          %779 = vmatprep.subr.mxu0 0.0
          %780 = vmatpush1.msra.mxu0 0.0
          %781 = vmatprep.subr.mxu0 0.0
          %782 = vmatpush1.msra.mxu0 0.0
          %783 = vmatprep.subr.mxu0 0.0
          %784 = vmatpush1.msra.mxu0 0.0
          %785 = vmatprep.subr.mxu0 0.0
          %786 = vmatpush1.msra.mxu0 0.0
          %787 = vmatprep.subr.mxu0 0.0
          %788 = vmatpush1.msra.mxu0 0.0
          %789 = vmatprep.subr.mxu0 0.0
          %790 = vmatpush1.msra.mxu0 0.0
          %791 = vmatprep.subr.mxu0 0.0
          %792 = vmatpush1.msra.mxu0 0.0
          %793 = vmatprep.subr.mxu0 0.0
          %794 = vmatpush1.msra.mxu0 0.0
          %795 = vmatprep.subr.mxu0 0.0
          %796 = vmatpush1.msra.mxu0 0.0
          %797 = vmatprep.subr.mxu0 0.0
          %798 = vmatpush1.msra.mxu0 0.0
          %799 = vmatprep.subr.mxu0 0.0
          %800 = vmatpush1.msra.mxu0 0.0
          %801 = vmatprep.subr.mxu0 0.0
          %802 = vmatpush1.msra.mxu0 0.0
          %803 = vmatprep.subr.mxu0 0.0
          %804 = vmatpush1.msra.mxu0 0.0
          %805 = vmatprep.subr.mxu0 0.0
          %806 = vmatpush1.msra.mxu0 0.0
          %807 = vmatprep.subr.mxu0 0.0
          %808 = vmatpush1.msra.mxu0 0.0
          %809 = vmatprep.subr.mxu0 0.0
          %810 = vmatpush1.msra.mxu0 0.0
          %811 = vmatprep.subr.mxu0 0.0
          %812 = vmatpush1.msra.mxu0 0.0
          %813 = vmatprep.subr.mxu0 0.0
          %814 = vmatpush1.msra.mxu0 0.0
          %815 = vmatprep.subr.mxu0 0.0
          %816 = vmatpush1.msra.mxu0 0.0
          %817 = vmatprep.subr.mxu0 0.0
          %818 = vmatpush1.msra.mxu0 0.0
          %819 = vmatprep.subr.mxu0 0.0
          %820 = vmatpush1.msra.mxu0 0.0
          %821 = vmatprep.subr.mxu0 0.0
          %822 = vmatpush1.msra.mxu0 0.0
          %823 = vmatprep.subr.mxu0 0.0
          %824 = vmatpush1.msra.mxu0 0.0
          %825 = vmatprep.subr.mxu0 0.0
          %826 = vmatpush1.msra.mxu0 0.0
          %827 = vmatprep.mubr.f32.mxu0 0.0
          %828 = vmatmul.mubr.f32.gmra.mrb[0].mxu0 %v573
          %v829 = vpop.f32.mrb[0].mxu0
          %v830 = vadd.f32 %v540, %v829
          %v831 = vpop.f32.mrb[0].mxu0
          %v832 = vadd.f32 %v544, %v831
          %833 = vmatprep.mubr.f32.mxu0 0.0
          %834 = vmatmul.mubr.f32.gmra.mrb[0].mxu0 %v576
          %v835 = vpop.f32.mrb[0].mxu0
          %v836 = vadd.f32 %v540, %v835
          %v837 = vpop.f32.mrb[0].mxu0
          %v838 = vadd.f32 %v544, %v837
          %839 = vdwg.mxu0
          %840 = vmatprep.subr.mxu0 %v504
          %841 = vmatpush1.msra.mxu0 %v503
          %842 = vmatprep.subr.mxu0 %v601
          %843 = vmatpush1.msra.mxu0 %v598
          %844 = vmatprep.subr.mxu0 0.0
          %845 = vmatpush1.msra.mxu0 0.0
          %846 = vmatprep.subr.mxu0 0.0
          %847 = vmatpush1.msra.mxu0 0.0
          %848 = vmatprep.subr.mxu0 0.0
          %849 = vmatpush1.msra.mxu0 0.0
          %850 = vmatprep.subr.mxu0 0.0
          %851 = vmatpush1.msra.mxu0 0.0
          %852 = vmatprep.subr.mxu0 0.0
          %853 = vmatpush1.msra.mxu0 0.0
          %854 = vmatprep.subr.mxu0 0.0
          %855 = vmatpush1.msra.mxu0 0.0
          %856 = vmatprep.subr.mxu0 0.0
          %857 = vmatpush1.msra.mxu0 0.0
          %858 = vmatprep.subr.mxu0 0.0
          %859 = vmatpush1.msra.mxu0 0.0
          %860 = vmatprep.subr.mxu0 0.0
          %861 = vmatpush1.msra.mxu0 0.0
          %862 = vmatprep.subr.mxu0 0.0
          %863 = vmatpush1.msra.mxu0 0.0
          %864 = vmatprep.subr.mxu0 0.0
          %865 = vmatpush1.msra.mxu0 0.0
          %866 = vmatprep.subr.mxu0 0.0
          %867 = vmatpush1.msra.mxu0 0.0
          %868 = vmatprep.subr.mxu0 0.0
          %869 = vmatpush1.msra.mxu0 0.0
          %870 = vmatprep.subr.mxu0 0.0
          %871 = vmatpush1.msra.mxu0 0.0
          %872 = vmatprep.subr.mxu0 0.0
          %873 = vmatpush1.msra.mxu0 0.0
          %874 = vmatprep.subr.mxu0 0.0
          %875 = vmatpush1.msra.mxu0 0.0
          %876 = vmatprep.subr.mxu0 0.0
          %877 = vmatpush1.msra.mxu0 0.0
          %878 = vmatprep.subr.mxu0 0.0
          %879 = vmatpush1.msra.mxu0 0.0
          %880 = vmatprep.subr.mxu0 0.0
          %881 = vmatpush1.msra.mxu0 0.0
          %882 = vmatprep.subr.mxu0 0.0
          %883 = vmatpush1.msra.mxu0 0.0
          %884 = vmatprep.subr.mxu0 0.0
          %885 = vmatpush1.msra.mxu0 0.0
          %886 = vmatprep.subr.mxu0 0.0
          %887 = vmatpush1.msra.mxu0 0.0
          %888 = vmatprep.subr.mxu0 0.0
          %889 = vmatpush1.msra.mxu0 0.0
          %890 = vmatprep.subr.mxu0 0.0
          %891 = vmatpush1.msra.mxu0 0.0
          %892 = vmatprep.subr.mxu0 0.0
          %893 = vmatpush1.msra.mxu0 0.0
          %894 = vmatprep.subr.mxu0 0.0
          %895 = vmatpush1.msra.mxu0 0.0
          %896 = vmatprep.subr.mxu0 0.0
          %897 = vmatpush1.msra.mxu0 0.0
          %898 = vmatprep.subr.mxu0 0.0
          %899 = vmatpush1.msra.mxu0 0.0
          %900 = vmatprep.subr.mxu0 0.0
          %901 = vmatpush1.msra.mxu0 0.0
          %902 = vmatprep.subr.mxu0 0.0
          %903 = vmatpush1.msra.mxu0 0.0
          %904 = vmatprep.mubr.f32.mxu0 0.0
          %905 = vmatmul.mubr.f32.gmra.mrb[0].mxu0 %v573
          %v906 = vpop.f32.mrb[0].mxu0
          %v907 = vadd.f32 %v548, %v906
          %v908 = vpop.f32.mrb[0].mxu0
          %v909 = vadd.f32 %v552, %v908
          %910 = vmatprep.mubr.f32.mxu0 0.0
          %911 = vmatmul.mubr.f32.gmra.mrb[0].mxu0 %v576
          %v912 = vpop.f32.mrb[0].mxu0
          %v913 = vadd.f32 %v548, %v912
          %v914 = vpop.f32.mrb[0].mxu0
          %v915 = vadd.f32 %v552, %v914
          %916 = vdwg.mxu0
          %917 = vmatprep.subr.mxu0 %v506
          %918 = vmatpush1.msra.mxu0 %v505
          %919 = vmatprep.subr.mxu0 %v607
          %920 = vmatpush1.msra.mxu0 %v604
          %921 = vmatprep.subr.mxu0 0.0
          %922 = vmatpush1.msra.mxu0 0.0
          %923 = vmatprep.subr.mxu0 0.0
          %924 = vmatpush1.msra.mxu0 0.0
          %925 = vmatprep.subr.mxu0 0.0
          %926 = vmatpush1.msra.mxu0 0.0
          %927 = vmatprep.subr.mxu0 0.0
          %928 = vmatpush1.msra.mxu0 0.0
          %929 = vmatprep.subr.mxu0 0.0
          %930 = vmatpush1.msra.mxu0 0.0
          %931 = vmatprep.subr.mxu0 0.0
          %932 = vmatpush1.msra.mxu0 0.0
          %933 = vmatprep.subr.mxu0 0.0
          %934 = vmatpush1.msra.mxu0 0.0
          %935 = vmatprep.subr.mxu0 0.0
          %936 = vmatpush1.msra.mxu0 0.0
          %937 = vmatprep.subr.mxu0 0.0
          %938 = vmatpush1.msra.mxu0 0.0
          %939 = vmatprep.subr.mxu0 0.0
          %940 = vmatpush1.msra.mxu0 0.0
          %941 = vmatprep.subr.mxu0 0.0
          %942 = vmatpush1.msra.mxu0 0.0
          %943 = vmatprep.subr.mxu0 0.0
          %944 = vmatpush1.msra.mxu0 0.0
          %945 = vmatprep.subr.mxu0 0.0
          %946 = vmatpush1.msra.mxu0 0.0
          %947 = vmatprep.subr.mxu0 0.0
          %948 = vmatpush1.msra.mxu0 0.0
          %949 = vmatprep.subr.mxu0 0.0
          %950 = vmatpush1.msra.mxu0 0.0
          %951 = vmatprep.subr.mxu0 0.0
          %952 = vmatpush1.msra.mxu0 0.0
          %953 = vmatprep.subr.mxu0 0.0
          %954 = vmatpush1.msra.mxu0 0.0
          %955 = vmatprep.subr.mxu0 0.0
          %956 = vmatpush1.msra.mxu0 0.0
          %957 = vmatprep.subr.mxu0 0.0
          %958 = vmatpush1.msra.mxu0 0.0
          %959 = vmatprep.subr.mxu0 0.0
          %960 = vmatpush1.msra.mxu0 0.0
          %961 = vmatprep.subr.mxu0 0.0
          %962 = vmatpush1.msra.mxu0 0.0
          %963 = vmatprep.subr.mxu0 0.0
          %964 = vmatpush1.msra.mxu0 0.0
          %965 = vmatprep.subr.mxu0 0.0
          %966 = vmatpush1.msra.mxu0 0.0
          %967 = vmatprep.subr.mxu0 0.0
          %968 = vmatpush1.msra.mxu0 0.0
          %969 = vmatprep.subr.mxu0 0.0
          %970 = vmatpush1.msra.mxu0 0.0
          %971 = vmatprep.subr.mxu0 0.0
          %972 = vmatpush1.msra.mxu0 0.0
          %973 = vmatprep.subr.mxu0 0.0
          %974 = vmatpush1.msra.mxu0 0.0
          %975 = vmatprep.subr.mxu0 0.0
          %976 = vmatpush1.msra.mxu0 0.0
          %977 = vmatprep.subr.mxu0 0.0
          %978 = vmatpush1.msra.mxu0 0.0
          %979 = vmatprep.subr.mxu0 0.0
          %980 = vmatpush1.msra.mxu0 0.0
          %981 = vmatprep.mubr.f32.mxu0 0.0
          %982 = vmatmul.mubr.f32.gmra.mrb[0].mxu0 %v573
          %v983 = vpop.f32.mrb[0].mxu0
          %v984 = vadd.f32 %v556, %v983
          %v985 = vpop.f32.mrb[0].mxu0
          %v986 = vadd.f32 %v560, %v985
          %987 = vmatprep.mubr.f32.mxu0 0.0
          %988 = vmatmul.mubr.f32.gmra.mrb[0].mxu0 %v576
          %v989 = vpop.f32.mrb[0].mxu0
          %v990 = vadd.f32 %v556, %v989
          %v991 = vpop.f32.mrb[0].mxu0
          %v992 = vadd.f32 %v560, %v991
          %993 = vdwg.mxu0
          %v994 = vmax.f32 %v676, 0.0
          %v995 = vmax.f32 %v678, 0.0
          %v996 = vmax.f32 %v753, 0.0
          %v997 = vmax.f32 %v755, 0.0
          %v998 = vmax.f32 %v830, 0.0
          %v999 = vmax.f32 %v832, 0.0
          %v1000 = vmax.f32 %v907, 0.0
          %v1001 = vmax.f32 %v909, 0.0
          %v1002 = vmax.f32 %v984, 0.0
          %v1003 = vmax.f32 %v986, 0.0
          %v1004 = vmax.f32 %v682, 0.0
          %v1005 = vmax.f32 %v684, 0.0
          %v1006 = vmax.f32 %v759, 0.0
          %v1007 = vmax.f32 %v761, 0.0
          %v1008 = vmax.f32 %v836, 0.0
          %v1009 = vmax.f32 %v838, 0.0
          %v1010 = vmax.f32 %v913, 0.0
          %v1011 = vmax.f32 %v915, 0.0
          %v1012 = vmax.f32 %v990, 0.0
          %v1013 = vmax.f32 %v992, 0.0
          %1014 = vst [vmem:[#allocation2] sm:$0xff] %v994
          %1015 = vst [vmem:[#allocation2 + $0x8] sm:$0xff] %v995
          %1016 = vst [vmem:[#allocation2 + $0x10] sm:$0xff] %v996
          %1017 = vst [vmem:[#allocation2 + $0x18] sm:$0xff] %v997
          %1018 = vst [vmem:[#allocation2 + $0x20] sm:$0xff] %v998
          %1019 = vst [vmem:[#allocation2 + $0x28] sm:$0xff] %v999
          %1020 = vst [vmem:[#allocation2 + $0x30] sm:$0xff] %v1000
          %1021 = vst [vmem:[#allocation2 + $0x38] sm:$0xff] %v1001
          %1022 = vst [vmem:[#allocation2 + $0x40] sm:$0xff] %v1002
          %1023 = vst [vmem:[#allocation2 + $0x48] sm:$0xff] %v1003
          %1024 = vst [vmem:[#allocation2 + $0x50] sm:$0xff] %v1004
          %1025 = vst [vmem:[#allocation2 + $0x58] sm:$0xff] %v1005
          %1026 = vst [vmem:[#allocation2 + $0x60] sm:$0xff] %v1006
          %1027 = vst [vmem:[#allocation2 + $0x68] sm:$0xff] %v1007
          %1028 = vst [vmem:[#allocation2 + $0x70] sm:$0xff] %v1008
          %1029 = vst [vmem:[#allocation2 + $0x78] sm:$0xff] %v1009
          %1030 = vst [vmem:[#allocation2 + $0x80] sm:$0xff] %v1010
          %1031 = vst [vmem:[#allocation2 + $0x88] sm:$0xff] %v1011
          %1032 = vst [vmem:[#allocation2 + $0x90] sm:$0xff] %v1012
          %1033 = vst [vmem:[#allocation2 + $0x98] sm:$0xff] %v1013
        $region96: #{gcn_forward.1} parent=55 // pred_fallthru
          _
        %v1034 = vld [vmem:[#allocation2] sm:$0xff]
        %v1035 = vld [vmem:[#allocation2 + $0x8] sm:$0xff]
        %v1036 = vld [vmem:[#allocation2 + $0x10] sm:$0xff]
        %v1037 = vld [vmem:[#allocation2 + $0x18] sm:$0xff]
        %v1038 = vld [vmem:[#allocation2 + $0x20] sm:$0xff]
        %v1039 = vld [vmem:[#allocation2 + $0x28] sm:$0xff]
        %v1040 = vld [vmem:[#allocation2 + $0x30] sm:$0xff]
        %v1041 = vld [vmem:[#allocation2 + $0x38] sm:$0xff]
        %v1042 = vld [vmem:[#allocation2 + $0x40] sm:$0xff]
        %v1043 = vld [vmem:[#allocation2 + $0x48] sm:$0xff]
        %v1044 = vld [vmem:[#allocation2 + $0x50] sm:$0xff]
        %v1045 = vld [vmem:[#allocation2 + $0x58] sm:$0xff]
        %v1046 = vld [vmem:[#allocation2 + $0x60] sm:$0xff]
        %v1047 = vld [vmem:[#allocation2 + $0x68] sm:$0xff]
        %v1048 = vld [vmem:[#allocation2 + $0x70] sm:$0xff]
        %v1049 = vld [vmem:[#allocation2 + $0x78] sm:$0xff]
        %v1050 = vld [vmem:[#allocation2 + $0x80] sm:$0xff]
        %v1051 = vld [vmem:[#allocation2 + $0x88] sm:$0xff]
        %v1052 = vld [vmem:[#allocation2 + $0x90] sm:$0xff]
        %v1053 = vld [vmem:[#allocation2 + $0x98] sm:$0xff]
        %v1054 = vld [vmem:[%s442] sm:$0x3f]
        %v1055 = vld [vmem:[%s442 + $0x8] sm:$0x3f]
        %v1056 = vld [vmem:[%s442 + $0x10] sm:$0x3f]
        %v1057 = vld [vmem:[%s442 + $0x18] sm:$0x3f]
        %v1058 = vld [vmem:[%s442 + $0x20] sm:$0x3f]
        %v1059 = vld [vmem:[%s442 + $0x28] sm:$0x3f]
        %v1060 = vld [vmem:[%s442 + $0x30] sm:$0x3f]
        %v1061 = vld [vmem:[%s442 + $0x38] sm:$0x3f]
        %v1062 = vld [vmem:[%s442 + $0x40] sm:$0x3f]
        %v1063 = vld [vmem:[%s442 + $0x48] sm:$0x3f]
        %v1064 = vld [vmem:[%s424] sm:$0xff]
        %v1065 = vld [vmem:[%s424 + $0x8] sm:$0xff]
        %v1066 = vld [vmem:[%s424 + $0x10] sm:$0xff]
        %v1067 = vld [vmem:[%s424 + $0x18] sm:$0xff]
        %v1068 = vld [vmem:[%s424 + $0x20] sm:$0xff]
        %v1069 = vld [vmem:[%s424 + $0x28] sm:$0xff]
        %v1070 = vld [vmem:[%s424 + $0x30] sm:$0xff]
        %v1071 = vld [vmem:[%s424 + $0x38] sm:$0xff]
        %v1072 = vld [vmem:[%s424 + $0x40] sm:$0xff]
        %v1073 = vld [vmem:[%s424 + $0x48] sm:$0xff]
        %v1074 = vld [vmem:[%s424 + $0x50] sm:$0xff]
        %v1075 = vld [vmem:[%s424 + $0x58] sm:$0xff]
        %v1076 = vld [vmem:[%s424 + $0x60] sm:$0xff]
        %v1077 = vld [vmem:[%s424 + $0x68] sm:$0xff]
        %v1078 = vld [vmem:[%s424 + $0x70] sm:$0xff]
        %v1079 = vld [vmem:[%s424 + $0x78] sm:$0xff]
        %v1080 = vld [vmem:[%s424 + $0x80] sm:$0xff]
        %v1081 = vld [vmem:[%s424 + $0x88] sm:$0xff]
        %v1082 = vld [vmem:[%s424 + $0x90] sm:$0xff]
        %v1083 = vld [vmem:[%s424 + $0x98] sm:$0xff]
        %v1084 = vld [vmem:[%s424 + $0xa0] sm:$0xff]
        %v1085 = vld [vmem:[%s424 + $0xa8] sm:$0xff]
        %v1086 = vld [vmem:[%s424 + $0xb0] sm:$0xff]
        %v1087 = vld [vmem:[%s424 + $0xb8] sm:$0xff]
        %v1088 = vld [vmem:[%s424 + $0xc0] sm:$0xff]
        %v1089 = vld [vmem:[%s424 + $0xc8] sm:$0xff]
        %v1090 = vld [vmem:[%s424 + $0xd0] sm:$0xff]
        %v1091 = vld [vmem:[%s424 + $0xd8] sm:$0xff]
        %v1092 = vld [vmem:[%s424 + $0xe0] sm:$0xff]
        %v1093 = vld [vmem:[%s424 + $0xe8] sm:$0xff]
        %v1094 = vld [vmem:[%s424 + $0xf0] sm:$0xff]
        %v1095 = vld [vmem:[%s424 + $0xf8] sm:$0xff]
        %v1096 = vld [vmem:[%s424 + $0x100] sm:$0xff]
        %v1097 = vld [vmem:[%s424 + $0x108] sm:$0xff]
        %v1098 = vld [vmem:[%s424 + $0x110] sm:$0xff]
        %v1099 = vld [vmem:[%s424 + $0x118] sm:$0xff]
        %v1100 = vld [vmem:[%s424 + $0x120] sm:$0xff]
        %v1101 = vld [vmem:[%s424 + $0x128] sm:$0xff]
        %v1102 = vld [vmem:[%s424 + $0x130] sm:$0xff]
        %v1103 = vld [vmem:[%s424 + $0x138] sm:$0xff]
        %v1104 = vld [vmem:[%s424 + $0x140] sm:$0xff]
        %v1105 = vld [vmem:[%s424 + $0x148] sm:$0xff]
        %v1106 = vld [vmem:[%s424 + $0x150] sm:$0xff]
        %v1107 = vld [vmem:[%s424 + $0x158] sm:$0xff]
        %v1108 = vld [vmem:[%s424 + $0x160] sm:$0xff]
        %v1109 = vld [vmem:[%s424 + $0x168] sm:$0xff]
        %v1110 = vld [vmem:[%s424 + $0x170] sm:$0xff]
        %v1111 = vld [vmem:[%s424 + $0x178] sm:$0xff]
        %v1112 = vld [vmem:[%s424 + $0x180] sm:$0xff]
        %v1113 = vld [vmem:[%s424 + $0x188] sm:$0xff]
        %v1114 = vld [vmem:[%s424 + $0x190] sm:$0xff]
        %v1115 = vld [vmem:[%s424 + $0x198] sm:$0xff]
        %v1116 = vld [vmem:[%s424 + $0x1a0] sm:$0xff]
        %v1117 = vld [vmem:[%s424 + $0x1a8] sm:$0xff]
        %v1118 = vld [vmem:[%s424 + $0x1b0] sm:$0xff]
        %v1119 = vld [vmem:[%s424 + $0x1b8] sm:$0xff]
        %v1120 = vld [vmem:[%s424 + $0x1c0] sm:$0xff]
        %v1121 = vld [vmem:[%s424 + $0x1c8] sm:$0xff]
        %v1122 = vld [vmem:[%s424 + $0x1d0] sm:$0xff]
        %v1123 = vld [vmem:[%s424 + $0x1d8] sm:$0xff]
        %v1124 = vld [vmem:[%s424 + $0x1e0] sm:$0xff]
        %v1125 = vld [vmem:[%s424 + $0x1e8] sm:$0xff]
        %v1126 = vld [vmem:[%s424 + $0x1f0] sm:$0xff]
        %v1127 = vld [vmem:[%s424 + $0x1f8] sm:$0xff]
        %v1128 = vld [vmem:[%s424 + $0x200] sm:$0xff]
        %v1129 = vld [vmem:[%s424 + $0x208] sm:$0xff]
        %v1130 = vld [vmem:[%s424 + $0x210] sm:$0xff]
        %v1131 = vld [vmem:[%s424 + $0x218] sm:$0xff]
        %v1132 = vld [vmem:[%s424 + $0x220] sm:$0xff]
        %v1133 = vld [vmem:[%s424 + $0x228] sm:$0xff]
        %v1134 = vld [vmem:[%s424 + $0x230] sm:$0xff]
        %v1135 = vld [vmem:[%s424 + $0x238] sm:$0xff]
        %v1136 = vld [vmem:[%s424 + $0x240] sm:$0xff]
        %v1137 = vld [vmem:[%s424 + $0x248] sm:$0xff]
        %v1138 = vld [vmem:[%s424 + $0x250] sm:$0xff]
        %v1139 = vld [vmem:[%s424 + $0x258] sm:$0xff]
        %v1140 = vld [vmem:[%s424 + $0x260] sm:$0xff]
        %v1141 = vld [vmem:[%s424 + $0x268] sm:$0xff]
        %v1142 = vld [vmem:[%s424 + $0x270] sm:$0xff]
        %v1143 = vld [vmem:[%s424 + $0x278] sm:$0xff]
        %v1144 = vld [vmem:[%s424 + $0x280] sm:$0xff]
        %v1145 = vld [vmem:[%s424 + $0x288] sm:$0xff]
        %v1146 = vld [vmem:[%s424 + $0x290] sm:$0xff]
        %v1147 = vld [vmem:[%s424 + $0x298] sm:$0xff]
        %v1148 = vld [vmem:[%s424 + $0x2a0] sm:$0xff]
        %v1149 = vld [vmem:[%s424 + $0x2a8] sm:$0xff]
        %v1150 = vld [vmem:[%s424 + $0x2b0] sm:$0xff]
        %v1151 = vld [vmem:[%s424 + $0x2b8] sm:$0xff]
        %v1152 = vld [vmem:[%s424 + $0x2c0] sm:$0xff]
        %v1153 = vld [vmem:[%s424 + $0x2c8] sm:$0xff]
        %v1154 = vld [vmem:[%s424 + $0x2d0] sm:$0xff]
        %v1155 = vld [vmem:[%s424 + $0x2d8] sm:$0xff]
        %v1156 = vld [vmem:[%s424 + $0x2e0] sm:$0xff]
        %v1157 = vld [vmem:[%s424 + $0x2e8] sm:$0xff]
        %v1158 = vld [vmem:[%s424 + $0x2f0] sm:$0xff]
        %v1159 = vld [vmem:[%s424 + $0x2f8] sm:$0xff]
        %v1160 = vld [vmem:[%s424 + $0x300] sm:$0xff]
        %v1161 = vld [vmem:[%s424 + $0x308] sm:$0xff]
        %v1162 = vld [vmem:[%s424 + $0x310] sm:$0xff]
        %v1163 = vld [vmem:[%s424 + $0x318] sm:$0xff]
        %v1164 = vld [vmem:[%s424 + $0x320] sm:$0xff]
        %v1165 = vld [vmem:[%s424 + $0x328] sm:$0xff]
        %v1166 = vld [vmem:[%s424 + $0x330] sm:$0xff]
        %v1167 = vld [vmem:[%s424 + $0x338] sm:$0xff]
        %v1168 = vld [vmem:[%s424 + $0x340] sm:$0xff]
        %v1169 = vld [vmem:[%s424 + $0x348] sm:$0xff]
        %v1170 = vld [vmem:[%s424 + $0x350] sm:$0xff]
        %v1171 = vld [vmem:[%s424 + $0x358] sm:$0xff]
        %v1172 = vld [vmem:[%s424 + $0x360] sm:$0xff]
        %v1173 = vld [vmem:[%s424 + $0x368] sm:$0xff]
        %v1174 = vld [vmem:[%s424 + $0x370] sm:$0xff]
        %v1175 = vld [vmem:[%s424 + $0x378] sm:$0xff]
        %v1176 = vld [vmem:[%s424 + $0x380] sm:$0xff]
        %v1177 = vld [vmem:[%s424 + $0x388] sm:$0xff]
        %v1178 = vld [vmem:[%s424 + $0x390] sm:$0xff]
        %v1179 = vld [vmem:[%s424 + $0x398] sm:$0xff]
        %v1180 = vld [vmem:[%s424 + $0x3a0] sm:$0xff]
        %v1181 = vld [vmem:[%s424 + $0x3a8] sm:$0xff]
        %v1182 = vld [vmem:[%s424 + $0x3b0] sm:$0xff]
        %v1183 = vld [vmem:[%s424 + $0x3b8] sm:$0xff]
        %v1184 = vld [vmem:[%s424 + $0x3c0] sm:$0xff]
        %v1185 = vld [vmem:[%s424 + $0x3c8] sm:$0xff]
        %v1186 = vld [vmem:[%s424 + $0x3d0] sm:$0xff]
        %v1187 = vld [vmem:[%s424 + $0x3d8] sm:$0xff]
        %v1188 = vld [vmem:[%s424 + $0x3e0] sm:$0xff]
        %v1189 = vld [vmem:[%s424 + $0x3e8] sm:$0xff]
        %v1190 = vld [vmem:[%s424 + $0x3f0] sm:$0xff]
        %v1191 = vld [vmem:[%s424 + $0x3f8] sm:$0xff]
        %v1192 = vld [vmem:[%s424 + $0x400] sm:$0xff]
        %v1193 = vld [vmem:[%s424 + $0x408] sm:$0xff]
        %v1194 = vld [vmem:[%s424 + $0x410] sm:$0xff]
        %v1195 = vld [vmem:[%s424 + $0x418] sm:$0xff]
        %v1196 = vld [vmem:[%s424 + $0x420] sm:$0xff]
        %v1197 = vld [vmem:[%s424 + $0x428] sm:$0xff]
        %v1198 = vld [vmem:[%s424 + $0x430] sm:$0xff]
        %v1199 = vld [vmem:[%s424 + $0x438] sm:$0xff]
        %v1200 = vld [vmem:[%s424 + $0x440] sm:$0xff]
        %v1201 = vld [vmem:[%s424 + $0x448] sm:$0xff]
        %v1202 = vld [vmem:[%s424 + $0x450] sm:$0xff]
        %v1203 = vld [vmem:[%s424 + $0x458] sm:$0xff]
        %v1204 = vld [vmem:[%s424 + $0x460] sm:$0xff]
        %v1205 = vld [vmem:[%s424 + $0x468] sm:$0xff]
        %v1206 = vld [vmem:[%s424 + $0x470] sm:$0xff]
        %v1207 = vld [vmem:[%s424 + $0x478] sm:$0xff]
        %v1208 = vld [vmem:[%s424 + $0x480] sm:$0xff]
        %v1209 = vld [vmem:[%s424 + $0x488] sm:$0xff]
        %v1210 = vld [vmem:[%s424 + $0x490] sm:$0xff]
        %v1211 = vld [vmem:[%s424 + $0x498] sm:$0xff]
        %v1212 = vld [vmem:[%s424 + $0x4a0] sm:$0xff]
        %v1213 = vld [vmem:[%s424 + $0x4a8] sm:$0xff]
        %v1214 = vld [vmem:[%s424 + $0x4b0] sm:$0xff]
        %v1215 = vld [vmem:[%s424 + $0x4b8] sm:$0xff]
        %v1216 = vld [vmem:[%s424 + $0x4c0] sm:$0xff]
        %v1217 = vld [vmem:[%s424 + $0x4c8] sm:$0xff]
        %v1218 = vld [vmem:[%s424 + $0x4d0] sm:$0xff]
        %v1219 = vld [vmem:[%s424 + $0x4d8] sm:$0xff]
        %v1220 = vld [vmem:[%s424 + $0x4e0] sm:$0xff]
        %v1221 = vld [vmem:[%s424 + $0x4e8] sm:$0xff]
        %v1222 = vld [vmem:[%s424 + $0x4f0] sm:$0xff]
        %v1223 = vld [vmem:[%s424 + $0x4f8] sm:$0xff]
        %v1224 = vld [vmem:[%s424 + $0x500] sm:$0xff]
        %v1225 = vld [vmem:[%s424 + $0x508] sm:$0xff]
        %v1226 = vld [vmem:[%s424 + $0x510] sm:$0xff]
        %v1227 = vld [vmem:[%s424 + $0x518] sm:$0xff]
        %v1228 = vld [vmem:[%s424 + $0x520] sm:$0xff]
        %v1229 = vld [vmem:[%s424 + $0x528] sm:$0xff]
        %v1230 = vld [vmem:[%s424 + $0x530] sm:$0xff]
        %v1231 = vld [vmem:[%s424 + $0x538] sm:$0xff]
        %v1232 = vld [vmem:[%s424 + $0x540] sm:$0xff]
        %v1233 = vld [vmem:[%s424 + $0x548] sm:$0xff]
        %v1234 = vld [vmem:[%s424 + $0x550] sm:$0xff]
        %v1235 = vld [vmem:[%s424 + $0x558] sm:$0xff]
        %v1236 = vld [vmem:[%s424 + $0x560] sm:$0xff]
        %v1237 = vld [vmem:[%s424 + $0x568] sm:$0xff]
        %v1238 = vld [vmem:[%s424 + $0x570] sm:$0xff]
        %v1239 = vld [vmem:[%s424 + $0x578] sm:$0xff]
        %v1240 = vld [vmem:[%s424 + $0x580] sm:$0xff]
        %v1241 = vld [vmem:[%s424 + $0x588] sm:$0xff]
        %v1242 = vld [vmem:[%s424 + $0x590] sm:$0xff]
        %v1243 = vld [vmem:[%s424 + $0x598] sm:$0xff]
        %v1244 = vld [vmem:[%s424 + $0x5a0] sm:$0xff]
        %v1245 = vld [vmem:[%s424 + $0x5a8] sm:$0xff]
        %v1246 = vld [vmem:[%s424 + $0x5b0] sm:$0xff]
        %v1247 = vld [vmem:[%s424 + $0x5b8] sm:$0xff]
        %v1248 = vld [vmem:[%s424 + $0x5c0] sm:$0xff]
        %v1249 = vld [vmem:[%s424 + $0x5c8] sm:$0xff]
        %v1250 = vld [vmem:[%s424 + $0x5d0] sm:$0xff]
        %v1251 = vld [vmem:[%s424 + $0x5d8] sm:$0xff]
        %v1252 = vld [vmem:[%s424 + $0x5e0] sm:$0xff]
        %v1253 = vld [vmem:[%s424 + $0x5e8] sm:$0xff]
        %v1254 = vld [vmem:[%s424 + $0x5f0] sm:$0xff]
        %v1255 = vld [vmem:[%s424 + $0x5f8] sm:$0xff]
        %v1256 = vld [vmem:[%s424 + $0x600] sm:$0xff]
        %v1257 = vld [vmem:[%s424 + $0x608] sm:$0xff]
        %v1258 = vld [vmem:[%s424 + $0x610] sm:$0xff]
        %v1259 = vld [vmem:[%s424 + $0x618] sm:$0xff]
        %v1260 = vld [vmem:[%s424 + $0x620] sm:$0xff]
        %v1261 = vld [vmem:[%s424 + $0x628] sm:$0xff]
        %v1262 = vld [vmem:[%s424 + $0x630] sm:$0xff]
        %v1263 = vld [vmem:[%s424 + $0x638] sm:$0xff]
        %v1264 = vld [vmem:[%s424 + $0x640] sm:$0xff]
        %v1265 = vld [vmem:[%s424 + $0x648] sm:$0xff]
        %v1266 = vld [vmem:[%s424 + $0x650] sm:$0xff]
        %v1267 = vld [vmem:[%s424 + $0x658] sm:$0xff]
        %v1268 = vld [vmem:[%s424 + $0x660] sm:$0xff]
        %v1269 = vld [vmem:[%s424 + $0x668] sm:$0xff]
        %v1270 = vld [vmem:[%s424 + $0x670] sm:$0xff]
        %v1271 = vld [vmem:[%s424 + $0x678] sm:$0xff]
        %v1272 = vld [vmem:[%s424 + $0x680] sm:$0xff]
        %v1273 = vld [vmem:[%s424 + $0x688] sm:$0xff]
        %v1274 = vld [vmem:[%s424 + $0x690] sm:$0xff]
        %v1275 = vld [vmem:[%s424 + $0x698] sm:$0xff]
        %v1276 = vld [vmem:[%s424 + $0x6a0] sm:$0xff]
        %v1277 = vld [vmem:[%s424 + $0x6a8] sm:$0xff]
        %v1278 = vld [vmem:[%s424 + $0x6b0] sm:$0xff]
        %v1279 = vld [vmem:[%s424 + $0x6b8] sm:$0xff]
        %v1280 = vld [vmem:[%s424 + $0x6c0] sm:$0xff]
        %v1281 = vld [vmem:[%s424 + $0x6c8] sm:$0xff]
        %v1282 = vld [vmem:[%s424 + $0x6d0] sm:$0xff]
        %v1283 = vld [vmem:[%s424 + $0x6d8] sm:$0xff]
        %v1284 = vld [vmem:[%s424 + $0x6e0] sm:$0xff]
        %v1285 = vld [vmem:[%s424 + $0x6e8] sm:$0xff]
        %v1286 = vld [vmem:[%s424 + $0x6f0] sm:$0xff]
        %v1287 = vld [vmem:[%s424 + $0x6f8] sm:$0xff]
        %v1288 = vld [vmem:[%s424 + $0x700] sm:$0xff]
        %v1289 = vld [vmem:[%s424 + $0x708] sm:$0xff]
        %v1290 = vld [vmem:[%s424 + $0x710] sm:$0xff]
        %v1291 = vld [vmem:[%s424 + $0x718] sm:$0xff]
        %v1292 = vld [vmem:[%s424 + $0x720] sm:$0xff]
        %v1293 = vld [vmem:[%s424 + $0x728] sm:$0xff]
        %v1294 = vld [vmem:[%s424 + $0x730] sm:$0xff]
        %v1295 = vld [vmem:[%s424 + $0x738] sm:$0xff]
        %v1296 = vld [vmem:[%s424 + $0x740] sm:$0xff]
        %v1297 = vld [vmem:[%s424 + $0x748] sm:$0xff]
        %v1298 = vld [vmem:[%s424 + $0x750] sm:$0xff]
        %v1299 = vld [vmem:[%s424 + $0x758] sm:$0xff]
        %v1300 = vld [vmem:[%s424 + $0x760] sm:$0xff]
        %v1301 = vld [vmem:[%s424 + $0x768] sm:$0xff]
        %v1302 = vld [vmem:[%s424 + $0x770] sm:$0xff]
        %v1303 = vld [vmem:[%s424 + $0x778] sm:$0xff]
        %v1304 = vld [vmem:[%s424 + $0x780] sm:$0xff]
        %v1305 = vld [vmem:[%s424 + $0x788] sm:$0xff]
        %v1306 = vld [vmem:[%s424 + $0x790] sm:$0xff]
        %v1307 = vld [vmem:[%s424 + $0x798] sm:$0xff]
        %v1308 = vld [vmem:[%s424 + $0x7a0] sm:$0xff]
        %v1309 = vld [vmem:[%s424 + $0x7a8] sm:$0xff]
        %v1310 = vld [vmem:[%s424 + $0x7b0] sm:$0xff]
        %v1311 = vld [vmem:[%s424 + $0x7b8] sm:$0xff]
        %v1312 = vld [vmem:[%s424 + $0x7c0] sm:$0xff]
        %v1313 = vld [vmem:[%s424 + $0x7c8] sm:$0xff]
        %v1314 = vld [vmem:[%s424 + $0x7d0] sm:$0xff]
        %v1315 = vld [vmem:[%s424 + $0x7d8] sm:$0xff]
        %v1316 = vld [vmem:[%s424 + $0x7e0] sm:$0xff]
        %v1317 = vld [vmem:[%s424 + $0x7e8] sm:$0xff]
        %v1318 = vld [vmem:[%s424 + $0x7f0] sm:$0xff]
        %v1319 = vld [vmem:[%s424 + $0x7f8] sm:$0xff]
        %v1320 = vld [vmem:[%s424 + $0x800] sm:$0xff]
        %v1321 = vld [vmem:[%s424 + $0x808] sm:$0xff]
        %v1322 = vld [vmem:[%s424 + $0x810] sm:$0xff]
        %v1323 = vld [vmem:[%s424 + $0x818] sm:$0xff]
        %v1324 = vld [vmem:[%s424 + $0x820] sm:$0xff]
        %v1325 = vld [vmem:[%s424 + $0x828] sm:$0xff]
        %v1326 = vld [vmem:[%s424 + $0x830] sm:$0xff]
        %v1327 = vld [vmem:[%s424 + $0x838] sm:$0xff]
        %v1328 = vld [vmem:[%s424 + $0x840] sm:$0xff]
        %v1329 = vld [vmem:[%s424 + $0x848] sm:$0xff]
        %v1330 = vld [vmem:[%s424 + $0x850] sm:$0xff]
        %v1331 = vld [vmem:[%s424 + $0x858] sm:$0xff]
        %v1332 = vld [vmem:[%s424 + $0x860] sm:$0xff]
        %v1333 = vld [vmem:[%s424 + $0x868] sm:$0xff]
        %v1334 = vld [vmem:[%s424 + $0x870] sm:$0xff]
        %v1335 = vld [vmem:[%s424 + $0x878] sm:$0xff]
        %v1336 = vld [vmem:[%s424 + $0x880] sm:$0xff]
        %v1337 = vld [vmem:[%s424 + $0x888] sm:$0xff]
        %v1338 = vld [vmem:[%s424 + $0x890] sm:$0xff]
        %v1339 = vld [vmem:[%s424 + $0x898] sm:$0xff]
        %v1340 = vld [vmem:[%s424 + $0x8a0] sm:$0xff]
        %v1341 = vld [vmem:[%s424 + $0x8a8] sm:$0xff]
        %v1342 = vld [vmem:[%s424 + $0x8b0] sm:$0xff]
        %v1343 = vld [vmem:[%s424 + $0x8b8] sm:$0xff]
        %v1344 = vld [vmem:[%s424 + $0x8c0] sm:$0xff]
        %v1345 = vld [vmem:[%s424 + $0x8c8] sm:$0xff]
        %v1346 = vld [vmem:[%s424 + $0x8d0] sm:$0xff]
        %v1347 = vld [vmem:[%s424 + $0x8d8] sm:$0xff]
        %v1348 = vld [vmem:[%s424 + $0x8e0] sm:$0xff]
        %v1349 = vld [vmem:[%s424 + $0x8e8] sm:$0xff]
        %v1350 = vld [vmem:[%s424 + $0x8f0] sm:$0xff]
        %v1351 = vld [vmem:[%s424 + $0x8f8] sm:$0xff]
        %v1352 = vld [vmem:[%s424 + $0x900] sm:$0xff]
        %v1353 = vld [vmem:[%s424 + $0x908] sm:$0xff]
        %v1354 = vld [vmem:[%s424 + $0x910] sm:$0xff]
        %v1355 = vld [vmem:[%s424 + $0x918] sm:$0xff]
        %v1356 = vld [vmem:[%s424 + $0x920] sm:$0xff]
        %v1357 = vld [vmem:[%s424 + $0x928] sm:$0xff]
        %v1358 = vld [vmem:[%s424 + $0x930] sm:$0xff]
        %v1359 = vld [vmem:[%s424 + $0x938] sm:$0xff]
        %v1360 = vld [vmem:[%s424 + $0x940] sm:$0xff]
        %v1361 = vld [vmem:[%s424 + $0x948] sm:$0xff]
        %v1362 = vld [vmem:[%s424 + $0x950] sm:$0xff]
        %v1363 = vld [vmem:[%s424 + $0x958] sm:$0xff]
        %v1364 = vld [vmem:[%s424 + $0x960] sm:$0xff]
        %v1365 = vld [vmem:[%s424 + $0x968] sm:$0xff]
        %v1366 = vld [vmem:[%s424 + $0x970] sm:$0xff]
        %v1367 = vld [vmem:[%s424 + $0x978] sm:$0xff]
        %v1368 = vld [vmem:[%s424 + $0x980] sm:$0xff]
        %v1369 = vld [vmem:[%s424 + $0x988] sm:$0xff]
        %v1370 = vld [vmem:[%s424 + $0x990] sm:$0xff]
        %v1371 = vld [vmem:[%s424 + $0x998] sm:$0xff]
        %v1372 = vld [vmem:[%s424 + $0x9a0] sm:$0xff]
        %v1373 = vld [vmem:[%s424 + $0x9a8] sm:$0xff]
        %v1374 = vld [vmem:[%s424 + $0x9b0] sm:$0xff]
        %v1375 = vld [vmem:[%s424 + $0x9b8] sm:$0xff]
        %v1376 = vld [vmem:[%s424 + $0x9c0] sm:$0xff]
        %v1377 = vld [vmem:[%s424 + $0x9c8] sm:$0xff]
        %v1378 = vld [vmem:[%s424 + $0x9d0] sm:$0xff]
        %v1379 = vld [vmem:[%s424 + $0x9d8] sm:$0xff]
        %v1380 = vld [vmem:[%s424 + $0x9e0] sm:$0xff]
        %v1381 = vld [vmem:[%s424 + $0x9e8] sm:$0xff]
        %v1382 = vld [vmem:[%s424 + $0x9f0] sm:$0xff]
        %v1383 = vld [vmem:[%s424 + $0x9f8] sm:$0xff]
        %v1384 = vld [vmem:[%s424 + $0xa00] sm:$0xff]
        %v1385 = vld [vmem:[%s424 + $0xa08] sm:$0xff]
        %v1386 = vld [vmem:[%s424 + $0xa10] sm:$0xff]
        %v1387 = vld [vmem:[%s424 + $0xa18] sm:$0xff]
        %v1388 = vld [vmem:[%s424 + $0xa20] sm:$0xff]
        %v1389 = vld [vmem:[%s424 + $0xa28] sm:$0xff]
        %v1390 = vld [vmem:[%s424 + $0xa30] sm:$0xff]
        %v1391 = vld [vmem:[%s424 + $0xa38] sm:$0xff]
        %v1392 = vld [vmem:[%s424 + $0xa40] sm:$0xff]
        %v1393 = vld [vmem:[%s424 + $0xa48] sm:$0xff]
        %v1394 = vld [vmem:[%s424 + $0xa50] sm:$0xff]
        %v1395 = vld [vmem:[%s424 + $0xa58] sm:$0xff]
        %v1396 = vld [vmem:[%s424 + $0xa60] sm:$0xff]
        %v1397 = vld [vmem:[%s424 + $0xa68] sm:$0xff]
        %v1398 = vld [vmem:[%s424 + $0xa70] sm:$0xff]
        %v1399 = vld [vmem:[%s424 + $0xa78] sm:$0xff]
        %v1400 = vld [vmem:[%s424 + $0xa80] sm:$0xff]
        %v1401 = vld [vmem:[%s424 + $0xa88] sm:$0xff]
        %v1402 = vld [vmem:[%s424 + $0xa90] sm:$0xff]
        %v1403 = vld [vmem:[%s424 + $0xa98] sm:$0xff]
        %v1404 = vld [vmem:[%s424 + $0xaa0] sm:$0xff]
        %v1405 = vld [vmem:[%s424 + $0xaa8] sm:$0xff]
        %v1406 = vld [vmem:[%s424 + $0xab0] sm:$0xff]
        %v1407 = vld [vmem:[%s424 + $0xab8] sm:$0xff]
        %v1408 = vld [vmem:[%s424 + $0xac0] sm:$0xff]
        %v1409 = vld [vmem:[%s424 + $0xac8] sm:$0xff]
        %v1410 = vld [vmem:[%s424 + $0xad0] sm:$0xff]
        %v1411 = vld [vmem:[%s424 + $0xad8] sm:$0xff]
        %v1412 = vld [vmem:[%s424 + $0xae0] sm:$0xff]
        %v1413 = vld [vmem:[%s424 + $0xae8] sm:$0xff]
        %v1414 = vld [vmem:[%s424 + $0xaf0] sm:$0xff]
        %v1415 = vld [vmem:[%s424 + $0xaf8] sm:$0xff]
        %v1416 = vld [vmem:[%s424 + $0xb00] sm:$0xff]
        %v1417 = vld [vmem:[%s424 + $0xb08] sm:$0xff]
        %v1418 = vld [vmem:[%s424 + $0xb10] sm:$0xff]
        %v1419 = vld [vmem:[%s424 + $0xb18] sm:$0xff]
        %v1420 = vld [vmem:[%s424 + $0xb20] sm:$0xff]
        %v1421 = vld [vmem:[%s424 + $0xb28] sm:$0xff]
        %v1422 = vld [vmem:[%s424 + $0xb30] sm:$0xff]
        %v1423 = vld [vmem:[%s424 + $0xb38] sm:$0xff]
        %v1424 = vld [vmem:[%s424 + $0xb40] sm:$0xff]
        %v1425 = vld [vmem:[%s424 + $0xb48] sm:$0xff]
        %v1426 = vld [vmem:[%s424 + $0xb50] sm:$0xff]
        %v1427 = vld [vmem:[%s424 + $0xb58] sm:$0xff]
        %v1428 = vld [vmem:[%s424 + $0xb60] sm:$0xff]
        %v1429 = vld [vmem:[%s424 + $0xb68] sm:$0xff]
        %v1430 = vld [vmem:[%s424 + $0xb70] sm:$0xff]
        %v1431 = vld [vmem:[%s424 + $0xb78] sm:$0xff]
        %v1432 = vld [vmem:[%s424 + $0xb80] sm:$0xff]
        %v1433 = vld [vmem:[%s424 + $0xb88] sm:$0xff]
        %v1434 = vld [vmem:[%s424 + $0xb90] sm:$0xff]
        %v1435 = vld [vmem:[%s424 + $0xb98] sm:$0xff]
        %v1436 = vld [vmem:[%s424 + $0xba0] sm:$0xff]
        %v1437 = vld [vmem:[%s424 + $0xba8] sm:$0xff]
        %v1438 = vld [vmem:[%s424 + $0xbb0] sm:$0xff]
        %v1439 = vld [vmem:[%s424 + $0xbb8] sm:$0xff]
        %v1440 = vld [vmem:[%s424 + $0xbc0] sm:$0xff]
        %v1441 = vld [vmem:[%s424 + $0xbc8] sm:$0xff]
        %v1442 = vld [vmem:[%s424 + $0xbd0] sm:$0xff]
        %v1443 = vld [vmem:[%s424 + $0xbd8] sm:$0xff]
        %v1444 = vld [vmem:[%s424 + $0xbe0] sm:$0xff]
        %v1445 = vld [vmem:[%s424 + $0xbe8] sm:$0xff]
        %v1446 = vld [vmem:[%s424 + $0xbf0] sm:$0xff]
        %v1447 = vld [vmem:[%s424 + $0xbf8] sm:$0xff]
        %v1448 = vld [vmem:[%s424 + $0xc00] sm:$0xff]
        %v1449 = vld [vmem:[%s424 + $0xc08] sm:$0xff]
        %v1450 = vld [vmem:[%s424 + $0xc10] sm:$0xff]
        %v1451 = vld [vmem:[%s424 + $0xc18] sm:$0xff]
        %v1452 = vld [vmem:[%s424 + $0xc20] sm:$0xff]
        %v1453 = vld [vmem:[%s424 + $0xc28] sm:$0xff]
        %v1454 = vld [vmem:[%s424 + $0xc30] sm:$0xff]
        %v1455 = vld [vmem:[%s424 + $0xc38] sm:$0xff]
        %v1456 = vld [vmem:[%s424 + $0xc40] sm:$0xff]
        %v1457 = vld [vmem:[%s424 + $0xc48] sm:$0xff]
        %v1458 = vld [vmem:[%s424 + $0xc50] sm:$0xff]
        %v1459 = vld [vmem:[%s424 + $0xc58] sm:$0xff]
        %v1460 = vld [vmem:[%s424 + $0xc60] sm:$0xff]
        %v1461 = vld [vmem:[%s424 + $0xc68] sm:$0xff]
        %v1462 = vld [vmem:[%s424 + $0xc70] sm:$0xff]
        %v1463 = vld [vmem:[%s424 + $0xc78] sm:$0xff]
        %v1464 = vunpack.c.l.s8.bf16 %v1064
        %v1465 = vunpack.c.l.s8.bf16 %v1065
        %v1466 = vunpack.c.l.s8.bf16 %v1066
        %v1467 = vunpack.c.l.s8.bf16 %v1067
        %v1468 = vunpack.c.l.s8.bf16 %v1068
        %v1469 = vunpack.c.l.s8.bf16 %v1069
        %v1470 = vunpack.c.l.s8.bf16 %v1070
        %v1471 = vunpack.c.l.s8.bf16 %v1071
        %v1472 = vunpack.c.l.s8.bf16 %v1072
        %v1473 = vunpack.c.l.s8.bf16 %v1073
        %v1474 = vunpack.c.h.s8.bf16 %v1064
        %v1475 = vunpack.c.h.s8.bf16 %v1065
        %v1476 = vunpack.c.h.s8.bf16 %v1066
        %v1477 = vunpack.c.h.s8.bf16 %v1067
        %v1478 = vunpack.c.h.s8.bf16 %v1068
        %v1479 = vunpack.c.h.s8.bf16 %v1069
        %v1480 = vunpack.c.h.s8.bf16 %v1070
        %v1481 = vunpack.c.h.s8.bf16 %v1071
        %v1482 = vunpack.c.h.s8.bf16 %v1072
        %v1483 = vunpack.c.h.s8.bf16 %v1073
        %v1484 = vunpack.c.l.s8.bf16 %v1074
        %v1485 = vunpack.c.l.s8.bf16 %v1075
        %v1486 = vunpack.c.l.s8.bf16 %v1076
        %v1487 = vunpack.c.l.s8.bf16 %v1077
        %v1488 = vunpack.c.l.s8.bf16 %v1078
        %v1489 = vunpack.c.l.s8.bf16 %v1079
        %v1490 = vunpack.c.l.s8.bf16 %v1080
        %v1491 = vunpack.c.l.s8.bf16 %v1081
        %v1492 = vunpack.c.l.s8.bf16 %v1082
        %v1493 = vunpack.c.l.s8.bf16 %v1083
        %v1494 = vunpack.c.h.s8.bf16 %v1074
        %v1495 = vunpack.c.h.s8.bf16 %v1075
        %v1496 = vunpack.c.h.s8.bf16 %v1076
        %v1497 = vunpack.c.h.s8.bf16 %v1077
        %v1498 = vunpack.c.h.s8.bf16 %v1078
        %v1499 = vunpack.c.h.s8.bf16 %v1079
        %v1500 = vunpack.c.h.s8.bf16 %v1080
        %v1501 = vunpack.c.h.s8.bf16 %v1081
        %v1502 = vunpack.c.h.s8.bf16 %v1082
        %v1503 = vunpack.c.h.s8.bf16 %v1083
        %v1504 = vunpack.c.l.s8.bf16 %v1084
        %v1505 = vunpack.c.l.s8.bf16 %v1085
        %v1506 = vunpack.c.l.s8.bf16 %v1086
        %v1507 = vunpack.c.l.s8.bf16 %v1087
        %v1508 = vunpack.c.l.s8.bf16 %v1088
        %v1509 = vunpack.c.l.s8.bf16 %v1089
        %v1510 = vunpack.c.l.s8.bf16 %v1090
        %v1511 = vunpack.c.l.s8.bf16 %v1091
        %v1512 = vunpack.c.l.s8.bf16 %v1092
        %v1513 = vunpack.c.l.s8.bf16 %v1093
        %v1514 = vunpack.c.h.s8.bf16 %v1084
        %v1515 = vunpack.c.h.s8.bf16 %v1085
        %v1516 = vunpack.c.h.s8.bf16 %v1086
        %v1517 = vunpack.c.h.s8.bf16 %v1087
        %v1518 = vunpack.c.h.s8.bf16 %v1088
        %v1519 = vunpack.c.h.s8.bf16 %v1089
        %v1520 = vunpack.c.h.s8.bf16 %v1090
        %v1521 = vunpack.c.h.s8.bf16 %v1091
        %v1522 = vunpack.c.h.s8.bf16 %v1092
        %v1523 = vunpack.c.h.s8.bf16 %v1093
        %v1524 = vunpack.c.l.s8.bf16 %v1094
        %v1525 = vunpack.c.l.s8.bf16 %v1095
        %v1526 = vunpack.c.l.s8.bf16 %v1096
        %v1527 = vunpack.c.l.s8.bf16 %v1097
        %v1528 = vunpack.c.l.s8.bf16 %v1098
        %v1529 = vunpack.c.l.s8.bf16 %v1099
        %v1530 = vunpack.c.l.s8.bf16 %v1100
        %v1531 = vunpack.c.l.s8.bf16 %v1101
        %v1532 = vunpack.c.l.s8.bf16 %v1102
        %v1533 = vunpack.c.l.s8.bf16 %v1103
        %v1534 = vunpack.c.h.s8.bf16 %v1094
        %v1535 = vunpack.c.h.s8.bf16 %v1095
        %v1536 = vunpack.c.h.s8.bf16 %v1096
        %v1537 = vunpack.c.h.s8.bf16 %v1097
        %v1538 = vunpack.c.h.s8.bf16 %v1098
        %v1539 = vunpack.c.h.s8.bf16 %v1099
        %v1540 = vunpack.c.h.s8.bf16 %v1100
        %v1541 = vunpack.c.h.s8.bf16 %v1101
        %v1542 = vunpack.c.h.s8.bf16 %v1102
        %v1543 = vunpack.c.h.s8.bf16 %v1103
        %v1544 = vunpack.c.l.s8.bf16 %v1104
        %v1545 = vunpack.c.l.s8.bf16 %v1105
        %v1546 = vunpack.c.l.s8.bf16 %v1106
        %v1547 = vunpack.c.l.s8.bf16 %v1107
        %v1548 = vunpack.c.l.s8.bf16 %v1108
        %v1549 = vunpack.c.l.s8.bf16 %v1109
        %v1550 = vunpack.c.l.s8.bf16 %v1110
        %v1551 = vunpack.c.l.s8.bf16 %v1111
        %v1552 = vunpack.c.l.s8.bf16 %v1112
        %v1553 = vunpack.c.l.s8.bf16 %v1113
        %v1554 = vunpack.c.h.s8.bf16 %v1104
        %v1555 = vunpack.c.h.s8.bf16 %v1105
        %v1556 = vunpack.c.h.s8.bf16 %v1106
        %v1557 = vunpack.c.h.s8.bf16 %v1107
        %v1558 = vunpack.c.h.s8.bf16 %v1108
        %v1559 = vunpack.c.h.s8.bf16 %v1109
        %v1560 = vunpack.c.h.s8.bf16 %v1110
        %v1561 = vunpack.c.h.s8.bf16 %v1111
        %v1562 = vunpack.c.h.s8.bf16 %v1112
        %v1563 = vunpack.c.h.s8.bf16 %v1113
        %v1564 = vunpack.c.l.s8.bf16 %v1114
        %v1565 = vunpack.c.l.s8.bf16 %v1115
        %v1566 = vunpack.c.l.s8.bf16 %v1116
        %v1567 = vunpack.c.l.s8.bf16 %v1117
        %v1568 = vunpack.c.l.s8.bf16 %v1118
        %v1569 = vunpack.c.l.s8.bf16 %v1119
        %v1570 = vunpack.c.l.s8.bf16 %v1120
        %v1571 = vunpack.c.l.s8.bf16 %v1121
        %v1572 = vunpack.c.l.s8.bf16 %v1122
        %v1573 = vunpack.c.l.s8.bf16 %v1123
        %v1574 = vunpack.c.h.s8.bf16 %v1114
        %v1575 = vunpack.c.h.s8.bf16 %v1115
        %v1576 = vunpack.c.h.s8.bf16 %v1116
        %v1577 = vunpack.c.h.s8.bf16 %v1117
        %v1578 = vunpack.c.h.s8.bf16 %v1118
        %v1579 = vunpack.c.h.s8.bf16 %v1119
        %v1580 = vunpack.c.h.s8.bf16 %v1120
        %v1581 = vunpack.c.h.s8.bf16 %v1121
        %v1582 = vunpack.c.h.s8.bf16 %v1122
        %v1583 = vunpack.c.h.s8.bf16 %v1123
        %v1584 = vunpack.c.l.s8.bf16 %v1124
        %v1585 = vunpack.c.l.s8.bf16 %v1125
        %v1586 = vunpack.c.l.s8.bf16 %v1126
        %v1587 = vunpack.c.l.s8.bf16 %v1127
        %v1588 = vunpack.c.l.s8.bf16 %v1128
        %v1589 = vunpack.c.l.s8.bf16 %v1129
        %v1590 = vunpack.c.l.s8.bf16 %v1130
        %v1591 = vunpack.c.l.s8.bf16 %v1131
        %v1592 = vunpack.c.l.s8.bf16 %v1132
        %v1593 = vunpack.c.l.s8.bf16 %v1133
        %v1594 = vunpack.c.h.s8.bf16 %v1124
        %v1595 = vunpack.c.h.s8.bf16 %v1125
        %v1596 = vunpack.c.h.s8.bf16 %v1126
        %v1597 = vunpack.c.h.s8.bf16 %v1127
        %v1598 = vunpack.c.h.s8.bf16 %v1128
        %v1599 = vunpack.c.h.s8.bf16 %v1129
        %v1600 = vunpack.c.h.s8.bf16 %v1130
        %v1601 = vunpack.c.h.s8.bf16 %v1131
        %v1602 = vunpack.c.h.s8.bf16 %v1132
        %v1603 = vunpack.c.h.s8.bf16 %v1133
        %v1604 = vunpack.c.l.s8.bf16 %v1134
        %v1605 = vunpack.c.l.s8.bf16 %v1135
        %v1606 = vunpack.c.l.s8.bf16 %v1136
        %v1607 = vunpack.c.l.s8.bf16 %v1137
        %v1608 = vunpack.c.l.s8.bf16 %v1138
        %v1609 = vunpack.c.l.s8.bf16 %v1139
        %v1610 = vunpack.c.l.s8.bf16 %v1140
        %v1611 = vunpack.c.l.s8.bf16 %v1141
        %v1612 = vunpack.c.l.s8.bf16 %v1142
        %v1613 = vunpack.c.l.s8.bf16 %v1143
        %v1614 = vunpack.c.h.s8.bf16 %v1134
        %v1615 = vunpack.c.h.s8.bf16 %v1135
        %v1616 = vunpack.c.h.s8.bf16 %v1136
        %v1617 = vunpack.c.h.s8.bf16 %v1137
        %v1618 = vunpack.c.h.s8.bf16 %v1138
        %v1619 = vunpack.c.h.s8.bf16 %v1139
        %v1620 = vunpack.c.h.s8.bf16 %v1140
        %v1621 = vunpack.c.h.s8.bf16 %v1141
        %v1622 = vunpack.c.h.s8.bf16 %v1142
        %v1623 = vunpack.c.h.s8.bf16 %v1143
        %v1624 = vunpack.c.l.s8.bf16 %v1144
        %v1625 = vunpack.c.l.s8.bf16 %v1145
        %v1626 = vunpack.c.l.s8.bf16 %v1146
        %v1627 = vunpack.c.l.s8.bf16 %v1147
        %v1628 = vunpack.c.l.s8.bf16 %v1148
        %v1629 = vunpack.c.l.s8.bf16 %v1149
        %v1630 = vunpack.c.l.s8.bf16 %v1150
        %v1631 = vunpack.c.l.s8.bf16 %v1151
        %v1632 = vunpack.c.l.s8.bf16 %v1152
        %v1633 = vunpack.c.l.s8.bf16 %v1153
        %v1634 = vunpack.c.h.s8.bf16 %v1144
        %v1635 = vunpack.c.h.s8.bf16 %v1145
        %v1636 = vunpack.c.h.s8.bf16 %v1146
        %v1637 = vunpack.c.h.s8.bf16 %v1147
        %v1638 = vunpack.c.h.s8.bf16 %v1148
        %v1639 = vunpack.c.h.s8.bf16 %v1149
        %v1640 = vunpack.c.h.s8.bf16 %v1150
        %v1641 = vunpack.c.h.s8.bf16 %v1151
        %v1642 = vunpack.c.h.s8.bf16 %v1152
        %v1643 = vunpack.c.h.s8.bf16 %v1153
        %v1644 = vunpack.c.l.s8.bf16 %v1154
        %v1645 = vunpack.c.l.s8.bf16 %v1155
        %v1646 = vunpack.c.l.s8.bf16 %v1156
        %v1647 = vunpack.c.l.s8.bf16 %v1157
        %v1648 = vunpack.c.l.s8.bf16 %v1158
        %v1649 = vunpack.c.l.s8.bf16 %v1159
        %v1650 = vunpack.c.l.s8.bf16 %v1160
        %v1651 = vunpack.c.l.s8.bf16 %v1161
        %v1652 = vunpack.c.l.s8.bf16 %v1162
        %v1653 = vunpack.c.l.s8.bf16 %v1163
        %v1654 = vunpack.c.h.s8.bf16 %v1154
        %v1655 = vunpack.c.h.s8.bf16 %v1155
        %v1656 = vunpack.c.h.s8.bf16 %v1156
        %v1657 = vunpack.c.h.s8.bf16 %v1157
        %v1658 = vunpack.c.h.s8.bf16 %v1158
        %v1659 = vunpack.c.h.s8.bf16 %v1159
        %v1660 = vunpack.c.h.s8.bf16 %v1160
        %v1661 = vunpack.c.h.s8.bf16 %v1161
        %v1662 = vunpack.c.h.s8.bf16 %v1162
        %v1663 = vunpack.c.h.s8.bf16 %v1163
        %v1664 = vunpack.c.l.s8.bf16 %v1164
        %v1665 = vunpack.c.l.s8.bf16 %v1165
        %v1666 = vunpack.c.l.s8.bf16 %v1166
        %v1667 = vunpack.c.l.s8.bf16 %v1167
        %v1668 = vunpack.c.l.s8.bf16 %v1168
        %v1669 = vunpack.c.l.s8.bf16 %v1169
        %v1670 = vunpack.c.l.s8.bf16 %v1170
        %v1671 = vunpack.c.l.s8.bf16 %v1171
        %v1672 = vunpack.c.l.s8.bf16 %v1172
        %v1673 = vunpack.c.l.s8.bf16 %v1173
        %v1674 = vunpack.c.h.s8.bf16 %v1164
        %v1675 = vunpack.c.h.s8.bf16 %v1165
        %v1676 = vunpack.c.h.s8.bf16 %v1166
        %v1677 = vunpack.c.h.s8.bf16 %v1167
        %v1678 = vunpack.c.h.s8.bf16 %v1168
        %v1679 = vunpack.c.h.s8.bf16 %v1169
        %v1680 = vunpack.c.h.s8.bf16 %v1170
        %v1681 = vunpack.c.h.s8.bf16 %v1171
        %v1682 = vunpack.c.h.s8.bf16 %v1172
        %v1683 = vunpack.c.h.s8.bf16 %v1173
        %v1684 = vunpack.c.l.s8.bf16 %v1174
        %v1685 = vunpack.c.l.s8.bf16 %v1175
        %v1686 = vunpack.c.l.s8.bf16 %v1176
        %v1687 = vunpack.c.l.s8.bf16 %v1177
        %v1688 = vunpack.c.l.s8.bf16 %v1178
        %v1689 = vunpack.c.l.s8.bf16 %v1179
        %v1690 = vunpack.c.l.s8.bf16 %v1180
        %v1691 = vunpack.c.l.s8.bf16 %v1181
        %v1692 = vunpack.c.l.s8.bf16 %v1182
        %v1693 = vunpack.c.l.s8.bf16 %v1183
        %v1694 = vunpack.c.h.s8.bf16 %v1174
        %v1695 = vunpack.c.h.s8.bf16 %v1175
        %v1696 = vunpack.c.h.s8.bf16 %v1176
        %v1697 = vunpack.c.h.s8.bf16 %v1177
        %v1698 = vunpack.c.h.s8.bf16 %v1178
        %v1699 = vunpack.c.h.s8.bf16 %v1179
        %v1700 = vunpack.c.h.s8.bf16 %v1180
        %v1701 = vunpack.c.h.s8.bf16 %v1181
        %v1702 = vunpack.c.h.s8.bf16 %v1182
        %v1703 = vunpack.c.h.s8.bf16 %v1183
        %v1704 = vunpack.c.l.s8.bf16 %v1184
        %v1705 = vunpack.c.l.s8.bf16 %v1185
        %v1706 = vunpack.c.l.s8.bf16 %v1186
        %v1707 = vunpack.c.l.s8.bf16 %v1187
        %v1708 = vunpack.c.l.s8.bf16 %v1188
        %v1709 = vunpack.c.l.s8.bf16 %v1189
        %v1710 = vunpack.c.l.s8.bf16 %v1190
        %v1711 = vunpack.c.l.s8.bf16 %v1191
        %v1712 = vunpack.c.l.s8.bf16 %v1192
        %v1713 = vunpack.c.l.s8.bf16 %v1193
        %v1714 = vunpack.c.h.s8.bf16 %v1184
        %v1715 = vunpack.c.h.s8.bf16 %v1185
        %v1716 = vunpack.c.h.s8.bf16 %v1186
        %v1717 = vunpack.c.h.s8.bf16 %v1187
        %v1718 = vunpack.c.h.s8.bf16 %v1188
        %v1719 = vunpack.c.h.s8.bf16 %v1189
        %v1720 = vunpack.c.h.s8.bf16 %v1190
        %v1721 = vunpack.c.h.s8.bf16 %v1191
        %v1722 = vunpack.c.h.s8.bf16 %v1192
        %v1723 = vunpack.c.h.s8.bf16 %v1193
        %v1724 = vunpack.c.l.s8.bf16 %v1194
        %v1725 = vunpack.c.l.s8.bf16 %v1195
        %v1726 = vunpack.c.l.s8.bf16 %v1196
        %v1727 = vunpack.c.l.s8.bf16 %v1197
        %v1728 = vunpack.c.l.s8.bf16 %v1198
        %v1729 = vunpack.c.l.s8.bf16 %v1199
        %v1730 = vunpack.c.l.s8.bf16 %v1200
        %v1731 = vunpack.c.l.s8.bf16 %v1201
        %v1732 = vunpack.c.l.s8.bf16 %v1202
        %v1733 = vunpack.c.l.s8.bf16 %v1203
        %v1734 = vunpack.c.h.s8.bf16 %v1194
        %v1735 = vunpack.c.h.s8.bf16 %v1195
        %v1736 = vunpack.c.h.s8.bf16 %v1196
        %v1737 = vunpack.c.h.s8.bf16 %v1197
        %v1738 = vunpack.c.h.s8.bf16 %v1198
        %v1739 = vunpack.c.h.s8.bf16 %v1199
        %v1740 = vunpack.c.h.s8.bf16 %v1200
        %v1741 = vunpack.c.h.s8.bf16 %v1201
        %v1742 = vunpack.c.h.s8.bf16 %v1202
        %v1743 = vunpack.c.h.s8.bf16 %v1203
        %v1744 = vunpack.c.l.s8.bf16 %v1204
        %v1745 = vunpack.c.l.s8.bf16 %v1205
        %v1746 = vunpack.c.l.s8.bf16 %v1206
        %v1747 = vunpack.c.l.s8.bf16 %v1207
        %v1748 = vunpack.c.l.s8.bf16 %v1208
        %v1749 = vunpack.c.l.s8.bf16 %v1209
        %v1750 = vunpack.c.l.s8.bf16 %v1210
        %v1751 = vunpack.c.l.s8.bf16 %v1211
        %v1752 = vunpack.c.l.s8.bf16 %v1212
        %v1753 = vunpack.c.l.s8.bf16 %v1213
        %v1754 = vunpack.c.h.s8.bf16 %v1204
        %v1755 = vunpack.c.h.s8.bf16 %v1205
        %v1756 = vunpack.c.h.s8.bf16 %v1206
        %v1757 = vunpack.c.h.s8.bf16 %v1207
        %v1758 = vunpack.c.h.s8.bf16 %v1208
        %v1759 = vunpack.c.h.s8.bf16 %v1209
        %v1760 = vunpack.c.h.s8.bf16 %v1210
        %v1761 = vunpack.c.h.s8.bf16 %v1211
        %v1762 = vunpack.c.h.s8.bf16 %v1212
        %v1763 = vunpack.c.h.s8.bf16 %v1213
        %v1764 = vunpack.c.l.s8.bf16 %v1214
        %v1765 = vunpack.c.l.s8.bf16 %v1215
        %v1766 = vunpack.c.l.s8.bf16 %v1216
        %v1767 = vunpack.c.l.s8.bf16 %v1217
        %v1768 = vunpack.c.l.s8.bf16 %v1218
        %v1769 = vunpack.c.l.s8.bf16 %v1219
        %v1770 = vunpack.c.l.s8.bf16 %v1220
        %v1771 = vunpack.c.l.s8.bf16 %v1221
        %v1772 = vunpack.c.l.s8.bf16 %v1222
        %v1773 = vunpack.c.l.s8.bf16 %v1223
        %v1774 = vunpack.c.h.s8.bf16 %v1214
        %v1775 = vunpack.c.h.s8.bf16 %v1215
        %v1776 = vunpack.c.h.s8.bf16 %v1216
        %v1777 = vunpack.c.h.s8.bf16 %v1217
        %v1778 = vunpack.c.h.s8.bf16 %v1218
        %v1779 = vunpack.c.h.s8.bf16 %v1219
        %v1780 = vunpack.c.h.s8.bf16 %v1220
        %v1781 = vunpack.c.h.s8.bf16 %v1221
        %v1782 = vunpack.c.h.s8.bf16 %v1222
        %v1783 = vunpack.c.h.s8.bf16 %v1223
        %v1784 = vunpack.c.l.s8.bf16 %v1224
        %v1785 = vunpack.c.l.s8.bf16 %v1225
        %v1786 = vunpack.c.l.s8.bf16 %v1226
        %v1787 = vunpack.c.l.s8.bf16 %v1227
        %v1788 = vunpack.c.l.s8.bf16 %v1228
        %v1789 = vunpack.c.l.s8.bf16 %v1229
        %v1790 = vunpack.c.l.s8.bf16 %v1230
        %v1791 = vunpack.c.l.s8.bf16 %v1231
        %v1792 = vunpack.c.l.s8.bf16 %v1232
        %v1793 = vunpack.c.l.s8.bf16 %v1233
        %v1794 = vunpack.c.h.s8.bf16 %v1224
        %v1795 = vunpack.c.h.s8.bf16 %v1225
        %v1796 = vunpack.c.h.s8.bf16 %v1226
        %v1797 = vunpack.c.h.s8.bf16 %v1227
        %v1798 = vunpack.c.h.s8.bf16 %v1228
        %v1799 = vunpack.c.h.s8.bf16 %v1229
        %v1800 = vunpack.c.h.s8.bf16 %v1230
        %v1801 = vunpack.c.h.s8.bf16 %v1231
        %v1802 = vunpack.c.h.s8.bf16 %v1232
        %v1803 = vunpack.c.h.s8.bf16 %v1233
        %v1804 = vunpack.c.l.s8.bf16 %v1234
        %v1805 = vunpack.c.l.s8.bf16 %v1235
        %v1806 = vunpack.c.l.s8.bf16 %v1236
        %v1807 = vunpack.c.l.s8.bf16 %v1237
        %v1808 = vunpack.c.l.s8.bf16 %v1238
        %v1809 = vunpack.c.l.s8.bf16 %v1239
        %v1810 = vunpack.c.l.s8.bf16 %v1240
        %v1811 = vunpack.c.l.s8.bf16 %v1241
        %v1812 = vunpack.c.l.s8.bf16 %v1242
        %v1813 = vunpack.c.l.s8.bf16 %v1243
        %v1814 = vunpack.c.h.s8.bf16 %v1234
        %v1815 = vunpack.c.h.s8.bf16 %v1235
        %v1816 = vunpack.c.h.s8.bf16 %v1236
        %v1817 = vunpack.c.h.s8.bf16 %v1237
        %v1818 = vunpack.c.h.s8.bf16 %v1238
        %v1819 = vunpack.c.h.s8.bf16 %v1239
        %v1820 = vunpack.c.h.s8.bf16 %v1240
        %v1821 = vunpack.c.h.s8.bf16 %v1241
        %v1822 = vunpack.c.h.s8.bf16 %v1242
        %v1823 = vunpack.c.h.s8.bf16 %v1243
        %v1824 = vunpack.c.l.s8.bf16 %v1244
        %v1825 = vunpack.c.l.s8.bf16 %v1245
        %v1826 = vunpack.c.l.s8.bf16 %v1246
        %v1827 = vunpack.c.l.s8.bf16 %v1247
        %v1828 = vunpack.c.l.s8.bf16 %v1248
        %v1829 = vunpack.c.l.s8.bf16 %v1249
        %v1830 = vunpack.c.l.s8.bf16 %v1250
        %v1831 = vunpack.c.l.s8.bf16 %v1251
        %v1832 = vunpack.c.l.s8.bf16 %v1252
        %v1833 = vunpack.c.l.s8.bf16 %v1253
        %v1834 = vunpack.c.h.s8.bf16 %v1244
        %v1835 = vunpack.c.h.s8.bf16 %v1245
        %v1836 = vunpack.c.h.s8.bf16 %v1246
        %v1837 = vunpack.c.h.s8.bf16 %v1247
        %v1838 = vunpack.c.h.s8.bf16 %v1248
        %v1839 = vunpack.c.h.s8.bf16 %v1249
        %v1840 = vunpack.c.h.s8.bf16 %v1250
        %v1841 = vunpack.c.h.s8.bf16 %v1251
        %v1842 = vunpack.c.h.s8.bf16 %v1252
        %v1843 = vunpack.c.h.s8.bf16 %v1253
        %v1844 = vunpack.c.l.s8.bf16 %v1254
        %v1845 = vunpack.c.l.s8.bf16 %v1255
        %v1846 = vunpack.c.l.s8.bf16 %v1256
        %v1847 = vunpack.c.l.s8.bf16 %v1257
        %v1848 = vunpack.c.l.s8.bf16 %v1258
        %v1849 = vunpack.c.l.s8.bf16 %v1259
        %v1850 = vunpack.c.l.s8.bf16 %v1260
        %v1851 = vunpack.c.l.s8.bf16 %v1261
        %v1852 = vunpack.c.l.s8.bf16 %v1262
        %v1853 = vunpack.c.l.s8.bf16 %v1263
        %v1854 = vunpack.c.h.s8.bf16 %v1254
        %v1855 = vunpack.c.h.s8.bf16 %v1255
        %v1856 = vunpack.c.h.s8.bf16 %v1256
        %v1857 = vunpack.c.h.s8.bf16 %v1257
        %v1858 = vunpack.c.h.s8.bf16 %v1258
        %v1859 = vunpack.c.h.s8.bf16 %v1259
        %v1860 = vunpack.c.h.s8.bf16 %v1260
        %v1861 = vunpack.c.h.s8.bf16 %v1261
        %v1862 = vunpack.c.h.s8.bf16 %v1262
        %v1863 = vunpack.c.h.s8.bf16 %v1263
        %v1864 = vunpack.c.l.s8.bf16 %v1264
        %v1865 = vunpack.c.l.s8.bf16 %v1265
        %v1866 = vunpack.c.l.s8.bf16 %v1266
        %v1867 = vunpack.c.l.s8.bf16 %v1267
        %v1868 = vunpack.c.l.s8.bf16 %v1268
        %v1869 = vunpack.c.l.s8.bf16 %v1269
        %v1870 = vunpack.c.l.s8.bf16 %v1270
        %v1871 = vunpack.c.l.s8.bf16 %v1271
        %v1872 = vunpack.c.l.s8.bf16 %v1272
        %v1873 = vunpack.c.l.s8.bf16 %v1273
        %v1874 = vunpack.c.h.s8.bf16 %v1264
        %v1875 = vunpack.c.h.s8.bf16 %v1265
        %v1876 = vunpack.c.h.s8.bf16 %v1266
        %v1877 = vunpack.c.h.s8.bf16 %v1267
        %v1878 = vunpack.c.h.s8.bf16 %v1268
        %v1879 = vunpack.c.h.s8.bf16 %v1269
        %v1880 = vunpack.c.h.s8.bf16 %v1270
        %v1881 = vunpack.c.h.s8.bf16 %v1271
        %v1882 = vunpack.c.h.s8.bf16 %v1272
        %v1883 = vunpack.c.h.s8.bf16 %v1273
        %v1884 = vunpack.c.l.s8.bf16 %v1274
        %v1885 = vunpack.c.l.s8.bf16 %v1275
        %v1886 = vunpack.c.l.s8.bf16 %v1276
        %v1887 = vunpack.c.l.s8.bf16 %v1277
        %v1888 = vunpack.c.l.s8.bf16 %v1278
        %v1889 = vunpack.c.l.s8.bf16 %v1279
        %v1890 = vunpack.c.l.s8.bf16 %v1280
        %v1891 = vunpack.c.l.s8.bf16 %v1281
        %v1892 = vunpack.c.l.s8.bf16 %v1282
        %v1893 = vunpack.c.l.s8.bf16 %v1283
        %v1894 = vunpack.c.h.s8.bf16 %v1274
        %v1895 = vunpack.c.h.s8.bf16 %v1275
        %v1896 = vunpack.c.h.s8.bf16 %v1276
        %v1897 = vunpack.c.h.s8.bf16 %v1277
        %v1898 = vunpack.c.h.s8.bf16 %v1278
        %v1899 = vunpack.c.h.s8.bf16 %v1279
        %v1900 = vunpack.c.h.s8.bf16 %v1280
        %v1901 = vunpack.c.h.s8.bf16 %v1281
        %v1902 = vunpack.c.h.s8.bf16 %v1282
        %v1903 = vunpack.c.h.s8.bf16 %v1283
        %v1904 = vunpack.c.l.s8.bf16 %v1284
        %v1905 = vunpack.c.l.s8.bf16 %v1285
        %v1906 = vunpack.c.l.s8.bf16 %v1286
        %v1907 = vunpack.c.l.s8.bf16 %v1287
        %v1908 = vunpack.c.l.s8.bf16 %v1288
        %v1909 = vunpack.c.l.s8.bf16 %v1289
        %v1910 = vunpack.c.l.s8.bf16 %v1290
        %v1911 = vunpack.c.l.s8.bf16 %v1291
        %v1912 = vunpack.c.l.s8.bf16 %v1292
        %v1913 = vunpack.c.l.s8.bf16 %v1293
        %v1914 = vunpack.c.h.s8.bf16 %v1284
        %v1915 = vunpack.c.h.s8.bf16 %v1285
        %v1916 = vunpack.c.h.s8.bf16 %v1286
        %v1917 = vunpack.c.h.s8.bf16 %v1287
        %v1918 = vunpack.c.h.s8.bf16 %v1288
        %v1919 = vunpack.c.h.s8.bf16 %v1289
        %v1920 = vunpack.c.h.s8.bf16 %v1290
        %v1921 = vunpack.c.h.s8.bf16 %v1291
        %v1922 = vunpack.c.h.s8.bf16 %v1292
        %v1923 = vunpack.c.h.s8.bf16 %v1293
        %v1924 = vunpack.c.l.s8.bf16 %v1294
        %v1925 = vunpack.c.l.s8.bf16 %v1295
        %v1926 = vunpack.c.l.s8.bf16 %v1296
        %v1927 = vunpack.c.l.s8.bf16 %v1297
        %v1928 = vunpack.c.l.s8.bf16 %v1298
        %v1929 = vunpack.c.l.s8.bf16 %v1299
        %v1930 = vunpack.c.l.s8.bf16 %v1300
        %v1931 = vunpack.c.l.s8.bf16 %v1301
        %v1932 = vunpack.c.l.s8.bf16 %v1302
        %v1933 = vunpack.c.l.s8.bf16 %v1303
        %v1934 = vunpack.c.h.s8.bf16 %v1294
        %v1935 = vunpack.c.h.s8.bf16 %v1295
        %v1936 = vunpack.c.h.s8.bf16 %v1296
        %v1937 = vunpack.c.h.s8.bf16 %v1297
        %v1938 = vunpack.c.h.s8.bf16 %v1298
        %v1939 = vunpack.c.h.s8.bf16 %v1299
        %v1940 = vunpack.c.h.s8.bf16 %v1300
        %v1941 = vunpack.c.h.s8.bf16 %v1301
        %v1942 = vunpack.c.h.s8.bf16 %v1302
        %v1943 = vunpack.c.h.s8.bf16 %v1303
        %v1944 = vunpack.c.l.s8.bf16 %v1304
        %v1945 = vunpack.c.l.s8.bf16 %v1305
        %v1946 = vunpack.c.l.s8.bf16 %v1306
        %v1947 = vunpack.c.l.s8.bf16 %v1307
        %v1948 = vunpack.c.l.s8.bf16 %v1308
        %v1949 = vunpack.c.l.s8.bf16 %v1309
        %v1950 = vunpack.c.l.s8.bf16 %v1310
        %v1951 = vunpack.c.l.s8.bf16 %v1311
        %v1952 = vunpack.c.l.s8.bf16 %v1312
        %v1953 = vunpack.c.l.s8.bf16 %v1313
        %v1954 = vunpack.c.h.s8.bf16 %v1304
        %v1955 = vunpack.c.h.s8.bf16 %v1305
        %v1956 = vunpack.c.h.s8.bf16 %v1306
        %v1957 = vunpack.c.h.s8.bf16 %v1307
        %v1958 = vunpack.c.h.s8.bf16 %v1308
        %v1959 = vunpack.c.h.s8.bf16 %v1309
        %v1960 = vunpack.c.h.s8.bf16 %v1310
        %v1961 = vunpack.c.h.s8.bf16 %v1311
        %v1962 = vunpack.c.h.s8.bf16 %v1312
        %v1963 = vunpack.c.h.s8.bf16 %v1313
        %v1964 = vunpack.c.l.s8.bf16 %v1314
        %v1965 = vunpack.c.l.s8.bf16 %v1315
        %v1966 = vunpack.c.l.s8.bf16 %v1316
        %v1967 = vunpack.c.l.s8.bf16 %v1317
        %v1968 = vunpack.c.l.s8.bf16 %v1318
        %v1969 = vunpack.c.l.s8.bf16 %v1319
        %v1970 = vunpack.c.l.s8.bf16 %v1320
        %v1971 = vunpack.c.l.s8.bf16 %v1321
        %v1972 = vunpack.c.l.s8.bf16 %v1322
        %v1973 = vunpack.c.l.s8.bf16 %v1323
        %v1974 = vunpack.c.h.s8.bf16 %v1314
        %v1975 = vunpack.c.h.s8.bf16 %v1315
        %v1976 = vunpack.c.h.s8.bf16 %v1316
        %v1977 = vunpack.c.h.s8.bf16 %v1317
        %v1978 = vunpack.c.h.s8.bf16 %v1318
        %v1979 = vunpack.c.h.s8.bf16 %v1319
        %v1980 = vunpack.c.h.s8.bf16 %v1320
        %v1981 = vunpack.c.h.s8.bf16 %v1321
        %v1982 = vunpack.c.h.s8.bf16 %v1322
        %v1983 = vunpack.c.h.s8.bf16 %v1323
        %v1984 = vunpack.c.l.s8.bf16 %v1324
        %v1985 = vunpack.c.l.s8.bf16 %v1325
        %v1986 = vunpack.c.l.s8.bf16 %v1326
        %v1987 = vunpack.c.l.s8.bf16 %v1327
        %v1988 = vunpack.c.l.s8.bf16 %v1328
        %v1989 = vunpack.c.l.s8.bf16 %v1329
        %v1990 = vunpack.c.l.s8.bf16 %v1330
        %v1991 = vunpack.c.l.s8.bf16 %v1331
        %v1992 = vunpack.c.l.s8.bf16 %v1332
        %v1993 = vunpack.c.l.s8.bf16 %v1333
        %v1994 = vunpack.c.h.s8.bf16 %v1324
        %v1995 = vunpack.c.h.s8.bf16 %v1325
        %v1996 = vunpack.c.h.s8.bf16 %v1326
        %v1997 = vunpack.c.h.s8.bf16 %v1327
        %v1998 = vunpack.c.h.s8.bf16 %v1328
        %v1999 = vunpack.c.h.s8.bf16 %v1329
        %v2000 = vunpack.c.h.s8.bf16 %v1330
        %v2001 = vunpack.c.h.s8.bf16 %v1331
        %v2002 = vunpack.c.h.s8.bf16 %v1332
        %v2003 = vunpack.c.h.s8.bf16 %v1333
        %v2004 = vunpack.c.l.s8.bf16 %v1334
        %v2005 = vunpack.c.l.s8.bf16 %v1335
        %v2006 = vunpack.c.l.s8.bf16 %v1336
        %v2007 = vunpack.c.l.s8.bf16 %v1337
        %v2008 = vunpack.c.l.s8.bf16 %v1338
        %v2009 = vunpack.c.l.s8.bf16 %v1339
        %v2010 = vunpack.c.l.s8.bf16 %v1340
        %v2011 = vunpack.c.l.s8.bf16 %v1341
        %v2012 = vunpack.c.l.s8.bf16 %v1342
        %v2013 = vunpack.c.l.s8.bf16 %v1343
        %v2014 = vunpack.c.h.s8.bf16 %v1334
        %v2015 = vunpack.c.h.s8.bf16 %v1335
        %v2016 = vunpack.c.h.s8.bf16 %v1336
        %v2017 = vunpack.c.h.s8.bf16 %v1337
        %v2018 = vunpack.c.h.s8.bf16 %v1338
        %v2019 = vunpack.c.h.s8.bf16 %v1339
        %v2020 = vunpack.c.h.s8.bf16 %v1340
        %v2021 = vunpack.c.h.s8.bf16 %v1341
        %v2022 = vunpack.c.h.s8.bf16 %v1342
        %v2023 = vunpack.c.h.s8.bf16 %v1343
        %v2024 = vunpack.c.l.s8.bf16 %v1344
        %v2025 = vunpack.c.l.s8.bf16 %v1345
        %v2026 = vunpack.c.l.s8.bf16 %v1346
        %v2027 = vunpack.c.l.s8.bf16 %v1347
        %v2028 = vunpack.c.l.s8.bf16 %v1348
        %v2029 = vunpack.c.l.s8.bf16 %v1349
        %v2030 = vunpack.c.l.s8.bf16 %v1350
        %v2031 = vunpack.c.l.s8.bf16 %v1351
        %v2032 = vunpack.c.l.s8.bf16 %v1352
        %v2033 = vunpack.c.l.s8.bf16 %v1353
        %v2034 = vunpack.c.h.s8.bf16 %v1344
        %v2035 = vunpack.c.h.s8.bf16 %v1345
        %v2036 = vunpack.c.h.s8.bf16 %v1346
        %v2037 = vunpack.c.h.s8.bf16 %v1347
        %v2038 = vunpack.c.h.s8.bf16 %v1348
        %v2039 = vunpack.c.h.s8.bf16 %v1349
        %v2040 = vunpack.c.h.s8.bf16 %v1350
        %v2041 = vunpack.c.h.s8.bf16 %v1351
        %v2042 = vunpack.c.h.s8.bf16 %v1352
        %v2043 = vunpack.c.h.s8.bf16 %v1353
        %v2044 = vunpack.c.l.s8.bf16 %v1354
        %v2045 = vunpack.c.l.s8.bf16 %v1355
        %v2046 = vunpack.c.l.s8.bf16 %v1356
        %v2047 = vunpack.c.l.s8.bf16 %v1357
        %v2048 = vunpack.c.l.s8.bf16 %v1358
        %v2049 = vunpack.c.l.s8.bf16 %v1359
        %v2050 = vunpack.c.l.s8.bf16 %v1360
        %v2051 = vunpack.c.l.s8.bf16 %v1361
        %v2052 = vunpack.c.l.s8.bf16 %v1362
        %v2053 = vunpack.c.l.s8.bf16 %v1363
        %v2054 = vunpack.c.h.s8.bf16 %v1354
        %v2055 = vunpack.c.h.s8.bf16 %v1355
        %v2056 = vunpack.c.h.s8.bf16 %v1356
        %v2057 = vunpack.c.h.s8.bf16 %v1357
        %v2058 = vunpack.c.h.s8.bf16 %v1358
        %v2059 = vunpack.c.h.s8.bf16 %v1359
        %v2060 = vunpack.c.h.s8.bf16 %v1360
        %v2061 = vunpack.c.h.s8.bf16 %v1361
        %v2062 = vunpack.c.h.s8.bf16 %v1362
        %v2063 = vunpack.c.h.s8.bf16 %v1363
        %v2064 = vunpack.c.l.s8.bf16 %v1364
        %v2065 = vunpack.c.l.s8.bf16 %v1365
        %v2066 = vunpack.c.l.s8.bf16 %v1366
        %v2067 = vunpack.c.l.s8.bf16 %v1367
        %v2068 = vunpack.c.l.s8.bf16 %v1368
        %v2069 = vunpack.c.l.s8.bf16 %v1369
        %v2070 = vunpack.c.l.s8.bf16 %v1370
        %v2071 = vunpack.c.l.s8.bf16 %v1371
        %v2072 = vunpack.c.l.s8.bf16 %v1372
        %v2073 = vunpack.c.l.s8.bf16 %v1373
        %v2074 = vunpack.c.h.s8.bf16 %v1364
        %v2075 = vunpack.c.h.s8.bf16 %v1365
        %v2076 = vunpack.c.h.s8.bf16 %v1366
        %v2077 = vunpack.c.h.s8.bf16 %v1367
        %v2078 = vunpack.c.h.s8.bf16 %v1368
        %v2079 = vunpack.c.h.s8.bf16 %v1369
        %v2080 = vunpack.c.h.s8.bf16 %v1370
        %v2081 = vunpack.c.h.s8.bf16 %v1371
        %v2082 = vunpack.c.h.s8.bf16 %v1372
        %v2083 = vunpack.c.h.s8.bf16 %v1373
        %v2084 = vunpack.c.l.s8.bf16 %v1374
        %v2085 = vunpack.c.l.s8.bf16 %v1375
        %v2086 = vunpack.c.l.s8.bf16 %v1376
        %v2087 = vunpack.c.l.s8.bf16 %v1377
        %v2088 = vunpack.c.l.s8.bf16 %v1378
        %v2089 = vunpack.c.l.s8.bf16 %v1379
        %v2090 = vunpack.c.l.s8.bf16 %v1380
        %v2091 = vunpack.c.l.s8.bf16 %v1381
        %v2092 = vunpack.c.l.s8.bf16 %v1382
        %v2093 = vunpack.c.l.s8.bf16 %v1383
        %v2094 = vunpack.c.h.s8.bf16 %v1374
        %v2095 = vunpack.c.h.s8.bf16 %v1375
        %v2096 = vunpack.c.h.s8.bf16 %v1376
        %v2097 = vunpack.c.h.s8.bf16 %v1377
        %v2098 = vunpack.c.h.s8.bf16 %v1378
        %v2099 = vunpack.c.h.s8.bf16 %v1379
        %v2100 = vunpack.c.h.s8.bf16 %v1380
        %v2101 = vunpack.c.h.s8.bf16 %v1381
        %v2102 = vunpack.c.h.s8.bf16 %v1382
        %v2103 = vunpack.c.h.s8.bf16 %v1383
        %v2104 = vunpack.c.l.s8.bf16 %v1384
        %v2105 = vunpack.c.l.s8.bf16 %v1385
        %v2106 = vunpack.c.l.s8.bf16 %v1386
        %v2107 = vunpack.c.l.s8.bf16 %v1387
        %v2108 = vunpack.c.l.s8.bf16 %v1388
        %v2109 = vunpack.c.l.s8.bf16 %v1389
        %v2110 = vunpack.c.l.s8.bf16 %v1390
        %v2111 = vunpack.c.l.s8.bf16 %v1391
        %v2112 = vunpack.c.l.s8.bf16 %v1392
        %v2113 = vunpack.c.l.s8.bf16 %v1393
        %v2114 = vunpack.c.h.s8.bf16 %v1384
        %v2115 = vunpack.c.h.s8.bf16 %v1385
        %v2116 = vunpack.c.h.s8.bf16 %v1386
        %v2117 = vunpack.c.h.s8.bf16 %v1387
        %v2118 = vunpack.c.h.s8.bf16 %v1388
        %v2119 = vunpack.c.h.s8.bf16 %v1389
        %v2120 = vunpack.c.h.s8.bf16 %v1390
        %v2121 = vunpack.c.h.s8.bf16 %v1391
        %v2122 = vunpack.c.h.s8.bf16 %v1392
        %v2123 = vunpack.c.h.s8.bf16 %v1393
        %v2124 = vunpack.c.l.s8.bf16 %v1394
        %v2125 = vunpack.c.l.s8.bf16 %v1395
        %v2126 = vunpack.c.l.s8.bf16 %v1396
        %v2127 = vunpack.c.l.s8.bf16 %v1397
        %v2128 = vunpack.c.l.s8.bf16 %v1398
        %v2129 = vunpack.c.l.s8.bf16 %v1399
        %v2130 = vunpack.c.l.s8.bf16 %v1400
        %v2131 = vunpack.c.l.s8.bf16 %v1401
        %v2132 = vunpack.c.l.s8.bf16 %v1402
        %v2133 = vunpack.c.l.s8.bf16 %v1403
        %v2134 = vunpack.c.h.s8.bf16 %v1394
        %v2135 = vunpack.c.h.s8.bf16 %v1395
        %v2136 = vunpack.c.h.s8.bf16 %v1396
        %v2137 = vunpack.c.h.s8.bf16 %v1397
        %v2138 = vunpack.c.h.s8.bf16 %v1398
        %v2139 = vunpack.c.h.s8.bf16 %v1399
        %v2140 = vunpack.c.h.s8.bf16 %v1400
        %v2141 = vunpack.c.h.s8.bf16 %v1401
        %v2142 = vunpack.c.h.s8.bf16 %v1402
        %v2143 = vunpack.c.h.s8.bf16 %v1403
        %v2144 = vunpack.c.l.s8.bf16 %v1404
        %v2145 = vunpack.c.l.s8.bf16 %v1405
        %v2146 = vunpack.c.l.s8.bf16 %v1406
        %v2147 = vunpack.c.l.s8.bf16 %v1407
        %v2148 = vunpack.c.l.s8.bf16 %v1408
        %v2149 = vunpack.c.l.s8.bf16 %v1409
        %v2150 = vunpack.c.l.s8.bf16 %v1410
        %v2151 = vunpack.c.l.s8.bf16 %v1411
        %v2152 = vunpack.c.l.s8.bf16 %v1412
        %v2153 = vunpack.c.l.s8.bf16 %v1413
        %v2154 = vunpack.c.h.s8.bf16 %v1404
        %v2155 = vunpack.c.h.s8.bf16 %v1405
        %v2156 = vunpack.c.h.s8.bf16 %v1406
        %v2157 = vunpack.c.h.s8.bf16 %v1407
        %v2158 = vunpack.c.h.s8.bf16 %v1408
        %v2159 = vunpack.c.h.s8.bf16 %v1409
        %v2160 = vunpack.c.h.s8.bf16 %v1410
        %v2161 = vunpack.c.h.s8.bf16 %v1411
        %v2162 = vunpack.c.h.s8.bf16 %v1412
        %v2163 = vunpack.c.h.s8.bf16 %v1413
        %v2164 = vunpack.c.l.s8.bf16 %v1414
        %v2165 = vunpack.c.l.s8.bf16 %v1415
        %v2166 = vunpack.c.l.s8.bf16 %v1416
        %v2167 = vunpack.c.l.s8.bf16 %v1417
        %v2168 = vunpack.c.l.s8.bf16 %v1418
        %v2169 = vunpack.c.l.s8.bf16 %v1419
        %v2170 = vunpack.c.l.s8.bf16 %v1420
        %v2171 = vunpack.c.l.s8.bf16 %v1421
        %v2172 = vunpack.c.l.s8.bf16 %v1422
        %v2173 = vunpack.c.l.s8.bf16 %v1423
        %v2174 = vunpack.c.h.s8.bf16 %v1414
        %v2175 = vunpack.c.h.s8.bf16 %v1415
        %v2176 = vunpack.c.h.s8.bf16 %v1416
        %v2177 = vunpack.c.h.s8.bf16 %v1417
        %v2178 = vunpack.c.h.s8.bf16 %v1418
        %v2179 = vunpack.c.h.s8.bf16 %v1419
        %v2180 = vunpack.c.h.s8.bf16 %v1420
        %v2181 = vunpack.c.h.s8.bf16 %v1421
        %v2182 = vunpack.c.h.s8.bf16 %v1422
        %v2183 = vunpack.c.h.s8.bf16 %v1423
        %v2184 = vunpack.c.l.s8.bf16 %v1424
        %v2185 = vunpack.c.l.s8.bf16 %v1425
        %v2186 = vunpack.c.l.s8.bf16 %v1426
        %v2187 = vunpack.c.l.s8.bf16 %v1427
        %v2188 = vunpack.c.l.s8.bf16 %v1428
        %v2189 = vunpack.c.l.s8.bf16 %v1429
        %v2190 = vunpack.c.l.s8.bf16 %v1430
        %v2191 = vunpack.c.l.s8.bf16 %v1431
        %v2192 = vunpack.c.l.s8.bf16 %v1432
        %v2193 = vunpack.c.l.s8.bf16 %v1433
        %v2194 = vunpack.c.h.s8.bf16 %v1424
        %v2195 = vunpack.c.h.s8.bf16 %v1425
        %v2196 = vunpack.c.h.s8.bf16 %v1426
        %v2197 = vunpack.c.h.s8.bf16 %v1427
        %v2198 = vunpack.c.h.s8.bf16 %v1428
        %v2199 = vunpack.c.h.s8.bf16 %v1429
        %v2200 = vunpack.c.h.s8.bf16 %v1430
        %v2201 = vunpack.c.h.s8.bf16 %v1431
        %v2202 = vunpack.c.h.s8.bf16 %v1432
        %v2203 = vunpack.c.h.s8.bf16 %v1433
        %v2204 = vunpack.c.l.s8.bf16 %v1434
        %v2205 = vunpack.c.l.s8.bf16 %v1435
        %v2206 = vunpack.c.l.s8.bf16 %v1436
        %v2207 = vunpack.c.l.s8.bf16 %v1437
        %v2208 = vunpack.c.l.s8.bf16 %v1438
        %v2209 = vunpack.c.l.s8.bf16 %v1439
        %v2210 = vunpack.c.l.s8.bf16 %v1440
        %v2211 = vunpack.c.l.s8.bf16 %v1441
        %v2212 = vunpack.c.l.s8.bf16 %v1442
        %v2213 = vunpack.c.l.s8.bf16 %v1443
        %v2214 = vunpack.c.h.s8.bf16 %v1434
        %v2215 = vunpack.c.h.s8.bf16 %v1435
        %v2216 = vunpack.c.h.s8.bf16 %v1436
        %v2217 = vunpack.c.h.s8.bf16 %v1437
        %v2218 = vunpack.c.h.s8.bf16 %v1438
        %v2219 = vunpack.c.h.s8.bf16 %v1439
        %v2220 = vunpack.c.h.s8.bf16 %v1440
        %v2221 = vunpack.c.h.s8.bf16 %v1441
        %v2222 = vunpack.c.h.s8.bf16 %v1442
        %v2223 = vunpack.c.h.s8.bf16 %v1443
        %v2224 = vunpack.c.l.s8.bf16 %v1444
        %v2225 = vunpack.c.l.s8.bf16 %v1445
        %v2226 = vunpack.c.l.s8.bf16 %v1446
        %v2227 = vunpack.c.l.s8.bf16 %v1447
        %v2228 = vunpack.c.l.s8.bf16 %v1448
        %v2229 = vunpack.c.l.s8.bf16 %v1449
        %v2230 = vunpack.c.l.s8.bf16 %v1450
        %v2231 = vunpack.c.l.s8.bf16 %v1451
        %v2232 = vunpack.c.l.s8.bf16 %v1452
        %v2233 = vunpack.c.l.s8.bf16 %v1453
        %v2234 = vunpack.c.h.s8.bf16 %v1444
        %v2235 = vunpack.c.h.s8.bf16 %v1445
        %v2236 = vunpack.c.h.s8.bf16 %v1446
        %v2237 = vunpack.c.h.s8.bf16 %v1447
        %v2238 = vunpack.c.h.s8.bf16 %v1448
        %v2239 = vunpack.c.h.s8.bf16 %v1449
        %v2240 = vunpack.c.h.s8.bf16 %v1450
        %v2241 = vunpack.c.h.s8.bf16 %v1451
        %v2242 = vunpack.c.h.s8.bf16 %v1452
        %v2243 = vunpack.c.h.s8.bf16 %v1453
        %v2244 = vunpack.c.l.s8.bf16 %v1454
        %v2245 = vunpack.c.l.s8.bf16 %v1455
        %v2246 = vunpack.c.l.s8.bf16 %v1456
        %v2247 = vunpack.c.l.s8.bf16 %v1457
        %v2248 = vunpack.c.l.s8.bf16 %v1458
        %v2249 = vunpack.c.l.s8.bf16 %v1459
        %v2250 = vunpack.c.l.s8.bf16 %v1460
        %v2251 = vunpack.c.l.s8.bf16 %v1461
        %v2252 = vunpack.c.l.s8.bf16 %v1462
        %v2253 = vunpack.c.l.s8.bf16 %v1463
        %v2254 = vunpack.c.h.s8.bf16 %v1454
        %v2255 = vunpack.c.h.s8.bf16 %v1455
        %v2256 = vunpack.c.h.s8.bf16 %v1456
        %v2257 = vunpack.c.h.s8.bf16 %v1457
        %v2258 = vunpack.c.h.s8.bf16 %v1458
        %v2259 = vunpack.c.h.s8.bf16 %v1459
        %v2260 = vunpack.c.h.s8.bf16 %v1460
        %v2261 = vunpack.c.h.s8.bf16 %v1461
        %v2262 = vunpack.c.h.s8.bf16 %v1462
        %v2263 = vunpack.c.h.s8.bf16 %v1463
        %v2264 = vld [vmem:[%s433] sm:$0xff]
        %v2265 = vld [vmem:[%s433 + $0x8] sm:$0xff]
        %v2266 = vld [vmem:[%s433 + $0x10] sm:$0xff]
        %v2267 = vld [vmem:[%s433 + $0x18] sm:$0xff]
        %v2268 = vld [vmem:[%s433 + $0x20] sm:$0xff]
        %v2269 = vld [vmem:[%s433 + $0x28] sm:$0xff]
        %v2270 = vld [vmem:[%s433 + $0x30] sm:$0xff]
        %v2271 = vld [vmem:[%s433 + $0x38] sm:$0xff]
        %v2272 = vld [vmem:[%s433 + $0x40] sm:$0xff]
        %v2273 = vld [vmem:[%s433 + $0x48] sm:$0xff]
        %v2274 = vld [vmem:[%s433 + $0x50] sm:$0xff]
        %v2275 = vld [vmem:[%s433 + $0x58] sm:$0xff]
        %v2276 = vld [vmem:[%s433 + $0x60] sm:$0xff]
        %v2277 = vld [vmem:[%s433 + $0x68] sm:$0xff]
        %v2278 = vld [vmem:[%s433 + $0x70] sm:$0xff]
        %v2279 = vld [vmem:[%s433 + $0x78] sm:$0xff]
        %v2280 = vld [vmem:[%s433 + $0x80] sm:$0xff]
        %v2281 = vld [vmem:[%s433 + $0x88] sm:$0xff]
        %v2282 = vld [vmem:[%s433 + $0x90] sm:$0xff]
        %v2283 = vld [vmem:[%s433 + $0x98] sm:$0xff]
        %v2284 = vld [vmem:[%s433 + $0xa0] sm:$0xff]
        %v2285 = vld [vmem:[%s433 + $0xa8] sm:$0xff]
        %v2286 = vld [vmem:[%s433 + $0xb0] sm:$0xff]
        %v2287 = vld [vmem:[%s433 + $0xb8] sm:$0xff]
        %v2288 = vld [vmem:[%s433 + $0xc0] sm:$0xff]
        %v2289 = vld [vmem:[%s433 + $0xc8] sm:$0xff]
        %v2290 = vld [vmem:[%s433 + $0xd0] sm:$0xff]
        %v2291 = vld [vmem:[%s433 + $0xd8] sm:$0xff]
        %v2292 = vld [vmem:[%s433 + $0xe0] sm:$0xff]
        %v2293 = vld [vmem:[%s433 + $0xe8] sm:$0xff]
        %v2294 = vld [vmem:[%s433 + $0xf0] sm:$0xff]
        %v2295 = vld [vmem:[%s433 + $0xf8] sm:$0xff]
        %v2296 = vld [vmem:[%s433 + $0x100] sm:$0xff]
        %v2297 = vld [vmem:[%s433 + $0x108] sm:$0xff]
        %v2298 = vld [vmem:[%s433 + $0x110] sm:$0xff]
        %v2299 = vld [vmem:[%s433 + $0x118] sm:$0xff]
        %v2300 = vld [vmem:[%s433 + $0x120] sm:$0xff]
        %v2301 = vld [vmem:[%s433 + $0x128] sm:$0xff]
        %v2302 = vld [vmem:[%s433 + $0x130] sm:$0xff]
        %v2303 = vld [vmem:[%s433 + $0x138] sm:$0xff]
        %v2304 = vld [vmem:[%s433 + $0x140] sm:$0xff]
        %v2305 = vld [vmem:[%s433 + $0x148] sm:$0xff]
        %v2306 = vld [vmem:[%s433 + $0x150] sm:$0xff]
        %v2307 = vld [vmem:[%s433 + $0x158] sm:$0xff]
        %v2308 = vld [vmem:[%s433 + $0x160] sm:$0xff]
        %v2309 = vld [vmem:[%s433 + $0x168] sm:$0xff]
        %v2310 = vld [vmem:[%s433 + $0x170] sm:$0xff]
        %v2311 = vld [vmem:[%s433 + $0x178] sm:$0xff]
        %v2312 = vld [vmem:[%s433 + $0x180] sm:$0xff]
        %v2313 = vld [vmem:[%s433 + $0x188] sm:$0xff]
        %v2314 = vld [vmem:[%s433 + $0x190] sm:$0xff]
        %v2315 = vld [vmem:[%s433 + $0x198] sm:$0xff]
        %v2316 = vld [vmem:[%s433 + $0x1a0] sm:$0xff]
        %v2317 = vld [vmem:[%s433 + $0x1a8] sm:$0xff]
        %v2318 = vld [vmem:[%s433 + $0x1b0] sm:$0xff]
        %v2319 = vld [vmem:[%s433 + $0x1b8] sm:$0xff]
        %v2320 = vld [vmem:[%s433 + $0x1c0] sm:$0xff]
        %v2321 = vld [vmem:[%s433 + $0x1c8] sm:$0xff]
        %v2322 = vld [vmem:[%s433 + $0x1d0] sm:$0xff]
        %v2323 = vld [vmem:[%s433 + $0x1d8] sm:$0xff]
        %v2324 = vld [vmem:[%s433 + $0x1e0] sm:$0xff]
        %v2325 = vld [vmem:[%s433 + $0x1e8] sm:$0xff]
        %v2326 = vld [vmem:[%s433 + $0x1f0] sm:$0xff]
        %v2327 = vld [vmem:[%s433 + $0x1f8] sm:$0xff]
        %v2328 = vld [vmem:[%s433 + $0x200] sm:$0xff]
        %v2329 = vld [vmem:[%s433 + $0x208] sm:$0xff]
        %v2330 = vld [vmem:[%s433 + $0x210] sm:$0xff]
        %v2331 = vld [vmem:[%s433 + $0x218] sm:$0xff]
        %v2332 = vld [vmem:[%s433 + $0x220] sm:$0xff]
        %v2333 = vld [vmem:[%s433 + $0x228] sm:$0xff]
        %v2334 = vld [vmem:[%s433 + $0x230] sm:$0xff]
        %v2335 = vld [vmem:[%s433 + $0x238] sm:$0xff]
        %v2336 = vld [vmem:[%s433 + $0x240] sm:$0xff]
        %v2337 = vld [vmem:[%s433 + $0x248] sm:$0xff]
        %v2338 = vld [vmem:[%s433 + $0x250] sm:$0xff]
        %v2339 = vld [vmem:[%s433 + $0x258] sm:$0xff]
        %v2340 = vld [vmem:[%s433 + $0x260] sm:$0xff]
        %v2341 = vld [vmem:[%s433 + $0x268] sm:$0xff]
        %v2342 = vld [vmem:[%s433 + $0x270] sm:$0xff]
        %v2343 = vld [vmem:[%s433 + $0x278] sm:$0xff]
        %v2344 = vld [vmem:[%s433 + $0x280] sm:$0xff]
        %v2345 = vld [vmem:[%s433 + $0x288] sm:$0xff]
        %v2346 = vld [vmem:[%s433 + $0x290] sm:$0xff]
        %v2347 = vld [vmem:[%s433 + $0x298] sm:$0xff]
        %v2348 = vld [vmem:[%s433 + $0x2a0] sm:$0xff]
        %v2349 = vld [vmem:[%s433 + $0x2a8] sm:$0xff]
        %v2350 = vld [vmem:[%s433 + $0x2b0] sm:$0xff]
        %v2351 = vld [vmem:[%s433 + $0x2b8] sm:$0xff]
        %v2352 = vld [vmem:[%s433 + $0x2c0] sm:$0xff]
        %v2353 = vld [vmem:[%s433 + $0x2c8] sm:$0xff]
        %v2354 = vld [vmem:[%s433 + $0x2d0] sm:$0xff]
        %v2355 = vld [vmem:[%s433 + $0x2d8] sm:$0xff]
        %v2356 = vld [vmem:[%s433 + $0x2e0] sm:$0xff]
        %v2357 = vld [vmem:[%s433 + $0x2e8] sm:$0xff]
        %v2358 = vld [vmem:[%s433 + $0x2f0] sm:$0xff]
        %v2359 = vld [vmem:[%s433 + $0x2f8] sm:$0xff]
        %v2360 = vld [vmem:[%s433 + $0x300] sm:$0xff]
        %v2361 = vld [vmem:[%s433 + $0x308] sm:$0xff]
        %v2362 = vld [vmem:[%s433 + $0x310] sm:$0xff]
        %v2363 = vld [vmem:[%s433 + $0x318] sm:$0xff]
        %v2364 = vld [vmem:[%s433 + $0x320] sm:$0xff]
        %v2365 = vld [vmem:[%s433 + $0x328] sm:$0xff]
        %v2366 = vld [vmem:[%s433 + $0x330] sm:$0xff]
        %v2367 = vld [vmem:[%s433 + $0x338] sm:$0xff]
        %v2368 = vld [vmem:[%s433 + $0x340] sm:$0xff]
        %v2369 = vld [vmem:[%s433 + $0x348] sm:$0xff]
        %v2370 = vld [vmem:[%s433 + $0x350] sm:$0xff]
        %v2371 = vld [vmem:[%s433 + $0x358] sm:$0xff]
        %v2372 = vld [vmem:[%s433 + $0x360] sm:$0xff]
        %v2373 = vld [vmem:[%s433 + $0x368] sm:$0xff]
        %v2374 = vld [vmem:[%s433 + $0x370] sm:$0xff]
        %v2375 = vld [vmem:[%s433 + $0x378] sm:$0xff]
        %v2376 = vld [vmem:[%s433 + $0x380] sm:$0xff]
        %v2377 = vld [vmem:[%s433 + $0x388] sm:$0xff]
        %v2378 = vld [vmem:[%s433 + $0x390] sm:$0xff]
        %v2379 = vld [vmem:[%s433 + $0x398] sm:$0xff]
        %v2380 = vld [vmem:[%s433 + $0x3a0] sm:$0xff]
        %v2381 = vld [vmem:[%s433 + $0x3a8] sm:$0xff]
        %v2382 = vld [vmem:[%s433 + $0x3b0] sm:$0xff]
        %v2383 = vld [vmem:[%s433 + $0x3b8] sm:$0xff]
        %v2384 = vld [vmem:[%s433 + $0x3c0] sm:$0xff]
        %v2385 = vld [vmem:[%s433 + $0x3c8] sm:$0xff]
        %v2386 = vld [vmem:[%s433 + $0x3d0] sm:$0xff]
        %v2387 = vld [vmem:[%s433 + $0x3d8] sm:$0xff]
        %v2388 = vld [vmem:[%s433 + $0x3e0] sm:$0xff]
        %v2389 = vld [vmem:[%s433 + $0x3e8] sm:$0xff]
        %v2390 = vld [vmem:[%s433 + $0x3f0] sm:$0xff]
        %v2391 = vld [vmem:[%s433 + $0x3f8] sm:$0xff]
        %v2392 = vld [vmem:[%s433 + $0x400] sm:$0xff]
        %v2393 = vld [vmem:[%s433 + $0x408] sm:$0xff]
        %v2394 = vld [vmem:[%s433 + $0x410] sm:$0xff]
        %v2395 = vld [vmem:[%s433 + $0x418] sm:$0xff]
        %v2396 = vld [vmem:[%s433 + $0x420] sm:$0xff]
        %v2397 = vld [vmem:[%s433 + $0x428] sm:$0xff]
        %v2398 = vld [vmem:[%s433 + $0x430] sm:$0xff]
        %v2399 = vld [vmem:[%s433 + $0x438] sm:$0xff]
        %v2400 = vld [vmem:[%s433 + $0x440] sm:$0xff]
        %v2401 = vld [vmem:[%s433 + $0x448] sm:$0xff]
        %v2402 = vld [vmem:[%s433 + $0x450] sm:$0xff]
        %v2403 = vld [vmem:[%s433 + $0x458] sm:$0xff]
        %v2404 = vld [vmem:[%s433 + $0x460] sm:$0xff]
        %v2405 = vld [vmem:[%s433 + $0x468] sm:$0xff]
        %v2406 = vld [vmem:[%s433 + $0x470] sm:$0xff]
        %v2407 = vld [vmem:[%s433 + $0x478] sm:$0xff]
        %v2408 = vld [vmem:[%s433 + $0x480] sm:$0xff]
        %v2409 = vld [vmem:[%s433 + $0x488] sm:$0xff]
        %v2410 = vld [vmem:[%s433 + $0x490] sm:$0xff]
        %v2411 = vld [vmem:[%s433 + $0x498] sm:$0xff]
        %v2412 = vld [vmem:[%s433 + $0x4a0] sm:$0xff]
        %v2413 = vld [vmem:[%s433 + $0x4a8] sm:$0xff]
        %v2414 = vld [vmem:[%s433 + $0x4b0] sm:$0xff]
        %v2415 = vld [vmem:[%s433 + $0x4b8] sm:$0xff]
        %v2416 = vld [vmem:[%s433 + $0x4c0] sm:$0xff]
        %v2417 = vld [vmem:[%s433 + $0x4c8] sm:$0xff]
        %v2418 = vld [vmem:[%s433 + $0x4d0] sm:$0xff]
        %v2419 = vld [vmem:[%s433 + $0x4d8] sm:$0xff]
        %v2420 = vld [vmem:[%s433 + $0x4e0] sm:$0xff]
        %v2421 = vld [vmem:[%s433 + $0x4e8] sm:$0xff]
        %v2422 = vld [vmem:[%s433 + $0x4f0] sm:$0xff]
        %v2423 = vld [vmem:[%s433 + $0x4f8] sm:$0xff]
        %v2424 = vld [vmem:[%s433 + $0x500] sm:$0xff]
        %v2425 = vld [vmem:[%s433 + $0x508] sm:$0xff]
        %v2426 = vld [vmem:[%s433 + $0x510] sm:$0xff]
        %v2427 = vld [vmem:[%s433 + $0x518] sm:$0xff]
        %v2428 = vld [vmem:[%s433 + $0x520] sm:$0xff]
        %v2429 = vld [vmem:[%s433 + $0x528] sm:$0xff]
        %v2430 = vld [vmem:[%s433 + $0x530] sm:$0xff]
        %v2431 = vld [vmem:[%s433 + $0x538] sm:$0xff]
        %v2432 = vld [vmem:[%s433 + $0x540] sm:$0xff]
        %v2433 = vld [vmem:[%s433 + $0x548] sm:$0xff]
        %v2434 = vld [vmem:[%s433 + $0x550] sm:$0xff]
        %v2435 = vld [vmem:[%s433 + $0x558] sm:$0xff]
        %v2436 = vld [vmem:[%s433 + $0x560] sm:$0xff]
        %v2437 = vld [vmem:[%s433 + $0x568] sm:$0xff]
        %v2438 = vld [vmem:[%s433 + $0x570] sm:$0xff]
        %v2439 = vld [vmem:[%s433 + $0x578] sm:$0xff]
        %v2440 = vld [vmem:[%s433 + $0x580] sm:$0xff]
        %v2441 = vld [vmem:[%s433 + $0x588] sm:$0xff]
        %v2442 = vld [vmem:[%s433 + $0x590] sm:$0xff]
        %v2443 = vld [vmem:[%s433 + $0x598] sm:$0xff]
        %v2444 = vld [vmem:[%s433 + $0x5a0] sm:$0xff]
        %v2445 = vld [vmem:[%s433 + $0x5a8] sm:$0xff]
        %v2446 = vld [vmem:[%s433 + $0x5b0] sm:$0xff]
        %v2447 = vld [vmem:[%s433 + $0x5b8] sm:$0xff]
        %v2448 = vld [vmem:[%s433 + $0x5c0] sm:$0xff]
        %v2449 = vld [vmem:[%s433 + $0x5c8] sm:$0xff]
        %v2450 = vld [vmem:[%s433 + $0x5d0] sm:$0xff]
        %v2451 = vld [vmem:[%s433 + $0x5d8] sm:$0xff]
        %v2452 = vld [vmem:[%s433 + $0x5e0] sm:$0xff]
        %v2453 = vld [vmem:[%s433 + $0x5e8] sm:$0xff]
        %v2454 = vld [vmem:[%s433 + $0x5f0] sm:$0xff]
        %v2455 = vld [vmem:[%s433 + $0x5f8] sm:$0xff]
        %v2456 = vld [vmem:[%s433 + $0x600] sm:$0xff]
        %v2457 = vld [vmem:[%s433 + $0x608] sm:$0xff]
        %v2458 = vld [vmem:[%s433 + $0x610] sm:$0xff]
        %v2459 = vld [vmem:[%s433 + $0x618] sm:$0xff]
        %v2460 = vld [vmem:[%s433 + $0x620] sm:$0xff]
        %v2461 = vld [vmem:[%s433 + $0x628] sm:$0xff]
        %v2462 = vld [vmem:[%s433 + $0x630] sm:$0xff]
        %v2463 = vld [vmem:[%s433 + $0x638] sm:$0xff]
        %v2464 = vld [vmem:[%s433 + $0x640] sm:$0xff]
        %v2465 = vld [vmem:[%s433 + $0x648] sm:$0xff]
        %v2466 = vld [vmem:[%s433 + $0x650] sm:$0xff]
        %v2467 = vld [vmem:[%s433 + $0x658] sm:$0xff]
        %v2468 = vld [vmem:[%s433 + $0x660] sm:$0xff]
        %v2469 = vld [vmem:[%s433 + $0x668] sm:$0xff]
        %v2470 = vld [vmem:[%s433 + $0x670] sm:$0xff]
        %v2471 = vld [vmem:[%s433 + $0x678] sm:$0xff]
        %v2472 = vld [vmem:[%s433 + $0x680] sm:$0xff]
        %v2473 = vld [vmem:[%s433 + $0x688] sm:$0xff]
        %v2474 = vld [vmem:[%s433 + $0x690] sm:$0xff]
        %v2475 = vld [vmem:[%s433 + $0x698] sm:$0xff]
        %v2476 = vld [vmem:[%s433 + $0x6a0] sm:$0xff]
        %v2477 = vld [vmem:[%s433 + $0x6a8] sm:$0xff]
        %v2478 = vld [vmem:[%s433 + $0x6b0] sm:$0xff]
        %v2479 = vld [vmem:[%s433 + $0x6b8] sm:$0xff]
        %v2480 = vld [vmem:[%s433 + $0x6c0] sm:$0xff]
        %v2481 = vld [vmem:[%s433 + $0x6c8] sm:$0xff]
        %v2482 = vld [vmem:[%s433 + $0x6d0] sm:$0xff]
        %v2483 = vld [vmem:[%s433 + $0x6d8] sm:$0xff]
        %v2484 = vld [vmem:[%s433 + $0x6e0] sm:$0xff]
        %v2485 = vld [vmem:[%s433 + $0x6e8] sm:$0xff]
        %v2486 = vld [vmem:[%s433 + $0x6f0] sm:$0xff]
        %v2487 = vld [vmem:[%s433 + $0x6f8] sm:$0xff]
        %v2488 = vld [vmem:[%s433 + $0x700] sm:$0xff]
        %v2489 = vld [vmem:[%s433 + $0x708] sm:$0xff]
        %v2490 = vld [vmem:[%s433 + $0x710] sm:$0xff]
        %v2491 = vld [vmem:[%s433 + $0x718] sm:$0xff]
        %v2492 = vld [vmem:[%s433 + $0x720] sm:$0xff]
        %v2493 = vld [vmem:[%s433 + $0x728] sm:$0xff]
        %v2494 = vld [vmem:[%s433 + $0x730] sm:$0xff]
        %v2495 = vld [vmem:[%s433 + $0x738] sm:$0xff]
        %v2496 = vld [vmem:[%s433 + $0x740] sm:$0xff]
        %v2497 = vld [vmem:[%s433 + $0x748] sm:$0xff]
        %v2498 = vld [vmem:[%s433 + $0x750] sm:$0xff]
        %v2499 = vld [vmem:[%s433 + $0x758] sm:$0xff]
        %v2500 = vld [vmem:[%s433 + $0x760] sm:$0xff]
        %v2501 = vld [vmem:[%s433 + $0x768] sm:$0xff]
        %v2502 = vld [vmem:[%s433 + $0x770] sm:$0xff]
        %v2503 = vld [vmem:[%s433 + $0x778] sm:$0xff]
        %v2504 = vld [vmem:[%s433 + $0x780] sm:$0xff]
        %v2505 = vld [vmem:[%s433 + $0x788] sm:$0xff]
        %v2506 = vld [vmem:[%s433 + $0x790] sm:$0xff]
        %v2507 = vld [vmem:[%s433 + $0x798] sm:$0xff]
        %v2508 = vld [vmem:[%s433 + $0x7a0] sm:$0xff]
        %v2509 = vld [vmem:[%s433 + $0x7a8] sm:$0xff]
        %v2510 = vld [vmem:[%s433 + $0x7b0] sm:$0xff]
        %v2511 = vld [vmem:[%s433 + $0x7b8] sm:$0xff]
        %v2512 = vld [vmem:[%s433 + $0x7c0] sm:$0xff]
        %v2513 = vld [vmem:[%s433 + $0x7c8] sm:$0xff]
        %v2514 = vld [vmem:[%s433 + $0x7d0] sm:$0xff]
        %v2515 = vld [vmem:[%s433 + $0x7d8] sm:$0xff]
        %v2516 = vld [vmem:[%s433 + $0x7e0] sm:$0xff]
        %v2517 = vld [vmem:[%s433 + $0x7e8] sm:$0xff]
        %v2518 = vld [vmem:[%s433 + $0x7f0] sm:$0xff]
        %v2519 = vld [vmem:[%s433 + $0x7f8] sm:$0xff]
        %v2520 = vld [vmem:[%s433 + $0x800] sm:$0xff]
        %v2521 = vld [vmem:[%s433 + $0x808] sm:$0xff]
        %v2522 = vld [vmem:[%s433 + $0x810] sm:$0xff]
        %v2523 = vld [vmem:[%s433 + $0x818] sm:$0xff]
        %v2524 = vld [vmem:[%s433 + $0x820] sm:$0xff]
        %v2525 = vld [vmem:[%s433 + $0x828] sm:$0xff]
        %v2526 = vld [vmem:[%s433 + $0x830] sm:$0xff]
        %v2527 = vld [vmem:[%s433 + $0x838] sm:$0xff]
        %v2528 = vld [vmem:[%s433 + $0x840] sm:$0xff]
        %v2529 = vld [vmem:[%s433 + $0x848] sm:$0xff]
        %v2530 = vld [vmem:[%s433 + $0x850] sm:$0xff]
        %v2531 = vld [vmem:[%s433 + $0x858] sm:$0xff]
        %v2532 = vld [vmem:[%s433 + $0x860] sm:$0xff]
        %v2533 = vld [vmem:[%s433 + $0x868] sm:$0xff]
        %v2534 = vld [vmem:[%s433 + $0x870] sm:$0xff]
        %v2535 = vld [vmem:[%s433 + $0x878] sm:$0xff]
        %v2536 = vld [vmem:[%s433 + $0x880] sm:$0xff]
        %v2537 = vld [vmem:[%s433 + $0x888] sm:$0xff]
        %v2538 = vld [vmem:[%s433 + $0x890] sm:$0xff]
        %v2539 = vld [vmem:[%s433 + $0x898] sm:$0xff]
        %v2540 = vld [vmem:[%s433 + $0x8a0] sm:$0xff]
        %v2541 = vld [vmem:[%s433 + $0x8a8] sm:$0xff]
        %v2542 = vld [vmem:[%s433 + $0x8b0] sm:$0xff]
        %v2543 = vld [vmem:[%s433 + $0x8b8] sm:$0xff]
        %v2544 = vld [vmem:[%s433 + $0x8c0] sm:$0xff]
        %v2545 = vld [vmem:[%s433 + $0x8c8] sm:$0xff]
        %v2546 = vld [vmem:[%s433 + $0x8d0] sm:$0xff]
        %v2547 = vld [vmem:[%s433 + $0x8d8] sm:$0xff]
        %v2548 = vld [vmem:[%s433 + $0x8e0] sm:$0xff]
        %v2549 = vld [vmem:[%s433 + $0x8e8] sm:$0xff]
        %v2550 = vld [vmem:[%s433 + $0x8f0] sm:$0xff]
        %v2551 = vld [vmem:[%s433 + $0x8f8] sm:$0xff]
        %v2552 = vld [vmem:[%s433 + $0x900] sm:$0xff]
        %v2553 = vld [vmem:[%s433 + $0x908] sm:$0xff]
        %v2554 = vld [vmem:[%s433 + $0x910] sm:$0xff]
        %v2555 = vld [vmem:[%s433 + $0x918] sm:$0xff]
        %v2556 = vld [vmem:[%s433 + $0x920] sm:$0xff]
        %v2557 = vld [vmem:[%s433 + $0x928] sm:$0xff]
        %v2558 = vld [vmem:[%s433 + $0x930] sm:$0xff]
        %v2559 = vld [vmem:[%s433 + $0x938] sm:$0xff]
        %v2560 = vld [vmem:[%s433 + $0x940] sm:$0xff]
        %v2561 = vld [vmem:[%s433 + $0x948] sm:$0xff]
        %v2562 = vld [vmem:[%s433 + $0x950] sm:$0xff]
        %v2563 = vld [vmem:[%s433 + $0x958] sm:$0xff]
        %v2564 = vld [vmem:[%s433 + $0x960] sm:$0xff]
        %v2565 = vld [vmem:[%s433 + $0x968] sm:$0xff]
        %v2566 = vld [vmem:[%s433 + $0x970] sm:$0xff]
        %v2567 = vld [vmem:[%s433 + $0x978] sm:$0xff]
        %v2568 = vld [vmem:[%s433 + $0x980] sm:$0xff]
        %v2569 = vld [vmem:[%s433 + $0x988] sm:$0xff]
        %v2570 = vld [vmem:[%s433 + $0x990] sm:$0xff]
        %v2571 = vld [vmem:[%s433 + $0x998] sm:$0xff]
        %v2572 = vld [vmem:[%s433 + $0x9a0] sm:$0xff]
        %v2573 = vld [vmem:[%s433 + $0x9a8] sm:$0xff]
        %v2574 = vld [vmem:[%s433 + $0x9b0] sm:$0xff]
        %v2575 = vld [vmem:[%s433 + $0x9b8] sm:$0xff]
        %v2576 = vld [vmem:[%s433 + $0x9c0] sm:$0xff]
        %v2577 = vld [vmem:[%s433 + $0x9c8] sm:$0xff]
        %v2578 = vld [vmem:[%s433 + $0x9d0] sm:$0xff]
        %v2579 = vld [vmem:[%s433 + $0x9d8] sm:$0xff]
        %v2580 = vld [vmem:[%s433 + $0x9e0] sm:$0xff]
        %v2581 = vld [vmem:[%s433 + $0x9e8] sm:$0xff]
        %v2582 = vld [vmem:[%s433 + $0x9f0] sm:$0xff]
        %v2583 = vld [vmem:[%s433 + $0x9f8] sm:$0xff]
        %v2584 = vld [vmem:[%s433 + $0xa00] sm:$0xff]
        %v2585 = vld [vmem:[%s433 + $0xa08] sm:$0xff]
        %v2586 = vld [vmem:[%s433 + $0xa10] sm:$0xff]
        %v2587 = vld [vmem:[%s433 + $0xa18] sm:$0xff]
        %v2588 = vld [vmem:[%s433 + $0xa20] sm:$0xff]
        %v2589 = vld [vmem:[%s433 + $0xa28] sm:$0xff]
        %v2590 = vld [vmem:[%s433 + $0xa30] sm:$0xff]
        %v2591 = vld [vmem:[%s433 + $0xa38] sm:$0xff]
        %v2592 = vld [vmem:[%s433 + $0xa40] sm:$0xff]
        %v2593 = vld [vmem:[%s433 + $0xa48] sm:$0xff]
        %v2594 = vld [vmem:[%s433 + $0xa50] sm:$0xff]
        %v2595 = vld [vmem:[%s433 + $0xa58] sm:$0xff]
        %v2596 = vld [vmem:[%s433 + $0xa60] sm:$0xff]
        %v2597 = vld [vmem:[%s433 + $0xa68] sm:$0xff]
        %v2598 = vld [vmem:[%s433 + $0xa70] sm:$0xff]
        %v2599 = vld [vmem:[%s433 + $0xa78] sm:$0xff]
        %v2600 = vld [vmem:[%s433 + $0xa80] sm:$0xff]
        %v2601 = vld [vmem:[%s433 + $0xa88] sm:$0xff]
        %v2602 = vld [vmem:[%s433 + $0xa90] sm:$0xff]
        %v2603 = vld [vmem:[%s433 + $0xa98] sm:$0xff]
        %v2604 = vld [vmem:[%s433 + $0xaa0] sm:$0xff]
        %v2605 = vld [vmem:[%s433 + $0xaa8] sm:$0xff]
        %v2606 = vld [vmem:[%s433 + $0xab0] sm:$0xff]
        %v2607 = vld [vmem:[%s433 + $0xab8] sm:$0xff]
        %v2608 = vld [vmem:[%s433 + $0xac0] sm:$0xff]
        %v2609 = vld [vmem:[%s433 + $0xac8] sm:$0xff]
        %v2610 = vld [vmem:[%s433 + $0xad0] sm:$0xff]
        %v2611 = vld [vmem:[%s433 + $0xad8] sm:$0xff]
        %v2612 = vld [vmem:[%s433 + $0xae0] sm:$0xff]
        %v2613 = vld [vmem:[%s433 + $0xae8] sm:$0xff]
        %v2614 = vld [vmem:[%s433 + $0xaf0] sm:$0xff]
        %v2615 = vld [vmem:[%s433 + $0xaf8] sm:$0xff]
        %v2616 = vld [vmem:[%s433 + $0xb00] sm:$0xff]
        %v2617 = vld [vmem:[%s433 + $0xb08] sm:$0xff]
        %v2618 = vld [vmem:[%s433 + $0xb10] sm:$0xff]
        %v2619 = vld [vmem:[%s433 + $0xb18] sm:$0xff]
        %v2620 = vld [vmem:[%s433 + $0xb20] sm:$0xff]
        %v2621 = vld [vmem:[%s433 + $0xb28] sm:$0xff]
        %v2622 = vld [vmem:[%s433 + $0xb30] sm:$0xff]
        %v2623 = vld [vmem:[%s433 + $0xb38] sm:$0xff]
        %v2624 = vld [vmem:[%s433 + $0xb40] sm:$0xff]
        %v2625 = vld [vmem:[%s433 + $0xb48] sm:$0xff]
        %v2626 = vld [vmem:[%s433 + $0xb50] sm:$0xff]
        %v2627 = vld [vmem:[%s433 + $0xb58] sm:$0xff]
        %v2628 = vld [vmem:[%s433 + $0xb60] sm:$0xff]
        %v2629 = vld [vmem:[%s433 + $0xb68] sm:$0xff]
        %v2630 = vld [vmem:[%s433 + $0xb70] sm:$0xff]
        %v2631 = vld [vmem:[%s433 + $0xb78] sm:$0xff]
        %v2632 = vld [vmem:[%s433 + $0xb80] sm:$0xff]
        %v2633 = vld [vmem:[%s433 + $0xb88] sm:$0xff]
        %v2634 = vld [vmem:[%s433 + $0xb90] sm:$0xff]
        %v2635 = vld [vmem:[%s433 + $0xb98] sm:$0xff]
        %v2636 = vld [vmem:[%s433 + $0xba0] sm:$0xff]
        %v2637 = vld [vmem:[%s433 + $0xba8] sm:$0xff]
        %v2638 = vld [vmem:[%s433 + $0xbb0] sm:$0xff]
        %v2639 = vld [vmem:[%s433 + $0xbb8] sm:$0xff]
        %v2640 = vld [vmem:[%s433 + $0xbc0] sm:$0xff]
        %v2641 = vld [vmem:[%s433 + $0xbc8] sm:$0xff]
        %v2642 = vld [vmem:[%s433 + $0xbd0] sm:$0xff]
        %v2643 = vld [vmem:[%s433 + $0xbd8] sm:$0xff]
        %v2644 = vld [vmem:[%s433 + $0xbe0] sm:$0xff]
        %v2645 = vld [vmem:[%s433 + $0xbe8] sm:$0xff]
        %v2646 = vld [vmem:[%s433 + $0xbf0] sm:$0xff]
        %v2647 = vld [vmem:[%s433 + $0xbf8] sm:$0xff]
        %v2648 = vld [vmem:[%s433 + $0xc00] sm:$0xff]
        %v2649 = vld [vmem:[%s433 + $0xc08] sm:$0xff]
        %v2650 = vld [vmem:[%s433 + $0xc10] sm:$0xff]
        %v2651 = vld [vmem:[%s433 + $0xc18] sm:$0xff]
        %v2652 = vld [vmem:[%s433 + $0xc20] sm:$0xff]
        %v2653 = vld [vmem:[%s433 + $0xc28] sm:$0xff]
        %v2654 = vld [vmem:[%s433 + $0xc30] sm:$0xff]
        %v2655 = vld [vmem:[%s433 + $0xc38] sm:$0xff]
        %v2656 = vld [vmem:[%s433 + $0xc40] sm:$0xff]
        %v2657 = vld [vmem:[%s433 + $0xc48] sm:$0xff]
        %v2658 = vld [vmem:[%s433 + $0xc50] sm:$0xff]
        %v2659 = vld [vmem:[%s433 + $0xc58] sm:$0xff]
        %v2660 = vld [vmem:[%s433 + $0xc60] sm:$0xff]
        %v2661 = vld [vmem:[%s433 + $0xc68] sm:$0xff]
        %v2662 = vld [vmem:[%s433 + $0xc70] sm:$0xff]
        %v2663 = vld [vmem:[%s433 + $0xc78] sm:$0xff]
        %v2664 = vunpack.c.l.s8.bf16 %v2264
        %v2665 = vunpack.c.l.s8.bf16 %v2265
        %v2666 = vunpack.c.l.s8.bf16 %v2266
        %v2667 = vunpack.c.l.s8.bf16 %v2267
        %v2668 = vunpack.c.l.s8.bf16 %v2268
        %v2669 = vunpack.c.l.s8.bf16 %v2269
        %v2670 = vunpack.c.l.s8.bf16 %v2270
        %v2671 = vunpack.c.l.s8.bf16 %v2271
        %v2672 = vunpack.c.l.s8.bf16 %v2272
        %v2673 = vunpack.c.l.s8.bf16 %v2273
        %v2674 = vunpack.c.h.s8.bf16 %v2264
        %v2675 = vunpack.c.h.s8.bf16 %v2265
        %v2676 = vunpack.c.h.s8.bf16 %v2266
        %v2677 = vunpack.c.h.s8.bf16 %v2267
        %v2678 = vunpack.c.h.s8.bf16 %v2268
        %v2679 = vunpack.c.h.s8.bf16 %v2269
        %v2680 = vunpack.c.h.s8.bf16 %v2270
        %v2681 = vunpack.c.h.s8.bf16 %v2271
        %v2682 = vunpack.c.h.s8.bf16 %v2272
        %v2683 = vunpack.c.h.s8.bf16 %v2273
        %v2684 = vunpack.c.l.s8.bf16 %v2274
        %v2685 = vunpack.c.l.s8.bf16 %v2275
        %v2686 = vunpack.c.l.s8.bf16 %v2276
        %v2687 = vunpack.c.l.s8.bf16 %v2277
        %v2688 = vunpack.c.l.s8.bf16 %v2278
        %v2689 = vunpack.c.l.s8.bf16 %v2279
        %v2690 = vunpack.c.l.s8.bf16 %v2280
        %v2691 = vunpack.c.l.s8.bf16 %v2281
        %v2692 = vunpack.c.l.s8.bf16 %v2282
        %v2693 = vunpack.c.l.s8.bf16 %v2283
        %v2694 = vunpack.c.h.s8.bf16 %v2274
        %v2695 = vunpack.c.h.s8.bf16 %v2275
        %v2696 = vunpack.c.h.s8.bf16 %v2276
        %v2697 = vunpack.c.h.s8.bf16 %v2277
        %v2698 = vunpack.c.h.s8.bf16 %v2278
        %v2699 = vunpack.c.h.s8.bf16 %v2279
        %v2700 = vunpack.c.h.s8.bf16 %v2280
        %v2701 = vunpack.c.h.s8.bf16 %v2281
        %v2702 = vunpack.c.h.s8.bf16 %v2282
        %v2703 = vunpack.c.h.s8.bf16 %v2283
        %v2704 = vunpack.c.l.s8.bf16 %v2284
        %v2705 = vunpack.c.l.s8.bf16 %v2285
        %v2706 = vunpack.c.l.s8.bf16 %v2286
        %v2707 = vunpack.c.l.s8.bf16 %v2287
        %v2708 = vunpack.c.l.s8.bf16 %v2288
        %v2709 = vunpack.c.l.s8.bf16 %v2289
        %v2710 = vunpack.c.l.s8.bf16 %v2290
        %v2711 = vunpack.c.l.s8.bf16 %v2291
        %v2712 = vunpack.c.l.s8.bf16 %v2292
        %v2713 = vunpack.c.l.s8.bf16 %v2293
        %v2714 = vunpack.c.h.s8.bf16 %v2284
        %v2715 = vunpack.c.h.s8.bf16 %v2285
        %v2716 = vunpack.c.h.s8.bf16 %v2286
        %v2717 = vunpack.c.h.s8.bf16 %v2287
        %v2718 = vunpack.c.h.s8.bf16 %v2288
        %v2719 = vunpack.c.h.s8.bf16 %v2289
        %v2720 = vunpack.c.h.s8.bf16 %v2290
        %v2721 = vunpack.c.h.s8.bf16 %v2291
        %v2722 = vunpack.c.h.s8.bf16 %v2292
        %v2723 = vunpack.c.h.s8.bf16 %v2293
        %v2724 = vunpack.c.l.s8.bf16 %v2294
        %v2725 = vunpack.c.l.s8.bf16 %v2295
        %v2726 = vunpack.c.l.s8.bf16 %v2296
        %v2727 = vunpack.c.l.s8.bf16 %v2297
        %v2728 = vunpack.c.l.s8.bf16 %v2298
        %v2729 = vunpack.c.l.s8.bf16 %v2299
        %v2730 = vunpack.c.l.s8.bf16 %v2300
        %v2731 = vunpack.c.l.s8.bf16 %v2301
        %v2732 = vunpack.c.l.s8.bf16 %v2302
        %v2733 = vunpack.c.l.s8.bf16 %v2303
        %v2734 = vunpack.c.h.s8.bf16 %v2294
        %v2735 = vunpack.c.h.s8.bf16 %v2295
        %v2736 = vunpack.c.h.s8.bf16 %v2296
        %v2737 = vunpack.c.h.s8.bf16 %v2297
        %v2738 = vunpack.c.h.s8.bf16 %v2298
        %v2739 = vunpack.c.h.s8.bf16 %v2299
        %v2740 = vunpack.c.h.s8.bf16 %v2300
        %v2741 = vunpack.c.h.s8.bf16 %v2301
        %v2742 = vunpack.c.h.s8.bf16 %v2302
        %v2743 = vunpack.c.h.s8.bf16 %v2303
        %v2744 = vunpack.c.l.s8.bf16 %v2304
        %v2745 = vunpack.c.l.s8.bf16 %v2305
        %v2746 = vunpack.c.l.s8.bf16 %v2306
        %v2747 = vunpack.c.l.s8.bf16 %v2307
        %v2748 = vunpack.c.l.s8.bf16 %v2308
        %v2749 = vunpack.c.l.s8.bf16 %v2309
        %v2750 = vunpack.c.l.s8.bf16 %v2310
        %v2751 = vunpack.c.l.s8.bf16 %v2311
        %v2752 = vunpack.c.l.s8.bf16 %v2312
        %v2753 = vunpack.c.l.s8.bf16 %v2313
        %v2754 = vunpack.c.h.s8.bf16 %v2304
        %v2755 = vunpack.c.h.s8.bf16 %v2305
        %v2756 = vunpack.c.h.s8.bf16 %v2306
        %v2757 = vunpack.c.h.s8.bf16 %v2307
        %v2758 = vunpack.c.h.s8.bf16 %v2308
        %v2759 = vunpack.c.h.s8.bf16 %v2309
        %v2760 = vunpack.c.h.s8.bf16 %v2310
        %v2761 = vunpack.c.h.s8.bf16 %v2311
        %v2762 = vunpack.c.h.s8.bf16 %v2312
        %v2763 = vunpack.c.h.s8.bf16 %v2313
        %v2764 = vunpack.c.l.s8.bf16 %v2314
        %v2765 = vunpack.c.l.s8.bf16 %v2315
        %v2766 = vunpack.c.l.s8.bf16 %v2316
        %v2767 = vunpack.c.l.s8.bf16 %v2317
        %v2768 = vunpack.c.l.s8.bf16 %v2318
        %v2769 = vunpack.c.l.s8.bf16 %v2319
        %v2770 = vunpack.c.l.s8.bf16 %v2320
        %v2771 = vunpack.c.l.s8.bf16 %v2321
        %v2772 = vunpack.c.l.s8.bf16 %v2322
        %v2773 = vunpack.c.l.s8.bf16 %v2323
        %v2774 = vunpack.c.h.s8.bf16 %v2314
        %v2775 = vunpack.c.h.s8.bf16 %v2315
        %v2776 = vunpack.c.h.s8.bf16 %v2316
        %v2777 = vunpack.c.h.s8.bf16 %v2317
        %v2778 = vunpack.c.h.s8.bf16 %v2318
        %v2779 = vunpack.c.h.s8.bf16 %v2319
        %v2780 = vunpack.c.h.s8.bf16 %v2320
        %v2781 = vunpack.c.h.s8.bf16 %v2321
        %v2782 = vunpack.c.h.s8.bf16 %v2322
        %v2783 = vunpack.c.h.s8.bf16 %v2323
        %v2784 = vunpack.c.l.s8.bf16 %v2324
        %v2785 = vunpack.c.l.s8.bf16 %v2325
        %v2786 = vunpack.c.l.s8.bf16 %v2326
        %v2787 = vunpack.c.l.s8.bf16 %v2327
        %v2788 = vunpack.c.l.s8.bf16 %v2328
        %v2789 = vunpack.c.l.s8.bf16 %v2329
        %v2790 = vunpack.c.l.s8.bf16 %v2330
        %v2791 = vunpack.c.l.s8.bf16 %v2331
        %v2792 = vunpack.c.l.s8.bf16 %v2332
        %v2793 = vunpack.c.l.s8.bf16 %v2333
        %v2794 = vunpack.c.h.s8.bf16 %v2324
        %v2795 = vunpack.c.h.s8.bf16 %v2325
        %v2796 = vunpack.c.h.s8.bf16 %v2326
        %v2797 = vunpack.c.h.s8.bf16 %v2327
        %v2798 = vunpack.c.h.s8.bf16 %v2328
        %v2799 = vunpack.c.h.s8.bf16 %v2329
        %v2800 = vunpack.c.h.s8.bf16 %v2330
        %v2801 = vunpack.c.h.s8.bf16 %v2331
        %v2802 = vunpack.c.h.s8.bf16 %v2332
        %v2803 = vunpack.c.h.s8.bf16 %v2333
        %v2804 = vunpack.c.l.s8.bf16 %v2334
        %v2805 = vunpack.c.l.s8.bf16 %v2335
        %v2806 = vunpack.c.l.s8.bf16 %v2336
        %v2807 = vunpack.c.l.s8.bf16 %v2337
        %v2808 = vunpack.c.l.s8.bf16 %v2338
        %v2809 = vunpack.c.l.s8.bf16 %v2339
        %v2810 = vunpack.c.l.s8.bf16 %v2340
        %v2811 = vunpack.c.l.s8.bf16 %v2341
        %v2812 = vunpack.c.l.s8.bf16 %v2342
        %v2813 = vunpack.c.l.s8.bf16 %v2343
        %v2814 = vunpack.c.h.s8.bf16 %v2334
        %v2815 = vunpack.c.h.s8.bf16 %v2335
        %v2816 = vunpack.c.h.s8.bf16 %v2336
        %v2817 = vunpack.c.h.s8.bf16 %v2337
        %v2818 = vunpack.c.h.s8.bf16 %v2338
        %v2819 = vunpack.c.h.s8.bf16 %v2339
        %v2820 = vunpack.c.h.s8.bf16 %v2340
        %v2821 = vunpack.c.h.s8.bf16 %v2341
        %v2822 = vunpack.c.h.s8.bf16 %v2342
        %v2823 = vunpack.c.h.s8.bf16 %v2343
        %v2824 = vunpack.c.l.s8.bf16 %v2344
        %v2825 = vunpack.c.l.s8.bf16 %v2345
        %v2826 = vunpack.c.l.s8.bf16 %v2346
        %v2827 = vunpack.c.l.s8.bf16 %v2347
        %v2828 = vunpack.c.l.s8.bf16 %v2348
        %v2829 = vunpack.c.l.s8.bf16 %v2349
        %v2830 = vunpack.c.l.s8.bf16 %v2350
        %v2831 = vunpack.c.l.s8.bf16 %v2351
        %v2832 = vunpack.c.l.s8.bf16 %v2352
        %v2833 = vunpack.c.l.s8.bf16 %v2353
        %v2834 = vunpack.c.h.s8.bf16 %v2344
        %v2835 = vunpack.c.h.s8.bf16 %v2345
        %v2836 = vunpack.c.h.s8.bf16 %v2346
        %v2837 = vunpack.c.h.s8.bf16 %v2347
        %v2838 = vunpack.c.h.s8.bf16 %v2348
        %v2839 = vunpack.c.h.s8.bf16 %v2349
        %v2840 = vunpack.c.h.s8.bf16 %v2350
        %v2841 = vunpack.c.h.s8.bf16 %v2351
        %v2842 = vunpack.c.h.s8.bf16 %v2352
        %v2843 = vunpack.c.h.s8.bf16 %v2353
        %v2844 = vunpack.c.l.s8.bf16 %v2354
        %v2845 = vunpack.c.l.s8.bf16 %v2355
        %v2846 = vunpack.c.l.s8.bf16 %v2356
        %v2847 = vunpack.c.l.s8.bf16 %v2357
        %v2848 = vunpack.c.l.s8.bf16 %v2358
        %v2849 = vunpack.c.l.s8.bf16 %v2359
        %v2850 = vunpack.c.l.s8.bf16 %v2360
        %v2851 = vunpack.c.l.s8.bf16 %v2361
        %v2852 = vunpack.c.l.s8.bf16 %v2362
        %v2853 = vunpack.c.l.s8.bf16 %v2363
        %v2854 = vunpack.c.h.s8.bf16 %v2354
        %v2855 = vunpack.c.h.s8.bf16 %v2355
        %v2856 = vunpack.c.h.s8.bf16 %v2356
        %v2857 = vunpack.c.h.s8.bf16 %v2357
        %v2858 = vunpack.c.h.s8.bf16 %v2358
        %v2859 = vunpack.c.h.s8.bf16 %v2359
        %v2860 = vunpack.c.h.s8.bf16 %v2360
        %v2861 = vunpack.c.h.s8.bf16 %v2361
        %v2862 = vunpack.c.h.s8.bf16 %v2362
        %v2863 = vunpack.c.h.s8.bf16 %v2363
        %v2864 = vunpack.c.l.s8.bf16 %v2364
        %v2865 = vunpack.c.l.s8.bf16 %v2365
        %v2866 = vunpack.c.l.s8.bf16 %v2366
        %v2867 = vunpack.c.l.s8.bf16 %v2367
        %v2868 = vunpack.c.l.s8.bf16 %v2368
        %v2869 = vunpack.c.l.s8.bf16 %v2369
        %v2870 = vunpack.c.l.s8.bf16 %v2370
        %v2871 = vunpack.c.l.s8.bf16 %v2371
        %v2872 = vunpack.c.l.s8.bf16 %v2372
        %v2873 = vunpack.c.l.s8.bf16 %v2373
        %v2874 = vunpack.c.h.s8.bf16 %v2364
        %v2875 = vunpack.c.h.s8.bf16 %v2365
        %v2876 = vunpack.c.h.s8.bf16 %v2366
        %v2877 = vunpack.c.h.s8.bf16 %v2367
        %v2878 = vunpack.c.h.s8.bf16 %v2368
        %v2879 = vunpack.c.h.s8.bf16 %v2369
        %v2880 = vunpack.c.h.s8.bf16 %v2370
        %v2881 = vunpack.c.h.s8.bf16 %v2371
        %v2882 = vunpack.c.h.s8.bf16 %v2372
        %v2883 = vunpack.c.h.s8.bf16 %v2373
        %v2884 = vunpack.c.l.s8.bf16 %v2374
        %v2885 = vunpack.c.l.s8.bf16 %v2375
        %v2886 = vunpack.c.l.s8.bf16 %v2376
        %v2887 = vunpack.c.l.s8.bf16 %v2377
        %v2888 = vunpack.c.l.s8.bf16 %v2378
        %v2889 = vunpack.c.l.s8.bf16 %v2379
        %v2890 = vunpack.c.l.s8.bf16 %v2380
        %v2891 = vunpack.c.l.s8.bf16 %v2381
        %v2892 = vunpack.c.l.s8.bf16 %v2382
        %v2893 = vunpack.c.l.s8.bf16 %v2383
        %v2894 = vunpack.c.h.s8.bf16 %v2374
        %v2895 = vunpack.c.h.s8.bf16 %v2375
        %v2896 = vunpack.c.h.s8.bf16 %v2376
        %v2897 = vunpack.c.h.s8.bf16 %v2377
        %v2898 = vunpack.c.h.s8.bf16 %v2378
        %v2899 = vunpack.c.h.s8.bf16 %v2379
        %v2900 = vunpack.c.h.s8.bf16 %v2380
        %v2901 = vunpack.c.h.s8.bf16 %v2381
        %v2902 = vunpack.c.h.s8.bf16 %v2382
        %v2903 = vunpack.c.h.s8.bf16 %v2383
        %v2904 = vunpack.c.l.s8.bf16 %v2384
        %v2905 = vunpack.c.l.s8.bf16 %v2385
        %v2906 = vunpack.c.l.s8.bf16 %v2386
        %v2907 = vunpack.c.l.s8.bf16 %v2387
        %v2908 = vunpack.c.l.s8.bf16 %v2388
        %v2909 = vunpack.c.l.s8.bf16 %v2389
        %v2910 = vunpack.c.l.s8.bf16 %v2390
        %v2911 = vunpack.c.l.s8.bf16 %v2391
        %v2912 = vunpack.c.l.s8.bf16 %v2392
        %v2913 = vunpack.c.l.s8.bf16 %v2393
        %v2914 = vunpack.c.h.s8.bf16 %v2384
        %v2915 = vunpack.c.h.s8.bf16 %v2385
        %v2916 = vunpack.c.h.s8.bf16 %v2386
        %v2917 = vunpack.c.h.s8.bf16 %v2387
        %v2918 = vunpack.c.h.s8.bf16 %v2388
        %v2919 = vunpack.c.h.s8.bf16 %v2389
        %v2920 = vunpack.c.h.s8.bf16 %v2390
        %v2921 = vunpack.c.h.s8.bf16 %v2391
        %v2922 = vunpack.c.h.s8.bf16 %v2392
        %v2923 = vunpack.c.h.s8.bf16 %v2393
        %v2924 = vunpack.c.l.s8.bf16 %v2394
        %v2925 = vunpack.c.l.s8.bf16 %v2395
        %v2926 = vunpack.c.l.s8.bf16 %v2396
        %v2927 = vunpack.c.l.s8.bf16 %v2397
        %v2928 = vunpack.c.l.s8.bf16 %v2398
        %v2929 = vunpack.c.l.s8.bf16 %v2399
        %v2930 = vunpack.c.l.s8.bf16 %v2400
        %v2931 = vunpack.c.l.s8.bf16 %v2401
        %v2932 = vunpack.c.l.s8.bf16 %v2402
        %v2933 = vunpack.c.l.s8.bf16 %v2403
        %v2934 = vunpack.c.h.s8.bf16 %v2394
        %v2935 = vunpack.c.h.s8.bf16 %v2395
        %v2936 = vunpack.c.h.s8.bf16 %v2396
        %v2937 = vunpack.c.h.s8.bf16 %v2397
        %v2938 = vunpack.c.h.s8.bf16 %v2398
        %v2939 = vunpack.c.h.s8.bf16 %v2399
        %v2940 = vunpack.c.h.s8.bf16 %v2400
        %v2941 = vunpack.c.h.s8.bf16 %v2401
        %v2942 = vunpack.c.h.s8.bf16 %v2402
        %v2943 = vunpack.c.h.s8.bf16 %v2403
        %v2944 = vunpack.c.l.s8.bf16 %v2404
        %v2945 = vunpack.c.l.s8.bf16 %v2405
        %v2946 = vunpack.c.l.s8.bf16 %v2406
        %v2947 = vunpack.c.l.s8.bf16 %v2407
        %v2948 = vunpack.c.l.s8.bf16 %v2408
        %v2949 = vunpack.c.l.s8.bf16 %v2409
        %v2950 = vunpack.c.l.s8.bf16 %v2410
        %v2951 = vunpack.c.l.s8.bf16 %v2411
        %v2952 = vunpack.c.l.s8.bf16 %v2412
        %v2953 = vunpack.c.l.s8.bf16 %v2413
        %v2954 = vunpack.c.h.s8.bf16 %v2404
        %v2955 = vunpack.c.h.s8.bf16 %v2405
        %v2956 = vunpack.c.h.s8.bf16 %v2406
        %v2957 = vunpack.c.h.s8.bf16 %v2407
        %v2958 = vunpack.c.h.s8.bf16 %v2408
        %v2959 = vunpack.c.h.s8.bf16 %v2409
        %v2960 = vunpack.c.h.s8.bf16 %v2410
        %v2961 = vunpack.c.h.s8.bf16 %v2411
        %v2962 = vunpack.c.h.s8.bf16 %v2412
        %v2963 = vunpack.c.h.s8.bf16 %v2413
        %v2964 = vunpack.c.l.s8.bf16 %v2414
        %v2965 = vunpack.c.l.s8.bf16 %v2415
        %v2966 = vunpack.c.l.s8.bf16 %v2416
        %v2967 = vunpack.c.l.s8.bf16 %v2417
        %v2968 = vunpack.c.l.s8.bf16 %v2418
        %v2969 = vunpack.c.l.s8.bf16 %v2419
        %v2970 = vunpack.c.l.s8.bf16 %v2420
        %v2971 = vunpack.c.l.s8.bf16 %v2421
        %v2972 = vunpack.c.l.s8.bf16 %v2422
        %v2973 = vunpack.c.l.s8.bf16 %v2423
        %v2974 = vunpack.c.h.s8.bf16 %v2414
        %v2975 = vunpack.c.h.s8.bf16 %v2415
        %v2976 = vunpack.c.h.s8.bf16 %v2416
        %v2977 = vunpack.c.h.s8.bf16 %v2417
        %v2978 = vunpack.c.h.s8.bf16 %v2418
        %v2979 = vunpack.c.h.s8.bf16 %v2419
        %v2980 = vunpack.c.h.s8.bf16 %v2420
        %v2981 = vunpack.c.h.s8.bf16 %v2421
        %v2982 = vunpack.c.h.s8.bf16 %v2422
        %v2983 = vunpack.c.h.s8.bf16 %v2423
        %v2984 = vunpack.c.l.s8.bf16 %v2424
        %v2985 = vunpack.c.l.s8.bf16 %v2425
        %v2986 = vunpack.c.l.s8.bf16 %v2426
        %v2987 = vunpack.c.l.s8.bf16 %v2427
        %v2988 = vunpack.c.l.s8.bf16 %v2428
        %v2989 = vunpack.c.l.s8.bf16 %v2429
        %v2990 = vunpack.c.l.s8.bf16 %v2430
        %v2991 = vunpack.c.l.s8.bf16 %v2431
        %v2992 = vunpack.c.l.s8.bf16 %v2432
        %v2993 = vunpack.c.l.s8.bf16 %v2433
        %v2994 = vunpack.c.h.s8.bf16 %v2424
        %v2995 = vunpack.c.h.s8.bf16 %v2425
        %v2996 = vunpack.c.h.s8.bf16 %v2426
        %v2997 = vunpack.c.h.s8.bf16 %v2427
        %v2998 = vunpack.c.h.s8.bf16 %v2428
        %v2999 = vunpack.c.h.s8.bf16 %v2429
        %v3000 = vunpack.c.h.s8.bf16 %v2430
        %v3001 = vunpack.c.h.s8.bf16 %v2431
        %v3002 = vunpack.c.h.s8.bf16 %v2432
        %v3003 = vunpack.c.h.s8.bf16 %v2433
        %v3004 = vunpack.c.l.s8.bf16 %v2434
        %v3005 = vunpack.c.l.s8.bf16 %v2435
        %v3006 = vunpack.c.l.s8.bf16 %v2436
        %v3007 = vunpack.c.l.s8.bf16 %v2437
        %v3008 = vunpack.c.l.s8.bf16 %v2438
        %v3009 = vunpack.c.l.s8.bf16 %v2439
        %v3010 = vunpack.c.l.s8.bf16 %v2440
        %v3011 = vunpack.c.l.s8.bf16 %v2441
        %v3012 = vunpack.c.l.s8.bf16 %v2442
        %v3013 = vunpack.c.l.s8.bf16 %v2443
        %v3014 = vunpack.c.h.s8.bf16 %v2434
        %v3015 = vunpack.c.h.s8.bf16 %v2435
        %v3016 = vunpack.c.h.s8.bf16 %v2436
        %v3017 = vunpack.c.h.s8.bf16 %v2437
        %v3018 = vunpack.c.h.s8.bf16 %v2438
        %v3019 = vunpack.c.h.s8.bf16 %v2439
        %v3020 = vunpack.c.h.s8.bf16 %v2440
        %v3021 = vunpack.c.h.s8.bf16 %v2441
        %v3022 = vunpack.c.h.s8.bf16 %v2442
        %v3023 = vunpack.c.h.s8.bf16 %v2443
        %v3024 = vunpack.c.l.s8.bf16 %v2444
        %v3025 = vunpack.c.l.s8.bf16 %v2445
        %v3026 = vunpack.c.l.s8.bf16 %v2446
        %v3027 = vunpack.c.l.s8.bf16 %v2447
        %v3028 = vunpack.c.l.s8.bf16 %v2448
        %v3029 = vunpack.c.l.s8.bf16 %v2449
        %v3030 = vunpack.c.l.s8.bf16 %v2450
        %v3031 = vunpack.c.l.s8.bf16 %v2451
        %v3032 = vunpack.c.l.s8.bf16 %v2452
        %v3033 = vunpack.c.l.s8.bf16 %v2453
        %v3034 = vunpack.c.h.s8.bf16 %v2444
        %v3035 = vunpack.c.h.s8.bf16 %v2445
        %v3036 = vunpack.c.h.s8.bf16 %v2446
        %v3037 = vunpack.c.h.s8.bf16 %v2447
        %v3038 = vunpack.c.h.s8.bf16 %v2448
        %v3039 = vunpack.c.h.s8.bf16 %v2449
        %v3040 = vunpack.c.h.s8.bf16 %v2450
        %v3041 = vunpack.c.h.s8.bf16 %v2451
        %v3042 = vunpack.c.h.s8.bf16 %v2452
        %v3043 = vunpack.c.h.s8.bf16 %v2453
        %v3044 = vunpack.c.l.s8.bf16 %v2454
        %v3045 = vunpack.c.l.s8.bf16 %v2455
        %v3046 = vunpack.c.l.s8.bf16 %v2456
        %v3047 = vunpack.c.l.s8.bf16 %v2457
        %v3048 = vunpack.c.l.s8.bf16 %v2458
        %v3049 = vunpack.c.l.s8.bf16 %v2459
        %v3050 = vunpack.c.l.s8.bf16 %v2460
        %v3051 = vunpack.c.l.s8.bf16 %v2461
        %v3052 = vunpack.c.l.s8.bf16 %v2462
        %v3053 = vunpack.c.l.s8.bf16 %v2463
        %v3054 = vunpack.c.h.s8.bf16 %v2454
        %v3055 = vunpack.c.h.s8.bf16 %v2455
        %v3056 = vunpack.c.h.s8.bf16 %v2456
        %v3057 = vunpack.c.h.s8.bf16 %v2457
        %v3058 = vunpack.c.h.s8.bf16 %v2458
        %v3059 = vunpack.c.h.s8.bf16 %v2459
        %v3060 = vunpack.c.h.s8.bf16 %v2460
        %v3061 = vunpack.c.h.s8.bf16 %v2461
        %v3062 = vunpack.c.h.s8.bf16 %v2462
        %v3063 = vunpack.c.h.s8.bf16 %v2463
        %v3064 = vunpack.c.l.s8.bf16 %v2464
        %v3065 = vunpack.c.l.s8.bf16 %v2465
        %v3066 = vunpack.c.l.s8.bf16 %v2466
        %v3067 = vunpack.c.l.s8.bf16 %v2467
        %v3068 = vunpack.c.l.s8.bf16 %v2468
        %v3069 = vunpack.c.l.s8.bf16 %v2469
        %v3070 = vunpack.c.l.s8.bf16 %v2470
        %v3071 = vunpack.c.l.s8.bf16 %v2471
        %v3072 = vunpack.c.l.s8.bf16 %v2472
        %v3073 = vunpack.c.l.s8.bf16 %v2473
        %v3074 = vunpack.c.h.s8.bf16 %v2464
        %v3075 = vunpack.c.h.s8.bf16 %v2465
        %v3076 = vunpack.c.h.s8.bf16 %v2466
        %v3077 = vunpack.c.h.s8.bf16 %v2467
        %v3078 = vunpack.c.h.s8.bf16 %v2468
        %v3079 = vunpack.c.h.s8.bf16 %v2469
        %v3080 = vunpack.c.h.s8.bf16 %v2470
        %v3081 = vunpack.c.h.s8.bf16 %v2471
        %v3082 = vunpack.c.h.s8.bf16 %v2472
        %v3083 = vunpack.c.h.s8.bf16 %v2473
        %v3084 = vunpack.c.l.s8.bf16 %v2474
        %v3085 = vunpack.c.l.s8.bf16 %v2475
        %v3086 = vunpack.c.l.s8.bf16 %v2476
        %v3087 = vunpack.c.l.s8.bf16 %v2477
        %v3088 = vunpack.c.l.s8.bf16 %v2478
        %v3089 = vunpack.c.l.s8.bf16 %v2479
        %v3090 = vunpack.c.l.s8.bf16 %v2480
        %v3091 = vunpack.c.l.s8.bf16 %v2481
        %v3092 = vunpack.c.l.s8.bf16 %v2482
        %v3093 = vunpack.c.l.s8.bf16 %v2483
        %v3094 = vunpack.c.h.s8.bf16 %v2474
        %v3095 = vunpack.c.h.s8.bf16 %v2475
        %v3096 = vunpack.c.h.s8.bf16 %v2476
        %v3097 = vunpack.c.h.s8.bf16 %v2477
        %v3098 = vunpack.c.h.s8.bf16 %v2478
        %v3099 = vunpack.c.h.s8.bf16 %v2479
        %v3100 = vunpack.c.h.s8.bf16 %v2480
        %v3101 = vunpack.c.h.s8.bf16 %v2481
        %v3102 = vunpack.c.h.s8.bf16 %v2482
        %v3103 = vunpack.c.h.s8.bf16 %v2483
        %v3104 = vunpack.c.l.s8.bf16 %v2484
        %v3105 = vunpack.c.l.s8.bf16 %v2485
        %v3106 = vunpack.c.l.s8.bf16 %v2486
        %v3107 = vunpack.c.l.s8.bf16 %v2487
        %v3108 = vunpack.c.l.s8.bf16 %v2488
        %v3109 = vunpack.c.l.s8.bf16 %v2489
        %v3110 = vunpack.c.l.s8.bf16 %v2490
        %v3111 = vunpack.c.l.s8.bf16 %v2491
        %v3112 = vunpack.c.l.s8.bf16 %v2492
        %v3113 = vunpack.c.l.s8.bf16 %v2493
        %v3114 = vunpack.c.h.s8.bf16 %v2484
        %v3115 = vunpack.c.h.s8.bf16 %v2485
        %v3116 = vunpack.c.h.s8.bf16 %v2486
        %v3117 = vunpack.c.h.s8.bf16 %v2487
        %v3118 = vunpack.c.h.s8.bf16 %v2488
        %v3119 = vunpack.c.h.s8.bf16 %v2489
        %v3120 = vunpack.c.h.s8.bf16 %v2490
        %v3121 = vunpack.c.h.s8.bf16 %v2491
        %v3122 = vunpack.c.h.s8.bf16 %v2492
        %v3123 = vunpack.c.h.s8.bf16 %v2493
        %v3124 = vunpack.c.l.s8.bf16 %v2494
        %v3125 = vunpack.c.l.s8.bf16 %v2495
        %v3126 = vunpack.c.l.s8.bf16 %v2496
        %v3127 = vunpack.c.l.s8.bf16 %v2497
        %v3128 = vunpack.c.l.s8.bf16 %v2498
        %v3129 = vunpack.c.l.s8.bf16 %v2499
        %v3130 = vunpack.c.l.s8.bf16 %v2500
        %v3131 = vunpack.c.l.s8.bf16 %v2501
        %v3132 = vunpack.c.l.s8.bf16 %v2502
        %v3133 = vunpack.c.l.s8.bf16 %v2503
        %v3134 = vunpack.c.h.s8.bf16 %v2494
        %v3135 = vunpack.c.h.s8.bf16 %v2495
        %v3136 = vunpack.c.h.s8.bf16 %v2496
        %v3137 = vunpack.c.h.s8.bf16 %v2497
        %v3138 = vunpack.c.h.s8.bf16 %v2498
        %v3139 = vunpack.c.h.s8.bf16 %v2499
        %v3140 = vunpack.c.h.s8.bf16 %v2500
        %v3141 = vunpack.c.h.s8.bf16 %v2501
        %v3142 = vunpack.c.h.s8.bf16 %v2502
        %v3143 = vunpack.c.h.s8.bf16 %v2503
        %v3144 = vunpack.c.l.s8.bf16 %v2504
        %v3145 = vunpack.c.l.s8.bf16 %v2505
        %v3146 = vunpack.c.l.s8.bf16 %v2506
        %v3147 = vunpack.c.l.s8.bf16 %v2507
        %v3148 = vunpack.c.l.s8.bf16 %v2508
        %v3149 = vunpack.c.l.s8.bf16 %v2509
        %v3150 = vunpack.c.l.s8.bf16 %v2510
        %v3151 = vunpack.c.l.s8.bf16 %v2511
        %v3152 = vunpack.c.l.s8.bf16 %v2512
        %v3153 = vunpack.c.l.s8.bf16 %v2513
        %v3154 = vunpack.c.h.s8.bf16 %v2504
        %v3155 = vunpack.c.h.s8.bf16 %v2505
        %v3156 = vunpack.c.h.s8.bf16 %v2506
        %v3157 = vunpack.c.h.s8.bf16 %v2507
        %v3158 = vunpack.c.h.s8.bf16 %v2508
        %v3159 = vunpack.c.h.s8.bf16 %v2509
        %v3160 = vunpack.c.h.s8.bf16 %v2510
        %v3161 = vunpack.c.h.s8.bf16 %v2511
        %v3162 = vunpack.c.h.s8.bf16 %v2512
        %v3163 = vunpack.c.h.s8.bf16 %v2513
        %v3164 = vunpack.c.l.s8.bf16 %v2514
        %v3165 = vunpack.c.l.s8.bf16 %v2515
        %v3166 = vunpack.c.l.s8.bf16 %v2516
        %v3167 = vunpack.c.l.s8.bf16 %v2517
        %v3168 = vunpack.c.l.s8.bf16 %v2518
        %v3169 = vunpack.c.l.s8.bf16 %v2519
        %v3170 = vunpack.c.l.s8.bf16 %v2520
        %v3171 = vunpack.c.l.s8.bf16 %v2521
        %v3172 = vunpack.c.l.s8.bf16 %v2522
        %v3173 = vunpack.c.l.s8.bf16 %v2523
        %v3174 = vunpack.c.h.s8.bf16 %v2514
        %v3175 = vunpack.c.h.s8.bf16 %v2515
        %v3176 = vunpack.c.h.s8.bf16 %v2516
        %v3177 = vunpack.c.h.s8.bf16 %v2517
        %v3178 = vunpack.c.h.s8.bf16 %v2518
        %v3179 = vunpack.c.h.s8.bf16 %v2519
        %v3180 = vunpack.c.h.s8.bf16 %v2520
        %v3181 = vunpack.c.h.s8.bf16 %v2521
        %v3182 = vunpack.c.h.s8.bf16 %v2522
        %v3183 = vunpack.c.h.s8.bf16 %v2523
        %v3184 = vunpack.c.l.s8.bf16 %v2524
        %v3185 = vunpack.c.l.s8.bf16 %v2525
        %v3186 = vunpack.c.l.s8.bf16 %v2526
        %v3187 = vunpack.c.l.s8.bf16 %v2527
        %v3188 = vunpack.c.l.s8.bf16 %v2528
        %v3189 = vunpack.c.l.s8.bf16 %v2529
        %v3190 = vunpack.c.l.s8.bf16 %v2530
        %v3191 = vunpack.c.l.s8.bf16 %v2531
        %v3192 = vunpack.c.l.s8.bf16 %v2532
        %v3193 = vunpack.c.l.s8.bf16 %v2533
        %v3194 = vunpack.c.h.s8.bf16 %v2524
        %v3195 = vunpack.c.h.s8.bf16 %v2525
        %v3196 = vunpack.c.h.s8.bf16 %v2526
        %v3197 = vunpack.c.h.s8.bf16 %v2527
        %v3198 = vunpack.c.h.s8.bf16 %v2528
        %v3199 = vunpack.c.h.s8.bf16 %v2529
        %v3200 = vunpack.c.h.s8.bf16 %v2530
        %v3201 = vunpack.c.h.s8.bf16 %v2531
        %v3202 = vunpack.c.h.s8.bf16 %v2532
        %v3203 = vunpack.c.h.s8.bf16 %v2533
        %v3204 = vunpack.c.l.s8.bf16 %v2534
        %v3205 = vunpack.c.l.s8.bf16 %v2535
        %v3206 = vunpack.c.l.s8.bf16 %v2536
        %v3207 = vunpack.c.l.s8.bf16 %v2537
        %v3208 = vunpack.c.l.s8.bf16 %v2538
        %v3209 = vunpack.c.l.s8.bf16 %v2539
        %v3210 = vunpack.c.l.s8.bf16 %v2540
        %v3211 = vunpack.c.l.s8.bf16 %v2541
        %v3212 = vunpack.c.l.s8.bf16 %v2542
        %v3213 = vunpack.c.l.s8.bf16 %v2543
        %v3214 = vunpack.c.h.s8.bf16 %v2534
        %v3215 = vunpack.c.h.s8.bf16 %v2535
        %v3216 = vunpack.c.h.s8.bf16 %v2536
        %v3217 = vunpack.c.h.s8.bf16 %v2537
        %v3218 = vunpack.c.h.s8.bf16 %v2538
        %v3219 = vunpack.c.h.s8.bf16 %v2539
        %v3220 = vunpack.c.h.s8.bf16 %v2540
        %v3221 = vunpack.c.h.s8.bf16 %v2541
        %v3222 = vunpack.c.h.s8.bf16 %v2542
        %v3223 = vunpack.c.h.s8.bf16 %v2543
        %v3224 = vunpack.c.l.s8.bf16 %v2544
        %v3225 = vunpack.c.l.s8.bf16 %v2545
        %v3226 = vunpack.c.l.s8.bf16 %v2546
        %v3227 = vunpack.c.l.s8.bf16 %v2547
        %v3228 = vunpack.c.l.s8.bf16 %v2548
        %v3229 = vunpack.c.l.s8.bf16 %v2549
        %v3230 = vunpack.c.l.s8.bf16 %v2550
        %v3231 = vunpack.c.l.s8.bf16 %v2551
        %v3232 = vunpack.c.l.s8.bf16 %v2552
        %v3233 = vunpack.c.l.s8.bf16 %v2553
        %v3234 = vunpack.c.h.s8.bf16 %v2544
        %v3235 = vunpack.c.h.s8.bf16 %v2545
        %v3236 = vunpack.c.h.s8.bf16 %v2546
        %v3237 = vunpack.c.h.s8.bf16 %v2547
        %v3238 = vunpack.c.h.s8.bf16 %v2548
        %v3239 = vunpack.c.h.s8.bf16 %v2549
        %v3240 = vunpack.c.h.s8.bf16 %v2550
        %v3241 = vunpack.c.h.s8.bf16 %v2551
        %v3242 = vunpack.c.h.s8.bf16 %v2552
        %v3243 = vunpack.c.h.s8.bf16 %v2553
        %v3244 = vunpack.c.l.s8.bf16 %v2554
        %v3245 = vunpack.c.l.s8.bf16 %v2555
        %v3246 = vunpack.c.l.s8.bf16 %v2556
        %v3247 = vunpack.c.l.s8.bf16 %v2557
        %v3248 = vunpack.c.l.s8.bf16 %v2558
        %v3249 = vunpack.c.l.s8.bf16 %v2559
        %v3250 = vunpack.c.l.s8.bf16 %v2560
        %v3251 = vunpack.c.l.s8.bf16 %v2561
        %v3252 = vunpack.c.l.s8.bf16 %v2562
        %v3253 = vunpack.c.l.s8.bf16 %v2563
        %v3254 = vunpack.c.h.s8.bf16 %v2554
        %v3255 = vunpack.c.h.s8.bf16 %v2555
        %v3256 = vunpack.c.h.s8.bf16 %v2556
        %v3257 = vunpack.c.h.s8.bf16 %v2557
        %v3258 = vunpack.c.h.s8.bf16 %v2558
        %v3259 = vunpack.c.h.s8.bf16 %v2559
        %v3260 = vunpack.c.h.s8.bf16 %v2560
        %v3261 = vunpack.c.h.s8.bf16 %v2561
        %v3262 = vunpack.c.h.s8.bf16 %v2562
        %v3263 = vunpack.c.h.s8.bf16 %v2563
        %v3264 = vunpack.c.l.s8.bf16 %v2564
        %v3265 = vunpack.c.l.s8.bf16 %v2565
        %v3266 = vunpack.c.l.s8.bf16 %v2566
        %v3267 = vunpack.c.l.s8.bf16 %v2567
        %v3268 = vunpack.c.l.s8.bf16 %v2568
        %v3269 = vunpack.c.l.s8.bf16 %v2569
        %v3270 = vunpack.c.l.s8.bf16 %v2570
        %v3271 = vunpack.c.l.s8.bf16 %v2571
        %v3272 = vunpack.c.l.s8.bf16 %v2572
        %v3273 = vunpack.c.l.s8.bf16 %v2573
        %v3274 = vunpack.c.h.s8.bf16 %v2564
        %v3275 = vunpack.c.h.s8.bf16 %v2565
        %v3276 = vunpack.c.h.s8.bf16 %v2566
        %v3277 = vunpack.c.h.s8.bf16 %v2567
        %v3278 = vunpack.c.h.s8.bf16 %v2568
        %v3279 = vunpack.c.h.s8.bf16 %v2569
        %v3280 = vunpack.c.h.s8.bf16 %v2570
        %v3281 = vunpack.c.h.s8.bf16 %v2571
        %v3282 = vunpack.c.h.s8.bf16 %v2572
        %v3283 = vunpack.c.h.s8.bf16 %v2573
        %v3284 = vunpack.c.l.s8.bf16 %v2574
        %v3285 = vunpack.c.l.s8.bf16 %v2575
        %v3286 = vunpack.c.l.s8.bf16 %v2576
        %v3287 = vunpack.c.l.s8.bf16 %v2577
        %v3288 = vunpack.c.l.s8.bf16 %v2578
        %v3289 = vunpack.c.l.s8.bf16 %v2579
        %v3290 = vunpack.c.l.s8.bf16 %v2580
        %v3291 = vunpack.c.l.s8.bf16 %v2581
        %v3292 = vunpack.c.l.s8.bf16 %v2582
        %v3293 = vunpack.c.l.s8.bf16 %v2583
        %v3294 = vunpack.c.h.s8.bf16 %v2574
        %v3295 = vunpack.c.h.s8.bf16 %v2575
        %v3296 = vunpack.c.h.s8.bf16 %v2576
        %v3297 = vunpack.c.h.s8.bf16 %v2577
        %v3298 = vunpack.c.h.s8.bf16 %v2578
        %v3299 = vunpack.c.h.s8.bf16 %v2579
        %v3300 = vunpack.c.h.s8.bf16 %v2580
        %v3301 = vunpack.c.h.s8.bf16 %v2581
        %v3302 = vunpack.c.h.s8.bf16 %v2582
        %v3303 = vunpack.c.h.s8.bf16 %v2583
        %v3304 = vunpack.c.l.s8.bf16 %v2584
        %v3305 = vunpack.c.l.s8.bf16 %v2585
        %v3306 = vunpack.c.l.s8.bf16 %v2586
        %v3307 = vunpack.c.l.s8.bf16 %v2587
        %v3308 = vunpack.c.l.s8.bf16 %v2588
        %v3309 = vunpack.c.l.s8.bf16 %v2589
        %v3310 = vunpack.c.l.s8.bf16 %v2590
        %v3311 = vunpack.c.l.s8.bf16 %v2591
        %v3312 = vunpack.c.l.s8.bf16 %v2592
        %v3313 = vunpack.c.l.s8.bf16 %v2593
        %v3314 = vunpack.c.h.s8.bf16 %v2584
        %v3315 = vunpack.c.h.s8.bf16 %v2585
        %v3316 = vunpack.c.h.s8.bf16 %v2586
        %v3317 = vunpack.c.h.s8.bf16 %v2587
        %v3318 = vunpack.c.h.s8.bf16 %v2588
        %v3319 = vunpack.c.h.s8.bf16 %v2589
        %v3320 = vunpack.c.h.s8.bf16 %v2590
        %v3321 = vunpack.c.h.s8.bf16 %v2591
        %v3322 = vunpack.c.h.s8.bf16 %v2592
        %v3323 = vunpack.c.h.s8.bf16 %v2593
        %v3324 = vunpack.c.l.s8.bf16 %v2594
        %v3325 = vunpack.c.l.s8.bf16 %v2595
        %v3326 = vunpack.c.l.s8.bf16 %v2596
        %v3327 = vunpack.c.l.s8.bf16 %v2597
        %v3328 = vunpack.c.l.s8.bf16 %v2598
        %v3329 = vunpack.c.l.s8.bf16 %v2599
        %v3330 = vunpack.c.l.s8.bf16 %v2600
        %v3331 = vunpack.c.l.s8.bf16 %v2601
        %v3332 = vunpack.c.l.s8.bf16 %v2602
        %v3333 = vunpack.c.l.s8.bf16 %v2603
        %v3334 = vunpack.c.h.s8.bf16 %v2594
        %v3335 = vunpack.c.h.s8.bf16 %v2595
        %v3336 = vunpack.c.h.s8.bf16 %v2596
        %v3337 = vunpack.c.h.s8.bf16 %v2597
        %v3338 = vunpack.c.h.s8.bf16 %v2598
        %v3339 = vunpack.c.h.s8.bf16 %v2599
        %v3340 = vunpack.c.h.s8.bf16 %v2600
        %v3341 = vunpack.c.h.s8.bf16 %v2601
        %v3342 = vunpack.c.h.s8.bf16 %v2602
        %v3343 = vunpack.c.h.s8.bf16 %v2603
        %v3344 = vunpack.c.l.s8.bf16 %v2604
        %v3345 = vunpack.c.l.s8.bf16 %v2605
        %v3346 = vunpack.c.l.s8.bf16 %v2606
        %v3347 = vunpack.c.l.s8.bf16 %v2607
        %v3348 = vunpack.c.l.s8.bf16 %v2608
        %v3349 = vunpack.c.l.s8.bf16 %v2609
        %v3350 = vunpack.c.l.s8.bf16 %v2610
        %v3351 = vunpack.c.l.s8.bf16 %v2611
        %v3352 = vunpack.c.l.s8.bf16 %v2612
        %v3353 = vunpack.c.l.s8.bf16 %v2613
        %v3354 = vunpack.c.h.s8.bf16 %v2604
        %v3355 = vunpack.c.h.s8.bf16 %v2605
        %v3356 = vunpack.c.h.s8.bf16 %v2606
        %v3357 = vunpack.c.h.s8.bf16 %v2607
        %v3358 = vunpack.c.h.s8.bf16 %v2608
        %v3359 = vunpack.c.h.s8.bf16 %v2609
        %v3360 = vunpack.c.h.s8.bf16 %v2610
        %v3361 = vunpack.c.h.s8.bf16 %v2611
        %v3362 = vunpack.c.h.s8.bf16 %v2612
        %v3363 = vunpack.c.h.s8.bf16 %v2613
        %v3364 = vunpack.c.l.s8.bf16 %v2614
        %v3365 = vunpack.c.l.s8.bf16 %v2615
        %v3366 = vunpack.c.l.s8.bf16 %v2616
        %v3367 = vunpack.c.l.s8.bf16 %v2617
        %v3368 = vunpack.c.l.s8.bf16 %v2618
        %v3369 = vunpack.c.l.s8.bf16 %v2619
        %v3370 = vunpack.c.l.s8.bf16 %v2620
        %v3371 = vunpack.c.l.s8.bf16 %v2621
        %v3372 = vunpack.c.l.s8.bf16 %v2622
        %v3373 = vunpack.c.l.s8.bf16 %v2623
        %v3374 = vunpack.c.h.s8.bf16 %v2614
        %v3375 = vunpack.c.h.s8.bf16 %v2615
        %v3376 = vunpack.c.h.s8.bf16 %v2616
        %v3377 = vunpack.c.h.s8.bf16 %v2617
        %v3378 = vunpack.c.h.s8.bf16 %v2618
        %v3379 = vunpack.c.h.s8.bf16 %v2619
        %v3380 = vunpack.c.h.s8.bf16 %v2620
        %v3381 = vunpack.c.h.s8.bf16 %v2621
        %v3382 = vunpack.c.h.s8.bf16 %v2622
        %v3383 = vunpack.c.h.s8.bf16 %v2623
        %v3384 = vunpack.c.l.s8.bf16 %v2624
        %v3385 = vunpack.c.l.s8.bf16 %v2625
        %v3386 = vunpack.c.l.s8.bf16 %v2626
        %v3387 = vunpack.c.l.s8.bf16 %v2627
        %v3388 = vunpack.c.l.s8.bf16 %v2628
        %v3389 = vunpack.c.l.s8.bf16 %v2629
        %v3390 = vunpack.c.l.s8.bf16 %v2630
        %v3391 = vunpack.c.l.s8.bf16 %v2631
        %v3392 = vunpack.c.l.s8.bf16 %v2632
        %v3393 = vunpack.c.l.s8.bf16 %v2633
        %v3394 = vunpack.c.h.s8.bf16 %v2624
        %v3395 = vunpack.c.h.s8.bf16 %v2625
        %v3396 = vunpack.c.h.s8.bf16 %v2626
        %v3397 = vunpack.c.h.s8.bf16 %v2627
        %v3398 = vunpack.c.h.s8.bf16 %v2628
        %v3399 = vunpack.c.h.s8.bf16 %v2629
        %v3400 = vunpack.c.h.s8.bf16 %v2630
        %v3401 = vunpack.c.h.s8.bf16 %v2631
        %v3402 = vunpack.c.h.s8.bf16 %v2632
        %v3403 = vunpack.c.h.s8.bf16 %v2633
        %v3404 = vunpack.c.l.s8.bf16 %v2634
        %v3405 = vunpack.c.l.s8.bf16 %v2635
        %v3406 = vunpack.c.l.s8.bf16 %v2636
        %v3407 = vunpack.c.l.s8.bf16 %v2637
        %v3408 = vunpack.c.l.s8.bf16 %v2638
        %v3409 = vunpack.c.l.s8.bf16 %v2639
        %v3410 = vunpack.c.l.s8.bf16 %v2640
        %v3411 = vunpack.c.l.s8.bf16 %v2641
        %v3412 = vunpack.c.l.s8.bf16 %v2642
        %v3413 = vunpack.c.l.s8.bf16 %v2643
        %v3414 = vunpack.c.h.s8.bf16 %v2634
        %v3415 = vunpack.c.h.s8.bf16 %v2635
        %v3416 = vunpack.c.h.s8.bf16 %v2636
        %v3417 = vunpack.c.h.s8.bf16 %v2637
        %v3418 = vunpack.c.h.s8.bf16 %v2638
        %v3419 = vunpack.c.h.s8.bf16 %v2639
        %v3420 = vunpack.c.h.s8.bf16 %v2640
        %v3421 = vunpack.c.h.s8.bf16 %v2641
        %v3422 = vunpack.c.h.s8.bf16 %v2642
        %v3423 = vunpack.c.h.s8.bf16 %v2643
        %v3424 = vunpack.c.l.s8.bf16 %v2644
        %v3425 = vunpack.c.l.s8.bf16 %v2645
        %v3426 = vunpack.c.l.s8.bf16 %v2646
        %v3427 = vunpack.c.l.s8.bf16 %v2647
        %v3428 = vunpack.c.l.s8.bf16 %v2648
        %v3429 = vunpack.c.l.s8.bf16 %v2649
        %v3430 = vunpack.c.l.s8.bf16 %v2650
        %v3431 = vunpack.c.l.s8.bf16 %v2651
        %v3432 = vunpack.c.l.s8.bf16 %v2652
        %v3433 = vunpack.c.l.s8.bf16 %v2653
        %v3434 = vunpack.c.h.s8.bf16 %v2644
        %v3435 = vunpack.c.h.s8.bf16 %v2645
        %v3436 = vunpack.c.h.s8.bf16 %v2646
        %v3437 = vunpack.c.h.s8.bf16 %v2647
        %v3438 = vunpack.c.h.s8.bf16 %v2648
        %v3439 = vunpack.c.h.s8.bf16 %v2649
        %v3440 = vunpack.c.h.s8.bf16 %v2650
        %v3441 = vunpack.c.h.s8.bf16 %v2651
        %v3442 = vunpack.c.h.s8.bf16 %v2652
        %v3443 = vunpack.c.h.s8.bf16 %v2653
        %v3444 = vunpack.c.l.s8.bf16 %v2654
        %v3445 = vunpack.c.l.s8.bf16 %v2655
        %v3446 = vunpack.c.l.s8.bf16 %v2656
        %v3447 = vunpack.c.l.s8.bf16 %v2657
        %v3448 = vunpack.c.l.s8.bf16 %v2658
        %v3449 = vunpack.c.l.s8.bf16 %v2659
        %v3450 = vunpack.c.l.s8.bf16 %v2660
        %v3451 = vunpack.c.l.s8.bf16 %v2661
        %v3452 = vunpack.c.l.s8.bf16 %v2662
        %v3453 = vunpack.c.l.s8.bf16 %v2663
        %v3454 = vunpack.c.h.s8.bf16 %v2654
        %v3455 = vunpack.c.h.s8.bf16 %v2655
        %v3456 = vunpack.c.h.s8.bf16 %v2656
        %v3457 = vunpack.c.h.s8.bf16 %v2657
        %v3458 = vunpack.c.h.s8.bf16 %v2658
        %v3459 = vunpack.c.h.s8.bf16 %v2659
        %v3460 = vunpack.c.h.s8.bf16 %v2660
        %v3461 = vunpack.c.h.s8.bf16 %v2661
        %v3462 = vunpack.c.h.s8.bf16 %v2662
        %v3463 = vunpack.c.h.s8.bf16 %v2663
        %v3464 = vpack.c.bf16 %v1044, %v1034
        %v3465 = vpack.c.bf16 %v1045, %v1035
        %v3466 = vpack.c.bf16 %v1046, %v1036
        %v3467 = vpack.c.bf16 %v1047, %v1037
        %v3468 = vpack.c.bf16 %v1048, %v1038
        %v3469 = vpack.c.bf16 %v1049, %v1039
        %v3470 = vpack.c.bf16 %v1050, %v1040
        %v3471 = vpack.c.bf16 %v1051, %v1041
        %v3472 = vpack.c.bf16 %v1052, %v1042
        %v3473 = vpack.c.bf16 %v1053, %v1043
        %3474 = vmatprep.subr.bf16.mxu0 %v1465
        %3475 = vmatpush1.bf16.msra.mxu0 %v1464
        %3476 = vmatprep.subr.bf16.mxu0 %v1475
        %3477 = vmatpush1.bf16.msra.mxu0 %v1474
        %3478 = vmatprep.subr.bf16.mxu0 %v1485
        %3479 = vmatpush1.bf16.msra.mxu0 %v1484
        %3480 = vmatprep.subr.bf16.mxu0 %v1495
        %3481 = vmatpush1.bf16.msra.mxu0 %v1494
        %3482 = vmatprep.subr.bf16.mxu0 %v1505
        %3483 = vmatpush1.bf16.msra.mxu0 %v1504
        %3484 = vmatprep.subr.bf16.mxu0 %v1515
        %3485 = vmatpush1.bf16.msra.mxu0 %v1514
        %3486 = vmatprep.subr.bf16.mxu0 %v1525
        %3487 = vmatpush1.bf16.msra.mxu0 %v1524
        %3488 = vmatprep.subr.bf16.mxu0 %v1535
        %3489 = vmatpush1.bf16.msra.mxu0 %v1534
        %3490 = vmatprep.subr.bf16.mxu0 %v1545
        %3491 = vmatpush1.bf16.msra.mxu0 %v1544
        %3492 = vmatprep.subr.bf16.mxu0 %v1555
        %3493 = vmatpush1.bf16.msra.mxu0 %v1554
        %3494 = vmatprep.subr.bf16.mxu0 %v1565
        %3495 = vmatpush1.bf16.msra.mxu0 %v1564
        %3496 = vmatprep.subr.bf16.mxu0 %v1575
        %3497 = vmatpush1.bf16.msra.mxu0 %v1574
        %3498 = vmatprep.subr.bf16.mxu0 %v1585
        %3499 = vmatpush1.bf16.msra.mxu0 %v1584
        %3500 = vmatprep.subr.bf16.mxu0 %v1595
        %3501 = vmatpush1.bf16.msra.mxu0 %v1594
        %3502 = vmatprep.subr.bf16.mxu0 %v1605
        %3503 = vmatpush1.bf16.msra.mxu0 %v1604
        %3504 = vmatprep.subr.bf16.mxu0 %v1615
        %3505 = vmatpush1.bf16.msra.mxu0 %v1614
        %3506 = vmatprep.mubr.bf16.mxu0 %v3465
        %3507 = vmatmul.mubr.bf16.gmra.mrb[0].mxu0 %v3464
        %v3508 = vpop.f32.mrb[0].mxu0
        %v3509 = vadd.f32 0.0, %v3508
        %v3510 = vpop.f32.mrb[0].mxu0
        %v3511 = vadd.f32 0.0, %v3510
        %v3512 = vpop.f32.mrb[0].mxu0
        %v3513 = vadd.f32 0.0, %v3512
        %v3514 = vpop.f32.mrb[0].mxu0
        %v3515 = vadd.f32 0.0, %v3514
        %3516 = vdwg.mxu0
        %3517 = vmatprep.subr.bf16.mxu0 %v1625
        %3518 = vmatpush1.bf16.msra.mxu0 %v1624
        %3519 = vmatprep.subr.bf16.mxu0 %v1635
        %3520 = vmatpush1.bf16.msra.mxu0 %v1634
        %3521 = vmatprep.subr.bf16.mxu0 %v1645
        %3522 = vmatpush1.bf16.msra.mxu0 %v1644
        %3523 = vmatprep.subr.bf16.mxu0 %v1655
        %3524 = vmatpush1.bf16.msra.mxu0 %v1654
        %3525 = vmatprep.subr.bf16.mxu0 %v1665
        %3526 = vmatpush1.bf16.msra.mxu0 %v1664
        %3527 = vmatprep.subr.bf16.mxu0 %v1675
        %3528 = vmatpush1.bf16.msra.mxu0 %v1674
        %3529 = vmatprep.subr.bf16.mxu0 %v1685
        %3530 = vmatpush1.bf16.msra.mxu0 %v1684
        %3531 = vmatprep.subr.bf16.mxu0 %v1695
        %3532 = vmatpush1.bf16.msra.mxu0 %v1694
        %3533 = vmatprep.subr.bf16.mxu0 %v1705
        %3534 = vmatpush1.bf16.msra.mxu0 %v1704
        %3535 = vmatprep.subr.bf16.mxu0 %v1715
        %3536 = vmatpush1.bf16.msra.mxu0 %v1714
        %3537 = vmatprep.subr.bf16.mxu0 %v1725
        %3538 = vmatpush1.bf16.msra.mxu0 %v1724
        %3539 = vmatprep.subr.bf16.mxu0 %v1735
        %3540 = vmatpush1.bf16.msra.mxu0 %v1734
        %3541 = vmatprep.subr.bf16.mxu0 %v1745
        %3542 = vmatpush1.bf16.msra.mxu0 %v1744
        %3543 = vmatprep.subr.bf16.mxu0 %v1755
        %3544 = vmatpush1.bf16.msra.mxu0 %v1754
        %3545 = vmatprep.subr.bf16.mxu0 %v1765
        %3546 = vmatpush1.bf16.msra.mxu0 %v1764
        %3547 = vmatprep.subr.bf16.mxu0 %v1775
        %3548 = vmatpush1.bf16.msra.mxu0 %v1774
        %3549 = vmatprep.mubr.bf16.mxu0 %v3467
        %3550 = vmatmul.mubr.bf16.gmra.mrb[0].mxu0 %v3466
        %v3551 = vpop.f32.mrb[0].mxu0
        %v3552 = vadd.f32 %v3509, %v3551
        %v3553 = vpop.f32.mrb[0].mxu0
        %v3554 = vadd.f32 %v3511, %v3553
        %v3555 = vpop.f32.mrb[0].mxu0
        %v3556 = vadd.f32 %v3513, %v3555
        %v3557 = vpop.f32.mrb[0].mxu0
        %v3558 = vadd.f32 %v3515, %v3557
        %3559 = vdwg.mxu0
        %3560 = vmatprep.subr.bf16.mxu0 %v1785
        %3561 = vmatpush1.bf16.msra.mxu0 %v1784
        %3562 = vmatprep.subr.bf16.mxu0 %v1795
        %3563 = vmatpush1.bf16.msra.mxu0 %v1794
        %3564 = vmatprep.subr.bf16.mxu0 %v1805
        %3565 = vmatpush1.bf16.msra.mxu0 %v1804
        %3566 = vmatprep.subr.bf16.mxu0 %v1815
        %3567 = vmatpush1.bf16.msra.mxu0 %v1814
        %3568 = vmatprep.subr.bf16.mxu0 %v1825
        %3569 = vmatpush1.bf16.msra.mxu0 %v1824
        %3570 = vmatprep.subr.bf16.mxu0 %v1835
        %3571 = vmatpush1.bf16.msra.mxu0 %v1834
        %3572 = vmatprep.subr.bf16.mxu0 %v1845
        %3573 = vmatpush1.bf16.msra.mxu0 %v1844
        %3574 = vmatprep.subr.bf16.mxu0 %v1855
        %3575 = vmatpush1.bf16.msra.mxu0 %v1854
        %3576 = vmatprep.subr.bf16.mxu0 %v1865
        %3577 = vmatpush1.bf16.msra.mxu0 %v1864
        %3578 = vmatprep.subr.bf16.mxu0 %v1875
        %3579 = vmatpush1.bf16.msra.mxu0 %v1874
        %3580 = vmatprep.subr.bf16.mxu0 %v1885
        %3581 = vmatpush1.bf16.msra.mxu0 %v1884
        %3582 = vmatprep.subr.bf16.mxu0 %v1895
        %3583 = vmatpush1.bf16.msra.mxu0 %v1894
        %3584 = vmatprep.subr.bf16.mxu0 %v1905
        %3585 = vmatpush1.bf16.msra.mxu0 %v1904
        %3586 = vmatprep.subr.bf16.mxu0 %v1915
        %3587 = vmatpush1.bf16.msra.mxu0 %v1914
        %3588 = vmatprep.subr.bf16.mxu0 %v1925
        %3589 = vmatpush1.bf16.msra.mxu0 %v1924
        %3590 = vmatprep.subr.bf16.mxu0 %v1935
        %3591 = vmatpush1.bf16.msra.mxu0 %v1934
        %3592 = vmatprep.mubr.bf16.mxu0 %v3469
        %3593 = vmatmul.mubr.bf16.gmra.mrb[0].mxu0 %v3468
        %v3594 = vpop.f32.mrb[0].mxu0
        %v3595 = vadd.f32 %v3552, %v3594
        %v3596 = vpop.f32.mrb[0].mxu0
        %v3597 = vadd.f32 %v3554, %v3596
        %v3598 = vpop.f32.mrb[0].mxu0
        %v3599 = vadd.f32 %v3556, %v3598
        %v3600 = vpop.f32.mrb[0].mxu0
        %v3601 = vadd.f32 %v3558, %v3600
        %3602 = vdwg.mxu0
        %3603 = vmatprep.subr.bf16.mxu0 %v1945
        %3604 = vmatpush1.bf16.msra.mxu0 %v1944
        %3605 = vmatprep.subr.bf16.mxu0 %v1955
        %3606 = vmatpush1.bf16.msra.mxu0 %v1954
        %3607 = vmatprep.subr.bf16.mxu0 %v1965
        %3608 = vmatpush1.bf16.msra.mxu0 %v1964
        %3609 = vmatprep.subr.bf16.mxu0 %v1975
        %3610 = vmatpush1.bf16.msra.mxu0 %v1974
        %3611 = vmatprep.subr.bf16.mxu0 %v1985
        %3612 = vmatpush1.bf16.msra.mxu0 %v1984
        %3613 = vmatprep.subr.bf16.mxu0 %v1995
        %3614 = vmatpush1.bf16.msra.mxu0 %v1994
        %3615 = vmatprep.subr.bf16.mxu0 %v2005
        %3616 = vmatpush1.bf16.msra.mxu0 %v2004
        %3617 = vmatprep.subr.bf16.mxu0 %v2015
        %3618 = vmatpush1.bf16.msra.mxu0 %v2014
        %3619 = vmatprep.subr.bf16.mxu0 %v2025
        %3620 = vmatpush1.bf16.msra.mxu0 %v2024
        %3621 = vmatprep.subr.bf16.mxu0 %v2035
        %3622 = vmatpush1.bf16.msra.mxu0 %v2034
        %3623 = vmatprep.subr.bf16.mxu0 %v2045
        %3624 = vmatpush1.bf16.msra.mxu0 %v2044
        %3625 = vmatprep.subr.bf16.mxu0 %v2055
        %3626 = vmatpush1.bf16.msra.mxu0 %v2054
        %3627 = vmatprep.subr.bf16.mxu0 %v2065
        %3628 = vmatpush1.bf16.msra.mxu0 %v2064
        %3629 = vmatprep.subr.bf16.mxu0 %v2075
        %3630 = vmatpush1.bf16.msra.mxu0 %v2074
        %3631 = vmatprep.subr.bf16.mxu0 %v2085
        %3632 = vmatpush1.bf16.msra.mxu0 %v2084
        %3633 = vmatprep.subr.bf16.mxu0 %v2095
        %3634 = vmatpush1.bf16.msra.mxu0 %v2094
        %3635 = vmatprep.mubr.bf16.mxu0 %v3471
        %3636 = vmatmul.mubr.bf16.gmra.mrb[0].mxu0 %v3470
        %v3637 = vpop.f32.mrb[0].mxu0
        %v3638 = vadd.f32 %v3595, %v3637
        %v3639 = vpop.f32.mrb[0].mxu0
        %v3640 = vadd.f32 %v3597, %v3639
        %v3641 = vpop.f32.mrb[0].mxu0
        %v3642 = vadd.f32 %v3599, %v3641
        %v3643 = vpop.f32.mrb[0].mxu0
        %v3644 = vadd.f32 %v3601, %v3643
        %3645 = vdwg.mxu0
        %3646 = vmatprep.subr.bf16.mxu0 %v2105
        %3647 = vmatpush1.bf16.msra.mxu0 %v2104
        %3648 = vmatprep.subr.bf16.mxu0 %v2115
        %3649 = vmatpush1.bf16.msra.mxu0 %v2114
        %3650 = vmatprep.subr.bf16.mxu0 %v2125
        %3651 = vmatpush1.bf16.msra.mxu0 %v2124
        %3652 = vmatprep.subr.bf16.mxu0 %v2135
        %3653 = vmatpush1.bf16.msra.mxu0 %v2134
        %3654 = vmatprep.subr.bf16.mxu0 %v2145
        %3655 = vmatpush1.bf16.msra.mxu0 %v2144
        %3656 = vmatprep.subr.bf16.mxu0 %v2155
        %3657 = vmatpush1.bf16.msra.mxu0 %v2154
        %3658 = vmatprep.subr.bf16.mxu0 %v2165
        %3659 = vmatpush1.bf16.msra.mxu0 %v2164
        %3660 = vmatprep.subr.bf16.mxu0 %v2175
        %3661 = vmatpush1.bf16.msra.mxu0 %v2174
        %3662 = vmatprep.subr.bf16.mxu0 %v2185
        %3663 = vmatpush1.bf16.msra.mxu0 %v2184
        %3664 = vmatprep.subr.bf16.mxu0 %v2195
        %3665 = vmatpush1.bf16.msra.mxu0 %v2194
        %3666 = vmatprep.subr.bf16.mxu0 %v2205
        %3667 = vmatpush1.bf16.msra.mxu0 %v2204
        %3668 = vmatprep.subr.bf16.mxu0 %v2215
        %3669 = vmatpush1.bf16.msra.mxu0 %v2214
        %3670 = vmatprep.subr.bf16.mxu0 %v2225
        %3671 = vmatpush1.bf16.msra.mxu0 %v2224
        %3672 = vmatprep.subr.bf16.mxu0 %v2235
        %3673 = vmatpush1.bf16.msra.mxu0 %v2234
        %3674 = vmatprep.subr.bf16.mxu0 %v2245
        %3675 = vmatpush1.bf16.msra.mxu0 %v2244
        %3676 = vmatprep.subr.bf16.mxu0 %v2255
        %3677 = vmatpush1.bf16.msra.mxu0 %v2254
        %3678 = vmatprep.mubr.bf16.mxu0 %v3473
        %3679 = vmatmul.mubr.bf16.gmra.mrb[0].mxu0 %v3472
        %v3680 = vpop.f32.mrb[0].mxu0
        %v3681 = vadd.f32 %v3638, %v3680
        %v3682 = vpop.f32.mrb[0].mxu0
        %v3683 = vadd.f32 %v3640, %v3682
        %v3684 = vpop.f32.mrb[0].mxu0
        %v3685 = vadd.f32 %v3642, %v3684
        %v3686 = vpop.f32.mrb[0].mxu0
        %v3687 = vadd.f32 %v3644, %v3686
        %3688 = vdwg.mxu0
        %3689 = vmatprep.subr.bf16.mxu0 %v1467
        %3690 = vmatpush1.bf16.msra.mxu0 %v1466
        %3691 = vmatprep.subr.bf16.mxu0 %v1477
        %3692 = vmatpush1.bf16.msra.mxu0 %v1476
        %3693 = vmatprep.subr.bf16.mxu0 %v1487
        %3694 = vmatpush1.bf16.msra.mxu0 %v1486
        %3695 = vmatprep.subr.bf16.mxu0 %v1497
        %3696 = vmatpush1.bf16.msra.mxu0 %v1496
        %3697 = vmatprep.subr.bf16.mxu0 %v1507
        %3698 = vmatpush1.bf16.msra.mxu0 %v1506
        %3699 = vmatprep.subr.bf16.mxu0 %v1517
        %3700 = vmatpush1.bf16.msra.mxu0 %v1516
        %3701 = vmatprep.subr.bf16.mxu0 %v1527
        %3702 = vmatpush1.bf16.msra.mxu0 %v1526
        %3703 = vmatprep.subr.bf16.mxu0 %v1537
        %3704 = vmatpush1.bf16.msra.mxu0 %v1536
        %3705 = vmatprep.subr.bf16.mxu0 %v1547
        %3706 = vmatpush1.bf16.msra.mxu0 %v1546
        %3707 = vmatprep.subr.bf16.mxu0 %v1557
        %3708 = vmatpush1.bf16.msra.mxu0 %v1556
        %3709 = vmatprep.subr.bf16.mxu0 %v1567
        %3710 = vmatpush1.bf16.msra.mxu0 %v1566
        %3711 = vmatprep.subr.bf16.mxu0 %v1577
        %3712 = vmatpush1.bf16.msra.mxu0 %v1576
        %3713 = vmatprep.subr.bf16.mxu0 %v1587
        %3714 = vmatpush1.bf16.msra.mxu0 %v1586
        %3715 = vmatprep.subr.bf16.mxu0 %v1597
        %3716 = vmatpush1.bf16.msra.mxu0 %v1596
        %3717 = vmatprep.subr.bf16.mxu0 %v1607
        %3718 = vmatpush1.bf16.msra.mxu0 %v1606
        %3719 = vmatprep.subr.bf16.mxu0 %v1617
        %3720 = vmatpush1.bf16.msra.mxu0 %v1616
        %3721 = vmatprep.mubr.bf16.mxu0 %v3465
        %3722 = vmatmul.mubr.bf16.gmra.mrb[0].mxu0 %v3464
        %v3723 = vpop.f32.mrb[0].mxu0
        %v3724 = vadd.f32 0.0, %v3723
        %v3725 = vpop.f32.mrb[0].mxu0
        %v3726 = vadd.f32 0.0, %v3725
        %v3727 = vpop.f32.mrb[0].mxu0
        %v3728 = vadd.f32 0.0, %v3727
        %v3729 = vpop.f32.mrb[0].mxu0
        %v3730 = vadd.f32 0.0, %v3729
        %3731 = vdwg.mxu0
        %3732 = vmatprep.subr.bf16.mxu0 %v1627
        %3733 = vmatpush1.bf16.msra.mxu0 %v1626
        %3734 = vmatprep.subr.bf16.mxu0 %v1637
        %3735 = vmatpush1.bf16.msra.mxu0 %v1636
        %3736 = vmatprep.subr.bf16.mxu0 %v1647
        %3737 = vmatpush1.bf16.msra.mxu0 %v1646
        %3738 = vmatprep.subr.bf16.mxu0 %v1657
        %3739 = vmatpush1.bf16.msra.mxu0 %v1656
        %3740 = vmatprep.subr.bf16.mxu0 %v1667
        %3741 = vmatpush1.bf16.msra.mxu0 %v1666
        %3742 = vmatprep.subr.bf16.mxu0 %v1677
        %3743 = vmatpush1.bf16.msra.mxu0 %v1676
        %3744 = vmatprep.subr.bf16.mxu0 %v1687
        %3745 = vmatpush1.bf16.msra.mxu0 %v1686
        %3746 = vmatprep.subr.bf16.mxu0 %v1697
        %3747 = vmatpush1.bf16.msra.mxu0 %v1696
        %3748 = vmatprep.subr.bf16.mxu0 %v1707
        %3749 = vmatpush1.bf16.msra.mxu0 %v1706
        %3750 = vmatprep.subr.bf16.mxu0 %v1717
        %3751 = vmatpush1.bf16.msra.mxu0 %v1716
        %3752 = vmatprep.subr.bf16.mxu0 %v1727
        %3753 = vmatpush1.bf16.msra.mxu0 %v1726
        %3754 = vmatprep.subr.bf16.mxu0 %v1737
        %3755 = vmatpush1.bf16.msra.mxu0 %v1736
        %3756 = vmatprep.subr.bf16.mxu0 %v1747
        %3757 = vmatpush1.bf16.msra.mxu0 %v1746
        %3758 = vmatprep.subr.bf16.mxu0 %v1757
        %3759 = vmatpush1.bf16.msra.mxu0 %v1756
        %3760 = vmatprep.subr.bf16.mxu0 %v1767
        %3761 = vmatpush1.bf16.msra.mxu0 %v1766
        %3762 = vmatprep.subr.bf16.mxu0 %v1777
        %3763 = vmatpush1.bf16.msra.mxu0 %v1776
        %3764 = vmatprep.mubr.bf16.mxu0 %v3467
        %3765 = vmatmul.mubr.bf16.gmra.mrb[0].mxu0 %v3466
        %v3766 = vpop.f32.mrb[0].mxu0
        %v3767 = vadd.f32 %v3724, %v3766
        %v3768 = vpop.f32.mrb[0].mxu0
        %v3769 = vadd.f32 %v3726, %v3768
        %v3770 = vpop.f32.mrb[0].mxu0
        %v3771 = vadd.f32 %v3728, %v3770
        %v3772 = vpop.f32.mrb[0].mxu0
        %v3773 = vadd.f32 %v3730, %v3772
        %3774 = vdwg.mxu0
        %3775 = vmatprep.subr.bf16.mxu0 %v1787
        %3776 = vmatpush1.bf16.msra.mxu0 %v1786
        %3777 = vmatprep.subr.bf16.mxu0 %v1797
        %3778 = vmatpush1.bf16.msra.mxu0 %v1796
        %3779 = vmatprep.subr.bf16.mxu0 %v1807
        %3780 = vmatpush1.bf16.msra.mxu0 %v1806
        %3781 = vmatprep.subr.bf16.mxu0 %v1817
        %3782 = vmatpush1.bf16.msra.mxu0 %v1816
        %3783 = vmatprep.subr.bf16.mxu0 %v1827
        %3784 = vmatpush1.bf16.msra.mxu0 %v1826
        %3785 = vmatprep.subr.bf16.mxu0 %v1837
        %3786 = vmatpush1.bf16.msra.mxu0 %v1836
        %3787 = vmatprep.subr.bf16.mxu0 %v1847
        %3788 = vmatpush1.bf16.msra.mxu0 %v1846
        %3789 = vmatprep.subr.bf16.mxu0 %v1857
        %3790 = vmatpush1.bf16.msra.mxu0 %v1856
        %3791 = vmatprep.subr.bf16.mxu0 %v1867
        %3792 = vmatpush1.bf16.msra.mxu0 %v1866
        %3793 = vmatprep.subr.bf16.mxu0 %v1877
        %3794 = vmatpush1.bf16.msra.mxu0 %v1876
        %3795 = vmatprep.subr.bf16.mxu0 %v1887
        %3796 = vmatpush1.bf16.msra.mxu0 %v1886
        %3797 = vmatprep.subr.bf16.mxu0 %v1897
        %3798 = vmatpush1.bf16.msra.mxu0 %v1896
        %3799 = vmatprep.subr.bf16.mxu0 %v1907
        %3800 = vmatpush1.bf16.msra.mxu0 %v1906
        %3801 = vmatprep.subr.bf16.mxu0 %v1917
        %3802 = vmatpush1.bf16.msra.mxu0 %v1916
        %3803 = vmatprep.subr.bf16.mxu0 %v1927
        %3804 = vmatpush1.bf16.msra.mxu0 %v1926
        %3805 = vmatprep.subr.bf16.mxu0 %v1937
        %3806 = vmatpush1.bf16.msra.mxu0 %v1936
        %3807 = vmatprep.mubr.bf16.mxu0 %v3469
        %3808 = vmatmul.mubr.bf16.gmra.mrb[0].mxu0 %v3468
        %v3809 = vpop.f32.mrb[0].mxu0
        %v3810 = vadd.f32 %v3767, %v3809
        %v3811 = vpop.f32.mrb[0].mxu0
        %v3812 = vadd.f32 %v3769, %v3811
        %v3813 = vpop.f32.mrb[0].mxu0
        %v3814 = vadd.f32 %v3771, %v3813
        %v3815 = vpop.f32.mrb[0].mxu0
        %v3816 = vadd.f32 %v3773, %v3815
        %3817 = vdwg.mxu0
        %3818 = vmatprep.subr.bf16.mxu0 %v1947
        %3819 = vmatpush1.bf16.msra.mxu0 %v1946
        %3820 = vmatprep.subr.bf16.mxu0 %v1957
        %3821 = vmatpush1.bf16.msra.mxu0 %v1956
        %3822 = vmatprep.subr.bf16.mxu0 %v1967
        %3823 = vmatpush1.bf16.msra.mxu0 %v1966
        %3824 = vmatprep.subr.bf16.mxu0 %v1977
        %3825 = vmatpush1.bf16.msra.mxu0 %v1976
        %3826 = vmatprep.subr.bf16.mxu0 %v1987
        %3827 = vmatpush1.bf16.msra.mxu0 %v1986
        %3828 = vmatprep.subr.bf16.mxu0 %v1997
        %3829 = vmatpush1.bf16.msra.mxu0 %v1996
        %3830 = vmatprep.subr.bf16.mxu0 %v2007
        %3831 = vmatpush1.bf16.msra.mxu0 %v2006
        %3832 = vmatprep.subr.bf16.mxu0 %v2017
        %3833 = vmatpush1.bf16.msra.mxu0 %v2016
        %3834 = vmatprep.subr.bf16.mxu0 %v2027
        %3835 = vmatpush1.bf16.msra.mxu0 %v2026
        %3836 = vmatprep.subr.bf16.mxu0 %v2037
        %3837 = vmatpush1.bf16.msra.mxu0 %v2036
        %3838 = vmatprep.subr.bf16.mxu0 %v2047
        %3839 = vmatpush1.bf16.msra.mxu0 %v2046
        %3840 = vmatprep.subr.bf16.mxu0 %v2057
        %3841 = vmatpush1.bf16.msra.mxu0 %v2056
        %3842 = vmatprep.subr.bf16.mxu0 %v2067
        %3843 = vmatpush1.bf16.msra.mxu0 %v2066
        %3844 = vmatprep.subr.bf16.mxu0 %v2077
        %3845 = vmatpush1.bf16.msra.mxu0 %v2076
        %3846 = vmatprep.subr.bf16.mxu0 %v2087
        %3847 = vmatpush1.bf16.msra.mxu0 %v2086
        %3848 = vmatprep.subr.bf16.mxu0 %v2097
        %3849 = vmatpush1.bf16.msra.mxu0 %v2096
        %3850 = vmatprep.mubr.bf16.mxu0 %v3471
        %3851 = vmatmul.mubr.bf16.gmra.mrb[0].mxu0 %v3470
        %v3852 = vpop.f32.mrb[0].mxu0
        %v3853 = vadd.f32 %v3810, %v3852
        %v3854 = vpop.f32.mrb[0].mxu0
        %v3855 = vadd.f32 %v3812, %v3854
        %v3856 = vpop.f32.mrb[0].mxu0
        %v3857 = vadd.f32 %v3814, %v3856
        %v3858 = vpop.f32.mrb[0].mxu0
        %v3859 = vadd.f32 %v3816, %v3858
        %3860 = vdwg.mxu0
        %3861 = vmatprep.subr.bf16.mxu0 %v2107
        %3862 = vmatpush1.bf16.msra.mxu0 %v2106
        %3863 = vmatprep.subr.bf16.mxu0 %v2117
        %3864 = vmatpush1.bf16.msra.mxu0 %v2116
        %3865 = vmatprep.subr.bf16.mxu0 %v2127
        %3866 = vmatpush1.bf16.msra.mxu0 %v2126
        %3867 = vmatprep.subr.bf16.mxu0 %v2137
        %3868 = vmatpush1.bf16.msra.mxu0 %v2136
        %3869 = vmatprep.subr.bf16.mxu0 %v2147
        %3870 = vmatpush1.bf16.msra.mxu0 %v2146
        %3871 = vmatprep.subr.bf16.mxu0 %v2157
        %3872 = vmatpush1.bf16.msra.mxu0 %v2156
        %3873 = vmatprep.subr.bf16.mxu0 %v2167
        %3874 = vmatpush1.bf16.msra.mxu0 %v2166
        %3875 = vmatprep.subr.bf16.mxu0 %v2177
        %3876 = vmatpush1.bf16.msra.mxu0 %v2176
        %3877 = vmatprep.subr.bf16.mxu0 %v2187
        %3878 = vmatpush1.bf16.msra.mxu0 %v2186
        %3879 = vmatprep.subr.bf16.mxu0 %v2197
        %3880 = vmatpush1.bf16.msra.mxu0 %v2196
        %3881 = vmatprep.subr.bf16.mxu0 %v2207
        %3882 = vmatpush1.bf16.msra.mxu0 %v2206
        %3883 = vmatprep.subr.bf16.mxu0 %v2217
        %3884 = vmatpush1.bf16.msra.mxu0 %v2216
        %3885 = vmatprep.subr.bf16.mxu0 %v2227
        %3886 = vmatpush1.bf16.msra.mxu0 %v2226
        %3887 = vmatprep.subr.bf16.mxu0 %v2237
        %3888 = vmatpush1.bf16.msra.mxu0 %v2236
        %3889 = vmatprep.subr.bf16.mxu0 %v2247
        %3890 = vmatpush1.bf16.msra.mxu0 %v2246
        %3891 = vmatprep.subr.bf16.mxu0 %v2257
        %3892 = vmatpush1.bf16.msra.mxu0 %v2256
        %3893 = vmatprep.mubr.bf16.mxu0 %v3473
        %3894 = vmatmul.mubr.bf16.gmra.mrb[0].mxu0 %v3472
        %v3895 = vpop.f32.mrb[0].mxu0
        %v3896 = vadd.f32 %v3853, %v3895
        %v3897 = vpop.f32.mrb[0].mxu0
        %v3898 = vadd.f32 %v3855, %v3897
        %v3899 = vpop.f32.mrb[0].mxu0
        %v3900 = vadd.f32 %v3857, %v3899
        %v3901 = vpop.f32.mrb[0].mxu0
        %v3902 = vadd.f32 %v3859, %v3901
        %3903 = vdwg.mxu0
        %3904 = vmatprep.subr.bf16.mxu0 %v1469
        %3905 = vmatpush1.bf16.msra.mxu0 %v1468
        %3906 = vmatprep.subr.bf16.mxu0 %v1479
        %3907 = vmatpush1.bf16.msra.mxu0 %v1478
        %3908 = vmatprep.subr.bf16.mxu0 %v1489
        %3909 = vmatpush1.bf16.msra.mxu0 %v1488
        %3910 = vmatprep.subr.bf16.mxu0 %v1499
        %3911 = vmatpush1.bf16.msra.mxu0 %v1498
        %3912 = vmatprep.subr.bf16.mxu0 %v1509
        %3913 = vmatpush1.bf16.msra.mxu0 %v1508
        %3914 = vmatprep.subr.bf16.mxu0 %v1519
        %3915 = vmatpush1.bf16.msra.mxu0 %v1518
        %3916 = vmatprep.subr.bf16.mxu0 %v1529
        %3917 = vmatpush1.bf16.msra.mxu0 %v1528
        %3918 = vmatprep.subr.bf16.mxu0 %v1539
        %3919 = vmatpush1.bf16.msra.mxu0 %v1538
        %3920 = vmatprep.subr.bf16.mxu0 %v1549
        %3921 = vmatpush1.bf16.msra.mxu0 %v1548
        %3922 = vmatprep.subr.bf16.mxu0 %v1559
        %3923 = vmatpush1.bf16.msra.mxu0 %v1558
        %3924 = vmatprep.subr.bf16.mxu0 %v1569
        %3925 = vmatpush1.bf16.msra.mxu0 %v1568
        %3926 = vmatprep.subr.bf16.mxu0 %v1579
        %3927 = vmatpush1.bf16.msra.mxu0 %v1578
        %3928 = vmatprep.subr.bf16.mxu0 %v1589
        %3929 = vmatpush1.bf16.msra.mxu0 %v1588
        %3930 = vmatprep.subr.bf16.mxu0 %v1599
        %3931 = vmatpush1.bf16.msra.mxu0 %v1598
        %3932 = vmatprep.subr.bf16.mxu0 %v1609
        %3933 = vmatpush1.bf16.msra.mxu0 %v1608
        %3934 = vmatprep.subr.bf16.mxu0 %v1619
        %3935 = vmatpush1.bf16.msra.mxu0 %v1618
        %3936 = vmatprep.mubr.bf16.mxu0 %v3465
        %3937 = vmatmul.mubr.bf16.gmra.mrb[0].mxu0 %v3464
        %v3938 = vpop.f32.mrb[0].mxu0
        %v3939 = vadd.f32 0.0, %v3938
        %v3940 = vpop.f32.mrb[0].mxu0
        %v3941 = vadd.f32 0.0, %v3940
        %v3942 = vpop.f32.mrb[0].mxu0
        %v3943 = vadd.f32 0.0, %v3942
        %v3944 = vpop.f32.mrb[0].mxu0
        %v3945 = vadd.f32 0.0, %v3944
        %3946 = vdwg.mxu0
        %3947 = vmatprep.subr.bf16.mxu0 %v1629
        %3948 = vmatpush1.bf16.msra.mxu0 %v1628
        %3949 = vmatprep.subr.bf16.mxu0 %v1639
        %3950 = vmatpush1.bf16.msra.mxu0 %v1638
        %3951 = vmatprep.subr.bf16.mxu0 %v1649
        %3952 = vmatpush1.bf16.msra.mxu0 %v1648
        %3953 = vmatprep.subr.bf16.mxu0 %v1659
        %3954 = vmatpush1.bf16.msra.mxu0 %v1658
        %3955 = vmatprep.subr.bf16.mxu0 %v1669
        %3956 = vmatpush1.bf16.msra.mxu0 %v1668
        %3957 = vmatprep.subr.bf16.mxu0 %v1679
        %3958 = vmatpush1.bf16.msra.mxu0 %v1678
        %3959 = vmatprep.subr.bf16.mxu0 %v1689
        %3960 = vmatpush1.bf16.msra.mxu0 %v1688
        %3961 = vmatprep.subr.bf16.mxu0 %v1699
        %3962 = vmatpush1.bf16.msra.mxu0 %v1698
        %3963 = vmatprep.subr.bf16.mxu0 %v1709
        %3964 = vmatpush1.bf16.msra.mxu0 %v1708
        %3965 = vmatprep.subr.bf16.mxu0 %v1719
        %3966 = vmatpush1.bf16.msra.mxu0 %v1718
        %3967 = vmatprep.subr.bf16.mxu0 %v1729
        %3968 = vmatpush1.bf16.msra.mxu0 %v1728
        %3969 = vmatprep.subr.bf16.mxu0 %v1739
        %3970 = vmatpush1.bf16.msra.mxu0 %v1738
        %3971 = vmatprep.subr.bf16.mxu0 %v1749
        %3972 = vmatpush1.bf16.msra.mxu0 %v1748
        %3973 = vmatprep.subr.bf16.mxu0 %v1759
        %3974 = vmatpush1.bf16.msra.mxu0 %v1758
        %3975 = vmatprep.subr.bf16.mxu0 %v1769
        %3976 = vmatpush1.bf16.msra.mxu0 %v1768
        %3977 = vmatprep.subr.bf16.mxu0 %v1779
        %3978 = vmatpush1.bf16.msra.mxu0 %v1778
        %3979 = vmatprep.mubr.bf16.mxu0 %v3467
        %3980 = vmatmul.mubr.bf16.gmra.mrb[0].mxu0 %v3466
        %v3981 = vpop.f32.mrb[0].mxu0
        %v3982 = vadd.f32 %v3939, %v3981
        %v3983 = vpop.f32.mrb[0].mxu0
        %v3984 = vadd.f32 %v3941, %v3983
        %v3985 = vpop.f32.mrb[0].mxu0
        %v3986 = vadd.f32 %v3943, %v3985
        %v3987 = vpop.f32.mrb[0].mxu0
        %v3988 = vadd.f32 %v3945, %v3987
        %3989 = vdwg.mxu0
        %3990 = vmatprep.subr.bf16.mxu0 %v1789
        %3991 = vmatpush1.bf16.msra.mxu0 %v1788
        %3992 = vmatprep.subr.bf16.mxu0 %v1799
        %3993 = vmatpush1.bf16.msra.mxu0 %v1798
        %3994 = vmatprep.subr.bf16.mxu0 %v1809
        %3995 = vmatpush1.bf16.msra.mxu0 %v1808
        %3996 = vmatprep.subr.bf16.mxu0 %v1819
        %3997 = vmatpush1.bf16.msra.mxu0 %v1818
        %3998 = vmatprep.subr.bf16.mxu0 %v1829
        %3999 = vmatpush1.bf16.msra.mxu0 %v1828
        %4000 = vmatprep.subr.bf16.mxu0 %v1839
        %4001 = vmatpush1.bf16.msra.mxu0 %v1838
        %4002 = vmatprep.subr.bf16.mxu0 %v1849
        %4003 = vmatpush1.bf16.msra.mxu0 %v1848
        %4004 = vmatprep.subr.bf16.mxu0 %v1859
        %4005 = vmatpush1.bf16.msra.mxu0 %v1858
        %4006 = vmatprep.subr.bf16.mxu0 %v1869
        %4007 = vmatpush1.bf16.msra.mxu0 %v1868
        %4008 = vmatprep.subr.bf16.mxu0 %v1879
        %4009 = vmatpush1.bf16.msra.mxu0 %v1878
        %4010 = vmatprep.subr.bf16.mxu0 %v1889
        %4011 = vmatpush1.bf16.msra.mxu0 %v1888
        %4012 = vmatprep.subr.bf16.mxu0 %v1899
        %4013 = vmatpush1.bf16.msra.mxu0 %v1898
        %4014 = vmatprep.subr.bf16.mxu0 %v1909
        %4015 = vmatpush1.bf16.msra.mxu0 %v1908
        %4016 = vmatprep.subr.bf16.mxu0 %v1919
        %4017 = vmatpush1.bf16.msra.mxu0 %v1918
        %4018 = vmatprep.subr.bf16.mxu0 %v1929
        %4019 = vmatpush1.bf16.msra.mxu0 %v1928
        %4020 = vmatprep.subr.bf16.mxu0 %v1939
        %4021 = vmatpush1.bf16.msra.mxu0 %v1938
        %4022 = vmatprep.mubr.bf16.mxu0 %v3469
        %4023 = vmatmul.mubr.bf16.gmra.mrb[0].mxu0 %v3468
        %v4024 = vpop.f32.mrb[0].mxu0
        %v4025 = vadd.f32 %v3982, %v4024
        %v4026 = vpop.f32.mrb[0].mxu0
        %v4027 = vadd.f32 %v3984, %v4026
        %v4028 = vpop.f32.mrb[0].mxu0
        %v4029 = vadd.f32 %v3986, %v4028
        %v4030 = vpop.f32.mrb[0].mxu0
        %v4031 = vadd.f32 %v3988, %v4030
        %4032 = vdwg.mxu0
        %4033 = vmatprep.subr.bf16.mxu0 %v1949
        %4034 = vmatpush1.bf16.msra.mxu0 %v1948
        %4035 = vmatprep.subr.bf16.mxu0 %v1959
        %4036 = vmatpush1.bf16.msra.mxu0 %v1958
        %4037 = vmatprep.subr.bf16.mxu0 %v1969
        %4038 = vmatpush1.bf16.msra.mxu0 %v1968
        %4039 = vmatprep.subr.bf16.mxu0 %v1979
        %4040 = vmatpush1.bf16.msra.mxu0 %v1978
        %4041 = vmatprep.subr.bf16.mxu0 %v1989
        %4042 = vmatpush1.bf16.msra.mxu0 %v1988
        %4043 = vmatprep.subr.bf16.mxu0 %v1999
        %4044 = vmatpush1.bf16.msra.mxu0 %v1998
        %4045 = vmatprep.subr.bf16.mxu0 %v2009
        %4046 = vmatpush1.bf16.msra.mxu0 %v2008
        %4047 = vmatprep.subr.bf16.mxu0 %v2019
        %4048 = vmatpush1.bf16.msra.mxu0 %v2018
        %4049 = vmatprep.subr.bf16.mxu0 %v2029
        %4050 = vmatpush1.bf16.msra.mxu0 %v2028
        %4051 = vmatprep.subr.bf16.mxu0 %v2039
        %4052 = vmatpush1.bf16.msra.mxu0 %v2038
        %4053 = vmatprep.subr.bf16.mxu0 %v2049
        %4054 = vmatpush1.bf16.msra.mxu0 %v2048
        %4055 = vmatprep.subr.bf16.mxu0 %v2059
        %4056 = vmatpush1.bf16.msra.mxu0 %v2058
        %4057 = vmatprep.subr.bf16.mxu0 %v2069
        %4058 = vmatpush1.bf16.msra.mxu0 %v2068
        %4059 = vmatprep.subr.bf16.mxu0 %v2079
        %4060 = vmatpush1.bf16.msra.mxu0 %v2078
        %4061 = vmatprep.subr.bf16.mxu0 %v2089
        %4062 = vmatpush1.bf16.msra.mxu0 %v2088
        %4063 = vmatprep.subr.bf16.mxu0 %v2099
        %4064 = vmatpush1.bf16.msra.mxu0 %v2098
        %4065 = vmatprep.mubr.bf16.mxu0 %v3471
        %4066 = vmatmul.mubr.bf16.gmra.mrb[0].mxu0 %v3470
        %v4067 = vpop.f32.mrb[0].mxu0
        %v4068 = vadd.f32 %v4025, %v4067
        %v4069 = vpop.f32.mrb[0].mxu0
        %v4070 = vadd.f32 %v4027, %v4069
        %v4071 = vpop.f32.mrb[0].mxu0
        %v4072 = vadd.f32 %v4029, %v4071
        %v4073 = vpop.f32.mrb[0].mxu0
        %v4074 = vadd.f32 %v4031, %v4073
        %4075 = vdwg.mxu0
        %4076 = vmatprep.subr.bf16.mxu0 %v2109
        %4077 = vmatpush1.bf16.msra.mxu0 %v2108
        %4078 = vmatprep.subr.bf16.mxu0 %v2119
        %4079 = vmatpush1.bf16.msra.mxu0 %v2118
        %4080 = vmatprep.subr.bf16.mxu0 %v2129
        %4081 = vmatpush1.bf16.msra.mxu0 %v2128
        %4082 = vmatprep.subr.bf16.mxu0 %v2139
        %4083 = vmatpush1.bf16.msra.mxu0 %v2138
        %4084 = vmatprep.subr.bf16.mxu0 %v2149
        %4085 = vmatpush1.bf16.msra.mxu0 %v2148
        %4086 = vmatprep.subr.bf16.mxu0 %v2159
        %4087 = vmatpush1.bf16.msra.mxu0 %v2158
        %4088 = vmatprep.subr.bf16.mxu0 %v2169
        %4089 = vmatpush1.bf16.msra.mxu0 %v2168
        %4090 = vmatprep.subr.bf16.mxu0 %v2179
        %4091 = vmatpush1.bf16.msra.mxu0 %v2178
        %4092 = vmatprep.subr.bf16.mxu0 %v2189
        %4093 = vmatpush1.bf16.msra.mxu0 %v2188
        %4094 = vmatprep.subr.bf16.mxu0 %v2199
        %4095 = vmatpush1.bf16.msra.mxu0 %v2198
        %4096 = vmatprep.subr.bf16.mxu0 %v2209
        %4097 = vmatpush1.bf16.msra.mxu0 %v2208
        %4098 = vmatprep.subr.bf16.mxu0 %v2219
        %4099 = vmatpush1.bf16.msra.mxu0 %v2218
        %4100 = vmatprep.subr.bf16.mxu0 %v2229
        %4101 = vmatpush1.bf16.msra.mxu0 %v2228
        %4102 = vmatprep.subr.bf16.mxu0 %v2239
        %4103 = vmatpush1.bf16.msra.mxu0 %v2238
        %4104 = vmatprep.subr.bf16.mxu0 %v2249
        %4105 = vmatpush1.bf16.msra.mxu0 %v2248
        %4106 = vmatprep.subr.bf16.mxu0 %v2259
        %4107 = vmatpush1.bf16.msra.mxu0 %v2258
        %4108 = vmatprep.mubr.bf16.mxu0 %v3473
        %4109 = vmatmul.mubr.bf16.gmra.mrb[0].mxu0 %v3472
        %v4110 = vpop.f32.mrb[0].mxu0
        %v4111 = vadd.f32 %v4068, %v4110
        %v4112 = vpop.f32.mrb[0].mxu0
        %v4113 = vadd.f32 %v4070, %v4112
        %v4114 = vpop.f32.mrb[0].mxu0
        %v4115 = vadd.f32 %v4072, %v4114
        %v4116 = vpop.f32.mrb[0].mxu0
        %v4117 = vadd.f32 %v4074, %v4116
        %4118 = vdwg.mxu0
        %4119 = vmatprep.subr.bf16.mxu0 %v1471
        %4120 = vmatpush1.bf16.msra.mxu0 %v1470
        %4121 = vmatprep.subr.bf16.mxu0 %v1481
        %4122 = vmatpush1.bf16.msra.mxu0 %v1480
        %4123 = vmatprep.subr.bf16.mxu0 %v1491
        %4124 = vmatpush1.bf16.msra.mxu0 %v1490
        %4125 = vmatprep.subr.bf16.mxu0 %v1501
        %4126 = vmatpush1.bf16.msra.mxu0 %v1500
        %4127 = vmatprep.subr.bf16.mxu0 %v1511
        %4128 = vmatpush1.bf16.msra.mxu0 %v1510
        %4129 = vmatprep.subr.bf16.mxu0 %v1521
        %4130 = vmatpush1.bf16.msra.mxu0 %v1520
        %4131 = vmatprep.subr.bf16.mxu0 %v1531
        %4132 = vmatpush1.bf16.msra.mxu0 %v1530
        %4133 = vmatprep.subr.bf16.mxu0 %v1541
        %4134 = vmatpush1.bf16.msra.mxu0 %v1540
        %4135 = vmatprep.subr.bf16.mxu0 %v1551
        %4136 = vmatpush1.bf16.msra.mxu0 %v1550
        %4137 = vmatprep.subr.bf16.mxu0 %v1561
        %4138 = vmatpush1.bf16.msra.mxu0 %v1560
        %4139 = vmatprep.subr.bf16.mxu0 %v1571
        %4140 = vmatpush1.bf16.msra.mxu0 %v1570
        %4141 = vmatprep.subr.bf16.mxu0 %v1581
        %4142 = vmatpush1.bf16.msra.mxu0 %v1580
        %4143 = vmatprep.subr.bf16.mxu0 %v1591
        %4144 = vmatpush1.bf16.msra.mxu0 %v1590
        %4145 = vmatprep.subr.bf16.mxu0 %v1601
        %4146 = vmatpush1.bf16.msra.mxu0 %v1600
        %4147 = vmatprep.subr.bf16.mxu0 %v1611
        %4148 = vmatpush1.bf16.msra.mxu0 %v1610
        %4149 = vmatprep.subr.bf16.mxu0 %v1621
        %4150 = vmatpush1.bf16.msra.mxu0 %v1620
        %4151 = vmatprep.mubr.bf16.mxu0 %v3465
        %4152 = vmatmul.mubr.bf16.gmra.mrb[0].mxu0 %v3464
        %v4153 = vpop.f32.mrb[0].mxu0
        %v4154 = vadd.f32 0.0, %v4153
        %v4155 = vpop.f32.mrb[0].mxu0
        %v4156 = vadd.f32 0.0, %v4155
        %v4157 = vpop.f32.mrb[0].mxu0
        %v4158 = vadd.f32 0.0, %v4157
        %v4159 = vpop.f32.mrb[0].mxu0
        %v4160 = vadd.f32 0.0, %v4159
        %4161 = vdwg.mxu0
        %4162 = vmatprep.subr.bf16.mxu0 %v1631
        %4163 = vmatpush1.bf16.msra.mxu0 %v1630
        %4164 = vmatprep.subr.bf16.mxu0 %v1641
        %4165 = vmatpush1.bf16.msra.mxu0 %v1640
        %4166 = vmatprep.subr.bf16.mxu0 %v1651
        %4167 = vmatpush1.bf16.msra.mxu0 %v1650
        %4168 = vmatprep.subr.bf16.mxu0 %v1661
        %4169 = vmatpush1.bf16.msra.mxu0 %v1660
        %4170 = vmatprep.subr.bf16.mxu0 %v1671
        %4171 = vmatpush1.bf16.msra.mxu0 %v1670
        %4172 = vmatprep.subr.bf16.mxu0 %v1681
        %4173 = vmatpush1.bf16.msra.mxu0 %v1680
        %4174 = vmatprep.subr.bf16.mxu0 %v1691
        %4175 = vmatpush1.bf16.msra.mxu0 %v1690
        %4176 = vmatprep.subr.bf16.mxu0 %v1701
        %4177 = vmatpush1.bf16.msra.mxu0 %v1700
        %4178 = vmatprep.subr.bf16.mxu0 %v1711
        %4179 = vmatpush1.bf16.msra.mxu0 %v1710
        %4180 = vmatprep.subr.bf16.mxu0 %v1721
        %4181 = vmatpush1.bf16.msra.mxu0 %v1720
        %4182 = vmatprep.subr.bf16.mxu0 %v1731
        %4183 = vmatpush1.bf16.msra.mxu0 %v1730
        %4184 = vmatprep.subr.bf16.mxu0 %v1741
        %4185 = vmatpush1.bf16.msra.mxu0 %v1740
        %4186 = vmatprep.subr.bf16.mxu0 %v1751
        %4187 = vmatpush1.bf16.msra.mxu0 %v1750
        %4188 = vmatprep.subr.bf16.mxu0 %v1761
        %4189 = vmatpush1.bf16.msra.mxu0 %v1760
        %4190 = vmatprep.subr.bf16.mxu0 %v1771
        %4191 = vmatpush1.bf16.msra.mxu0 %v1770
        %4192 = vmatprep.subr.bf16.mxu0 %v1781
        %4193 = vmatpush1.bf16.msra.mxu0 %v1780
        %4194 = vmatprep.mubr.bf16.mxu0 %v3467
        %4195 = vmatmul.mubr.bf16.gmra.mrb[0].mxu0 %v3466
        %v4196 = vpop.f32.mrb[0].mxu0
        %v4197 = vadd.f32 %v4154, %v4196
        %v4198 = vpop.f32.mrb[0].mxu0
        %v4199 = vadd.f32 %v4156, %v4198
        %v4200 = vpop.f32.mrb[0].mxu0
        %v4201 = vadd.f32 %v4158, %v4200
        %v4202 = vpop.f32.mrb[0].mxu0
        %v4203 = vadd.f32 %v4160, %v4202
        %4204 = vdwg.mxu0
        %4205 = vmatprep.subr.bf16.mxu0 %v1791
        %4206 = vmatpush1.bf16.msra.mxu0 %v1790
        %4207 = vmatprep.subr.bf16.mxu0 %v1801
        %4208 = vmatpush1.bf16.msra.mxu0 %v1800
        %4209 = vmatprep.subr.bf16.mxu0 %v1811
        %4210 = vmatpush1.bf16.msra.mxu0 %v1810
        %4211 = vmatprep.subr.bf16.mxu0 %v1821
        %4212 = vmatpush1.bf16.msra.mxu0 %v1820
        %4213 = vmatprep.subr.bf16.mxu0 %v1831
        %4214 = vmatpush1.bf16.msra.mxu0 %v1830
        %4215 = vmatprep.subr.bf16.mxu0 %v1841
        %4216 = vmatpush1.bf16.msra.mxu0 %v1840
        %4217 = vmatprep.subr.bf16.mxu0 %v1851
        %4218 = vmatpush1.bf16.msra.mxu0 %v1850
        %4219 = vmatprep.subr.bf16.mxu0 %v1861
        %4220 = vmatpush1.bf16.msra.mxu0 %v1860
        %4221 = vmatprep.subr.bf16.mxu0 %v1871
        %4222 = vmatpush1.bf16.msra.mxu0 %v1870
        %4223 = vmatprep.subr.bf16.mxu0 %v1881
        %4224 = vmatpush1.bf16.msra.mxu0 %v1880
        %4225 = vmatprep.subr.bf16.mxu0 %v1891
        %4226 = vmatpush1.bf16.msra.mxu0 %v1890
        %4227 = vmatprep.subr.bf16.mxu0 %v1901
        %4228 = vmatpush1.bf16.msra.mxu0 %v1900
        %4229 = vmatprep.subr.bf16.mxu0 %v1911
        %4230 = vmatpush1.bf16.msra.mxu0 %v1910
        %4231 = vmatprep.subr.bf16.mxu0 %v1921
        %4232 = vmatpush1.bf16.msra.mxu0 %v1920
        %4233 = vmatprep.subr.bf16.mxu0 %v1931
        %4234 = vmatpush1.bf16.msra.mxu0 %v1930
        %4235 = vmatprep.subr.bf16.mxu0 %v1941
        %4236 = vmatpush1.bf16.msra.mxu0 %v1940
        %4237 = vmatprep.mubr.bf16.mxu0 %v3469
        %4238 = vmatmul.mubr.bf16.gmra.mrb[0].mxu0 %v3468
        %v4239 = vpop.f32.mrb[0].mxu0
        %v4240 = vadd.f32 %v4197, %v4239
        %v4241 = vpop.f32.mrb[0].mxu0
        %v4242 = vadd.f32 %v4199, %v4241
        %v4243 = vpop.f32.mrb[0].mxu0
        %v4244 = vadd.f32 %v4201, %v4243
        %v4245 = vpop.f32.mrb[0].mxu0
        %v4246 = vadd.f32 %v4203, %v4245
        %4247 = vdwg.mxu0
        %4248 = vmatprep.subr.bf16.mxu0 %v1951
        %4249 = vmatpush1.bf16.msra.mxu0 %v1950
        %4250 = vmatprep.subr.bf16.mxu0 %v1961
        %4251 = vmatpush1.bf16.msra.mxu0 %v1960
        %4252 = vmatprep.subr.bf16.mxu0 %v1971
        %4253 = vmatpush1.bf16.msra.mxu0 %v1970
        %4254 = vmatprep.subr.bf16.mxu0 %v1981
        %4255 = vmatpush1.bf16.msra.mxu0 %v1980
        %4256 = vmatprep.subr.bf16.mxu0 %v1991
        %4257 = vmatpush1.bf16.msra.mxu0 %v1990
        %4258 = vmatprep.subr.bf16.mxu0 %v2001
        %4259 = vmatpush1.bf16.msra.mxu0 %v2000
        %4260 = vmatprep.subr.bf16.mxu0 %v2011
        %4261 = vmatpush1.bf16.msra.mxu0 %v2010
        %4262 = vmatprep.subr.bf16.mxu0 %v2021
        %4263 = vmatpush1.bf16.msra.mxu0 %v2020
        %4264 = vmatprep.subr.bf16.mxu0 %v2031
        %4265 = vmatpush1.bf16.msra.mxu0 %v2030
        %4266 = vmatprep.subr.bf16.mxu0 %v2041
        %4267 = vmatpush1.bf16.msra.mxu0 %v2040
        %4268 = vmatprep.subr.bf16.mxu0 %v2051
        %4269 = vmatpush1.bf16.msra.mxu0 %v2050
        %4270 = vmatprep.subr.bf16.mxu0 %v2061
        %4271 = vmatpush1.bf16.msra.mxu0 %v2060
        %4272 = vmatprep.subr.bf16.mxu0 %v2071
        %4273 = vmatpush1.bf16.msra.mxu0 %v2070
        %4274 = vmatprep.subr.bf16.mxu0 %v2081
        %4275 = vmatpush1.bf16.msra.mxu0 %v2080
        %4276 = vmatprep.subr.bf16.mxu0 %v2091
        %4277 = vmatpush1.bf16.msra.mxu0 %v2090
        %4278 = vmatprep.subr.bf16.mxu0 %v2101
        %4279 = vmatpush1.bf16.msra.mxu0 %v2100
        %4280 = vmatprep.mubr.bf16.mxu0 %v3471
        %4281 = vmatmul.mubr.bf16.gmra.mrb[0].mxu0 %v3470
        %v4282 = vpop.f32.mrb[0].mxu0
        %v4283 = vadd.f32 %v4240, %v4282
        %v4284 = vpop.f32.mrb[0].mxu0
        %v4285 = vadd.f32 %v4242, %v4284
        %v4286 = vpop.f32.mrb[0].mxu0
        %v4287 = vadd.f32 %v4244, %v4286
        %v4288 = vpop.f32.mrb[0].mxu0
        %v4289 = vadd.f32 %v4246, %v4288
        %4290 = vdwg.mxu0
        %4291 = vmatprep.subr.bf16.mxu0 %v2111
        %4292 = vmatpush1.bf16.msra.mxu0 %v2110
        %4293 = vmatprep.subr.bf16.mxu0 %v2121
        %4294 = vmatpush1.bf16.msra.mxu0 %v2120
        %4295 = vmatprep.subr.bf16.mxu0 %v2131
        %4296 = vmatpush1.bf16.msra.mxu0 %v2130
        %4297 = vmatprep.subr.bf16.mxu0 %v2141
        %4298 = vmatpush1.bf16.msra.mxu0 %v2140
        %4299 = vmatprep.subr.bf16.mxu0 %v2151
        %4300 = vmatpush1.bf16.msra.mxu0 %v2150
        %4301 = vmatprep.subr.bf16.mxu0 %v2161
        %4302 = vmatpush1.bf16.msra.mxu0 %v2160
        %4303 = vmatprep.subr.bf16.mxu0 %v2171
        %4304 = vmatpush1.bf16.msra.mxu0 %v2170
        %4305 = vmatprep.subr.bf16.mxu0 %v2181
        %4306 = vmatpush1.bf16.msra.mxu0 %v2180
        %4307 = vmatprep.subr.bf16.mxu0 %v2191
        %4308 = vmatpush1.bf16.msra.mxu0 %v2190
        %4309 = vmatprep.subr.bf16.mxu0 %v2201
        %4310 = vmatpush1.bf16.msra.mxu0 %v2200
        %4311 = vmatprep.subr.bf16.mxu0 %v2211
        %4312 = vmatpush1.bf16.msra.mxu0 %v2210
        %4313 = vmatprep.subr.bf16.mxu0 %v2221
        %4314 = vmatpush1.bf16.msra.mxu0 %v2220
        %4315 = vmatprep.subr.bf16.mxu0 %v2231
        %4316 = vmatpush1.bf16.msra.mxu0 %v2230
        %4317 = vmatprep.subr.bf16.mxu0 %v2241
        %4318 = vmatpush1.bf16.msra.mxu0 %v2240
        %4319 = vmatprep.subr.bf16.mxu0 %v2251
        %4320 = vmatpush1.bf16.msra.mxu0 %v2250
        %4321 = vmatprep.subr.bf16.mxu0 %v2261
        %4322 = vmatpush1.bf16.msra.mxu0 %v2260
        %4323 = vmatprep.mubr.bf16.mxu0 %v3473
        %4324 = vmatmul.mubr.bf16.gmra.mrb[0].mxu0 %v3472
        %v4325 = vpop.f32.mrb[0].mxu0
        %v4326 = vadd.f32 %v4283, %v4325
        %v4327 = vpop.f32.mrb[0].mxu0
        %v4328 = vadd.f32 %v4285, %v4327
        %v4329 = vpop.f32.mrb[0].mxu0
        %v4330 = vadd.f32 %v4287, %v4329
        %v4331 = vpop.f32.mrb[0].mxu0
        %v4332 = vadd.f32 %v4289, %v4331
        %4333 = vdwg.mxu0
        %4334 = vmatprep.subr.bf16.mxu0 %v1473
        %4335 = vmatpush1.bf16.msra.mxu0 %v1472
        %4336 = vmatprep.subr.bf16.mxu0 %v1483
        %4337 = vmatpush1.bf16.msra.mxu0 %v1482
        %4338 = vmatprep.subr.bf16.mxu0 %v1493
        %4339 = vmatpush1.bf16.msra.mxu0 %v1492
        %4340 = vmatprep.subr.bf16.mxu0 %v1503
        %4341 = vmatpush1.bf16.msra.mxu0 %v1502
        %4342 = vmatprep.subr.bf16.mxu0 %v1513
        %4343 = vmatpush1.bf16.msra.mxu0 %v1512
        %4344 = vmatprep.subr.bf16.mxu0 %v1523
        %4345 = vmatpush1.bf16.msra.mxu0 %v1522
        %4346 = vmatprep.subr.bf16.mxu0 %v1533
        %4347 = vmatpush1.bf16.msra.mxu0 %v1532
        %4348 = vmatprep.subr.bf16.mxu0 %v1543
        %4349 = vmatpush1.bf16.msra.mxu0 %v1542
        %4350 = vmatprep.subr.bf16.mxu0 %v1553
        %4351 = vmatpush1.bf16.msra.mxu0 %v1552
        %4352 = vmatprep.subr.bf16.mxu0 %v1563
        %4353 = vmatpush1.bf16.msra.mxu0 %v1562
        %4354 = vmatprep.subr.bf16.mxu0 %v1573
        %4355 = vmatpush1.bf16.msra.mxu0 %v1572
        %4356 = vmatprep.subr.bf16.mxu0 %v1583
        %4357 = vmatpush1.bf16.msra.mxu0 %v1582
        %4358 = vmatprep.subr.bf16.mxu0 %v1593
        %4359 = vmatpush1.bf16.msra.mxu0 %v1592
        %4360 = vmatprep.subr.bf16.mxu0 %v1603
        %4361 = vmatpush1.bf16.msra.mxu0 %v1602
        %4362 = vmatprep.subr.bf16.mxu0 %v1613
        %4363 = vmatpush1.bf16.msra.mxu0 %v1612
        %4364 = vmatprep.subr.bf16.mxu0 %v1623
        %4365 = vmatpush1.bf16.msra.mxu0 %v1622
        %4366 = vmatprep.mubr.bf16.mxu0 %v3465
        %4367 = vmatmul.mubr.bf16.gmra.mrb[0].mxu0 %v3464
        %v4368 = vpop.f32.mrb[0].mxu0
        %v4369 = vadd.f32 0.0, %v4368
        %v4370 = vpop.f32.mrb[0].mxu0
        %v4371 = vadd.f32 0.0, %v4370
        %v4372 = vpop.f32.mrb[0].mxu0
        %v4373 = vadd.f32 0.0, %v4372
        %v4374 = vpop.f32.mrb[0].mxu0
        %v4375 = vadd.f32 0.0, %v4374
        %4376 = vdwg.mxu0
        %4377 = vmatprep.subr.bf16.mxu0 %v1633
        %4378 = vmatpush1.bf16.msra.mxu0 %v1632
        %4379 = vmatprep.subr.bf16.mxu0 %v1643
        %4380 = vmatpush1.bf16.msra.mxu0 %v1642
        %4381 = vmatprep.subr.bf16.mxu0 %v1653
        %4382 = vmatpush1.bf16.msra.mxu0 %v1652
        %4383 = vmatprep.subr.bf16.mxu0 %v1663
        %4384 = vmatpush1.bf16.msra.mxu0 %v1662
        %4385 = vmatprep.subr.bf16.mxu0 %v1673
        %4386 = vmatpush1.bf16.msra.mxu0 %v1672
        %4387 = vmatprep.subr.bf16.mxu0 %v1683
        %4388 = vmatpush1.bf16.msra.mxu0 %v1682
        %4389 = vmatprep.subr.bf16.mxu0 %v1693
        %4390 = vmatpush1.bf16.msra.mxu0 %v1692
        %4391 = vmatprep.subr.bf16.mxu0 %v1703
        %4392 = vmatpush1.bf16.msra.mxu0 %v1702
        %4393 = vmatprep.subr.bf16.mxu0 %v1713
        %4394 = vmatpush1.bf16.msra.mxu0 %v1712
        %4395 = vmatprep.subr.bf16.mxu0 %v1723
        %4396 = vmatpush1.bf16.msra.mxu0 %v1722
        %4397 = vmatprep.subr.bf16.mxu0 %v1733
        %4398 = vmatpush1.bf16.msra.mxu0 %v1732
        %4399 = vmatprep.subr.bf16.mxu0 %v1743
        %4400 = vmatpush1.bf16.msra.mxu0 %v1742
        %4401 = vmatprep.subr.bf16.mxu0 %v1753
        %4402 = vmatpush1.bf16.msra.mxu0 %v1752
        %4403 = vmatprep.subr.bf16.mxu0 %v1763
        %4404 = vmatpush1.bf16.msra.mxu0 %v1762
        %4405 = vmatprep.subr.bf16.mxu0 %v1773
        %4406 = vmatpush1.bf16.msra.mxu0 %v1772
        %4407 = vmatprep.subr.bf16.mxu0 %v1783
        %4408 = vmatpush1.bf16.msra.mxu0 %v1782
        %4409 = vmatprep.mubr.bf16.mxu0 %v3467
        %4410 = vmatmul.mubr.bf16.gmra.mrb[0].mxu0 %v3466
        %v4411 = vpop.f32.mrb[0].mxu0
        %v4412 = vadd.f32 %v4369, %v4411
        %v4413 = vpop.f32.mrb[0].mxu0
        %v4414 = vadd.f32 %v4371, %v4413
        %v4415 = vpop.f32.mrb[0].mxu0
        %v4416 = vadd.f32 %v4373, %v4415
        %v4417 = vpop.f32.mrb[0].mxu0
        %v4418 = vadd.f32 %v4375, %v4417
        %4419 = vdwg.mxu0
        %4420 = vmatprep.subr.bf16.mxu0 %v1793
        %4421 = vmatpush1.bf16.msra.mxu0 %v1792
        %4422 = vmatprep.subr.bf16.mxu0 %v1803
        %4423 = vmatpush1.bf16.msra.mxu0 %v1802
        %4424 = vmatprep.subr.bf16.mxu0 %v1813
        %4425 = vmatpush1.bf16.msra.mxu0 %v1812
        %4426 = vmatprep.subr.bf16.mxu0 %v1823
        %4427 = vmatpush1.bf16.msra.mxu0 %v1822
        %4428 = vmatprep.subr.bf16.mxu0 %v1833
        %4429 = vmatpush1.bf16.msra.mxu0 %v1832
        %4430 = vmatprep.subr.bf16.mxu0 %v1843
        %4431 = vmatpush1.bf16.msra.mxu0 %v1842
        %4432 = vmatprep.subr.bf16.mxu0 %v1853
        %4433 = vmatpush1.bf16.msra.mxu0 %v1852
        %4434 = vmatprep.subr.bf16.mxu0 %v1863
        %4435 = vmatpush1.bf16.msra.mxu0 %v1862
        %4436 = vmatprep.subr.bf16.mxu0 %v1873
        %4437 = vmatpush1.bf16.msra.mxu0 %v1872
        %4438 = vmatprep.subr.bf16.mxu0 %v1883
        %4439 = vmatpush1.bf16.msra.mxu0 %v1882
        %4440 = vmatprep.subr.bf16.mxu0 %v1893
        %4441 = vmatpush1.bf16.msra.mxu0 %v1892
        %4442 = vmatprep.subr.bf16.mxu0 %v1903
        %4443 = vmatpush1.bf16.msra.mxu0 %v1902
        %4444 = vmatprep.subr.bf16.mxu0 %v1913
        %4445 = vmatpush1.bf16.msra.mxu0 %v1912
        %4446 = vmatprep.subr.bf16.mxu0 %v1923
        %4447 = vmatpush1.bf16.msra.mxu0 %v1922
        %4448 = vmatprep.subr.bf16.mxu0 %v1933
        %4449 = vmatpush1.bf16.msra.mxu0 %v1932
        %4450 = vmatprep.subr.bf16.mxu0 %v1943
        %4451 = vmatpush1.bf16.msra.mxu0 %v1942
        %4452 = vmatprep.mubr.bf16.mxu0 %v3469
        %4453 = vmatmul.mubr.bf16.gmra.mrb[0].mxu0 %v3468
        %v4454 = vpop.f32.mrb[0].mxu0
        %v4455 = vadd.f32 %v4412, %v4454
        %v4456 = vpop.f32.mrb[0].mxu0
        %v4457 = vadd.f32 %v4414, %v4456
        %v4458 = vpop.f32.mrb[0].mxu0
        %v4459 = vadd.f32 %v4416, %v4458
        %v4460 = vpop.f32.mrb[0].mxu0
        %v4461 = vadd.f32 %v4418, %v4460
        %4462 = vdwg.mxu0
        %4463 = vmatprep.subr.bf16.mxu0 %v1953
        %4464 = vmatpush1.bf16.msra.mxu0 %v1952
        %4465 = vmatprep.subr.bf16.mxu0 %v1963
        %4466 = vmatpush1.bf16.msra.mxu0 %v1962
        %4467 = vmatprep.subr.bf16.mxu0 %v1973
        %4468 = vmatpush1.bf16.msra.mxu0 %v1972
        %4469 = vmatprep.subr.bf16.mxu0 %v1983
        %4470 = vmatpush1.bf16.msra.mxu0 %v1982
        %4471 = vmatprep.subr.bf16.mxu0 %v1993
        %4472 = vmatpush1.bf16.msra.mxu0 %v1992
        %4473 = vmatprep.subr.bf16.mxu0 %v2003
        %4474 = vmatpush1.bf16.msra.mxu0 %v2002
        %4475 = vmatprep.subr.bf16.mxu0 %v2013
        %4476 = vmatpush1.bf16.msra.mxu0 %v2012
        %4477 = vmatprep.subr.bf16.mxu0 %v2023
        %4478 = vmatpush1.bf16.msra.mxu0 %v2022
        %4479 = vmatprep.subr.bf16.mxu0 %v2033
        %4480 = vmatpush1.bf16.msra.mxu0 %v2032
        %4481 = vmatprep.subr.bf16.mxu0 %v2043
        %4482 = vmatpush1.bf16.msra.mxu0 %v2042
        %4483 = vmatprep.subr.bf16.mxu0 %v2053
        %4484 = vmatpush1.bf16.msra.mxu0 %v2052
        %4485 = vmatprep.subr.bf16.mxu0 %v2063
        %4486 = vmatpush1.bf16.msra.mxu0 %v2062
        %4487 = vmatprep.subr.bf16.mxu0 %v2073
        %4488 = vmatpush1.bf16.msra.mxu0 %v2072
        %4489 = vmatprep.subr.bf16.mxu0 %v2083
        %4490 = vmatpush1.bf16.msra.mxu0 %v2082
        %4491 = vmatprep.subr.bf16.mxu0 %v2093
        %4492 = vmatpush1.bf16.msra.mxu0 %v2092
        %4493 = vmatprep.subr.bf16.mxu0 %v2103
        %4494 = vmatpush1.bf16.msra.mxu0 %v2102
        %4495 = vmatprep.mubr.bf16.mxu0 %v3471
        %4496 = vmatmul.mubr.bf16.gmra.mrb[0].mxu0 %v3470
        %v4497 = vpop.f32.mrb[0].mxu0
        %v4498 = vadd.f32 %v4455, %v4497
        %v4499 = vpop.f32.mrb[0].mxu0
        %v4500 = vadd.f32 %v4457, %v4499
        %v4501 = vpop.f32.mrb[0].mxu0
        %v4502 = vadd.f32 %v4459, %v4501
        %v4503 = vpop.f32.mrb[0].mxu0
        %v4504 = vadd.f32 %v4461, %v4503
        %4505 = vdwg.mxu0
        %4506 = vmatprep.subr.bf16.mxu0 %v2113
        %4507 = vmatpush1.bf16.msra.mxu0 %v2112
        %4508 = vmatprep.subr.bf16.mxu0 %v2123
        %4509 = vmatpush1.bf16.msra.mxu0 %v2122
        %4510 = vmatprep.subr.bf16.mxu0 %v2133
        %4511 = vmatpush1.bf16.msra.mxu0 %v2132
        %4512 = vmatprep.subr.bf16.mxu0 %v2143
        %4513 = vmatpush1.bf16.msra.mxu0 %v2142
        %4514 = vmatprep.subr.bf16.mxu0 %v2153
        %4515 = vmatpush1.bf16.msra.mxu0 %v2152
        %4516 = vmatprep.subr.bf16.mxu0 %v2163
        %4517 = vmatpush1.bf16.msra.mxu0 %v2162
        %4518 = vmatprep.subr.bf16.mxu0 %v2173
        %4519 = vmatpush1.bf16.msra.mxu0 %v2172
        %4520 = vmatprep.subr.bf16.mxu0 %v2183
        %4521 = vmatpush1.bf16.msra.mxu0 %v2182
        %4522 = vmatprep.subr.bf16.mxu0 %v2193
        %4523 = vmatpush1.bf16.msra.mxu0 %v2192
        %4524 = vmatprep.subr.bf16.mxu0 %v2203
        %4525 = vmatpush1.bf16.msra.mxu0 %v2202
        %4526 = vmatprep.subr.bf16.mxu0 %v2213
        %4527 = vmatpush1.bf16.msra.mxu0 %v2212
        %4528 = vmatprep.subr.bf16.mxu0 %v2223
        %4529 = vmatpush1.bf16.msra.mxu0 %v2222
        %4530 = vmatprep.subr.bf16.mxu0 %v2233
        %4531 = vmatpush1.bf16.msra.mxu0 %v2232
        %4532 = vmatprep.subr.bf16.mxu0 %v2243
        %4533 = vmatpush1.bf16.msra.mxu0 %v2242
        %4534 = vmatprep.subr.bf16.mxu0 %v2253
        %4535 = vmatpush1.bf16.msra.mxu0 %v2252
        %4536 = vmatprep.subr.bf16.mxu0 %v2263
        %4537 = vmatpush1.bf16.msra.mxu0 %v2262
        %4538 = vmatprep.mubr.bf16.mxu0 %v3473
        %4539 = vmatmul.mubr.bf16.gmra.mrb[0].mxu0 %v3472
        %v4540 = vpop.f32.mrb[0].mxu0
        %v4541 = vadd.f32 %v4498, %v4540
        %v4542 = vpop.f32.mrb[0].mxu0
        %v4543 = vadd.f32 %v4500, %v4542
        %v4544 = vpop.f32.mrb[0].mxu0
        %v4545 = vadd.f32 %v4502, %v4544
        %v4546 = vpop.f32.mrb[0].mxu0
        %v4547 = vadd.f32 %v4504, %v4546
        %4548 = vdwg.mxu0
        %v4549 = vlaneseq
        %v4550 = vshrl.u32 %v4549, 7
        %v4551 = vsub.s32 4, %v4550
        %v4552 = vrot.slane %v1054, %v4551
        %v4553 = vlaneseq
        %v4554 = vshrl.u32 %v4553, 7
        %v4555 = vsub.s32 4, %v4554
        %v4556 = vrot.slane %v1055, %v4555
        %v4557 = vlaneseq
        %v4558 = vshrl.u32 %v4557, 7
        %v4559 = vsub.s32 4, %v4558
        %v4560 = vrot.slane %v1056, %v4559
        %v4561 = vlaneseq
        %v4562 = vshrl.u32 %v4561, 7
        %v4563 = vsub.s32 4, %v4562
        %v4564 = vrot.slane %v1057, %v4563
        %v4565 = vlaneseq
        %v4566 = vshrl.u32 %v4565, 7
        %v4567 = vsub.s32 4, %v4566
        %v4568 = vrot.slane %v1058, %v4567
        %v4569 = vlaneseq
        %v4570 = vshrl.u32 %v4569, 7
        %v4571 = vsub.s32 4, %v4570
        %v4572 = vrot.slane %v1059, %v4571
        %v4573 = vlaneseq
        %v4574 = vshrl.u32 %v4573, 7
        %v4575 = vsub.s32 4, %v4574
        %v4576 = vrot.slane %v1060, %v4575
        %v4577 = vlaneseq
        %v4578 = vshrl.u32 %v4577, 7
        %v4579 = vsub.s32 4, %v4578
        %v4580 = vrot.slane %v1061, %v4579
        %v4581 = vlaneseq
        %v4582 = vshrl.u32 %v4581, 7
        %v4583 = vsub.s32 4, %v4582
        %v4584 = vrot.slane %v1062, %v4583
        %v4585 = vlaneseq
        %v4586 = vshrl.u32 %v4585, 7
        %v4587 = vsub.s32 4, %v4586
        %v4588 = vrot.slane %v1063, %v4587
        %v4589 = vmul.f32 %v3681, %v4552
        %v4590 = vmul.f32 %v3683, %v4556
        %v4591 = vmul.f32 %v3896, %v4560
        %v4592 = vmul.f32 %v3898, %v4564
        %v4593 = vmul.f32 %v4111, %v4568
        %v4594 = vmul.f32 %v4113, %v4572
        %v4595 = vmul.f32 %v4326, %v4576
        %v4596 = vmul.f32 %v4328, %v4580
        %v4597 = vmul.f32 %v4541, %v4584
        %v4598 = vmul.f32 %v4543, %v4588
        %v4599 = vmul.f32 %v3685, %v4552
        %v4600 = vmul.f32 %v3687, %v4556
        %v4601 = vmul.f32 %v3900, %v4560
        %v4602 = vmul.f32 %v3902, %v4564
        %v4603 = vmul.f32 %v4115, %v4568
        %v4604 = vmul.f32 %v4117, %v4572
        %v4605 = vmul.f32 %v4330, %v4576
        %v4606 = vmul.f32 %v4332, %v4580
        %v4607 = vmul.f32 %v4545, %v4584
        %v4608 = vmul.f32 %v4547, %v4588
        %v4609 = vld [vmem:[#allocation5] sm:$0xff]
        %v4610 = vld [vmem:[#allocation5 + $0x8] sm:$0xff]
        %v4611 = vlaneseq
        %v4612 = vshrl.u32 %v4611, 7
        %v4613 = vsub.s32 0, %v4612
        %v4614 = vrot.slane %v1054, %v4613
        %v4615 = vlaneseq
        %v4616 = vshrl.u32 %v4615, 7
        %v4617 = vsub.s32 0, %v4616
        %v4618 = vrot.slane %v1055, %v4617
        %v4619 = vlaneseq
        %v4620 = vshrl.u32 %v4619, 7
        %v4621 = vsub.s32 0, %v4620
        %v4622 = vrot.slane %v1056, %v4621
        %v4623 = vlaneseq
        %v4624 = vshrl.u32 %v4623, 7
        %v4625 = vsub.s32 0, %v4624
        %v4626 = vrot.slane %v1057, %v4625
        %v4627 = vlaneseq
        %v4628 = vshrl.u32 %v4627, 7
        %v4629 = vsub.s32 0, %v4628
        %v4630 = vrot.slane %v1058, %v4629
        %v4631 = vlaneseq
        %v4632 = vshrl.u32 %v4631, 7
        %v4633 = vsub.s32 0, %v4632
        %v4634 = vrot.slane %v1059, %v4633
        %v4635 = vlaneseq
        %v4636 = vshrl.u32 %v4635, 7
        %v4637 = vsub.s32 0, %v4636
        %v4638 = vrot.slane %v1060, %v4637
        %v4639 = vlaneseq
        %v4640 = vshrl.u32 %v4639, 7
        %v4641 = vsub.s32 0, %v4640
        %v4642 = vrot.slane %v1061, %v4641
        %v4643 = vlaneseq
        %v4644 = vshrl.u32 %v4643, 7
        %v4645 = vsub.s32 0, %v4644
        %v4646 = vrot.slane %v1062, %v4645
        %v4647 = vlaneseq
        %v4648 = vshrl.u32 %v4647, 7
        %v4649 = vsub.s32 0, %v4648
        %v4650 = vrot.slane %v1063, %v4649
        %vm4651 = vcmask 130048
        %v4653 = vsel %vm4651, %v4609, 0
        %v4656 = vsel %vm4651, %v4610, 0
        %4658 = vmatprep.subr.mxu0 %v4590
        %4659 = vmatpush1.msra.mxu0 %v4589
        %4660 = vmatprep.subr.mxu0 %v4600
        %4661 = vmatpush1.msra.mxu0 %v4599
        %4662 = vmatprep.subr.mxu0 0.0
        %4663 = vmatpush1.msra.mxu0 0.0
        %4664 = vmatprep.subr.mxu0 0.0
        %4665 = vmatpush1.msra.mxu0 0.0
        %4666 = vmatprep.subr.mxu0 0.0
        %4667 = vmatpush1.msra.mxu0 0.0
        %4668 = vmatprep.subr.mxu0 0.0
        %4669 = vmatpush1.msra.mxu0 0.0
        %4670 = vmatprep.subr.mxu0 0.0
        %4671 = vmatpush1.msra.mxu0 0.0
        %4672 = vmatprep.subr.mxu0 0.0
        %4673 = vmatpush1.msra.mxu0 0.0
        %4674 = vmatprep.subr.mxu0 0.0
        %4675 = vmatpush1.msra.mxu0 0.0
        %4676 = vmatprep.subr.mxu0 0.0
        %4677 = vmatpush1.msra.mxu0 0.0
        %4678 = vmatprep.subr.mxu0 0.0
        %4679 = vmatpush1.msra.mxu0 0.0
        %4680 = vmatprep.subr.mxu0 0.0
        %4681 = vmatpush1.msra.mxu0 0.0
        %4682 = vmatprep.subr.mxu0 0.0
        %4683 = vmatpush1.msra.mxu0 0.0
        %4684 = vmatprep.subr.mxu0 0.0
        %4685 = vmatpush1.msra.mxu0 0.0
        %4686 = vmatprep.subr.mxu0 0.0
        %4687 = vmatpush1.msra.mxu0 0.0
        %4688 = vmatprep.subr.mxu0 0.0
        %4689 = vmatpush1.msra.mxu0 0.0
        %4690 = vmatprep.subr.mxu0 0.0
        %4691 = vmatpush1.msra.mxu0 0.0
        %4692 = vmatprep.subr.mxu0 0.0
        %4693 = vmatpush1.msra.mxu0 0.0
        %4694 = vmatprep.subr.mxu0 0.0
        %4695 = vmatpush1.msra.mxu0 0.0
        %4696 = vmatprep.subr.mxu0 0.0
        %4697 = vmatpush1.msra.mxu0 0.0
        %4698 = vmatprep.subr.mxu0 0.0
        %4699 = vmatpush1.msra.mxu0 0.0
        %4700 = vmatprep.subr.mxu0 0.0
        %4701 = vmatpush1.msra.mxu0 0.0
        %4702 = vmatprep.subr.mxu0 0.0
        %4703 = vmatpush1.msra.mxu0 0.0
        %4704 = vmatprep.subr.mxu0 0.0
        %4705 = vmatpush1.msra.mxu0 0.0
        %4706 = vmatprep.subr.mxu0 0.0
        %4707 = vmatpush1.msra.mxu0 0.0
        %4708 = vmatprep.subr.mxu0 0.0
        %4709 = vmatpush1.msra.mxu0 0.0
        %4710 = vmatprep.subr.mxu0 0.0
        %4711 = vmatpush1.msra.mxu0 0.0
        %4712 = vmatprep.subr.mxu0 0.0
        %4713 = vmatpush1.msra.mxu0 0.0
        %4714 = vmatprep.subr.mxu0 0.0
        %4715 = vmatpush1.msra.mxu0 0.0
        %4716 = vmatprep.subr.mxu0 0.0
        %4717 = vmatpush1.msra.mxu0 0.0
        %4718 = vmatprep.subr.mxu0 0.0
        %4719 = vmatpush1.msra.mxu0 0.0
        %4720 = vmatprep.subr.mxu0 0.0
        %4721 = vmatpush1.msra.mxu0 0.0
        %4722 = vmatprep.mubr.f32.mxu0 0.0
        %4723 = vmatmul.mubr.f32.gmra.mrb[0].mxu0 %v4653
        %v4724 = vpop.f32.mrb[0].mxu0
        %v4725 = vadd.f32 %v4614, %v4724
        %v4726 = vpop.f32.mrb[0].mxu0
        %v4727 = vadd.f32 %v4618, %v4726
        %4728 = vmatprep.mubr.f32.mxu0 0.0
        %4729 = vmatmul.mubr.f32.gmra.mrb[0].mxu0 %v4656
        %v4730 = vpop.f32.mrb[0].mxu0
        %v4731 = vadd.f32 %v4614, %v4730
        %v4732 = vpop.f32.mrb[0].mxu0
        %v4733 = vadd.f32 %v4618, %v4732
        %4734 = vdwg.mxu0
        %4735 = vmatprep.subr.mxu0 %v4592
        %4736 = vmatpush1.msra.mxu0 %v4591
        %4737 = vmatprep.subr.mxu0 %v4602
        %4738 = vmatpush1.msra.mxu0 %v4601
        %4739 = vmatprep.subr.mxu0 0.0
        %4740 = vmatpush1.msra.mxu0 0.0
        %4741 = vmatprep.subr.mxu0 0.0
        %4742 = vmatpush1.msra.mxu0 0.0
        %4743 = vmatprep.subr.mxu0 0.0
        %4744 = vmatpush1.msra.mxu0 0.0
        %4745 = vmatprep.subr.mxu0 0.0
        %4746 = vmatpush1.msra.mxu0 0.0
        %4747 = vmatprep.subr.mxu0 0.0
        %4748 = vmatpush1.msra.mxu0 0.0
        %4749 = vmatprep.subr.mxu0 0.0
        %4750 = vmatpush1.msra.mxu0 0.0
        %4751 = vmatprep.subr.mxu0 0.0
        %4752 = vmatpush1.msra.mxu0 0.0
        %4753 = vmatprep.subr.mxu0 0.0
        %4754 = vmatpush1.msra.mxu0 0.0
        %4755 = vmatprep.subr.mxu0 0.0
        %4756 = vmatpush1.msra.mxu0 0.0
        %4757 = vmatprep.subr.mxu0 0.0
        %4758 = vmatpush1.msra.mxu0 0.0
        %4759 = vmatprep.subr.mxu0 0.0
        %4760 = vmatpush1.msra.mxu0 0.0
        %4761 = vmatprep.subr.mxu0 0.0
        %4762 = vmatpush1.msra.mxu0 0.0
        %4763 = vmatprep.subr.mxu0 0.0
        %4764 = vmatpush1.msra.mxu0 0.0
        %4765 = vmatprep.subr.mxu0 0.0
        %4766 = vmatpush1.msra.mxu0 0.0
        %4767 = vmatprep.subr.mxu0 0.0
        %4768 = vmatpush1.msra.mxu0 0.0
        %4769 = vmatprep.subr.mxu0 0.0
        %4770 = vmatpush1.msra.mxu0 0.0
        %4771 = vmatprep.subr.mxu0 0.0
        %4772 = vmatpush1.msra.mxu0 0.0
        %4773 = vmatprep.subr.mxu0 0.0
        %4774 = vmatpush1.msra.mxu0 0.0
        %4775 = vmatprep.subr.mxu0 0.0
        %4776 = vmatpush1.msra.mxu0 0.0
        %4777 = vmatprep.subr.mxu0 0.0
        %4778 = vmatpush1.msra.mxu0 0.0
        %4779 = vmatprep.subr.mxu0 0.0
        %4780 = vmatpush1.msra.mxu0 0.0
        %4781 = vmatprep.subr.mxu0 0.0
        %4782 = vmatpush1.msra.mxu0 0.0
        %4783 = vmatprep.subr.mxu0 0.0
        %4784 = vmatpush1.msra.mxu0 0.0
        %4785 = vmatprep.subr.mxu0 0.0
        %4786 = vmatpush1.msra.mxu0 0.0
        %4787 = vmatprep.subr.mxu0 0.0
        %4788 = vmatpush1.msra.mxu0 0.0
        %4789 = vmatprep.subr.mxu0 0.0
        %4790 = vmatpush1.msra.mxu0 0.0
        %4791 = vmatprep.subr.mxu0 0.0
        %4792 = vmatpush1.msra.mxu0 0.0
        %4793 = vmatprep.subr.mxu0 0.0
        %4794 = vmatpush1.msra.mxu0 0.0
        %4795 = vmatprep.subr.mxu0 0.0
        %4796 = vmatpush1.msra.mxu0 0.0
        %4797 = vmatprep.subr.mxu0 0.0
        %4798 = vmatpush1.msra.mxu0 0.0
        %4799 = vmatprep.mubr.f32.mxu0 0.0
        %4800 = vmatmul.mubr.f32.gmra.mrb[0].mxu0 %v4653
        %v4801 = vpop.f32.mrb[0].mxu0
        %v4802 = vadd.f32 %v4622, %v4801
        %v4803 = vpop.f32.mrb[0].mxu0
        %v4804 = vadd.f32 %v4626, %v4803
        %4805 = vmatprep.mubr.f32.mxu0 0.0
        %4806 = vmatmul.mubr.f32.gmra.mrb[0].mxu0 %v4656
        %v4807 = vpop.f32.mrb[0].mxu0
        %v4808 = vadd.f32 %v4622, %v4807
        %v4809 = vpop.f32.mrb[0].mxu0
        %v4810 = vadd.f32 %v4626, %v4809
        %4811 = vdwg.mxu0
        %4812 = vmatprep.subr.mxu0 %v4594
        %4813 = vmatpush1.msra.mxu0 %v4593
        %4814 = vmatprep.subr.mxu0 %v4604
        %4815 = vmatpush1.msra.mxu0 %v4603
        %4816 = vmatprep.subr.mxu0 0.0
        %4817 = vmatpush1.msra.mxu0 0.0
        %4818 = vmatprep.subr.mxu0 0.0
        %4819 = vmatpush1.msra.mxu0 0.0
        %4820 = vmatprep.subr.mxu0 0.0
        %4821 = vmatpush1.msra.mxu0 0.0
        %4822 = vmatprep.subr.mxu0 0.0
        %4823 = vmatpush1.msra.mxu0 0.0
        %4824 = vmatprep.subr.mxu0 0.0
        %4825 = vmatpush1.msra.mxu0 0.0
        %4826 = vmatprep.subr.mxu0 0.0
        %4827 = vmatpush1.msra.mxu0 0.0
        %4828 = vmatprep.subr.mxu0 0.0
        %4829 = vmatpush1.msra.mxu0 0.0
        %4830 = vmatprep.subr.mxu0 0.0
        %4831 = vmatpush1.msra.mxu0 0.0
        %4832 = vmatprep.subr.mxu0 0.0
        %4833 = vmatpush1.msra.mxu0 0.0
        %4834 = vmatprep.subr.mxu0 0.0
        %4835 = vmatpush1.msra.mxu0 0.0
        %4836 = vmatprep.subr.mxu0 0.0
        %4837 = vmatpush1.msra.mxu0 0.0
        %4838 = vmatprep.subr.mxu0 0.0
        %4839 = vmatpush1.msra.mxu0 0.0
        %4840 = vmatprep.subr.mxu0 0.0
        %4841 = vmatpush1.msra.mxu0 0.0
        %4842 = vmatprep.subr.mxu0 0.0
        %4843 = vmatpush1.msra.mxu0 0.0
        %4844 = vmatprep.subr.mxu0 0.0
        %4845 = vmatpush1.msra.mxu0 0.0
        %4846 = vmatprep.subr.mxu0 0.0
        %4847 = vmatpush1.msra.mxu0 0.0
        %4848 = vmatprep.subr.mxu0 0.0
        %4849 = vmatpush1.msra.mxu0 0.0
        %4850 = vmatprep.subr.mxu0 0.0
        %4851 = vmatpush1.msra.mxu0 0.0
        %4852 = vmatprep.subr.mxu0 0.0
        %4853 = vmatpush1.msra.mxu0 0.0
        %4854 = vmatprep.subr.mxu0 0.0
        %4855 = vmatpush1.msra.mxu0 0.0
        %4856 = vmatprep.subr.mxu0 0.0
        %4857 = vmatpush1.msra.mxu0 0.0
        %4858 = vmatprep.subr.mxu0 0.0
        %4859 = vmatpush1.msra.mxu0 0.0
        %4860 = vmatprep.subr.mxu0 0.0
        %4861 = vmatpush1.msra.mxu0 0.0
        %4862 = vmatprep.subr.mxu0 0.0
        %4863 = vmatpush1.msra.mxu0 0.0
        %4864 = vmatprep.subr.mxu0 0.0
        %4865 = vmatpush1.msra.mxu0 0.0
        %4866 = vmatprep.subr.mxu0 0.0
        %4867 = vmatpush1.msra.mxu0 0.0
        %4868 = vmatprep.subr.mxu0 0.0
        %4869 = vmatpush1.msra.mxu0 0.0
        %4870 = vmatprep.subr.mxu0 0.0
        %4871 = vmatpush1.msra.mxu0 0.0
        %4872 = vmatprep.subr.mxu0 0.0
        %4873 = vmatpush1.msra.mxu0 0.0
        %4874 = vmatprep.subr.mxu0 0.0
        %4875 = vmatpush1.msra.mxu0 0.0
        %4876 = vmatprep.mubr.f32.mxu0 0.0
        %4877 = vmatmul.mubr.f32.gmra.mrb[0].mxu0 %v4653
        %v4878 = vpop.f32.mrb[0].mxu0
        %v4879 = vadd.f32 %v4630, %v4878
        %v4880 = vpop.f32.mrb[0].mxu0
        %v4881 = vadd.f32 %v4634, %v4880
        %4882 = vmatprep.mubr.f32.mxu0 0.0
        %4883 = vmatmul.mubr.f32.gmra.mrb[0].mxu0 %v4656
        %v4884 = vpop.f32.mrb[0].mxu0
        %v4885 = vadd.f32 %v4630, %v4884
        %v4886 = vpop.f32.mrb[0].mxu0
        %v4887 = vadd.f32 %v4634, %v4886
        %4888 = vdwg.mxu0
        %4889 = vmatprep.subr.mxu0 %v4596
        %4890 = vmatpush1.msra.mxu0 %v4595
        %4891 = vmatprep.subr.mxu0 %v4606
        %4892 = vmatpush1.msra.mxu0 %v4605
        %4893 = vmatprep.subr.mxu0 0.0
        %4894 = vmatpush1.msra.mxu0 0.0
        %4895 = vmatprep.subr.mxu0 0.0
        %4896 = vmatpush1.msra.mxu0 0.0
        %4897 = vmatprep.subr.mxu0 0.0
        %4898 = vmatpush1.msra.mxu0 0.0
        %4899 = vmatprep.subr.mxu0 0.0
        %4900 = vmatpush1.msra.mxu0 0.0
        %4901 = vmatprep.subr.mxu0 0.0
        %4902 = vmatpush1.msra.mxu0 0.0
        %4903 = vmatprep.subr.mxu0 0.0
        %4904 = vmatpush1.msra.mxu0 0.0
        %4905 = vmatprep.subr.mxu0 0.0
        %4906 = vmatpush1.msra.mxu0 0.0
        %4907 = vmatprep.subr.mxu0 0.0
        %4908 = vmatpush1.msra.mxu0 0.0
        %4909 = vmatprep.subr.mxu0 0.0
        %4910 = vmatpush1.msra.mxu0 0.0
        %4911 = vmatprep.subr.mxu0 0.0
        %4912 = vmatpush1.msra.mxu0 0.0
        %4913 = vmatprep.subr.mxu0 0.0
        %4914 = vmatpush1.msra.mxu0 0.0
        %4915 = vmatprep.subr.mxu0 0.0
        %4916 = vmatpush1.msra.mxu0 0.0
        %4917 = vmatprep.subr.mxu0 0.0
        %4918 = vmatpush1.msra.mxu0 0.0
        %4919 = vmatprep.subr.mxu0 0.0
        %4920 = vmatpush1.msra.mxu0 0.0
        %4921 = vmatprep.subr.mxu0 0.0
        %4922 = vmatpush1.msra.mxu0 0.0
        %4923 = vmatprep.subr.mxu0 0.0
        %4924 = vmatpush1.msra.mxu0 0.0
        %4925 = vmatprep.subr.mxu0 0.0
        %4926 = vmatpush1.msra.mxu0 0.0
        %4927 = vmatprep.subr.mxu0 0.0
        %4928 = vmatpush1.msra.mxu0 0.0
        %4929 = vmatprep.subr.mxu0 0.0
        %4930 = vmatpush1.msra.mxu0 0.0
        %4931 = vmatprep.subr.mxu0 0.0
        %4932 = vmatpush1.msra.mxu0 0.0
        %4933 = vmatprep.subr.mxu0 0.0
        %4934 = vmatpush1.msra.mxu0 0.0
        %4935 = vmatprep.subr.mxu0 0.0
        %4936 = vmatpush1.msra.mxu0 0.0
        %4937 = vmatprep.subr.mxu0 0.0
        %4938 = vmatpush1.msra.mxu0 0.0
        %4939 = vmatprep.subr.mxu0 0.0
        %4940 = vmatpush1.msra.mxu0 0.0
        %4941 = vmatprep.subr.mxu0 0.0
        %4942 = vmatpush1.msra.mxu0 0.0
        %4943 = vmatprep.subr.mxu0 0.0
        %4944 = vmatpush1.msra.mxu0 0.0
        %4945 = vmatprep.subr.mxu0 0.0
        %4946 = vmatpush1.msra.mxu0 0.0
        %4947 = vmatprep.subr.mxu0 0.0
        %4948 = vmatpush1.msra.mxu0 0.0
        %4949 = vmatprep.subr.mxu0 0.0
        %4950 = vmatpush1.msra.mxu0 0.0
        %4951 = vmatprep.subr.mxu0 0.0
        %4952 = vmatpush1.msra.mxu0 0.0
        %4953 = vmatprep.mubr.f32.mxu0 0.0
        %4954 = vmatmul.mubr.f32.gmra.mrb[0].mxu0 %v4653
        %v4955 = vpop.f32.mrb[0].mxu0
        %v4956 = vadd.f32 %v4638, %v4955
        %v4957 = vpop.f32.mrb[0].mxu0
        %v4958 = vadd.f32 %v4642, %v4957
        %4959 = vmatprep.mubr.f32.mxu0 0.0
        %4960 = vmatmul.mubr.f32.gmra.mrb[0].mxu0 %v4656
        %v4961 = vpop.f32.mrb[0].mxu0
        %v4962 = vadd.f32 %v4638, %v4961
        %v4963 = vpop.f32.mrb[0].mxu0
        %v4964 = vadd.f32 %v4642, %v4963
        %4965 = vdwg.mxu0
        %4966 = vmatprep.subr.mxu0 %v4598
        %4967 = vmatpush1.msra.mxu0 %v4597
        %4968 = vmatprep.subr.mxu0 %v4608
        %4969 = vmatpush1.msra.mxu0 %v4607
        %4970 = vmatprep.subr.mxu0 0.0
        %4971 = vmatpush1.msra.mxu0 0.0
        %4972 = vmatprep.subr.mxu0 0.0
        %4973 = vmatpush1.msra.mxu0 0.0
        %4974 = vmatprep.subr.mxu0 0.0
        %4975 = vmatpush1.msra.mxu0 0.0
        %4976 = vmatprep.subr.mxu0 0.0
        %4977 = vmatpush1.msra.mxu0 0.0
        %4978 = vmatprep.subr.mxu0 0.0
        %4979 = vmatpush1.msra.mxu0 0.0
        %4980 = vmatprep.subr.mxu0 0.0
        %4981 = vmatpush1.msra.mxu0 0.0
        %4982 = vmatprep.subr.mxu0 0.0
        %4983 = vmatpush1.msra.mxu0 0.0
        %4984 = vmatprep.subr.mxu0 0.0
        %4985 = vmatpush1.msra.mxu0 0.0
        %4986 = vmatprep.subr.mxu0 0.0
        %4987 = vmatpush1.msra.mxu0 0.0
        %4988 = vmatprep.subr.mxu0 0.0
        %4989 = vmatpush1.msra.mxu0 0.0
        %4990 = vmatprep.subr.mxu0 0.0
        %4991 = vmatpush1.msra.mxu0 0.0
        %4992 = vmatprep.subr.mxu0 0.0
        %4993 = vmatpush1.msra.mxu0 0.0
        %4994 = vmatprep.subr.mxu0 0.0
        %4995 = vmatpush1.msra.mxu0 0.0
        %4996 = vmatprep.subr.mxu0 0.0
        %4997 = vmatpush1.msra.mxu0 0.0
        %4998 = vmatprep.subr.mxu0 0.0
        %4999 = vmatpush1.msra.mxu0 0.0
        %5000 = vmatprep.subr.mxu0 0.0
        %5001 = vmatpush1.msra.mxu0 0.0
        %5002 = vmatprep.subr.mxu0 0.0
        %5003 = vmatpush1.msra.mxu0 0.0
        %5004 = vmatprep.subr.mxu0 0.0
        %5005 = vmatpush1.msra.mxu0 0.0
        %5006 = vmatprep.subr.mxu0 0.0
        %5007 = vmatpush1.msra.mxu0 0.0
        %5008 = vmatprep.subr.mxu0 0.0
        %5009 = vmatpush1.msra.mxu0 0.0
        %5010 = vmatprep.subr.mxu0 0.0
        %5011 = vmatpush1.msra.mxu0 0.0
        %5012 = vmatprep.subr.mxu0 0.0
        %5013 = vmatpush1.msra.mxu0 0.0
        %5014 = vmatprep.subr.mxu0 0.0
        %5015 = vmatpush1.msra.mxu0 0.0
        %5016 = vmatprep.subr.mxu0 0.0
        %5017 = vmatpush1.msra.mxu0 0.0
        %5018 = vmatprep.subr.mxu0 0.0
        %5019 = vmatpush1.msra.mxu0 0.0
        %5020 = vmatprep.subr.mxu0 0.0
        %5021 = vmatpush1.msra.mxu0 0.0
        %5022 = vmatprep.subr.mxu0 0.0
        %5023 = vmatpush1.msra.mxu0 0.0
        %5024 = vmatprep.subr.mxu0 0.0
        %5025 = vmatpush1.msra.mxu0 0.0
        %5026 = vmatprep.subr.mxu0 0.0
        %5027 = vmatpush1.msra.mxu0 0.0
        %5028 = vmatprep.subr.mxu0 0.0
        %5029 = vmatpush1.msra.mxu0 0.0
        %5030 = vmatprep.mubr.f32.mxu0 0.0
        %5031 = vmatmul.mubr.f32.gmra.mrb[0].mxu0 %v4653
        %v5032 = vpop.f32.mrb[0].mxu0
        %v5033 = vadd.f32 %v4646, %v5032
        %v5034 = vpop.f32.mrb[0].mxu0
        %v5035 = vadd.f32 %v4650, %v5034
        %5036 = vmatprep.mubr.f32.mxu0 0.0
        %5037 = vmatmul.mubr.f32.gmra.mrb[0].mxu0 %v4656
        %v5038 = vpop.f32.mrb[0].mxu0
        %v5039 = vadd.f32 %v4646, %v5038
        %v5040 = vpop.f32.mrb[0].mxu0
        %v5041 = vadd.f32 %v4650, %v5040
        %5042 = vdwg.mxu0
        %v5043 = vmax.f32 %v4725, 0.0
        %v5044 = vmax.f32 %v4727, 0.0
        %v5045 = vmax.f32 %v4802, 0.0
        %v5046 = vmax.f32 %v4804, 0.0
        %v5047 = vmax.f32 %v4879, 0.0
        %v5048 = vmax.f32 %v4881, 0.0
        %v5049 = vmax.f32 %v4956, 0.0
        %v5050 = vmax.f32 %v4958, 0.0
        %v5051 = vmax.f32 %v5033, 0.0
        %v5052 = vmax.f32 %v5035, 0.0
        %v5053 = vmax.f32 %v4731, 0.0
        %v5054 = vmax.f32 %v4733, 0.0
        %v5055 = vmax.f32 %v4808, 0.0
        %v5056 = vmax.f32 %v4810, 0.0
        %v5057 = vmax.f32 %v4885, 0.0
        %v5058 = vmax.f32 %v4887, 0.0
        %v5059 = vmax.f32 %v4962, 0.0
        %v5060 = vmax.f32 %v4964, 0.0
        %v5061 = vmax.f32 %v5039, 0.0
        %v5062 = vmax.f32 %v5041, 0.0
        %v5063 = vpack.c.bf16 %v5053, %v5043
        %v5064 = vpack.c.bf16 %v5054, %v5044
        %v5065 = vpack.c.bf16 %v5055, %v5045
        %v5066 = vpack.c.bf16 %v5056, %v5046
        %v5067 = vpack.c.bf16 %v5057, %v5047
        %v5068 = vpack.c.bf16 %v5058, %v5048
        %v5069 = vpack.c.bf16 %v5059, %v5049
        %v5070 = vpack.c.bf16 %v5060, %v5050
        %v5071 = vpack.c.bf16 %v5061, %v5051
        %v5072 = vpack.c.bf16 %v5062, %v5052
        %5073 = vmatprep.subr.bf16.mxu0 %v2665
        %5074 = vmatpush1.bf16.msra.mxu0 %v2664
        %5075 = vmatprep.subr.bf16.mxu0 %v2675
        %5076 = vmatpush1.bf16.msra.mxu0 %v2674
        %5077 = vmatprep.subr.bf16.mxu0 %v2685
        %5078 = vmatpush1.bf16.msra.mxu0 %v2684
        %5079 = vmatprep.subr.bf16.mxu0 %v2695
        %5080 = vmatpush1.bf16.msra.mxu0 %v2694
        %5081 = vmatprep.subr.bf16.mxu0 %v2705
        %5082 = vmatpush1.bf16.msra.mxu0 %v2704
        %5083 = vmatprep.subr.bf16.mxu0 %v2715
        %5084 = vmatpush1.bf16.msra.mxu0 %v2714
        %5085 = vmatprep.subr.bf16.mxu0 %v2725
        %5086 = vmatpush1.bf16.msra.mxu0 %v2724
        %5087 = vmatprep.subr.bf16.mxu0 %v2735
        %5088 = vmatpush1.bf16.msra.mxu0 %v2734
        %5089 = vmatprep.subr.bf16.mxu0 %v2745
        %5090 = vmatpush1.bf16.msra.mxu0 %v2744
        %5091 = vmatprep.subr.bf16.mxu0 %v2755
        %5092 = vmatpush1.bf16.msra.mxu0 %v2754
        %5093 = vmatprep.subr.bf16.mxu0 %v2765
        %5094 = vmatpush1.bf16.msra.mxu0 %v2764
        %5095 = vmatprep.subr.bf16.mxu0 %v2775
        %5096 = vmatpush1.bf16.msra.mxu0 %v2774
        %5097 = vmatprep.subr.bf16.mxu0 %v2785
        %5098 = vmatpush1.bf16.msra.mxu0 %v2784
        %5099 = vmatprep.subr.bf16.mxu0 %v2795
        %5100 = vmatpush1.bf16.msra.mxu0 %v2794
        %5101 = vmatprep.subr.bf16.mxu0 %v2805
        %5102 = vmatpush1.bf16.msra.mxu0 %v2804
        %5103 = vmatprep.subr.bf16.mxu0 %v2815
        %5104 = vmatpush1.bf16.msra.mxu0 %v2814
        %5105 = vmatprep.mubr.bf16.mxu0 %v5064
        %5106 = vmatmul.mubr.bf16.gmra.mrb[0].mxu0 %v5063
        %v5107 = vpop.f32.mrb[0].mxu0
        %v5108 = vadd.f32 0.0, %v5107
        %v5109 = vpop.f32.mrb[0].mxu0
        %v5110 = vadd.f32 0.0, %v5109
        %v5111 = vpop.f32.mrb[0].mxu0
        %v5112 = vadd.f32 0.0, %v5111
        %v5113 = vpop.f32.mrb[0].mxu0
        %v5114 = vadd.f32 0.0, %v5113
        %5115 = vdwg.mxu0
        %5116 = vmatprep.subr.bf16.mxu0 %v2825
        %5117 = vmatpush1.bf16.msra.mxu0 %v2824
        %5118 = vmatprep.subr.bf16.mxu0 %v2835
        %5119 = vmatpush1.bf16.msra.mxu0 %v2834
        %5120 = vmatprep.subr.bf16.mxu0 %v2845
        %5121 = vmatpush1.bf16.msra.mxu0 %v2844
        %5122 = vmatprep.subr.bf16.mxu0 %v2855
        %5123 = vmatpush1.bf16.msra.mxu0 %v2854
        %5124 = vmatprep.subr.bf16.mxu0 %v2865
        %5125 = vmatpush1.bf16.msra.mxu0 %v2864
        %5126 = vmatprep.subr.bf16.mxu0 %v2875
        %5127 = vmatpush1.bf16.msra.mxu0 %v2874
        %5128 = vmatprep.subr.bf16.mxu0 %v2885
        %5129 = vmatpush1.bf16.msra.mxu0 %v2884
        %5130 = vmatprep.subr.bf16.mxu0 %v2895
        %5131 = vmatpush1.bf16.msra.mxu0 %v2894
        %5132 = vmatprep.subr.bf16.mxu0 %v2905
        %5133 = vmatpush1.bf16.msra.mxu0 %v2904
        %5134 = vmatprep.subr.bf16.mxu0 %v2915
        %5135 = vmatpush1.bf16.msra.mxu0 %v2914
        %5136 = vmatprep.subr.bf16.mxu0 %v2925
        %5137 = vmatpush1.bf16.msra.mxu0 %v2924
        %5138 = vmatprep.subr.bf16.mxu0 %v2935
        %5139 = vmatpush1.bf16.msra.mxu0 %v2934
        %5140 = vmatprep.subr.bf16.mxu0 %v2945
        %5141 = vmatpush1.bf16.msra.mxu0 %v2944
        %5142 = vmatprep.subr.bf16.mxu0 %v2955
        %5143 = vmatpush1.bf16.msra.mxu0 %v2954
        %5144 = vmatprep.subr.bf16.mxu0 %v2965
        %5145 = vmatpush1.bf16.msra.mxu0 %v2964
        %5146 = vmatprep.subr.bf16.mxu0 %v2975
        %5147 = vmatpush1.bf16.msra.mxu0 %v2974
        %5148 = vmatprep.mubr.bf16.mxu0 %v5066
        %5149 = vmatmul.mubr.bf16.gmra.mrb[0].mxu0 %v5065
        %v5150 = vpop.f32.mrb[0].mxu0
        %v5151 = vadd.f32 %v5108, %v5150
        %v5152 = vpop.f32.mrb[0].mxu0
        %v5153 = vadd.f32 %v5110, %v5152
        %v5154 = vpop.f32.mrb[0].mxu0
        %v5155 = vadd.f32 %v5112, %v5154
        %v5156 = vpop.f32.mrb[0].mxu0
        %v5157 = vadd.f32 %v5114, %v5156
        %5158 = vdwg.mxu0
        %5159 = vmatprep.subr.bf16.mxu0 %v2985
        %5160 = vmatpush1.bf16.msra.mxu0 %v2984
        %5161 = vmatprep.subr.bf16.mxu0 %v2995
        %5162 = vmatpush1.bf16.msra.mxu0 %v2994
        %5163 = vmatprep.subr.bf16.mxu0 %v3005
        %5164 = vmatpush1.bf16.msra.mxu0 %v3004
        %5165 = vmatprep.subr.bf16.mxu0 %v3015
        %5166 = vmatpush1.bf16.msra.mxu0 %v3014
        %5167 = vmatprep.subr.bf16.mxu0 %v3025
        %5168 = vmatpush1.bf16.msra.mxu0 %v3024
        %5169 = vmatprep.subr.bf16.mxu0 %v3035
        %5170 = vmatpush1.bf16.msra.mxu0 %v3034
        %5171 = vmatprep.subr.bf16.mxu0 %v3045
        %5172 = vmatpush1.bf16.msra.mxu0 %v3044
        %5173 = vmatprep.subr.bf16.mxu0 %v3055
        %5174 = vmatpush1.bf16.msra.mxu0 %v3054
        %5175 = vmatprep.subr.bf16.mxu0 %v3065
        %5176 = vmatpush1.bf16.msra.mxu0 %v3064
        %5177 = vmatprep.subr.bf16.mxu0 %v3075
        %5178 = vmatpush1.bf16.msra.mxu0 %v3074
        %5179 = vmatprep.subr.bf16.mxu0 %v3085
        %5180 = vmatpush1.bf16.msra.mxu0 %v3084
        %5181 = vmatprep.subr.bf16.mxu0 %v3095
        %5182 = vmatpush1.bf16.msra.mxu0 %v3094
        %5183 = vmatprep.subr.bf16.mxu0 %v3105
        %5184 = vmatpush1.bf16.msra.mxu0 %v3104
        %5185 = vmatprep.subr.bf16.mxu0 %v3115
        %5186 = vmatpush1.bf16.msra.mxu0 %v3114
        %5187 = vmatprep.subr.bf16.mxu0 %v3125
        %5188 = vmatpush1.bf16.msra.mxu0 %v3124
        %5189 = vmatprep.subr.bf16.mxu0 %v3135
        %5190 = vmatpush1.bf16.msra.mxu0 %v3134
        %5191 = vmatprep.mubr.bf16.mxu0 %v5068
        %5192 = vmatmul.mubr.bf16.gmra.mrb[0].mxu0 %v5067
        %v5193 = vpop.f32.mrb[0].mxu0
        %v5194 = vadd.f32 %v5151, %v5193
        %v5195 = vpop.f32.mrb[0].mxu0
        %v5196 = vadd.f32 %v5153, %v5195
        %v5197 = vpop.f32.mrb[0].mxu0
        %v5198 = vadd.f32 %v5155, %v5197
        %v5199 = vpop.f32.mrb[0].mxu0
        %v5200 = vadd.f32 %v5157, %v5199
        %5201 = vdwg.mxu0
        %5202 = vmatprep.subr.bf16.mxu0 %v3145
        %5203 = vmatpush1.bf16.msra.mxu0 %v3144
        %5204 = vmatprep.subr.bf16.mxu0 %v3155
        %5205 = vmatpush1.bf16.msra.mxu0 %v3154
        %5206 = vmatprep.subr.bf16.mxu0 %v3165
        %5207 = vmatpush1.bf16.msra.mxu0 %v3164
        %5208 = vmatprep.subr.bf16.mxu0 %v3175
        %5209 = vmatpush1.bf16.msra.mxu0 %v3174
        %5210 = vmatprep.subr.bf16.mxu0 %v3185
        %5211 = vmatpush1.bf16.msra.mxu0 %v3184
        %5212 = vmatprep.subr.bf16.mxu0 %v3195
        %5213 = vmatpush1.bf16.msra.mxu0 %v3194
        %5214 = vmatprep.subr.bf16.mxu0 %v3205
        %5215 = vmatpush1.bf16.msra.mxu0 %v3204
        %5216 = vmatprep.subr.bf16.mxu0 %v3215
        %5217 = vmatpush1.bf16.msra.mxu0 %v3214
        %5218 = vmatprep.subr.bf16.mxu0 %v3225
        %5219 = vmatpush1.bf16.msra.mxu0 %v3224
        %5220 = vmatprep.subr.bf16.mxu0 %v3235
        %5221 = vmatpush1.bf16.msra.mxu0 %v3234
        %5222 = vmatprep.subr.bf16.mxu0 %v3245
        %5223 = vmatpush1.bf16.msra.mxu0 %v3244
        %5224 = vmatprep.subr.bf16.mxu0 %v3255
        %5225 = vmatpush1.bf16.msra.mxu0 %v3254
        %5226 = vmatprep.subr.bf16.mxu0 %v3265
        %5227 = vmatpush1.bf16.msra.mxu0 %v3264
        %5228 = vmatprep.subr.bf16.mxu0 %v3275
        %5229 = vmatpush1.bf16.msra.mxu0 %v3274
        %5230 = vmatprep.subr.bf16.mxu0 %v3285
        %5231 = vmatpush1.bf16.msra.mxu0 %v3284
        %5232 = vmatprep.subr.bf16.mxu0 %v3295
        %5233 = vmatpush1.bf16.msra.mxu0 %v3294
        %5234 = vmatprep.mubr.bf16.mxu0 %v5070
        %5235 = vmatmul.mubr.bf16.gmra.mrb[0].mxu0 %v5069
        %v5236 = vpop.f32.mrb[0].mxu0
        %v5237 = vadd.f32 %v5194, %v5236
        %v5238 = vpop.f32.mrb[0].mxu0
        %v5239 = vadd.f32 %v5196, %v5238
        %v5240 = vpop.f32.mrb[0].mxu0
        %v5241 = vadd.f32 %v5198, %v5240
        %v5242 = vpop.f32.mrb[0].mxu0
        %v5243 = vadd.f32 %v5200, %v5242
        %5244 = vdwg.mxu0
        %5245 = vmatprep.subr.bf16.mxu0 %v3305
        %5246 = vmatpush1.bf16.msra.mxu0 %v3304
        %5247 = vmatprep.subr.bf16.mxu0 %v3315
        %5248 = vmatpush1.bf16.msra.mxu0 %v3314
        %5249 = vmatprep.subr.bf16.mxu0 %v3325
        %5250 = vmatpush1.bf16.msra.mxu0 %v3324
        %5251 = vmatprep.subr.bf16.mxu0 %v3335
        %5252 = vmatpush1.bf16.msra.mxu0 %v3334
        %5253 = vmatprep.subr.bf16.mxu0 %v3345
        %5254 = vmatpush1.bf16.msra.mxu0 %v3344
        %5255 = vmatprep.subr.bf16.mxu0 %v3355
        %5256 = vmatpush1.bf16.msra.mxu0 %v3354
        %5257 = vmatprep.subr.bf16.mxu0 %v3365
        %5258 = vmatpush1.bf16.msra.mxu0 %v3364
        %5259 = vmatprep.subr.bf16.mxu0 %v3375
        %5260 = vmatpush1.bf16.msra.mxu0 %v3374
        %5261 = vmatprep.subr.bf16.mxu0 %v3385
        %5262 = vmatpush1.bf16.msra.mxu0 %v3384
        %5263 = vmatprep.subr.bf16.mxu0 %v3395
        %5264 = vmatpush1.bf16.msra.mxu0 %v3394
        %5265 = vmatprep.subr.bf16.mxu0 %v3405
        %5266 = vmatpush1.bf16.msra.mxu0 %v3404
        %5267 = vmatprep.subr.bf16.mxu0 %v3415
        %5268 = vmatpush1.bf16.msra.mxu0 %v3414
        %5269 = vmatprep.subr.bf16.mxu0 %v3425
        %5270 = vmatpush1.bf16.msra.mxu0 %v3424
        %5271 = vmatprep.subr.bf16.mxu0 %v3435
        %5272 = vmatpush1.bf16.msra.mxu0 %v3434
        %5273 = vmatprep.subr.bf16.mxu0 %v3445
        %5274 = vmatpush1.bf16.msra.mxu0 %v3444
        %5275 = vmatprep.subr.bf16.mxu0 %v3455
        %5276 = vmatpush1.bf16.msra.mxu0 %v3454
        %5277 = vmatprep.mubr.bf16.mxu0 %v5072
        %5278 = vmatmul.mubr.bf16.gmra.mrb[0].mxu0 %v5071
        %v5279 = vpop.f32.mrb[0].mxu0
        %v5280 = vadd.f32 %v5237, %v5279
        %v5281 = vpop.f32.mrb[0].mxu0
        %v5282 = vadd.f32 %v5239, %v5281
        %v5283 = vpop.f32.mrb[0].mxu0
        %v5284 = vadd.f32 %v5241, %v5283
        %v5285 = vpop.f32.mrb[0].mxu0
        %v5286 = vadd.f32 %v5243, %v5285
        %5287 = vdwg.mxu0
        %5288 = vmatprep.subr.bf16.mxu0 %v2667
        %5289 = vmatpush1.bf16.msra.mxu0 %v2666
        %5290 = vmatprep.subr.bf16.mxu0 %v2677
        %5291 = vmatpush1.bf16.msra.mxu0 %v2676
        %5292 = vmatprep.subr.bf16.mxu0 %v2687
        %5293 = vmatpush1.bf16.msra.mxu0 %v2686
        %5294 = vmatprep.subr.bf16.mxu0 %v2697
        %5295 = vmatpush1.bf16.msra.mxu0 %v2696
        %5296 = vmatprep.subr.bf16.mxu0 %v2707
        %5297 = vmatpush1.bf16.msra.mxu0 %v2706
        %5298 = vmatprep.subr.bf16.mxu0 %v2717
        %5299 = vmatpush1.bf16.msra.mxu0 %v2716
        %5300 = vmatprep.subr.bf16.mxu0 %v2727
        %5301 = vmatpush1.bf16.msra.mxu0 %v2726
        %5302 = vmatprep.subr.bf16.mxu0 %v2737
        %5303 = vmatpush1.bf16.msra.mxu0 %v2736
        %5304 = vmatprep.subr.bf16.mxu0 %v2747
        %5305 = vmatpush1.bf16.msra.mxu0 %v2746
        %5306 = vmatprep.subr.bf16.mxu0 %v2757
        %5307 = vmatpush1.bf16.msra.mxu0 %v2756
        %5308 = vmatprep.subr.bf16.mxu0 %v2767
        %5309 = vmatpush1.bf16.msra.mxu0 %v2766
        %5310 = vmatprep.subr.bf16.mxu0 %v2777
        %5311 = vmatpush1.bf16.msra.mxu0 %v2776
        %5312 = vmatprep.subr.bf16.mxu0 %v2787
        %5313 = vmatpush1.bf16.msra.mxu0 %v2786
        %5314 = vmatprep.subr.bf16.mxu0 %v2797
        %5315 = vmatpush1.bf16.msra.mxu0 %v2796
        %5316 = vmatprep.subr.bf16.mxu0 %v2807
        %5317 = vmatpush1.bf16.msra.mxu0 %v2806
        %5318 = vmatprep.subr.bf16.mxu0 %v2817
        %5319 = vmatpush1.bf16.msra.mxu0 %v2816
        %5320 = vmatprep.mubr.bf16.mxu0 %v5064
        %5321 = vmatmul.mubr.bf16.gmra.mrb[0].mxu0 %v5063
        %v5322 = vpop.f32.mrb[0].mxu0
        %v5323 = vadd.f32 0.0, %v5322
        %v5324 = vpop.f32.mrb[0].mxu0
        %v5325 = vadd.f32 0.0, %v5324
        %v5326 = vpop.f32.mrb[0].mxu0
        %v5327 = vadd.f32 0.0, %v5326
        %v5328 = vpop.f32.mrb[0].mxu0
        %v5329 = vadd.f32 0.0, %v5328
        %5330 = vdwg.mxu0
        %5331 = vmatprep.subr.bf16.mxu0 %v2827
        %5332 = vmatpush1.bf16.msra.mxu0 %v2826
        %5333 = vmatprep.subr.bf16.mxu0 %v2837
        %5334 = vmatpush1.bf16.msra.mxu0 %v2836
        %5335 = vmatprep.subr.bf16.mxu0 %v2847
        %5336 = vmatpush1.bf16.msra.mxu0 %v2846
        %5337 = vmatprep.subr.bf16.mxu0 %v2857
        %5338 = vmatpush1.bf16.msra.mxu0 %v2856
        %5339 = vmatprep.subr.bf16.mxu0 %v2867
        %5340 = vmatpush1.bf16.msra.mxu0 %v2866
        %5341 = vmatprep.subr.bf16.mxu0 %v2877
        %5342 = vmatpush1.bf16.msra.mxu0 %v2876
        %5343 = vmatprep.subr.bf16.mxu0 %v2887
        %5344 = vmatpush1.bf16.msra.mxu0 %v2886
        %5345 = vmatprep.subr.bf16.mxu0 %v2897
        %5346 = vmatpush1.bf16.msra.mxu0 %v2896
        %5347 = vmatprep.subr.bf16.mxu0 %v2907
        %5348 = vmatpush1.bf16.msra.mxu0 %v2906
        %5349 = vmatprep.subr.bf16.mxu0 %v2917
        %5350 = vmatpush1.bf16.msra.mxu0 %v2916
        %5351 = vmatprep.subr.bf16.mxu0 %v2927
        %5352 = vmatpush1.bf16.msra.mxu0 %v2926
        %5353 = vmatprep.subr.bf16.mxu0 %v2937
        %5354 = vmatpush1.bf16.msra.mxu0 %v2936
        %5355 = vmatprep.subr.bf16.mxu0 %v2947
        %5356 = vmatpush1.bf16.msra.mxu0 %v2946
        %5357 = vmatprep.subr.bf16.mxu0 %v2957
        %5358 = vmatpush1.bf16.msra.mxu0 %v2956
        %5359 = vmatprep.subr.bf16.mxu0 %v2967
        %5360 = vmatpush1.bf16.msra.mxu0 %v2966
        %5361 = vmatprep.subr.bf16.mxu0 %v2977
        %5362 = vmatpush1.bf16.msra.mxu0 %v2976
        %5363 = vmatprep.mubr.bf16.mxu0 %v5066
        %5364 = vmatmul.mubr.bf16.gmra.mrb[0].mxu0 %v5065
        %v5365 = vpop.f32.mrb[0].mxu0
        %v5366 = vadd.f32 %v5323, %v5365
        %v5367 = vpop.f32.mrb[0].mxu0
        %v5368 = vadd.f32 %v5325, %v5367
        %v5369 = vpop.f32.mrb[0].mxu0
        %v5370 = vadd.f32 %v5327, %v5369
        %v5371 = vpop.f32.mrb[0].mxu0
        %v5372 = vadd.f32 %v5329, %v5371
        %5373 = vdwg.mxu0
        %5374 = vmatprep.subr.bf16.mxu0 %v2987
        %5375 = vmatpush1.bf16.msra.mxu0 %v2986
        %5376 = vmatprep.subr.bf16.mxu0 %v2997
        %5377 = vmatpush1.bf16.msra.mxu0 %v2996
        %5378 = vmatprep.subr.bf16.mxu0 %v3007
        %5379 = vmatpush1.bf16.msra.mxu0 %v3006
        %5380 = vmatprep.subr.bf16.mxu0 %v3017
        %5381 = vmatpush1.bf16.msra.mxu0 %v3016
        %5382 = vmatprep.subr.bf16.mxu0 %v3027
        %5383 = vmatpush1.bf16.msra.mxu0 %v3026
        %5384 = vmatprep.subr.bf16.mxu0 %v3037
        %5385 = vmatpush1.bf16.msra.mxu0 %v3036
        %5386 = vmatprep.subr.bf16.mxu0 %v3047
        %5387 = vmatpush1.bf16.msra.mxu0 %v3046
        %5388 = vmatprep.subr.bf16.mxu0 %v3057
        %5389 = vmatpush1.bf16.msra.mxu0 %v3056
        %5390 = vmatprep.subr.bf16.mxu0 %v3067
        %5391 = vmatpush1.bf16.msra.mxu0 %v3066
        %5392 = vmatprep.subr.bf16.mxu0 %v3077
        %5393 = vmatpush1.bf16.msra.mxu0 %v3076
        %5394 = vmatprep.subr.bf16.mxu0 %v3087
        %5395 = vmatpush1.bf16.msra.mxu0 %v3086
        %5396 = vmatprep.subr.bf16.mxu0 %v3097
        %5397 = vmatpush1.bf16.msra.mxu0 %v3096
        %5398 = vmatprep.subr.bf16.mxu0 %v3107
        %5399 = vmatpush1.bf16.msra.mxu0 %v3106
        %5400 = vmatprep.subr.bf16.mxu0 %v3117
        %5401 = vmatpush1.bf16.msra.mxu0 %v3116
        %5402 = vmatprep.subr.bf16.mxu0 %v3127
        %5403 = vmatpush1.bf16.msra.mxu0 %v3126
        %5404 = vmatprep.subr.bf16.mxu0 %v3137
        %5405 = vmatpush1.bf16.msra.mxu0 %v3136
        %5406 = vmatprep.mubr.bf16.mxu0 %v5068
        %5407 = vmatmul.mubr.bf16.gmra.mrb[0].mxu0 %v5067
        %v5408 = vpop.f32.mrb[0].mxu0
        %v5409 = vadd.f32 %v5366, %v5408
        %v5410 = vpop.f32.mrb[0].mxu0
        %v5411 = vadd.f32 %v5368, %v5410
        %v5412 = vpop.f32.mrb[0].mxu0
        %v5413 = vadd.f32 %v5370, %v5412
        %v5414 = vpop.f32.mrb[0].mxu0
        %v5415 = vadd.f32 %v5372, %v5414
        %5416 = vdwg.mxu0
        %5417 = vmatprep.subr.bf16.mxu0 %v3147
        %5418 = vmatpush1.bf16.msra.mxu0 %v3146
        %5419 = vmatprep.subr.bf16.mxu0 %v3157
        %5420 = vmatpush1.bf16.msra.mxu0 %v3156
        %5421 = vmatprep.subr.bf16.mxu0 %v3167
        %5422 = vmatpush1.bf16.msra.mxu0 %v3166
        %5423 = vmatprep.subr.bf16.mxu0 %v3177
        %5424 = vmatpush1.bf16.msra.mxu0 %v3176
        %5425 = vmatprep.subr.bf16.mxu0 %v3187
        %5426 = vmatpush1.bf16.msra.mxu0 %v3186
        %5427 = vmatprep.subr.bf16.mxu0 %v3197
        %5428 = vmatpush1.bf16.msra.mxu0 %v3196
        %5429 = vmatprep.subr.bf16.mxu0 %v3207
        %5430 = vmatpush1.bf16.msra.mxu0 %v3206
        %5431 = vmatprep.subr.bf16.mxu0 %v3217
        %5432 = vmatpush1.bf16.msra.mxu0 %v3216
        %5433 = vmatprep.subr.bf16.mxu0 %v3227
        %5434 = vmatpush1.bf16.msra.mxu0 %v3226
        %5435 = vmatprep.subr.bf16.mxu0 %v3237
        %5436 = vmatpush1.bf16.msra.mxu0 %v3236
        %5437 = vmatprep.subr.bf16.mxu0 %v3247
        %5438 = vmatpush1.bf16.msra.mxu0 %v3246
        %5439 = vmatprep.subr.bf16.mxu0 %v3257
        %5440 = vmatpush1.bf16.msra.mxu0 %v3256
        %5441 = vmatprep.subr.bf16.mxu0 %v3267
        %5442 = vmatpush1.bf16.msra.mxu0 %v3266
        %5443 = vmatprep.subr.bf16.mxu0 %v3277
        %5444 = vmatpush1.bf16.msra.mxu0 %v3276
        %5445 = vmatprep.subr.bf16.mxu0 %v3287
        %5446 = vmatpush1.bf16.msra.mxu0 %v3286
        %5447 = vmatprep.subr.bf16.mxu0 %v3297
        %5448 = vmatpush1.bf16.msra.mxu0 %v3296
        %5449 = vmatprep.mubr.bf16.mxu0 %v5070
        %5450 = vmatmul.mubr.bf16.gmra.mrb[0].mxu0 %v5069
        %v5451 = vpop.f32.mrb[0].mxu0
        %v5452 = vadd.f32 %v5409, %v5451
        %v5453 = vpop.f32.mrb[0].mxu0
        %v5454 = vadd.f32 %v5411, %v5453
        %v5455 = vpop.f32.mrb[0].mxu0
        %v5456 = vadd.f32 %v5413, %v5455
        %v5457 = vpop.f32.mrb[0].mxu0
        %v5458 = vadd.f32 %v5415, %v5457
        %5459 = vdwg.mxu0
        %5460 = vmatprep.subr.bf16.mxu0 %v3307
        %5461 = vmatpush1.bf16.msra.mxu0 %v3306
        %5462 = vmatprep.subr.bf16.mxu0 %v3317
        %5463 = vmatpush1.bf16.msra.mxu0 %v3316
        %5464 = vmatprep.subr.bf16.mxu0 %v3327
        %5465 = vmatpush1.bf16.msra.mxu0 %v3326
        %5466 = vmatprep.subr.bf16.mxu0 %v3337
        %5467 = vmatpush1.bf16.msra.mxu0 %v3336
        %5468 = vmatprep.subr.bf16.mxu0 %v3347
        %5469 = vmatpush1.bf16.msra.mxu0 %v3346
        %5470 = vmatprep.subr.bf16.mxu0 %v3357
        %5471 = vmatpush1.bf16.msra.mxu0 %v3356
        %5472 = vmatprep.subr.bf16.mxu0 %v3367
        %5473 = vmatpush1.bf16.msra.mxu0 %v3366
        %5474 = vmatprep.subr.bf16.mxu0 %v3377
        %5475 = vmatpush1.bf16.msra.mxu0 %v3376
        %5476 = vmatprep.subr.bf16.mxu0 %v3387
        %5477 = vmatpush1.bf16.msra.mxu0 %v3386
        %5478 = vmatprep.subr.bf16.mxu0 %v3397
        %5479 = vmatpush1.bf16.msra.mxu0 %v3396
        %5480 = vmatprep.subr.bf16.mxu0 %v3407
        %5481 = vmatpush1.bf16.msra.mxu0 %v3406
        %5482 = vmatprep.subr.bf16.mxu0 %v3417
        %5483 = vmatpush1.bf16.msra.mxu0 %v3416
        %5484 = vmatprep.subr.bf16.mxu0 %v3427
        %5485 = vmatpush1.bf16.msra.mxu0 %v3426
        %5486 = vmatprep.subr.bf16.mxu0 %v3437
        %5487 = vmatpush1.bf16.msra.mxu0 %v3436
        %5488 = vmatprep.subr.bf16.mxu0 %v3447
        %5489 = vmatpush1.bf16.msra.mxu0 %v3446
        %5490 = vmatprep.subr.bf16.mxu0 %v3457
        %5491 = vmatpush1.bf16.msra.mxu0 %v3456
        %5492 = vmatprep.mubr.bf16.mxu0 %v5072
        %5493 = vmatmul.mubr.bf16.gmra.mrb[0].mxu0 %v5071
        %v5494 = vpop.f32.mrb[0].mxu0
        %v5495 = vadd.f32 %v5452, %v5494
        %v5496 = vpop.f32.mrb[0].mxu0
        %v5497 = vadd.f32 %v5454, %v5496
        %v5498 = vpop.f32.mrb[0].mxu0
        %v5499 = vadd.f32 %v5456, %v5498
        %v5500 = vpop.f32.mrb[0].mxu0
        %v5501 = vadd.f32 %v5458, %v5500
        %5502 = vdwg.mxu0
        %5503 = vmatprep.subr.bf16.mxu0 %v2669
        %5504 = vmatpush1.bf16.msra.mxu0 %v2668
        %5505 = vmatprep.subr.bf16.mxu0 %v2679
        %5506 = vmatpush1.bf16.msra.mxu0 %v2678
        %5507 = vmatprep.subr.bf16.mxu0 %v2689
        %5508 = vmatpush1.bf16.msra.mxu0 %v2688
        %5509 = vmatprep.subr.bf16.mxu0 %v2699
        %5510 = vmatpush1.bf16.msra.mxu0 %v2698
        %5511 = vmatprep.subr.bf16.mxu0 %v2709
        %5512 = vmatpush1.bf16.msra.mxu0 %v2708
        %5513 = vmatprep.subr.bf16.mxu0 %v2719
        %5514 = vmatpush1.bf16.msra.mxu0 %v2718
        %5515 = vmatprep.subr.bf16.mxu0 %v2729
        %5516 = vmatpush1.bf16.msra.mxu0 %v2728
        %5517 = vmatprep.subr.bf16.mxu0 %v2739
        %5518 = vmatpush1.bf16.msra.mxu0 %v2738
        %5519 = vmatprep.subr.bf16.mxu0 %v2749
        %5520 = vmatpush1.bf16.msra.mxu0 %v2748
        %5521 = vmatprep.subr.bf16.mxu0 %v2759
        %5522 = vmatpush1.bf16.msra.mxu0 %v2758
        %5523 = vmatprep.subr.bf16.mxu0 %v2769
        %5524 = vmatpush1.bf16.msra.mxu0 %v2768
        %5525 = vmatprep.subr.bf16.mxu0 %v2779
        %5526 = vmatpush1.bf16.msra.mxu0 %v2778
        %5527 = vmatprep.subr.bf16.mxu0 %v2789
        %5528 = vmatpush1.bf16.msra.mxu0 %v2788
        %5529 = vmatprep.subr.bf16.mxu0 %v2799
        %5530 = vmatpush1.bf16.msra.mxu0 %v2798
        %5531 = vmatprep.subr.bf16.mxu0 %v2809
        %5532 = vmatpush1.bf16.msra.mxu0 %v2808
        %5533 = vmatprep.subr.bf16.mxu0 %v2819
        %5534 = vmatpush1.bf16.msra.mxu0 %v2818
        %5535 = vmatprep.mubr.bf16.mxu0 %v5064
        %5536 = vmatmul.mubr.bf16.gmra.mrb[0].mxu0 %v5063
        %v5537 = vpop.f32.mrb[0].mxu0
        %v5538 = vadd.f32 0.0, %v5537
        %v5539 = vpop.f32.mrb[0].mxu0
        %v5540 = vadd.f32 0.0, %v5539
        %v5541 = vpop.f32.mrb[0].mxu0
        %v5542 = vadd.f32 0.0, %v5541
        %v5543 = vpop.f32.mrb[0].mxu0
        %v5544 = vadd.f32 0.0, %v5543
        %5545 = vdwg.mxu0
        %5546 = vmatprep.subr.bf16.mxu0 %v2829
        %5547 = vmatpush1.bf16.msra.mxu0 %v2828
        %5548 = vmatprep.subr.bf16.mxu0 %v2839
        %5549 = vmatpush1.bf16.msra.mxu0 %v2838
        %5550 = vmatprep.subr.bf16.mxu0 %v2849
        %5551 = vmatpush1.bf16.msra.mxu0 %v2848
        %5552 = vmatprep.subr.bf16.mxu0 %v2859
        %5553 = vmatpush1.bf16.msra.mxu0 %v2858
        %5554 = vmatprep.subr.bf16.mxu0 %v2869
        %5555 = vmatpush1.bf16.msra.mxu0 %v2868
        %5556 = vmatprep.subr.bf16.mxu0 %v2879
        %5557 = vmatpush1.bf16.msra.mxu0 %v2878
        %5558 = vmatprep.subr.bf16.mxu0 %v2889
        %5559 = vmatpush1.bf16.msra.mxu0 %v2888
        %5560 = vmatprep.subr.bf16.mxu0 %v2899
        %5561 = vmatpush1.bf16.msra.mxu0 %v2898
        %5562 = vmatprep.subr.bf16.mxu0 %v2909
        %5563 = vmatpush1.bf16.msra.mxu0 %v2908
        %5564 = vmatprep.subr.bf16.mxu0 %v2919
        %5565 = vmatpush1.bf16.msra.mxu0 %v2918
        %5566 = vmatprep.subr.bf16.mxu0 %v2929
        %5567 = vmatpush1.bf16.msra.mxu0 %v2928
        %5568 = vmatprep.subr.bf16.mxu0 %v2939
        %5569 = vmatpush1.bf16.msra.mxu0 %v2938
        %5570 = vmatprep.subr.bf16.mxu0 %v2949
        %5571 = vmatpush1.bf16.msra.mxu0 %v2948
        %5572 = vmatprep.subr.bf16.mxu0 %v2959
        %5573 = vmatpush1.bf16.msra.mxu0 %v2958
        %5574 = vmatprep.subr.bf16.mxu0 %v2969
        %5575 = vmatpush1.bf16.msra.mxu0 %v2968
        %5576 = vmatprep.subr.bf16.mxu0 %v2979
        %5577 = vmatpush1.bf16.msra.mxu0 %v2978
        %5578 = vmatprep.mubr.bf16.mxu0 %v5066
        %5579 = vmatmul.mubr.bf16.gmra.mrb[0].mxu0 %v5065
        %v5580 = vpop.f32.mrb[0].mxu0
        %v5581 = vadd.f32 %v5538, %v5580
        %v5582 = vpop.f32.mrb[0].mxu0
        %v5583 = vadd.f32 %v5540, %v5582
        %v5584 = vpop.f32.mrb[0].mxu0
        %v5585 = vadd.f32 %v5542, %v5584
        %v5586 = vpop.f32.mrb[0].mxu0
        %v5587 = vadd.f32 %v5544, %v5586
        %5588 = vdwg.mxu0
        %5589 = vmatprep.subr.bf16.mxu0 %v2989
        %5590 = vmatpush1.bf16.msra.mxu0 %v2988
        %5591 = vmatprep.subr.bf16.mxu0 %v2999
        %5592 = vmatpush1.bf16.msra.mxu0 %v2998
        %5593 = vmatprep.subr.bf16.mxu0 %v3009
        %5594 = vmatpush1.bf16.msra.mxu0 %v3008
        %5595 = vmatprep.subr.bf16.mxu0 %v3019
        %5596 = vmatpush1.bf16.msra.mxu0 %v3018
        %5597 = vmatprep.subr.bf16.mxu0 %v3029
        %5598 = vmatpush1.bf16.msra.mxu0 %v3028
        %5599 = vmatprep.subr.bf16.mxu0 %v3039
        %5600 = vmatpush1.bf16.msra.mxu0 %v3038
        %5601 = vmatprep.subr.bf16.mxu0 %v3049
        %5602 = vmatpush1.bf16.msra.mxu0 %v3048
        %5603 = vmatprep.subr.bf16.mxu0 %v3059
        %5604 = vmatpush1.bf16.msra.mxu0 %v3058
        %5605 = vmatprep.subr.bf16.mxu0 %v3069
        %5606 = vmatpush1.bf16.msra.mxu0 %v3068
        %5607 = vmatprep.subr.bf16.mxu0 %v3079
        %5608 = vmatpush1.bf16.msra.mxu0 %v3078
        %5609 = vmatprep.subr.bf16.mxu0 %v3089
        %5610 = vmatpush1.bf16.msra.mxu0 %v3088
        %5611 = vmatprep.subr.bf16.mxu0 %v3099
        %5612 = vmatpush1.bf16.msra.mxu0 %v3098
        %5613 = vmatprep.subr.bf16.mxu0 %v3109
        %5614 = vmatpush1.bf16.msra.mxu0 %v3108
        %5615 = vmatprep.subr.bf16.mxu0 %v3119
        %5616 = vmatpush1.bf16.msra.mxu0 %v3118
        %5617 = vmatprep.subr.bf16.mxu0 %v3129
        %5618 = vmatpush1.bf16.msra.mxu0 %v3128
        %5619 = vmatprep.subr.bf16.mxu0 %v3139
        %5620 = vmatpush1.bf16.msra.mxu0 %v3138
        %5621 = vmatprep.mubr.bf16.mxu0 %v5068
        %5622 = vmatmul.mubr.bf16.gmra.mrb[0].mxu0 %v5067
        %v5623 = vpop.f32.mrb[0].mxu0
        %v5624 = vadd.f32 %v5581, %v5623
        %v5625 = vpop.f32.mrb[0].mxu0
        %v5626 = vadd.f32 %v5583, %v5625
        %v5627 = vpop.f32.mrb[0].mxu0
        %v5628 = vadd.f32 %v5585, %v5627
        %v5629 = vpop.f32.mrb[0].mxu0
        %v5630 = vadd.f32 %v5587, %v5629
        %5631 = vdwg.mxu0
        %5632 = vmatprep.subr.bf16.mxu0 %v3149
        %5633 = vmatpush1.bf16.msra.mxu0 %v3148
        %5634 = vmatprep.subr.bf16.mxu0 %v3159
        %5635 = vmatpush1.bf16.msra.mxu0 %v3158
        %5636 = vmatprep.subr.bf16.mxu0 %v3169
        %5637 = vmatpush1.bf16.msra.mxu0 %v3168
        %5638 = vmatprep.subr.bf16.mxu0 %v3179
        %5639 = vmatpush1.bf16.msra.mxu0 %v3178
        %5640 = vmatprep.subr.bf16.mxu0 %v3189
        %5641 = vmatpush1.bf16.msra.mxu0 %v3188
        %5642 = vmatprep.subr.bf16.mxu0 %v3199
        %5643 = vmatpush1.bf16.msra.mxu0 %v3198
        %5644 = vmatprep.subr.bf16.mxu0 %v3209
        %5645 = vmatpush1.bf16.msra.mxu0 %v3208
        %5646 = vmatprep.subr.bf16.mxu0 %v3219
        %5647 = vmatpush1.bf16.msra.mxu0 %v3218
        %5648 = vmatprep.subr.bf16.mxu0 %v3229
        %5649 = vmatpush1.bf16.msra.mxu0 %v3228
        %5650 = vmatprep.subr.bf16.mxu0 %v3239
        %5651 = vmatpush1.bf16.msra.mxu0 %v3238
        %5652 = vmatprep.subr.bf16.mxu0 %v3249
        %5653 = vmatpush1.bf16.msra.mxu0 %v3248
        %5654 = vmatprep.subr.bf16.mxu0 %v3259
        %5655 = vmatpush1.bf16.msra.mxu0 %v3258
        %5656 = vmatprep.subr.bf16.mxu0 %v3269
        %5657 = vmatpush1.bf16.msra.mxu0 %v3268
        %5658 = vmatprep.subr.bf16.mxu0 %v3279
        %5659 = vmatpush1.bf16.msra.mxu0 %v3278
        %5660 = vmatprep.subr.bf16.mxu0 %v3289
        %5661 = vmatpush1.bf16.msra.mxu0 %v3288
        %5662 = vmatprep.subr.bf16.mxu0 %v3299
        %5663 = vmatpush1.bf16.msra.mxu0 %v3298
        %5664 = vmatprep.mubr.bf16.mxu0 %v5070
        %5665 = vmatmul.mubr.bf16.gmra.mrb[0].mxu0 %v5069
        %v5666 = vpop.f32.mrb[0].mxu0
        %v5667 = vadd.f32 %v5624, %v5666
        %v5668 = vpop.f32.mrb[0].mxu0
        %v5669 = vadd.f32 %v5626, %v5668
        %v5670 = vpop.f32.mrb[0].mxu0
        %v5671 = vadd.f32 %v5628, %v5670
        %v5672 = vpop.f32.mrb[0].mxu0
        %v5673 = vadd.f32 %v5630, %v5672
        %5674 = vdwg.mxu0
        %5675 = vmatprep.subr.bf16.mxu0 %v3309
        %5676 = vmatpush1.bf16.msra.mxu0 %v3308
        %5677 = vmatprep.subr.bf16.mxu0 %v3319
        %5678 = vmatpush1.bf16.msra.mxu0 %v3318
        %5679 = vmatprep.subr.bf16.mxu0 %v3329
        %5680 = vmatpush1.bf16.msra.mxu0 %v3328
        %5681 = vmatprep.subr.bf16.mxu0 %v3339
        %5682 = vmatpush1.bf16.msra.mxu0 %v3338
        %5683 = vmatprep.subr.bf16.mxu0 %v3349
        %5684 = vmatpush1.bf16.msra.mxu0 %v3348
        %5685 = vmatprep.subr.bf16.mxu0 %v3359
        %5686 = vmatpush1.bf16.msra.mxu0 %v3358
        %5687 = vmatprep.subr.bf16.mxu0 %v3369
        %5688 = vmatpush1.bf16.msra.mxu0 %v3368
        %5689 = vmatprep.subr.bf16.mxu0 %v3379
        %5690 = vmatpush1.bf16.msra.mxu0 %v3378
        %5691 = vmatprep.subr.bf16.mxu0 %v3389
        %5692 = vmatpush1.bf16.msra.mxu0 %v3388
        %5693 = vmatprep.subr.bf16.mxu0 %v3399
        %5694 = vmatpush1.bf16.msra.mxu0 %v3398
        %5695 = vmatprep.subr.bf16.mxu0 %v3409
        %5696 = vmatpush1.bf16.msra.mxu0 %v3408
        %5697 = vmatprep.subr.bf16.mxu0 %v3419
        %5698 = vmatpush1.bf16.msra.mxu0 %v3418
        %5699 = vmatprep.subr.bf16.mxu0 %v3429
        %5700 = vmatpush1.bf16.msra.mxu0 %v3428
        %5701 = vmatprep.subr.bf16.mxu0 %v3439
        %5702 = vmatpush1.bf16.msra.mxu0 %v3438
        %5703 = vmatprep.subr.bf16.mxu0 %v3449
        %5704 = vmatpush1.bf16.msra.mxu0 %v3448
        %5705 = vmatprep.subr.bf16.mxu0 %v3459
        %5706 = vmatpush1.bf16.msra.mxu0 %v3458
        %5707 = vmatprep.mubr.bf16.mxu0 %v5072
        %5708 = vmatmul.mubr.bf16.gmra.mrb[0].mxu0 %v5071
        %v5709 = vpop.f32.mrb[0].mxu0
        %v5710 = vadd.f32 %v5667, %v5709
        %v5711 = vpop.f32.mrb[0].mxu0
        %v5712 = vadd.f32 %v5669, %v5711
        %v5713 = vpop.f32.mrb[0].mxu0
        %v5714 = vadd.f32 %v5671, %v5713
        %v5715 = vpop.f32.mrb[0].mxu0
        %v5716 = vadd.f32 %v5673, %v5715
        %5717 = vdwg.mxu0
        %5718 = vmatprep.subr.bf16.mxu0 %v2671
        %5719 = vmatpush1.bf16.msra.mxu0 %v2670
        %5720 = vmatprep.subr.bf16.mxu0 %v2681
        %5721 = vmatpush1.bf16.msra.mxu0 %v2680
        %5722 = vmatprep.subr.bf16.mxu0 %v2691
        %5723 = vmatpush1.bf16.msra.mxu0 %v2690
        %5724 = vmatprep.subr.bf16.mxu0 %v2701
        %5725 = vmatpush1.bf16.msra.mxu0 %v2700
        %5726 = vmatprep.subr.bf16.mxu0 %v2711
        %5727 = vmatpush1.bf16.msra.mxu0 %v2710
        %5728 = vmatprep.subr.bf16.mxu0 %v2721
        %5729 = vmatpush1.bf16.msra.mxu0 %v2720
        %5730 = vmatprep.subr.bf16.mxu0 %v2731
        %5731 = vmatpush1.bf16.msra.mxu0 %v2730
        %5732 = vmatprep.subr.bf16.mxu0 %v2741
        %5733 = vmatpush1.bf16.msra.mxu0 %v2740
        %5734 = vmatprep.subr.bf16.mxu0 %v2751
        %5735 = vmatpush1.bf16.msra.mxu0 %v2750
        %5736 = vmatprep.subr.bf16.mxu0 %v2761
        %5737 = vmatpush1.bf16.msra.mxu0 %v2760
        %5738 = vmatprep.subr.bf16.mxu0 %v2771
        %5739 = vmatpush1.bf16.msra.mxu0 %v2770
        %5740 = vmatprep.subr.bf16.mxu0 %v2781
        %5741 = vmatpush1.bf16.msra.mxu0 %v2780
        %5742 = vmatprep.subr.bf16.mxu0 %v2791
        %5743 = vmatpush1.bf16.msra.mxu0 %v2790
        %5744 = vmatprep.subr.bf16.mxu0 %v2801
        %5745 = vmatpush1.bf16.msra.mxu0 %v2800
        %5746 = vmatprep.subr.bf16.mxu0 %v2811
        %5747 = vmatpush1.bf16.msra.mxu0 %v2810
        %5748 = vmatprep.subr.bf16.mxu0 %v2821
        %5749 = vmatpush1.bf16.msra.mxu0 %v2820
        %5750 = vmatprep.mubr.bf16.mxu0 %v5064
        %5751 = vmatmul.mubr.bf16.gmra.mrb[0].mxu0 %v5063
        %v5752 = vpop.f32.mrb[0].mxu0
        %v5753 = vadd.f32 0.0, %v5752
        %v5754 = vpop.f32.mrb[0].mxu0
        %v5755 = vadd.f32 0.0, %v5754
        %v5756 = vpop.f32.mrb[0].mxu0
        %v5757 = vadd.f32 0.0, %v5756
        %v5758 = vpop.f32.mrb[0].mxu0
        %v5759 = vadd.f32 0.0, %v5758
        %5760 = vdwg.mxu0
        %5761 = vmatprep.subr.bf16.mxu0 %v2831
        %5762 = vmatpush1.bf16.msra.mxu0 %v2830
        %5763 = vmatprep.subr.bf16.mxu0 %v2841
        %5764 = vmatpush1.bf16.msra.mxu0 %v2840
        %5765 = vmatprep.subr.bf16.mxu0 %v2851
        %5766 = vmatpush1.bf16.msra.mxu0 %v2850
        %5767 = vmatprep.subr.bf16.mxu0 %v2861
        %5768 = vmatpush1.bf16.msra.mxu0 %v2860
        %5769 = vmatprep.subr.bf16.mxu0 %v2871
        %5770 = vmatpush1.bf16.msra.mxu0 %v2870
        %5771 = vmatprep.subr.bf16.mxu0 %v2881
        %5772 = vmatpush1.bf16.msra.mxu0 %v2880
        %5773 = vmatprep.subr.bf16.mxu0 %v2891
        %5774 = vmatpush1.bf16.msra.mxu0 %v2890
        %5775 = vmatprep.subr.bf16.mxu0 %v2901
        %5776 = vmatpush1.bf16.msra.mxu0 %v2900
        %5777 = vmatprep.subr.bf16.mxu0 %v2911
        %5778 = vmatpush1.bf16.msra.mxu0 %v2910
        %5779 = vmatprep.subr.bf16.mxu0 %v2921
        %5780 = vmatpush1.bf16.msra.mxu0 %v2920
        %5781 = vmatprep.subr.bf16.mxu0 %v2931
        %5782 = vmatpush1.bf16.msra.mxu0 %v2930
        %5783 = vmatprep.subr.bf16.mxu0 %v2941
        %5784 = vmatpush1.bf16.msra.mxu0 %v2940
        %5785 = vmatprep.subr.bf16.mxu0 %v2951
        %5786 = vmatpush1.bf16.msra.mxu0 %v2950
        %5787 = vmatprep.subr.bf16.mxu0 %v2961
        %5788 = vmatpush1.bf16.msra.mxu0 %v2960
        %5789 = vmatprep.subr.bf16.mxu0 %v2971
        %5790 = vmatpush1.bf16.msra.mxu0 %v2970
        %5791 = vmatprep.subr.bf16.mxu0 %v2981
        %5792 = vmatpush1.bf16.msra.mxu0 %v2980
        %5793 = vmatprep.mubr.bf16.mxu0 %v5066
        %5794 = vmatmul.mubr.bf16.gmra.mrb[0].mxu0 %v5065
        %v5795 = vpop.f32.mrb[0].mxu0
        %v5796 = vadd.f32 %v5753, %v5795
        %v5797 = vpop.f32.mrb[0].mxu0
        %v5798 = vadd.f32 %v5755, %v5797
        %v5799 = vpop.f32.mrb[0].mxu0
        %v5800 = vadd.f32 %v5757, %v5799
        %v5801 = vpop.f32.mrb[0].mxu0
        %v5802 = vadd.f32 %v5759, %v5801
        %5803 = vdwg.mxu0
        %5804 = vmatprep.subr.bf16.mxu0 %v2991
        %5805 = vmatpush1.bf16.msra.mxu0 %v2990
        %5806 = vmatprep.subr.bf16.mxu0 %v3001
        %5807 = vmatpush1.bf16.msra.mxu0 %v3000
        %5808 = vmatprep.subr.bf16.mxu0 %v3011
        %5809 = vmatpush1.bf16.msra.mxu0 %v3010
        %5810 = vmatprep.subr.bf16.mxu0 %v3021
        %5811 = vmatpush1.bf16.msra.mxu0 %v3020
        %5812 = vmatprep.subr.bf16.mxu0 %v3031
        %5813 = vmatpush1.bf16.msra.mxu0 %v3030
        %5814 = vmatprep.subr.bf16.mxu0 %v3041
        %5815 = vmatpush1.bf16.msra.mxu0 %v3040
        %5816 = vmatprep.subr.bf16.mxu0 %v3051
        %5817 = vmatpush1.bf16.msra.mxu0 %v3050
        %5818 = vmatprep.subr.bf16.mxu0 %v3061
        %5819 = vmatpush1.bf16.msra.mxu0 %v3060
        %5820 = vmatprep.subr.bf16.mxu0 %v3071
        %5821 = vmatpush1.bf16.msra.mxu0 %v3070
        %5822 = vmatprep.subr.bf16.mxu0 %v3081
        %5823 = vmatpush1.bf16.msra.mxu0 %v3080
        %5824 = vmatprep.subr.bf16.mxu0 %v3091
        %5825 = vmatpush1.bf16.msra.mxu0 %v3090
        %5826 = vmatprep.subr.bf16.mxu0 %v3101
        %5827 = vmatpush1.bf16.msra.mxu0 %v3100
        %5828 = vmatprep.subr.bf16.mxu0 %v3111
        %5829 = vmatpush1.bf16.msra.mxu0 %v3110
        %5830 = vmatprep.subr.bf16.mxu0 %v3121
        %5831 = vmatpush1.bf16.msra.mxu0 %v3120
        %5832 = vmatprep.subr.bf16.mxu0 %v3131
        %5833 = vmatpush1.bf16.msra.mxu0 %v3130
        %5834 = vmatprep.subr.bf16.mxu0 %v3141
        %5835 = vmatpush1.bf16.msra.mxu0 %v3140
        %5836 = vmatprep.mubr.bf16.mxu0 %v5068
        %5837 = vmatmul.mubr.bf16.gmra.mrb[0].mxu0 %v5067
        %v5838 = vpop.f32.mrb[0].mxu0
        %v5839 = vadd.f32 %v5796, %v5838
        %v5840 = vpop.f32.mrb[0].mxu0
        %v5841 = vadd.f32 %v5798, %v5840
        %v5842 = vpop.f32.mrb[0].mxu0
        %v5843 = vadd.f32 %v5800, %v5842
        %v5844 = vpop.f32.mrb[0].mxu0
        %v5845 = vadd.f32 %v5802, %v5844
        %5846 = vdwg.mxu0
        %5847 = vmatprep.subr.bf16.mxu0 %v3151
        %5848 = vmatpush1.bf16.msra.mxu0 %v3150
        %5849 = vmatprep.subr.bf16.mxu0 %v3161
        %5850 = vmatpush1.bf16.msra.mxu0 %v3160
        %5851 = vmatprep.subr.bf16.mxu0 %v3171
        %5852 = vmatpush1.bf16.msra.mxu0 %v3170
        %5853 = vmatprep.subr.bf16.mxu0 %v3181
        %5854 = vmatpush1.bf16.msra.mxu0 %v3180
        %5855 = vmatprep.subr.bf16.mxu0 %v3191
        %5856 = vmatpush1.bf16.msra.mxu0 %v3190
        %5857 = vmatprep.subr.bf16.mxu0 %v3201
        %5858 = vmatpush1.bf16.msra.mxu0 %v3200
        %5859 = vmatprep.subr.bf16.mxu0 %v3211
        %5860 = vmatpush1.bf16.msra.mxu0 %v3210
        %5861 = vmatprep.subr.bf16.mxu0 %v3221
        %5862 = vmatpush1.bf16.msra.mxu0 %v3220
        %5863 = vmatprep.subr.bf16.mxu0 %v3231
        %5864 = vmatpush1.bf16.msra.mxu0 %v3230
        %5865 = vmatprep.subr.bf16.mxu0 %v3241
        %5866 = vmatpush1.bf16.msra.mxu0 %v3240
        %5867 = vmatprep.subr.bf16.mxu0 %v3251
        %5868 = vmatpush1.bf16.msra.mxu0 %v3250
        %5869 = vmatprep.subr.bf16.mxu0 %v3261
        %5870 = vmatpush1.bf16.msra.mxu0 %v3260
        %5871 = vmatprep.subr.bf16.mxu0 %v3271
        %5872 = vmatpush1.bf16.msra.mxu0 %v3270
        %5873 = vmatprep.subr.bf16.mxu0 %v3281
        %5874 = vmatpush1.bf16.msra.mxu0 %v3280
        %5875 = vmatprep.subr.bf16.mxu0 %v3291
        %5876 = vmatpush1.bf16.msra.mxu0 %v3290
        %5877 = vmatprep.subr.bf16.mxu0 %v3301
        %5878 = vmatpush1.bf16.msra.mxu0 %v3300
        %5879 = vmatprep.mubr.bf16.mxu0 %v5070
        %5880 = vmatmul.mubr.bf16.gmra.mrb[0].mxu0 %v5069
        %v5881 = vpop.f32.mrb[0].mxu0
        %v5882 = vadd.f32 %v5839, %v5881
        %v5883 = vpop.f32.mrb[0].mxu0
        %v5884 = vadd.f32 %v5841, %v5883
        %v5885 = vpop.f32.mrb[0].mxu0
        %v5886 = vadd.f32 %v5843, %v5885
        %v5887 = vpop.f32.mrb[0].mxu0
        %v5888 = vadd.f32 %v5845, %v5887
        %5889 = vdwg.mxu0
        %5890 = vmatprep.subr.bf16.mxu0 %v3311
        %5891 = vmatpush1.bf16.msra.mxu0 %v3310
        %5892 = vmatprep.subr.bf16.mxu0 %v3321
        %5893 = vmatpush1.bf16.msra.mxu0 %v3320
        %5894 = vmatprep.subr.bf16.mxu0 %v3331
        %5895 = vmatpush1.bf16.msra.mxu0 %v3330
        %5896 = vmatprep.subr.bf16.mxu0 %v3341
        %5897 = vmatpush1.bf16.msra.mxu0 %v3340
        %5898 = vmatprep.subr.bf16.mxu0 %v3351
        %5899 = vmatpush1.bf16.msra.mxu0 %v3350
        %5900 = vmatprep.subr.bf16.mxu0 %v3361
        %5901 = vmatpush1.bf16.msra.mxu0 %v3360
        %5902 = vmatprep.subr.bf16.mxu0 %v3371
        %5903 = vmatpush1.bf16.msra.mxu0 %v3370
        %5904 = vmatprep.subr.bf16.mxu0 %v3381
        %5905 = vmatpush1.bf16.msra.mxu0 %v3380
        %5906 = vmatprep.subr.bf16.mxu0 %v3391
        %5907 = vmatpush1.bf16.msra.mxu0 %v3390
        %5908 = vmatprep.subr.bf16.mxu0 %v3401
        %5909 = vmatpush1.bf16.msra.mxu0 %v3400
        %5910 = vmatprep.subr.bf16.mxu0 %v3411
        %5911 = vmatpush1.bf16.msra.mxu0 %v3410
        %5912 = vmatprep.subr.bf16.mxu0 %v3421
        %5913 = vmatpush1.bf16.msra.mxu0 %v3420
        %5914 = vmatprep.subr.bf16.mxu0 %v3431
        %5915 = vmatpush1.bf16.msra.mxu0 %v3430
        %5916 = vmatprep.subr.bf16.mxu0 %v3441
        %5917 = vmatpush1.bf16.msra.mxu0 %v3440
        %5918 = vmatprep.subr.bf16.mxu0 %v3451
        %5919 = vmatpush1.bf16.msra.mxu0 %v3450
        %5920 = vmatprep.subr.bf16.mxu0 %v3461
        %5921 = vmatpush1.bf16.msra.mxu0 %v3460
        %5922 = vmatprep.mubr.bf16.mxu0 %v5072
        %5923 = vmatmul.mubr.bf16.gmra.mrb[0].mxu0 %v5071
        %v5924 = vpop.f32.mrb[0].mxu0
        %v5925 = vadd.f32 %v5882, %v5924
        %v5926 = vpop.f32.mrb[0].mxu0
        %v5927 = vadd.f32 %v5884, %v5926
        %v5928 = vpop.f32.mrb[0].mxu0
        %v5929 = vadd.f32 %v5886, %v5928
        %v5930 = vpop.f32.mrb[0].mxu0
        %v5931 = vadd.f32 %v5888, %v5930
        %5932 = vdwg.mxu0
        %5933 = vmatprep.subr.bf16.mxu0 %v2673
        %5934 = vmatpush1.bf16.msra.mxu0 %v2672
        %5935 = vmatprep.subr.bf16.mxu0 %v2683
        %5936 = vmatpush1.bf16.msra.mxu0 %v2682
        %5937 = vmatprep.subr.bf16.mxu0 %v2693
        %5938 = vmatpush1.bf16.msra.mxu0 %v2692
        %5939 = vmatprep.subr.bf16.mxu0 %v2703
        %5940 = vmatpush1.bf16.msra.mxu0 %v2702
        %5941 = vmatprep.subr.bf16.mxu0 %v2713
        %5942 = vmatpush1.bf16.msra.mxu0 %v2712
        %5943 = vmatprep.subr.bf16.mxu0 %v2723
        %5944 = vmatpush1.bf16.msra.mxu0 %v2722
        %5945 = vmatprep.subr.bf16.mxu0 %v2733
        %5946 = vmatpush1.bf16.msra.mxu0 %v2732
        %5947 = vmatprep.subr.bf16.mxu0 %v2743
        %5948 = vmatpush1.bf16.msra.mxu0 %v2742
        %5949 = vmatprep.subr.bf16.mxu0 %v2753
        %5950 = vmatpush1.bf16.msra.mxu0 %v2752
        %5951 = vmatprep.subr.bf16.mxu0 %v2763
        %5952 = vmatpush1.bf16.msra.mxu0 %v2762
        %5953 = vmatprep.subr.bf16.mxu0 %v2773
        %5954 = vmatpush1.bf16.msra.mxu0 %v2772
        %5955 = vmatprep.subr.bf16.mxu0 %v2783
        %5956 = vmatpush1.bf16.msra.mxu0 %v2782
        %5957 = vmatprep.subr.bf16.mxu0 %v2793
        %5958 = vmatpush1.bf16.msra.mxu0 %v2792
        %5959 = vmatprep.subr.bf16.mxu0 %v2803
        %5960 = vmatpush1.bf16.msra.mxu0 %v2802
        %5961 = vmatprep.subr.bf16.mxu0 %v2813
        %5962 = vmatpush1.bf16.msra.mxu0 %v2812
        %5963 = vmatprep.subr.bf16.mxu0 %v2823
        %5964 = vmatpush1.bf16.msra.mxu0 %v2822
        %5965 = vmatprep.mubr.bf16.mxu0 %v5064
        %5966 = vmatmul.mubr.bf16.gmra.mrb[0].mxu0 %v5063
        %v5967 = vpop.f32.mrb[0].mxu0
        %v5968 = vadd.f32 0.0, %v5967
        %v5969 = vpop.f32.mrb[0].mxu0
        %v5970 = vadd.f32 0.0, %v5969
        %v5971 = vpop.f32.mrb[0].mxu0
        %v5972 = vadd.f32 0.0, %v5971
        %v5973 = vpop.f32.mrb[0].mxu0
        %v5974 = vadd.f32 0.0, %v5973
        %5975 = vdwg.mxu0
        %5976 = vmatprep.subr.bf16.mxu0 %v2833
        %5977 = vmatpush1.bf16.msra.mxu0 %v2832
        %5978 = vmatprep.subr.bf16.mxu0 %v2843
        %5979 = vmatpush1.bf16.msra.mxu0 %v2842
        %5980 = vmatprep.subr.bf16.mxu0 %v2853
        %5981 = vmatpush1.bf16.msra.mxu0 %v2852
        %5982 = vmatprep.subr.bf16.mxu0 %v2863
        %5983 = vmatpush1.bf16.msra.mxu0 %v2862
        %5984 = vmatprep.subr.bf16.mxu0 %v2873
        %5985 = vmatpush1.bf16.msra.mxu0 %v2872
        %5986 = vmatprep.subr.bf16.mxu0 %v2883
        %5987 = vmatpush1.bf16.msra.mxu0 %v2882
        %5988 = vmatprep.subr.bf16.mxu0 %v2893
        %5989 = vmatpush1.bf16.msra.mxu0 %v2892
        %5990 = vmatprep.subr.bf16.mxu0 %v2903
        %5991 = vmatpush1.bf16.msra.mxu0 %v2902
        %5992 = vmatprep.subr.bf16.mxu0 %v2913
        %5993 = vmatpush1.bf16.msra.mxu0 %v2912
        %5994 = vmatprep.subr.bf16.mxu0 %v2923
        %5995 = vmatpush1.bf16.msra.mxu0 %v2922
        %5996 = vmatprep.subr.bf16.mxu0 %v2933
        %5997 = vmatpush1.bf16.msra.mxu0 %v2932
        %5998 = vmatprep.subr.bf16.mxu0 %v2943
        %5999 = vmatpush1.bf16.msra.mxu0 %v2942
        %6000 = vmatprep.subr.bf16.mxu0 %v2953
        %6001 = vmatpush1.bf16.msra.mxu0 %v2952
        %6002 = vmatprep.subr.bf16.mxu0 %v2963
        %6003 = vmatpush1.bf16.msra.mxu0 %v2962
        %6004 = vmatprep.subr.bf16.mxu0 %v2973
        %6005 = vmatpush1.bf16.msra.mxu0 %v2972
        %6006 = vmatprep.subr.bf16.mxu0 %v2983
        %6007 = vmatpush1.bf16.msra.mxu0 %v2982
        %6008 = vmatprep.mubr.bf16.mxu0 %v5066
        %6009 = vmatmul.mubr.bf16.gmra.mrb[0].mxu0 %v5065
        %v6010 = vpop.f32.mrb[0].mxu0
        %v6011 = vadd.f32 %v5968, %v6010
        %v6012 = vpop.f32.mrb[0].mxu0
        %v6013 = vadd.f32 %v5970, %v6012
        %v6014 = vpop.f32.mrb[0].mxu0
        %v6015 = vadd.f32 %v5972, %v6014
        %v6016 = vpop.f32.mrb[0].mxu0
        %v6017 = vadd.f32 %v5974, %v6016
        %6018 = vdwg.mxu0
        %6019 = vmatprep.subr.bf16.mxu0 %v2993
        %6020 = vmatpush1.bf16.msra.mxu0 %v2992
        %6021 = vmatprep.subr.bf16.mxu0 %v3003
        %6022 = vmatpush1.bf16.msra.mxu0 %v3002
        %6023 = vmatprep.subr.bf16.mxu0 %v3013
        %6024 = vmatpush1.bf16.msra.mxu0 %v3012
        %6025 = vmatprep.subr.bf16.mxu0 %v3023
        %6026 = vmatpush1.bf16.msra.mxu0 %v3022
        %6027 = vmatprep.subr.bf16.mxu0 %v3033
        %6028 = vmatpush1.bf16.msra.mxu0 %v3032
        %6029 = vmatprep.subr.bf16.mxu0 %v3043
        %6030 = vmatpush1.bf16.msra.mxu0 %v3042
        %6031 = vmatprep.subr.bf16.mxu0 %v3053
        %6032 = vmatpush1.bf16.msra.mxu0 %v3052
        %6033 = vmatprep.subr.bf16.mxu0 %v3063
        %6034 = vmatpush1.bf16.msra.mxu0 %v3062
        %6035 = vmatprep.subr.bf16.mxu0 %v3073
        %6036 = vmatpush1.bf16.msra.mxu0 %v3072
        %6037 = vmatprep.subr.bf16.mxu0 %v3083
        %6038 = vmatpush1.bf16.msra.mxu0 %v3082
        %6039 = vmatprep.subr.bf16.mxu0 %v3093
        %6040 = vmatpush1.bf16.msra.mxu0 %v3092
        %6041 = vmatprep.subr.bf16.mxu0 %v3103
        %6042 = vmatpush1.bf16.msra.mxu0 %v3102
        %6043 = vmatprep.subr.bf16.mxu0 %v3113
        %6044 = vmatpush1.bf16.msra.mxu0 %v3112
        %6045 = vmatprep.subr.bf16.mxu0 %v3123
        %6046 = vmatpush1.bf16.msra.mxu0 %v3122
        %6047 = vmatprep.subr.bf16.mxu0 %v3133
        %6048 = vmatpush1.bf16.msra.mxu0 %v3132
        %6049 = vmatprep.subr.bf16.mxu0 %v3143
        %6050 = vmatpush1.bf16.msra.mxu0 %v3142
        %6051 = vmatprep.mubr.bf16.mxu0 %v5068
        %6052 = vmatmul.mubr.bf16.gmra.mrb[0].mxu0 %v5067
        %v6053 = vpop.f32.mrb[0].mxu0
        %v6054 = vadd.f32 %v6011, %v6053
        %v6055 = vpop.f32.mrb[0].mxu0
        %v6056 = vadd.f32 %v6013, %v6055
        %v6057 = vpop.f32.mrb[0].mxu0
        %v6058 = vadd.f32 %v6015, %v6057
        %v6059 = vpop.f32.mrb[0].mxu0
        %v6060 = vadd.f32 %v6017, %v6059
        %6061 = vdwg.mxu0
        %6062 = vmatprep.subr.bf16.mxu0 %v3153
        %6063 = vmatpush1.bf16.msra.mxu0 %v3152
        %6064 = vmatprep.subr.bf16.mxu0 %v3163
        %6065 = vmatpush1.bf16.msra.mxu0 %v3162
        %6066 = vmatprep.subr.bf16.mxu0 %v3173
        %6067 = vmatpush1.bf16.msra.mxu0 %v3172
        %6068 = vmatprep.subr.bf16.mxu0 %v3183
        %6069 = vmatpush1.bf16.msra.mxu0 %v3182
        %6070 = vmatprep.subr.bf16.mxu0 %v3193
        %6071 = vmatpush1.bf16.msra.mxu0 %v3192
        %6072 = vmatprep.subr.bf16.mxu0 %v3203
        %6073 = vmatpush1.bf16.msra.mxu0 %v3202
        %6074 = vmatprep.subr.bf16.mxu0 %v3213
        %6075 = vmatpush1.bf16.msra.mxu0 %v3212
        %6076 = vmatprep.subr.bf16.mxu0 %v3223
        %6077 = vmatpush1.bf16.msra.mxu0 %v3222
        %6078 = vmatprep.subr.bf16.mxu0 %v3233
        %6079 = vmatpush1.bf16.msra.mxu0 %v3232
        %6080 = vmatprep.subr.bf16.mxu0 %v3243
        %6081 = vmatpush1.bf16.msra.mxu0 %v3242
        %6082 = vmatprep.subr.bf16.mxu0 %v3253
        %6083 = vmatpush1.bf16.msra.mxu0 %v3252
        %6084 = vmatprep.subr.bf16.mxu0 %v3263
        %6085 = vmatpush1.bf16.msra.mxu0 %v3262
        %6086 = vmatprep.subr.bf16.mxu0 %v3273
        %6087 = vmatpush1.bf16.msra.mxu0 %v3272
        %6088 = vmatprep.subr.bf16.mxu0 %v3283
        %6089 = vmatpush1.bf16.msra.mxu0 %v3282
        %6090 = vmatprep.subr.bf16.mxu0 %v3293
        %6091 = vmatpush1.bf16.msra.mxu0 %v3292
        %6092 = vmatprep.subr.bf16.mxu0 %v3303
        %6093 = vmatpush1.bf16.msra.mxu0 %v3302
        %6094 = vmatprep.mubr.bf16.mxu0 %v5070
        %6095 = vmatmul.mubr.bf16.gmra.mrb[0].mxu0 %v5069
        %v6096 = vpop.f32.mrb[0].mxu0
        %v6097 = vadd.f32 %v6054, %v6096
        %v6098 = vpop.f32.mrb[0].mxu0
        %v6099 = vadd.f32 %v6056, %v6098
        %v6100 = vpop.f32.mrb[0].mxu0
        %v6101 = vadd.f32 %v6058, %v6100
        %v6102 = vpop.f32.mrb[0].mxu0
        %v6103 = vadd.f32 %v6060, %v6102
        %6104 = vdwg.mxu0
        %6105 = vmatprep.subr.bf16.mxu0 %v3313
        %6106 = vmatpush1.bf16.msra.mxu0 %v3312
        %6107 = vmatprep.subr.bf16.mxu0 %v3323
        %6108 = vmatpush1.bf16.msra.mxu0 %v3322
        %6109 = vmatprep.subr.bf16.mxu0 %v3333
        %6110 = vmatpush1.bf16.msra.mxu0 %v3332
        %6111 = vmatprep.subr.bf16.mxu0 %v3343
        %6112 = vmatpush1.bf16.msra.mxu0 %v3342
        %6113 = vmatprep.subr.bf16.mxu0 %v3353
        %6114 = vmatpush1.bf16.msra.mxu0 %v3352
        %6115 = vmatprep.subr.bf16.mxu0 %v3363
        %6116 = vmatpush1.bf16.msra.mxu0 %v3362
        %6117 = vmatprep.subr.bf16.mxu0 %v3373
        %6118 = vmatpush1.bf16.msra.mxu0 %v3372
        %6119 = vmatprep.subr.bf16.mxu0 %v3383
        %6120 = vmatpush1.bf16.msra.mxu0 %v3382
        %6121 = vmatprep.subr.bf16.mxu0 %v3393
        %6122 = vmatpush1.bf16.msra.mxu0 %v3392
        %6123 = vmatprep.subr.bf16.mxu0 %v3403
        %6124 = vmatpush1.bf16.msra.mxu0 %v3402
        %6125 = vmatprep.subr.bf16.mxu0 %v3413
        %6126 = vmatpush1.bf16.msra.mxu0 %v3412
        %6127 = vmatprep.subr.bf16.mxu0 %v3423
        %6128 = vmatpush1.bf16.msra.mxu0 %v3422
        %6129 = vmatprep.subr.bf16.mxu0 %v3433
        %6130 = vmatpush1.bf16.msra.mxu0 %v3432
        %6131 = vmatprep.subr.bf16.mxu0 %v3443
        %6132 = vmatpush1.bf16.msra.mxu0 %v3442
        %6133 = vmatprep.subr.bf16.mxu0 %v3453
        %6134 = vmatpush1.bf16.msra.mxu0 %v3452
        %6135 = vmatprep.subr.bf16.mxu0 %v3463
        %6136 = vmatpush1.bf16.msra.mxu0 %v3462
        %6137 = vmatprep.mubr.bf16.mxu0 %v5072
        %6138 = vmatmul.mubr.bf16.gmra.mrb[0].mxu0 %v5071
        %v6139 = vpop.f32.mrb[0].mxu0
        %v6140 = vadd.f32 %v6097, %v6139
        %v6141 = vpop.f32.mrb[0].mxu0
        %v6142 = vadd.f32 %v6099, %v6141
        %v6143 = vpop.f32.mrb[0].mxu0
        %v6144 = vadd.f32 %v6101, %v6143
        %v6145 = vpop.f32.mrb[0].mxu0
        %v6146 = vadd.f32 %v6103, %v6145
        %6147 = vdwg.mxu0
        %v6148 = vlaneseq
        %v6149 = vshrl.u32 %v6148, 7
        %v6150 = vsub.s32 5, %v6149
        %v6151 = vrot.slane %v1054, %v6150
        %v6152 = vlaneseq
        %v6153 = vshrl.u32 %v6152, 7
        %v6154 = vsub.s32 5, %v6153
        %v6155 = vrot.slane %v1055, %v6154
        %v6156 = vlaneseq
        %v6157 = vshrl.u32 %v6156, 7
        %v6158 = vsub.s32 5, %v6157
        %v6159 = vrot.slane %v1056, %v6158
        %v6160 = vlaneseq
        %v6161 = vshrl.u32 %v6160, 7
        %v6162 = vsub.s32 5, %v6161
        %v6163 = vrot.slane %v1057, %v6162
        %v6164 = vlaneseq
        %v6165 = vshrl.u32 %v6164, 7
        %v6166 = vsub.s32 5, %v6165
        %v6167 = vrot.slane %v1058, %v6166
        %v6168 = vlaneseq
        %v6169 = vshrl.u32 %v6168, 7
        %v6170 = vsub.s32 5, %v6169
        %v6171 = vrot.slane %v1059, %v6170
        %v6172 = vlaneseq
        %v6173 = vshrl.u32 %v6172, 7
        %v6174 = vsub.s32 5, %v6173
        %v6175 = vrot.slane %v1060, %v6174
        %v6176 = vlaneseq
        %v6177 = vshrl.u32 %v6176, 7
        %v6178 = vsub.s32 5, %v6177
        %v6179 = vrot.slane %v1061, %v6178
        %v6180 = vlaneseq
        %v6181 = vshrl.u32 %v6180, 7
        %v6182 = vsub.s32 5, %v6181
        %v6183 = vrot.slane %v1062, %v6182
        %v6184 = vlaneseq
        %v6185 = vshrl.u32 %v6184, 7
        %v6186 = vsub.s32 5, %v6185
        %v6187 = vrot.slane %v1063, %v6186
        %v6188 = vmul.f32 %v5280, %v6151
        %v6189 = vmul.f32 %v5282, %v6155
        %v6190 = vmul.f32 %v5495, %v6159
        %v6191 = vmul.f32 %v5497, %v6163
        %v6192 = vmul.f32 %v5710, %v6167
        %v6193 = vmul.f32 %v5712, %v6171
        %v6194 = vmul.f32 %v5925, %v6175
        %v6195 = vmul.f32 %v5927, %v6179
        %v6196 = vmul.f32 %v6140, %v6183
        %v6197 = vmul.f32 %v6142, %v6187
        %v6198 = vmul.f32 %v5284, %v6151
        %v6199 = vmul.f32 %v5286, %v6155
        %v6200 = vmul.f32 %v5499, %v6159
        %v6201 = vmul.f32 %v5501, %v6163
        %v6202 = vmul.f32 %v5714, %v6167
        %v6203 = vmul.f32 %v5716, %v6171
        %v6204 = vmul.f32 %v5929, %v6175
        %v6205 = vmul.f32 %v5931, %v6179
        %v6206 = vmul.f32 %v6144, %v6183
        %v6207 = vmul.f32 %v6146, %v6187
        %v6208 = vlaneseq
        %v6209 = vshrl.u32 %v6208, 7
        %v6210 = vsub.s32 1, %v6209
        %v6211 = vrot.slane %v1054, %v6210
        %v6212 = vlaneseq
        %v6213 = vshrl.u32 %v6212, 7
        %v6214 = vsub.s32 1, %v6213
        %v6215 = vrot.slane %v1055, %v6214
        %v6216 = vlaneseq
        %v6217 = vshrl.u32 %v6216, 7
        %v6218 = vsub.s32 1, %v6217
        %v6219 = vrot.slane %v1056, %v6218
        %v6220 = vlaneseq
        %v6221 = vshrl.u32 %v6220, 7
        %v6222 = vsub.s32 1, %v6221
        %v6223 = vrot.slane %v1057, %v6222
        %v6224 = vlaneseq
        %v6225 = vshrl.u32 %v6224, 7
        %v6226 = vsub.s32 1, %v6225
        %v6227 = vrot.slane %v1058, %v6226
        %v6228 = vlaneseq
        %v6229 = vshrl.u32 %v6228, 7
        %v6230 = vsub.s32 1, %v6229
        %v6231 = vrot.slane %v1059, %v6230
        %v6232 = vlaneseq
        %v6233 = vshrl.u32 %v6232, 7
        %v6234 = vsub.s32 1, %v6233
        %v6235 = vrot.slane %v1060, %v6234
        %v6236 = vlaneseq
        %v6237 = vshrl.u32 %v6236, 7
        %v6238 = vsub.s32 1, %v6237
        %v6239 = vrot.slane %v1061, %v6238
        %v6240 = vlaneseq
        %v6241 = vshrl.u32 %v6240, 7
        %v6242 = vsub.s32 1, %v6241
        %v6243 = vrot.slane %v1062, %v6242
        %v6244 = vlaneseq
        %v6245 = vshrl.u32 %v6244, 7
        %v6246 = vsub.s32 1, %v6245
        %v6247 = vrot.slane %v1063, %v6246
        %v6248 = vadd.f32 %v6188, %v6211
        %v6249 = vadd.f32 %v6189, %v6215
        %v6250 = vadd.f32 %v6190, %v6219
        %v6251 = vadd.f32 %v6191, %v6223
        %v6252 = vadd.f32 %v6192, %v6227
        %v6253 = vadd.f32 %v6193, %v6231
        %v6254 = vadd.f32 %v6194, %v6235
        %v6255 = vadd.f32 %v6195, %v6239
        %v6256 = vadd.f32 %v6196, %v6243
        %v6257 = vadd.f32 %v6197, %v6247
        %v6258 = vadd.f32 %v6198, %v6211
        %v6259 = vadd.f32 %v6199, %v6215
        %v6260 = vadd.f32 %v6200, %v6219
        %v6261 = vadd.f32 %v6201, %v6223
        %v6262 = vadd.f32 %v6202, %v6227
        %v6263 = vadd.f32 %v6203, %v6231
        %v6264 = vadd.f32 %v6204, %v6235
        %v6265 = vadd.f32 %v6205, %v6239
        %v6266 = vadd.f32 %v6206, %v6243
        %v6267 = vadd.f32 %v6207, %v6247
        %v6268 = vmax.f32 %v6248, 0.0
        %v6269 = vmax.f32 %v6249, 0.0
        %v6270 = vmax.f32 %v6250, 0.0
        %v6271 = vmax.f32 %v6251, 0.0
        %v6272 = vmax.f32 %v6252, 0.0
        %v6273 = vmax.f32 %v6253, 0.0
        %v6274 = vmax.f32 %v6254, 0.0
        %v6275 = vmax.f32 %v6255, 0.0
        %v6276 = vmax.f32 %v6256, 0.0
        %v6277 = vmax.f32 %v6257, 0.0
        %v6278 = vmax.f32 %v6258, 0.0
        %v6279 = vmax.f32 %v6259, 0.0
        %v6280 = vmax.f32 %v6260, 0.0
        %v6281 = vmax.f32 %v6261, 0.0
        %v6282 = vmax.f32 %v6262, 0.0
        %v6283 = vmax.f32 %v6263, 0.0
        %v6284 = vmax.f32 %v6264, 0.0
        %v6285 = vmax.f32 %v6265, 0.0
        %v6286 = vmax.f32 %v6266, 0.0
        %v6287 = vmax.f32 %v6267, 0.0
        %v6288 = vadd.f32 %v6268, %v1034
        %v6289 = vadd.f32 %v6269, %v1035
        %v6290 = vadd.f32 %v6270, %v1036
        %v6291 = vadd.f32 %v6271, %v1037
        %v6292 = vadd.f32 %v6272, %v1038
        %v6293 = vadd.f32 %v6273, %v1039
        %v6294 = vadd.f32 %v6274, %v1040
        %v6295 = vadd.f32 %v6275, %v1041
        %v6296 = vadd.f32 %v6276, %v1042
        %v6297 = vadd.f32 %v6277, %v1043
        %v6298 = vadd.f32 %v6278, %v1044
        %v6299 = vadd.f32 %v6279, %v1045
        %v6300 = vadd.f32 %v6280, %v1046
        %v6301 = vadd.f32 %v6281, %v1047
        %v6302 = vadd.f32 %v6282, %v1048
        %v6303 = vadd.f32 %v6283, %v1049
        %v6304 = vadd.f32 %v6284, %v1050
        %v6305 = vadd.f32 %v6285, %v1051
        %v6306 = vadd.f32 %v6286, %v1052
        %v6307 = vadd.f32 %v6287, %v1053
        %v6308 = vlaneseq
        %v6309 = vshrl.u32 %v6308, 7
        %v6310 = vsub.s32 2, %v6309
        %v6311 = vrot.slane %v1054, %v6310
        %v6312 = vlaneseq
        %v6313 = vshrl.u32 %v6312, 7
        %v6314 = vsub.s32 2, %v6313
        %v6315 = vrot.slane %v1055, %v6314
        %v6316 = vlaneseq
        %v6317 = vshrl.u32 %v6316, 7
        %v6318 = vsub.s32 2, %v6317
        %v6319 = vrot.slane %v1056, %v6318
        %v6320 = vlaneseq
        %v6321 = vshrl.u32 %v6320, 7
        %v6322 = vsub.s32 2, %v6321
        %v6323 = vrot.slane %v1057, %v6322
        %v6324 = vlaneseq
        %v6325 = vshrl.u32 %v6324, 7
        %v6326 = vsub.s32 2, %v6325
        %v6327 = vrot.slane %v1058, %v6326
        %v6328 = vlaneseq
        %v6329 = vshrl.u32 %v6328, 7
        %v6330 = vsub.s32 2, %v6329
        %v6331 = vrot.slane %v1059, %v6330
        %v6332 = vlaneseq
        %v6333 = vshrl.u32 %v6332, 7
        %v6334 = vsub.s32 2, %v6333
        %v6335 = vrot.slane %v1060, %v6334
        %v6336 = vlaneseq
        %v6337 = vshrl.u32 %v6336, 7
        %v6338 = vsub.s32 2, %v6337
        %v6339 = vrot.slane %v1061, %v6338
        %v6340 = vlaneseq
        %v6341 = vshrl.u32 %v6340, 7
        %v6342 = vsub.s32 2, %v6341
        %v6343 = vrot.slane %v1062, %v6342
        %v6344 = vlaneseq
        %v6345 = vshrl.u32 %v6344, 7
        %v6346 = vsub.s32 2, %v6345
        %v6347 = vrot.slane %v1063, %v6346
        %v6348 = vmul.f32 %v6288, %v6311
        %v6349 = vmul.f32 %v6289, %v6315
        %v6350 = vmul.f32 %v6290, %v6319
        %v6351 = vmul.f32 %v6291, %v6323
        %v6352 = vmul.f32 %v6292, %v6327
        %v6353 = vmul.f32 %v6293, %v6331
        %v6354 = vmul.f32 %v6294, %v6335
        %v6355 = vmul.f32 %v6295, %v6339
        %v6356 = vmul.f32 %v6296, %v6343
        %v6357 = vmul.f32 %v6297, %v6347
        %v6358 = vmul.f32 %v6298, %v6311
        %v6359 = vmul.f32 %v6299, %v6315
        %v6360 = vmul.f32 %v6300, %v6319
        %v6361 = vmul.f32 %v6301, %v6323
        %v6362 = vmul.f32 %v6302, %v6327
        %v6363 = vmul.f32 %v6303, %v6331
        %v6364 = vmul.f32 %v6304, %v6335
        %v6365 = vmul.f32 %v6305, %v6339
        %v6366 = vmul.f32 %v6306, %v6343
        %v6367 = vmul.f32 %v6307, %v6347
        %v6368 = vlaneseq
        %v6369 = vshrl.u32 %v6368, 7
        %v6370 = vsub.s32 3, %v6369
        %v6371 = vrot.slane %v1054, %v6370
        %v6372 = vlaneseq
        %v6373 = vshrl.u32 %v6372, 7
        %v6374 = vsub.s32 3, %v6373
        %v6375 = vrot.slane %v1055, %v6374
        %v6376 = vlaneseq
        %v6377 = vshrl.u32 %v6376, 7
        %v6378 = vsub.s32 3, %v6377
        %v6379 = vrot.slane %v1056, %v6378
        %v6380 = vlaneseq
        %v6381 = vshrl.u32 %v6380, 7
        %v6382 = vsub.s32 3, %v6381
        %v6383 = vrot.slane %v1057, %v6382
        %v6384 = vlaneseq
        %v6385 = vshrl.u32 %v6384, 7
        %v6386 = vsub.s32 3, %v6385
        %v6387 = vrot.slane %v1058, %v6386
        %v6388 = vlaneseq
        %v6389 = vshrl.u32 %v6388, 7
        %v6390 = vsub.s32 3, %v6389
        %v6391 = vrot.slane %v1059, %v6390
        %v6392 = vlaneseq
        %v6393 = vshrl.u32 %v6392, 7
        %v6394 = vsub.s32 3, %v6393
        %v6395 = vrot.slane %v1060, %v6394
        %v6396 = vlaneseq
        %v6397 = vshrl.u32 %v6396, 7
        %v6398 = vsub.s32 3, %v6397
        %v6399 = vrot.slane %v1061, %v6398
        %v6400 = vlaneseq
        %v6401 = vshrl.u32 %v6400, 7
        %v6402 = vsub.s32 3, %v6401
        %v6403 = vrot.slane %v1062, %v6402
        %v6404 = vlaneseq
        %v6405 = vshrl.u32 %v6404, 7
        %v6406 = vsub.s32 3, %v6405
        %v6407 = vrot.slane %v1063, %v6406
        %v6408 = vadd.f32 %v6348, %v6371
        %v6409 = vadd.f32 %v6349, %v6375
        %v6410 = vadd.f32 %v6350, %v6379
        %v6411 = vadd.f32 %v6351, %v6383
        %v6412 = vadd.f32 %v6352, %v6387
        %v6413 = vadd.f32 %v6353, %v6391
        %v6414 = vadd.f32 %v6354, %v6395
        %v6415 = vadd.f32 %v6355, %v6399
        %v6416 = vadd.f32 %v6356, %v6403
        %v6417 = vadd.f32 %v6357, %v6407
        %v6418 = vadd.f32 %v6358, %v6371
        %v6419 = vadd.f32 %v6359, %v6375
        %v6420 = vadd.f32 %v6360, %v6379
        %v6421 = vadd.f32 %v6361, %v6383
        %v6422 = vadd.f32 %v6362, %v6387
        %v6423 = vadd.f32 %v6363, %v6391
        %v6424 = vadd.f32 %v6364, %v6395
        %v6425 = vadd.f32 %v6365, %v6399
        %v6426 = vadd.f32 %v6366, %v6403
        %v6427 = vadd.f32 %v6367, %v6407
        %6428 = vst [vmem:[#allocation2] sm:$0xff] %v6408
        %6429 = vst [vmem:[#allocation2 + $0x8] sm:$0xff] %v6409
        %6430 = vst [vmem:[#allocation2 + $0x10] sm:$0xff] %v6410
        %6431 = vst [vmem:[#allocation2 + $0x18] sm:$0xff] %v6411
        %6432 = vst [vmem:[#allocation2 + $0x20] sm:$0xff] %v6412
        %6433 = vst [vmem:[#allocation2 + $0x28] sm:$0xff] %v6413
        %6434 = vst [vmem:[#allocation2 + $0x30] sm:$0xff] %v6414
        %6435 = vst [vmem:[#allocation2 + $0x38] sm:$0xff] %v6415
        %6436 = vst [vmem:[#allocation2 + $0x40] sm:$0xff] %v6416
        %6437 = vst [vmem:[#allocation2 + $0x48] sm:$0xff] %v6417
        %6438 = vst [vmem:[#allocation2 + $0x50] sm:$0xff] %v6418
        %6439 = vst [vmem:[#allocation2 + $0x58] sm:$0xff] %v6419
        %6440 = vst [vmem:[#allocation2 + $0x60] sm:$0xff] %v6420
        %6441 = vst [vmem:[#allocation2 + $0x68] sm:$0xff] %v6421
        %6442 = vst [vmem:[#allocation2 + $0x70] sm:$0xff] %v6422
        %6443 = vst [vmem:[#allocation2 + $0x78] sm:$0xff] %v6423
        %6444 = vst [vmem:[#allocation2 + $0x80] sm:$0xff] %v6424
        %6445 = vst [vmem:[#allocation2 + $0x88] sm:$0xff] %v6425
        %6446 = vst [vmem:[#allocation2 + $0x90] sm:$0xff] %v6426
        %6447 = vst [vmem:[#allocation2 + $0x98] sm:$0xff] %v6427
        %v6448 = vpack.c.bf16 %v6418, %v6408
        %v6449 = vpack.c.bf16 %v6419, %v6409
        %v6450 = vpack.c.bf16 %v6420, %v6410
        %v6451 = vpack.c.bf16 %v6421, %v6411
        %v6452 = vpack.c.bf16 %v6422, %v6412
        %v6453 = vpack.c.bf16 %v6423, %v6413
        %v6454 = vpack.c.bf16 %v6424, %v6414
        %v6455 = vpack.c.bf16 %v6425, %v6415
        %v6456 = vpack.c.bf16 %v6426, %v6416
        %v6457 = vpack.c.bf16 %v6427, %v6417
        %v6458 = vld [vmem:[#allocation13] sm:$0xf]
        %v6459 = vld [vmem:[#allocation13 + $0x4] sm:$0xf]
        %v6460 = vld [vmem:[#allocation13 + $0x8] sm:$0xf]
        %v6461 = vld [vmem:[#allocation13 + $0xc] sm:$0xf]
        %v6462 = vld [vmem:[#allocation13 + $0x10] sm:$0xf]
        %v6463 = vld [vmem:[#allocation13 + $0x14] sm:$0xf]
        %v6464 = vld [vmem:[#allocation13 + $0x18] sm:$0xf]
        %v6465 = vld [vmem:[#allocation13 + $0x1c] sm:$0xf]
        %v6466 = vld [vmem:[#allocation13 + $0x20] sm:$0xf]
        %v6467 = vld [vmem:[#allocation13 + $0x24] sm:$0xf]
        %v6468 = vld [vmem:[#allocation13 + $0x28] sm:$0xf]
        %v6469 = vld [vmem:[#allocation13 + $0x2c] sm:$0xf]
        %v6470 = vld [vmem:[#allocation13 + $0x30] sm:$0xf]
        %v6471 = vld [vmem:[#allocation13 + $0x34] sm:$0xf]
        %v6472 = vld [vmem:[#allocation13 + $0x38] sm:$0xf]
        %v6473 = vld [vmem:[#allocation13 + $0x3c] sm:$0xf]
        %v6474 = vld [vmem:[#allocation13 + $0x40] sm:$0xf]
        %v6475 = vld [vmem:[#allocation13 + $0x44] sm:$0xf]
        %v6476 = vld [vmem:[#allocation13 + $0x48] sm:$0xf]
        %v6477 = vld [vmem:[#allocation13 + $0x4c] sm:$0xf]
        %v6478 = vld [vmem:[#allocation13 + $0x50] sm:$0xf]
        %v6479 = vld [vmem:[#allocation13 + $0x54] sm:$0xf]
        %v6480 = vld [vmem:[#allocation13 + $0x58] sm:$0xf]
        %v6481 = vld [vmem:[#allocation13 + $0x5c] sm:$0xf]
        %v6482 = vld [vmem:[#allocation13 + $0x60] sm:$0xf]
        %v6483 = vld [vmem:[#allocation13 + $0x64] sm:$0xf]
        %v6484 = vld [vmem:[#allocation13 + $0x68] sm:$0xf]
        %v6485 = vld [vmem:[#allocation13 + $0x6c] sm:$0xf]
        %v6486 = vld [vmem:[#allocation13 + $0x70] sm:$0xf]
        %v6487 = vld [vmem:[#allocation13 + $0x74] sm:$0xf]
        %v6488 = vld [vmem:[#allocation13 + $0x78] sm:$0xf]
        %v6489 = vld [vmem:[#allocation13 + $0x7c] sm:$0xf]
        %v6490 = vld [vmem:[#allocation13 + $0x80] sm:$0xf]
        %v6491 = vld [vmem:[#allocation13 + $0x84] sm:$0xf]
        %v6492 = vld [vmem:[#allocation13 + $0x88] sm:$0xf]
        %v6493 = vld [vmem:[#allocation13 + $0x8c] sm:$0xf]
        %v6494 = vld [vmem:[#allocation13 + $0x90] sm:$0xf]
        %v6495 = vld [vmem:[#allocation13 + $0x94] sm:$0xf]
        %v6496 = vld [vmem:[#allocation13 + $0x98] sm:$0xf]
        %v6497 = vld [vmem:[#allocation13 + $0x9c] sm:$0xf]
        %v6498 = vld [vmem:[#allocation13 + $0xa0] sm:$0xf]
        %v6499 = vld [vmem:[#allocation13 + $0xa4] sm:$0xf]
        %v6500 = vld [vmem:[#allocation13 + $0xa8] sm:$0xf]
        %v6501 = vld [vmem:[#allocation13 + $0xac] sm:$0xf]
        %v6502 = vld [vmem:[#allocation13 + $0xb0] sm:$0xf]
        %v6503 = vld [vmem:[#allocation13 + $0xb4] sm:$0xf]
        %v6504 = vld [vmem:[#allocation13 + $0xb8] sm:$0xf]
        %v6505 = vld [vmem:[#allocation13 + $0xbc] sm:$0xf]
        %v6506 = vld [vmem:[#allocation13 + $0xc0] sm:$0xf]
        %v6507 = vld [vmem:[#allocation13 + $0xc4] sm:$0xf]
        %v6508 = vld [vmem:[#allocation13 + $0xc8] sm:$0xf]
        %v6509 = vld [vmem:[#allocation13 + $0xcc] sm:$0xf]
        %v6510 = vld [vmem:[#allocation13 + $0xd0] sm:$0xf]
        %v6511 = vld [vmem:[#allocation13 + $0xd4] sm:$0xf]
        %v6512 = vld [vmem:[#allocation13 + $0xd8] sm:$0xf]
        %v6513 = vld [vmem:[#allocation13 + $0xdc] sm:$0xf]
        %v6514 = vld [vmem:[#allocation13 + $0xe0] sm:$0xf]
        %v6515 = vld [vmem:[#allocation13 + $0xe4] sm:$0xf]
        %v6516 = vld [vmem:[#allocation13 + $0xe8] sm:$0xf]
        %v6517 = vld [vmem:[#allocation13 + $0xec] sm:$0xf]
        %v6518 = vld [vmem:[#allocation13 + $0xf0] sm:$0xf]
        %v6519 = vld [vmem:[#allocation13 + $0xf4] sm:$0xf]
        %v6520 = vld [vmem:[#allocation13 + $0xf8] sm:$0xf]
        %v6521 = vld [vmem:[#allocation13 + $0xfc] sm:$0xf]
        %v6522 = vld [vmem:[#allocation13 + $0x100] sm:$0xf]
        %v6523 = vld [vmem:[#allocation13 + $0x104] sm:$0xf]
        %v6524 = vld [vmem:[#allocation13 + $0x108] sm:$0xf]
        %v6525 = vld [vmem:[#allocation13 + $0x10c] sm:$0xf]
        %v6526 = vld [vmem:[#allocation13 + $0x110] sm:$0xf]
        %v6527 = vld [vmem:[#allocation13 + $0x114] sm:$0xf]
        %v6528 = vld [vmem:[#allocation13 + $0x118] sm:$0xf]
        %v6529 = vld [vmem:[#allocation13 + $0x11c] sm:$0xf]
        %v6530 = vld [vmem:[#allocation13 + $0x120] sm:$0xf]
        %v6531 = vld [vmem:[#allocation13 + $0x124] sm:$0xf]
        %v6532 = vld [vmem:[#allocation13 + $0x128] sm:$0xf]
        %v6533 = vld [vmem:[#allocation13 + $0x12c] sm:$0xf]
        %v6534 = vld [vmem:[#allocation13 + $0x130] sm:$0xf]
        %v6535 = vld [vmem:[#allocation13 + $0x134] sm:$0xf]
        %v6536 = vld [vmem:[#allocation13 + $0x138] sm:$0xf]
        %v6537 = vld [vmem:[#allocation13 + $0x13c] sm:$0xf]
        %v6538 = vld [vmem:[#allocation13 + $0x140] sm:$0xf]
        %v6539 = vld [vmem:[#allocation13 + $0x144] sm:$0xf]
        %v6540 = vld [vmem:[#allocation13 + $0x148] sm:$0xf]
        %v6541 = vld [vmem:[#allocation13 + $0x14c] sm:$0xf]
        %v6542 = vld [vmem:[#allocation13 + $0x150] sm:$0xf]
        %v6543 = vld [vmem:[#allocation13 + $0x154] sm:$0xf]
        %v6544 = vld [vmem:[#allocation13 + $0x158] sm:$0xf]
        %v6545 = vld [vmem:[#allocation13 + $0x15c] sm:$0xf]
        %v6546 = vld [vmem:[#allocation13 + $0x160] sm:$0xf]
        %v6547 = vld [vmem:[#allocation13 + $0x164] sm:$0xf]
        %v6548 = vld [vmem:[#allocation13 + $0x168] sm:$0xf]
        %v6549 = vld [vmem:[#allocation13 + $0x16c] sm:$0xf]
        %v6550 = vld [vmem:[#allocation13 + $0x170] sm:$0xf]
        %v6551 = vld [vmem:[#allocation13 + $0x174] sm:$0xf]
        %v6552 = vld [vmem:[#allocation13 + $0x178] sm:$0xf]
        %v6553 = vld [vmem:[#allocation13 + $0x17c] sm:$0xf]
        %v6554 = vld [vmem:[#allocation13 + $0x180] sm:$0xf]
        %v6555 = vld [vmem:[#allocation13 + $0x184] sm:$0xf]
        %v6556 = vld [vmem:[#allocation13 + $0x188] sm:$0xf]
        %v6557 = vld [vmem:[#allocation13 + $0x18c] sm:$0xf]
        %v6558 = vld [vmem:[#allocation13 + $0x190] sm:$0xf]
        %v6559 = vld [vmem:[#allocation13 + $0x194] sm:$0xf]
        %v6560 = vld [vmem:[#allocation13 + $0x198] sm:$0xf]
        %v6561 = vld [vmem:[#allocation13 + $0x19c] sm:$0xf]
        %v6562 = vld [vmem:[#allocation13 + $0x1a0] sm:$0xf]
        %v6563 = vld [vmem:[#allocation13 + $0x1a4] sm:$0xf]
        %v6564 = vld [vmem:[#allocation13 + $0x1a8] sm:$0xf]
        %v6565 = vld [vmem:[#allocation13 + $0x1ac] sm:$0xf]
        %v6566 = vld [vmem:[#allocation13 + $0x1b0] sm:$0xf]
        %v6567 = vld [vmem:[#allocation13 + $0x1b4] sm:$0xf]
        %v6568 = vld [vmem:[#allocation13 + $0x1b8] sm:$0xf]
        %v6569 = vld [vmem:[#allocation13 + $0x1bc] sm:$0xf]
        %v6570 = vld [vmem:[#allocation13 + $0x1c0] sm:$0xf]
        %v6571 = vld [vmem:[#allocation13 + $0x1c4] sm:$0xf]
        %v6572 = vld [vmem:[#allocation13 + $0x1c8] sm:$0xf]
        %v6573 = vld [vmem:[#allocation13 + $0x1cc] sm:$0xf]
        %v6574 = vld [vmem:[#allocation13 + $0x1d0] sm:$0xf]
        %v6575 = vld [vmem:[#allocation13 + $0x1d4] sm:$0xf]
        %v6576 = vld [vmem:[#allocation13 + $0x1d8] sm:$0xf]
        %v6577 = vld [vmem:[#allocation13 + $0x1dc] sm:$0xf]
        %v6578 = vld [vmem:[#allocation13 + $0x1e0] sm:$0xf]
        %v6579 = vld [vmem:[#allocation13 + $0x1e4] sm:$0xf]
        %v6580 = vld [vmem:[#allocation13 + $0x1e8] sm:$0xf]
        %v6581 = vld [vmem:[#allocation13 + $0x1ec] sm:$0xf]
        %v6582 = vld [vmem:[#allocation13 + $0x1f0] sm:$0xf]
        %v6583 = vld [vmem:[#allocation13 + $0x1f4] sm:$0xf]
        %v6584 = vld [vmem:[#allocation13 + $0x1f8] sm:$0xf]
        %v6585 = vld [vmem:[#allocation13 + $0x1fc] sm:$0xf]
        %v6586 = vld [vmem:[#allocation13 + $0x200] sm:$0xf]
        %v6587 = vld [vmem:[#allocation13 + $0x204] sm:$0xf]
        %v6588 = vld [vmem:[#allocation13 + $0x208] sm:$0xf]
        %v6589 = vld [vmem:[#allocation13 + $0x20c] sm:$0xf]
        %v6590 = vld [vmem:[#allocation13 + $0x210] sm:$0xf]
        %v6591 = vld [vmem:[#allocation13 + $0x214] sm:$0xf]
        %v6592 = vld [vmem:[#allocation13 + $0x218] sm:$0xf]
        %v6593 = vld [vmem:[#allocation13 + $0x21c] sm:$0xf]
        %v6594 = vld [vmem:[#allocation13 + $0x220] sm:$0xf]
        %v6595 = vld [vmem:[#allocation13 + $0x224] sm:$0xf]
        %v6596 = vld [vmem:[#allocation13 + $0x228] sm:$0xf]
        %v6597 = vld [vmem:[#allocation13 + $0x22c] sm:$0xf]
        %v6598 = vld [vmem:[#allocation13 + $0x230] sm:$0xf]
        %v6599 = vld [vmem:[#allocation13 + $0x234] sm:$0xf]
        %v6600 = vld [vmem:[#allocation13 + $0x238] sm:$0xf]
        %v6601 = vld [vmem:[#allocation13 + $0x23c] sm:$0xf]
        %v6602 = vld [vmem:[#allocation13 + $0x240] sm:$0xf]
        %v6603 = vld [vmem:[#allocation13 + $0x244] sm:$0xf]
        %v6604 = vld [vmem:[#allocation13 + $0x248] sm:$0xf]
        %v6605 = vld [vmem:[#allocation13 + $0x24c] sm:$0xf]
        %v6606 = vld [vmem:[#allocation13 + $0x250] sm:$0xf]
        %v6607 = vld [vmem:[#allocation13 + $0x254] sm:$0xf]
        %v6608 = vld [vmem:[#allocation13 + $0x258] sm:$0xf]
        %v6609 = vld [vmem:[#allocation13 + $0x25c] sm:$0xf]
        %v6610 = vld [vmem:[#allocation13 + $0x260] sm:$0xf]
        %v6611 = vld [vmem:[#allocation13 + $0x264] sm:$0xf]
        %v6612 = vld [vmem:[#allocation13 + $0x268] sm:$0xf]
        %v6613 = vld [vmem:[#allocation13 + $0x26c] sm:$0xf]
        %v6614 = vld [vmem:[#allocation13 + $0x270] sm:$0xf]
        %v6615 = vld [vmem:[#allocation13 + $0x274] sm:$0xf]
        %v6616 = vld [vmem:[#allocation13 + $0x278] sm:$0xf]
        %v6617 = vld [vmem:[#allocation13 + $0x27c] sm:$0xf]
        %v6618 = vld [vmem:[#allocation14] sm:$0x1]
        %v6620 = vlaneseq
        %v6621 = vshrl.u32 %v6620, 7
        %v6622 = vsub.s32 0, %v6621
        %v6623 = vrot.slane %v6618, %v6622
        %v6785 = vunpack.c.l.b16 %v6458
        %v6786 = vunpack.c.l.b16 %v6459
        %v6787 = vunpack.c.l.b16 %v6460
        %v6788 = vunpack.c.l.b16 %v6461
        %v6789 = vunpack.c.l.b16 %v6462
        %v6790 = vunpack.c.l.b16 %v6463
        %v6791 = vunpack.c.l.b16 %v6464
        %v6792 = vunpack.c.l.b16 %v6465
        %v6793 = vunpack.c.l.b16 %v6466
        %v6794 = vunpack.c.l.b16 %v6467
        %v6795 = vunpack.c.l.b16 %v6468
        %v6796 = vunpack.c.l.b16 %v6469
        %v6797 = vunpack.c.l.b16 %v6470
        %v6798 = vunpack.c.l.b16 %v6471
        %v6799 = vunpack.c.l.b16 %v6472
        %v6800 = vunpack.c.l.b16 %v6473
        %v6801 = vunpack.c.l.b16 %v6474
        %v6802 = vunpack.c.l.b16 %v6475
        %v6803 = vunpack.c.l.b16 %v6476
        %v6804 = vunpack.c.l.b16 %v6477
        %v6805 = vunpack.c.l.b16 %v6478
        %v6806 = vunpack.c.l.b16 %v6479
        %v6807 = vunpack.c.l.b16 %v6480
        %v6808 = vunpack.c.l.b16 %v6481
        %v6809 = vunpack.c.l.b16 %v6482
        %v6810 = vunpack.c.l.b16 %v6483
        %v6811 = vunpack.c.l.b16 %v6484
        %v6812 = vunpack.c.l.b16 %v6485
        %v6813 = vunpack.c.l.b16 %v6486
        %v6814 = vunpack.c.l.b16 %v6487
        %v6815 = vunpack.c.l.b16 %v6488
        %v6816 = vunpack.c.l.b16 %v6489
        %v6817 = vunpack.c.l.b16 %v6490
        %v6818 = vunpack.c.l.b16 %v6491
        %v6819 = vunpack.c.l.b16 %v6492
        %v6820 = vunpack.c.l.b16 %v6493
        %v6821 = vunpack.c.l.b16 %v6494
        %v6822 = vunpack.c.l.b16 %v6495
        %v6823 = vunpack.c.l.b16 %v6496
        %v6824 = vunpack.c.l.b16 %v6497
        %v6825 = vunpack.c.l.b16 %v6498
        %v6826 = vunpack.c.l.b16 %v6499
        %v6827 = vunpack.c.l.b16 %v6500
        %v6828 = vunpack.c.l.b16 %v6501
        %v6829 = vunpack.c.l.b16 %v6502
        %v6830 = vunpack.c.l.b16 %v6503
        %v6831 = vunpack.c.l.b16 %v6504
        %v6832 = vunpack.c.l.b16 %v6505
        %v6833 = vunpack.c.l.b16 %v6506
        %v6834 = vunpack.c.l.b16 %v6507
        %v6835 = vunpack.c.l.b16 %v6508
        %v6836 = vunpack.c.l.b16 %v6509
        %v6837 = vunpack.c.l.b16 %v6510
        %v6838 = vunpack.c.l.b16 %v6511
        %v6839 = vunpack.c.l.b16 %v6512
        %v6840 = vunpack.c.l.b16 %v6513
        %v6841 = vunpack.c.l.b16 %v6514
        %v6842 = vunpack.c.l.b16 %v6515
        %v6843 = vunpack.c.l.b16 %v6516
        %v6844 = vunpack.c.l.b16 %v6517
        %v6845 = vunpack.c.l.b16 %v6518
        %v6846 = vunpack.c.l.b16 %v6519
        %v6847 = vunpack.c.l.b16 %v6520
        %v6848 = vunpack.c.l.b16 %v6521
        %v6849 = vunpack.c.l.b16 %v6522
        %v6850 = vunpack.c.l.b16 %v6523
        %v6851 = vunpack.c.l.b16 %v6524
        %v6852 = vunpack.c.l.b16 %v6525
        %v6853 = vunpack.c.l.b16 %v6526
        %v6854 = vunpack.c.l.b16 %v6527
        %v6855 = vunpack.c.l.b16 %v6528
        %v6856 = vunpack.c.l.b16 %v6529
        %v6857 = vunpack.c.l.b16 %v6530
        %v6858 = vunpack.c.l.b16 %v6531
        %v6859 = vunpack.c.l.b16 %v6532
        %v6860 = vunpack.c.l.b16 %v6533
        %v6861 = vunpack.c.l.b16 %v6534
        %v6862 = vunpack.c.l.b16 %v6535
        %v6863 = vunpack.c.l.b16 %v6536
        %v6864 = vunpack.c.l.b16 %v6537
        %v6865 = vunpack.c.l.b16 %v6538
        %v6866 = vunpack.c.l.b16 %v6539
        %v6867 = vunpack.c.l.b16 %v6540
        %v6868 = vunpack.c.l.b16 %v6541
        %v6869 = vunpack.c.l.b16 %v6542
        %v6870 = vunpack.c.l.b16 %v6543
        %v6871 = vunpack.c.l.b16 %v6544
        %v6872 = vunpack.c.l.b16 %v6545
        %v6873 = vunpack.c.l.b16 %v6546
        %v6874 = vunpack.c.l.b16 %v6547
        %v6875 = vunpack.c.l.b16 %v6548
        %v6876 = vunpack.c.l.b16 %v6549
        %v6877 = vunpack.c.l.b16 %v6550
        %v6878 = vunpack.c.l.b16 %v6551
        %v6879 = vunpack.c.l.b16 %v6552
        %v6880 = vunpack.c.l.b16 %v6553
        %v6881 = vunpack.c.l.b16 %v6554
        %v6882 = vunpack.c.l.b16 %v6555
        %v6883 = vunpack.c.l.b16 %v6556
        %v6884 = vunpack.c.l.b16 %v6557
        %v6885 = vunpack.c.l.b16 %v6558
        %v6886 = vunpack.c.l.b16 %v6559
        %v6887 = vunpack.c.l.b16 %v6560
        %v6888 = vunpack.c.l.b16 %v6561
        %v6889 = vunpack.c.l.b16 %v6562
        %v6890 = vunpack.c.l.b16 %v6563
        %v6891 = vunpack.c.l.b16 %v6564
        %v6892 = vunpack.c.l.b16 %v6565
        %v6893 = vunpack.c.l.b16 %v6566
        %v6894 = vunpack.c.l.b16 %v6567
        %v6895 = vunpack.c.l.b16 %v6568
        %v6896 = vunpack.c.l.b16 %v6569
        %v6897 = vunpack.c.l.b16 %v6570
        %v6898 = vunpack.c.l.b16 %v6571
        %v6899 = vunpack.c.l.b16 %v6572
        %v6900 = vunpack.c.l.b16 %v6573
        %v6901 = vunpack.c.l.b16 %v6574
        %v6902 = vunpack.c.l.b16 %v6575
        %v6903 = vunpack.c.l.b16 %v6576
        %v6904 = vunpack.c.l.b16 %v6577
        %v6905 = vunpack.c.l.b16 %v6578
        %v6906 = vunpack.c.l.b16 %v6579
        %v6907 = vunpack.c.l.b16 %v6580
        %v6908 = vunpack.c.l.b16 %v6581
        %v6909 = vunpack.c.l.b16 %v6582
        %v6910 = vunpack.c.l.b16 %v6583
        %v6911 = vunpack.c.l.b16 %v6584
        %v6912 = vunpack.c.l.b16 %v6585
        %v6913 = vunpack.c.l.b16 %v6586
        %v6914 = vunpack.c.l.b16 %v6587
        %v6915 = vunpack.c.l.b16 %v6588
        %v6916 = vunpack.c.l.b16 %v6589
        %v6917 = vunpack.c.l.b16 %v6590
        %v6918 = vunpack.c.l.b16 %v6591
        %v6919 = vunpack.c.l.b16 %v6592
        %v6920 = vunpack.c.l.b16 %v6593
        %v6921 = vunpack.c.l.b16 %v6594
        %v6922 = vunpack.c.l.b16 %v6595
        %v6923 = vunpack.c.l.b16 %v6596
        %v6924 = vunpack.c.l.b16 %v6597
        %v6925 = vunpack.c.l.b16 %v6598
        %v6926 = vunpack.c.l.b16 %v6599
        %v6927 = vunpack.c.l.b16 %v6600
        %v6928 = vunpack.c.l.b16 %v6601
        %v6929 = vunpack.c.l.b16 %v6602
        %v6930 = vunpack.c.l.b16 %v6603
        %v6931 = vunpack.c.l.b16 %v6604
        %v6932 = vunpack.c.l.b16 %v6605
        %v6933 = vunpack.c.l.b16 %v6606
        %v6934 = vunpack.c.l.b16 %v6607
        %v6935 = vunpack.c.l.b16 %v6608
        %v6936 = vunpack.c.l.b16 %v6609
        %v6937 = vunpack.c.l.b16 %v6610
        %v6938 = vunpack.c.l.b16 %v6611
        %v6939 = vunpack.c.l.b16 %v6612
        %v6940 = vunpack.c.l.b16 %v6613
        %v6941 = vunpack.c.l.b16 %v6614
        %v6942 = vunpack.c.l.b16 %v6615
        %v6943 = vunpack.c.l.b16 %v6616
        %v6944 = vunpack.c.l.b16 %v6617
        %v6945 = vpack.c.b16 %v6786, %v6785
        %v6946 = vpack.c.b16 %v6788, %v6787
        %v6947 = vpack.c.b16 %v6790, %v6789
        %v6948 = vpack.c.b16 %v6792, %v6791
        %v6949 = vpack.c.b16 %v6794, %v6793
        %v6950 = vpack.c.b16 %v6796, %v6795
        %v6951 = vpack.c.b16 %v6798, %v6797
        %v6952 = vpack.c.b16 %v6800, %v6799
        %v6953 = vpack.c.b16 %v6802, %v6801
        %v6954 = vpack.c.b16 %v6804, %v6803
        %v6955 = vpack.c.b16 %v6806, %v6805
        %v6956 = vpack.c.b16 %v6808, %v6807
        %v6957 = vpack.c.b16 %v6810, %v6809
        %v6958 = vpack.c.b16 %v6812, %v6811
        %v6959 = vpack.c.b16 %v6814, %v6813
        %v6960 = vpack.c.b16 %v6816, %v6815
        %v6961 = vpack.c.b16 %v6818, %v6817
        %v6962 = vpack.c.b16 %v6820, %v6819
        %v6963 = vpack.c.b16 %v6822, %v6821
        %v6964 = vpack.c.b16 %v6824, %v6823
        %v6965 = vpack.c.b16 %v6826, %v6825
        %v6966 = vpack.c.b16 %v6828, %v6827
        %v6967 = vpack.c.b16 %v6830, %v6829
        %v6968 = vpack.c.b16 %v6832, %v6831
        %v6969 = vpack.c.b16 %v6834, %v6833
        %v6970 = vpack.c.b16 %v6836, %v6835
        %v6971 = vpack.c.b16 %v6838, %v6837
        %v6972 = vpack.c.b16 %v6840, %v6839
        %v6973 = vpack.c.b16 %v6842, %v6841
        %v6974 = vpack.c.b16 %v6844, %v6843
        %v6975 = vpack.c.b16 %v6846, %v6845
        %v6976 = vpack.c.b16 %v6848, %v6847
        %v6977 = vpack.c.b16 %v6850, %v6849
        %v6978 = vpack.c.b16 %v6852, %v6851
        %v6979 = vpack.c.b16 %v6854, %v6853
        %v6980 = vpack.c.b16 %v6856, %v6855
        %v6981 = vpack.c.b16 %v6858, %v6857
        %v6982 = vpack.c.b16 %v6860, %v6859
        %v6983 = vpack.c.b16 %v6862, %v6861
        %v6984 = vpack.c.b16 %v6864, %v6863
        %v6985 = vpack.c.b16 %v6866, %v6865
        %v6986 = vpack.c.b16 %v6868, %v6867
        %v6987 = vpack.c.b16 %v6870, %v6869
        %v6988 = vpack.c.b16 %v6872, %v6871
        %v6989 = vpack.c.b16 %v6874, %v6873
        %v6990 = vpack.c.b16 %v6876, %v6875
        %v6991 = vpack.c.b16 %v6878, %v6877
        %v6992 = vpack.c.b16 %v6880, %v6879
        %v6993 = vpack.c.b16 %v6882, %v6881
        %v6994 = vpack.c.b16 %v6884, %v6883
        %v6995 = vpack.c.b16 %v6886, %v6885
        %v6996 = vpack.c.b16 %v6888, %v6887
        %v6997 = vpack.c.b16 %v6890, %v6889
        %v6998 = vpack.c.b16 %v6892, %v6891
        %v6999 = vpack.c.b16 %v6894, %v6893
        %v7000 = vpack.c.b16 %v6896, %v6895
        %v7001 = vpack.c.b16 %v6898, %v6897
        %v7002 = vpack.c.b16 %v6900, %v6899
        %v7003 = vpack.c.b16 %v6902, %v6901
        %v7004 = vpack.c.b16 %v6904, %v6903
        %v7005 = vpack.c.b16 %v6906, %v6905
        %v7006 = vpack.c.b16 %v6908, %v6907
        %v7007 = vpack.c.b16 %v6910, %v6909
        %v7008 = vpack.c.b16 %v6912, %v6911
        %v7009 = vpack.c.b16 %v6914, %v6913
        %v7010 = vpack.c.b16 %v6916, %v6915
        %v7011 = vpack.c.b16 %v6918, %v6917
        %v7012 = vpack.c.b16 %v6920, %v6919
        %v7013 = vpack.c.b16 %v6922, %v6921
        %v7014 = vpack.c.b16 %v6924, %v6923
        %v7015 = vpack.c.b16 %v6926, %v6925
        %v7016 = vpack.c.b16 %v6928, %v6927
        %v7017 = vpack.c.b16 %v6930, %v6929
        %v7018 = vpack.c.b16 %v6932, %v6931
        %v7019 = vpack.c.b16 %v6934, %v6933
        %v7020 = vpack.c.b16 %v6936, %v6935
        %v7021 = vpack.c.b16 %v6938, %v6937
        %v7022 = vpack.c.b16 %v6940, %v6939
        %v7023 = vpack.c.b16 %v6942, %v6941
        %v7024 = vpack.c.b16 %v6944, %v6943
        %7105 = vmatprep.subr.bf16.mxu0 0
        %7106 = vmatpush1.bf16.msra.mxu0 %v6945
        %7107 = vmatprep.subr.bf16.mxu0 0
        %7108 = vmatpush1.bf16.msra.mxu0 %v6946
        %7109 = vmatprep.subr.bf16.mxu0 0
        %7110 = vmatpush1.bf16.msra.mxu0 %v6947
        %7111 = vmatprep.subr.bf16.mxu0 0
        %7112 = vmatpush1.bf16.msra.mxu0 %v6948
        %7113 = vmatprep.subr.bf16.mxu0 0
        %7114 = vmatpush1.bf16.msra.mxu0 %v6949
        %7115 = vmatprep.subr.bf16.mxu0 0
        %7116 = vmatpush1.bf16.msra.mxu0 %v6950
        %7117 = vmatprep.subr.bf16.mxu0 0
        %7118 = vmatpush1.bf16.msra.mxu0 %v6951
        %7119 = vmatprep.subr.bf16.mxu0 0
        %7120 = vmatpush1.bf16.msra.mxu0 %v6952
        %7121 = vmatprep.subr.bf16.mxu0 0
        %7122 = vmatpush1.bf16.msra.mxu0 %v6953
        %7123 = vmatprep.subr.bf16.mxu0 0
        %7124 = vmatpush1.bf16.msra.mxu0 %v6954
        %7125 = vmatprep.subr.bf16.mxu0 0
        %7126 = vmatpush1.bf16.msra.mxu0 %v6955
        %7127 = vmatprep.subr.bf16.mxu0 0
        %7128 = vmatpush1.bf16.msra.mxu0 %v6956
        %7129 = vmatprep.subr.bf16.mxu0 0
        %7130 = vmatpush1.bf16.msra.mxu0 %v6957
        %7131 = vmatprep.subr.bf16.mxu0 0
        %7132 = vmatpush1.bf16.msra.mxu0 %v6958
        %7133 = vmatprep.subr.bf16.mxu0 0
        %7134 = vmatpush1.bf16.msra.mxu0 %v6959
        %7135 = vmatprep.subr.bf16.mxu0 0
        %7136 = vmatpush1.bf16.msra.mxu0 %v6960
        %7137 = vmatprep.mubr.bf16.mxu0 %v6449
        %7138 = vmatmul.mubr.bf16.gmra.mrb[0].mxu0 %v6448
        %v7139 = vpop.f32.mrb[0].mxu0
        %v7140 = vadd.f32 %v6623, %v7139
        %v7141 = vpop.f32.mrb[0].mxu0
        %v7142 = vpop.f32.mrb[0].mxu0
        %v7143 = vadd.f32 %v6623, %v7142
        %v7144 = vpop.f32.mrb[0].mxu0
        %7145 = vdwg.mxu0
        %7146 = vmatprep.subr.bf16.mxu0 0
        %7147 = vmatpush1.bf16.msra.mxu0 %v6961
        %7148 = vmatprep.subr.bf16.mxu0 0
        %7149 = vmatpush1.bf16.msra.mxu0 %v6962
        %7150 = vmatprep.subr.bf16.mxu0 0
        %7151 = vmatpush1.bf16.msra.mxu0 %v6963
        %7152 = vmatprep.subr.bf16.mxu0 0
        %7153 = vmatpush1.bf16.msra.mxu0 %v6964
        %7154 = vmatprep.subr.bf16.mxu0 0
        %7155 = vmatpush1.bf16.msra.mxu0 %v6965
        %7156 = vmatprep.subr.bf16.mxu0 0
        %7157 = vmatpush1.bf16.msra.mxu0 %v6966
        %7158 = vmatprep.subr.bf16.mxu0 0
        %7159 = vmatpush1.bf16.msra.mxu0 %v6967
        %7160 = vmatprep.subr.bf16.mxu0 0
        %7161 = vmatpush1.bf16.msra.mxu0 %v6968
        %7162 = vmatprep.subr.bf16.mxu0 0
        %7163 = vmatpush1.bf16.msra.mxu0 %v6969
        %7164 = vmatprep.subr.bf16.mxu0 0
        %7165 = vmatpush1.bf16.msra.mxu0 %v6970
        %7166 = vmatprep.subr.bf16.mxu0 0
        %7167 = vmatpush1.bf16.msra.mxu0 %v6971
        %7168 = vmatprep.subr.bf16.mxu0 0
        %7169 = vmatpush1.bf16.msra.mxu0 %v6972
        %7170 = vmatprep.subr.bf16.mxu0 0
        %7171 = vmatpush1.bf16.msra.mxu0 %v6973
        %7172 = vmatprep.subr.bf16.mxu0 0
        %7173 = vmatpush1.bf16.msra.mxu0 %v6974
        %7174 = vmatprep.subr.bf16.mxu0 0
        %7175 = vmatpush1.bf16.msra.mxu0 %v6975
        %7176 = vmatprep.subr.bf16.mxu0 0
        %7177 = vmatpush1.bf16.msra.mxu0 %v6976
        %7178 = vmatprep.mubr.bf16.mxu0 %v6451
        %7179 = vmatmul.mubr.bf16.gmra.mrb[0].mxu0 %v6450
        %v7180 = vpop.f32.mrb[0].mxu0
        %v7181 = vadd.f32 %v7140, %v7180
        %v7182 = vpop.f32.mrb[0].mxu0
        %v7183 = vpop.f32.mrb[0].mxu0
        %v7184 = vadd.f32 %v7143, %v7183
        %v7185 = vpop.f32.mrb[0].mxu0
        %7186 = vdwg.mxu0
        %7187 = vmatprep.subr.bf16.mxu0 0
        %7188 = vmatpush1.bf16.msra.mxu0 %v6977
        %7189 = vmatprep.subr.bf16.mxu0 0
        %7190 = vmatpush1.bf16.msra.mxu0 %v6978
        %7191 = vmatprep.subr.bf16.mxu0 0
        %7192 = vmatpush1.bf16.msra.mxu0 %v6979
        %7193 = vmatprep.subr.bf16.mxu0 0
        %7194 = vmatpush1.bf16.msra.mxu0 %v6980
        %7195 = vmatprep.subr.bf16.mxu0 0
        %7196 = vmatpush1.bf16.msra.mxu0 %v6981
        %7197 = vmatprep.subr.bf16.mxu0 0
        %7198 = vmatpush1.bf16.msra.mxu0 %v6982
        %7199 = vmatprep.subr.bf16.mxu0 0
        %7200 = vmatpush1.bf16.msra.mxu0 %v6983
        %7201 = vmatprep.subr.bf16.mxu0 0
        %7202 = vmatpush1.bf16.msra.mxu0 %v6984
        %7203 = vmatprep.subr.bf16.mxu0 0
        %7204 = vmatpush1.bf16.msra.mxu0 %v6985
        %7205 = vmatprep.subr.bf16.mxu0 0
        %7206 = vmatpush1.bf16.msra.mxu0 %v6986
        %7207 = vmatprep.subr.bf16.mxu0 0
        %7208 = vmatpush1.bf16.msra.mxu0 %v6987
        %7209 = vmatprep.subr.bf16.mxu0 0
        %7210 = vmatpush1.bf16.msra.mxu0 %v6988
        %7211 = vmatprep.subr.bf16.mxu0 0
        %7212 = vmatpush1.bf16.msra.mxu0 %v6989
        %7213 = vmatprep.subr.bf16.mxu0 0
        %7214 = vmatpush1.bf16.msra.mxu0 %v6990
        %7215 = vmatprep.subr.bf16.mxu0 0
        %7216 = vmatpush1.bf16.msra.mxu0 %v6991
        %7217 = vmatprep.subr.bf16.mxu0 0
        %7218 = vmatpush1.bf16.msra.mxu0 %v6992
        %7219 = vmatprep.mubr.bf16.mxu0 %v6453
        %7220 = vmatmul.mubr.bf16.gmra.mrb[0].mxu0 %v6452
        %v7221 = vpop.f32.mrb[0].mxu0
        %v7222 = vadd.f32 %v7181, %v7221
        %v7223 = vpop.f32.mrb[0].mxu0
        %v7224 = vpop.f32.mrb[0].mxu0
        %v7225 = vadd.f32 %v7184, %v7224
        %v7226 = vpop.f32.mrb[0].mxu0
        %7227 = vdwg.mxu0
        %7228 = vmatprep.subr.bf16.mxu0 0
        %7229 = vmatpush1.bf16.msra.mxu0 %v6993
        %7230 = vmatprep.subr.bf16.mxu0 0
        %7231 = vmatpush1.bf16.msra.mxu0 %v6994
        %7232 = vmatprep.subr.bf16.mxu0 0
        %7233 = vmatpush1.bf16.msra.mxu0 %v6995
        %7234 = vmatprep.subr.bf16.mxu0 0
        %7235 = vmatpush1.bf16.msra.mxu0 %v6996
        %7236 = vmatprep.subr.bf16.mxu0 0
        %7237 = vmatpush1.bf16.msra.mxu0 %v6997
        %7238 = vmatprep.subr.bf16.mxu0 0
        %7239 = vmatpush1.bf16.msra.mxu0 %v6998
        %7240 = vmatprep.subr.bf16.mxu0 0
        %7241 = vmatpush1.bf16.msra.mxu0 %v6999
        %7242 = vmatprep.subr.bf16.mxu0 0
        %7243 = vmatpush1.bf16.msra.mxu0 %v7000
        %7244 = vmatprep.subr.bf16.mxu0 0
        %7245 = vmatpush1.bf16.msra.mxu0 %v7001
        %7246 = vmatprep.subr.bf16.mxu0 0
        %7247 = vmatpush1.bf16.msra.mxu0 %v7002
        %7248 = vmatprep.subr.bf16.mxu0 0
        %7249 = vmatpush1.bf16.msra.mxu0 %v7003
        %7250 = vmatprep.subr.bf16.mxu0 0
        %7251 = vmatpush1.bf16.msra.mxu0 %v7004
        %7252 = vmatprep.subr.bf16.mxu0 0
        %7253 = vmatpush1.bf16.msra.mxu0 %v7005
        %7254 = vmatprep.subr.bf16.mxu0 0
        %7255 = vmatpush1.bf16.msra.mxu0 %v7006
        %7256 = vmatprep.subr.bf16.mxu0 0
        %7257 = vmatpush1.bf16.msra.mxu0 %v7007
        %7258 = vmatprep.subr.bf16.mxu0 0
        %7259 = vmatpush1.bf16.msra.mxu0 %v7008
        %7260 = vmatprep.mubr.bf16.mxu0 %v6455
        %7261 = vmatmul.mubr.bf16.gmra.mrb[0].mxu0 %v6454
        %v7262 = vpop.f32.mrb[0].mxu0
        %v7263 = vadd.f32 %v7222, %v7262
        %v7264 = vpop.f32.mrb[0].mxu0
        %v7265 = vpop.f32.mrb[0].mxu0
        %v7266 = vadd.f32 %v7225, %v7265
        %v7267 = vpop.f32.mrb[0].mxu0
        %7268 = vdwg.mxu0
        %7269 = vmatprep.subr.bf16.mxu0 0
        %7270 = vmatpush1.bf16.msra.mxu0 %v7009
        %7271 = vmatprep.subr.bf16.mxu0 0
        %7272 = vmatpush1.bf16.msra.mxu0 %v7010
        %7273 = vmatprep.subr.bf16.mxu0 0
        %7274 = vmatpush1.bf16.msra.mxu0 %v7011
        %7275 = vmatprep.subr.bf16.mxu0 0
        %7276 = vmatpush1.bf16.msra.mxu0 %v7012
        %7277 = vmatprep.subr.bf16.mxu0 0
        %7278 = vmatpush1.bf16.msra.mxu0 %v7013
        %7279 = vmatprep.subr.bf16.mxu0 0
        %7280 = vmatpush1.bf16.msra.mxu0 %v7014
        %7281 = vmatprep.subr.bf16.mxu0 0
        %7282 = vmatpush1.bf16.msra.mxu0 %v7015
        %7283 = vmatprep.subr.bf16.mxu0 0
        %7284 = vmatpush1.bf16.msra.mxu0 %v7016
        %7285 = vmatprep.subr.bf16.mxu0 0
        %7286 = vmatpush1.bf16.msra.mxu0 %v7017
        %7287 = vmatprep.subr.bf16.mxu0 0
        %7288 = vmatpush1.bf16.msra.mxu0 %v7018
        %7289 = vmatprep.subr.bf16.mxu0 0
        %7290 = vmatpush1.bf16.msra.mxu0 %v7019
        %7291 = vmatprep.subr.bf16.mxu0 0
        %7292 = vmatpush1.bf16.msra.mxu0 %v7020
        %7293 = vmatprep.subr.bf16.mxu0 0
        %7294 = vmatpush1.bf16.msra.mxu0 %v7021
        %7295 = vmatprep.subr.bf16.mxu0 0
        %7296 = vmatpush1.bf16.msra.mxu0 %v7022
        %7297 = vmatprep.subr.bf16.mxu0 0
        %7298 = vmatpush1.bf16.msra.mxu0 %v7023
        %7299 = vmatprep.subr.bf16.mxu0 0
        %7300 = vmatpush1.bf16.msra.mxu0 %v7024
        %7301 = vmatprep.mubr.bf16.mxu0 %v6457
        %7302 = vmatmul.mubr.bf16.gmra.mrb[0].mxu0 %v6456
        %v7303 = vpop.f32.mrb[0].mxu0
        %v7304 = vadd.f32 %v7263, %v7303
        %v7305 = vpop.f32.mrb[0].mxu0
        %v7306 = vpop.f32.mrb[0].mxu0
        %v7307 = vadd.f32 %v7266, %v7306
        %v7308 = vpop.f32.mrb[0].mxu0
        %7309 = vdwg.mxu0
        %7310 = vst [vmem:[%s9] sm:$0xff] %v7304
        %7311 = vst [vmem:[%s9 + $0x8] sm:$0xff] %v7307
        // Predicated region
        $region97: #{gcn_forward.1} parent=55 // pred_check
          %p7312 = pneg %p240
        $region98: #{gcn_forward.1} parent=55 // pred_check_branch
          %7314 = sbr.rel (%p7312) target = $region100
        $region99: #{gcn_forward.1} parent=55 // pred_region
          _
        $region100: #{gcn_forward.1} parent=55 // pred_fallthru
          _
        // Predicated region
        $region101: #{gcn_forward.1} parent=55 // pred_check
          %p7315 = pneg %p240
        $region102: #{gcn_forward.1} parent=55 // pred_check_branch
          %7317 = sbr.rel (%p7315) target = $region104
        $region103: #{gcn_forward.1} parent=55 // pred_region
          _
        $region104: #{gcn_forward.1} parent=55 // pred_fallthru
          _
      $region56: #{gcn_forward.1} parent=5 // pred_fallthru
        _
      %p7318 = scmp.le.s32.totalorder 2, %s18
      // Predicated region
      $region105: #{gcn_forward.1} parent=5 // pred_check
        %p7319 = pneg %p7318
      $region106: #{gcn_forward.1} parent=5 // pred_check_branch
        %7321 = sbr.rel (%p7319) target = $region108
      $region107: #{gcn_forward.1} parent=5 // pred_region
        %s7322 = ssub.s32 %s18, 2
      $region108: #{gcn_forward.1} parent=5 // pred_fallthru
        _
    $region6: #{gcn_forward.1} parent=1 // loop_footer
      %s22 = sadd.s32 1, %s18
    $region7: #{gcn_forward.1} parent=1 // loop_footer_branch
      %17 = sbr.rel target = $region3
    $region8: #{gcn_forward.1} parent=1 // loop_exit
      _
    %7323 = vsyncpa [#allocation4], 1
    %s7324 = scalar_lea.sflag [#allocation4], 1
    %7325 = vsyncpa %s7324, 1
    %7326 = vsyncpa [#allocation6], 1
    %7327 = vsyncpa [#allocation9], 1

</llo_original>
